<compile_context>
chip_gen: v7x
topology: tpu7x:2x2x1
jax: 0.10.0
libtpu: 0.0.40
codegen_flags: <defaults>
</compile_context>

<pallas_src>
import functools

import jax
import jax.numpy as jnp
from jax import lax
from jax.experimental import pallas as pl
from jax.experimental.pallas import tpu as pltpu

NUM_JOINTS = 71
FEAT_DIM = 2048
FOCAL_LENGTH = 1000.0
INPUT_SIZE = 256.0
DEPTH_FACTOR = 2.2          # bbox_3d_shape[2] * 0.001 = 2200 * 0.001
INIT_CAM = 0.9

# fused head column layout (HEAD_PAD = 640 = 5 * 128 lanes)
SHAPE_OFF = 0      # decshape            [0, 21)
PHI_OFF = 21       # decphi              [21, 129)
CAM_OFF = 129      # deccam              [129, 130)   (+ init_cam in kernel)
SIG_OFF = 130      # decsigma            [130, 200)   (sigmoid in kernel)
SIGMT_OFF = 200    # decsigma_mouthtop   [200, 201)   (sigmoid in kernel)
U_OFF = 256        # fc_coord u (70) + mouthtop u     [256, 327)  lane-aligned
V_OFF = 384        # fc_coord v (70) + mouthtop v     [384, 455)  lane-aligned
D_OFF = 512        # fc_coord d (70) + mouthtop d     [512, 583)  lane-aligned
HEAD_PAD = 640

# geometry output layout (GEO_PAD = 512 = 4 * 128 lanes)
#   [0,128) xyz-x (root-rel), [128,256) xyz-y, [256,384) xyz-z,
#   [384,512) camera_root in lanes 0..2
GEO_PAD = 512

MAX_TILE_S = 16384          # bounds the in-kernel chunk unroll / single-DMA size


# --------------------------- capability probes ----------------------------- #

_BUF1 = None   # whether pipeline_mode=pl.Buffered(1) is accepted; probed outside jit


def probe_single_buffered_weights():
    """Probe (OUTSIDE jit) whether BlockSpec(pipeline_mode=pl.Buffered(1)) works."""
    global _BUF1
    if _BUF1 is not None:
        return _BUF1
    try:
        def _probe(x_ref, o_ref):
            o_ref[...] = x_ref[...] + 1.0

        out = pl.pallas_call(
            _probe,
            grid=(2,),
            in_specs=[pl.BlockSpec((8, 128), lambda i: (0, 0),
                                   pipeline_mode=pl.Buffered(1))],
            out_specs=pl.BlockSpec((8, 128), lambda i: (i, 0)),
            out_shape=jax.ShapeDtypeStruct((16, 128), jnp.float32),
        )(jnp.zeros((8, 128), jnp.float32))
        jax.block_until_ready(out)
        _BUF1 = bool(jnp.allclose(out, 1.0))
    except Exception:
        _BUF1 = False
    return _BUF1


def _vmem_capacity_bytes():
    try:
        return int(pltpu.get_tpu_info().vmem_capacity_bytes)
    except Exception:
        return 64 << 20        # conservative fallback = v7x physical VMEM


# ------------------------------ fused kernel ------------------------------ #

def _fused_kernel(x_ref, wb_ref, bb_ref, wh_ref, bh_ref,
                  feat_ref, head_ref, geo_ref, pool_acc,
                  *, inv_hw, total_s):
    s = pl.program_id(0)
    B, C, tile_s = x_ref.shape
    n_full = tile_s // 128
    rem = tile_s - n_full * 128
    # ragged tail only possible on the multi-tile path (single-block => tile_s == S)
    ragged_grid = (total_s % tile_s) != 0

    @pl.when(s == 0)
    def _init():
        pool_acc[...] = jnp.zeros_like(pool_acc)

    def _partial_sum(mask_tail):
        # Lane-wise partial sums: lane-aligned 128-wide chunk loads + VPU adds.
        # The single XLU cross-lane reduce is deferred to the epilogue.
        part = jnp.zeros((B, C, 128), jnp.float32)
        for k in range(n_full):
            chunk = x_ref[:, :, k * 128:(k + 1) * 128].astype(jnp.float32)
            if mask_tail:
                lane = (lax.broadcasted_iota(jnp.int32, chunk.shape, 2)
                        + (s * tile_s + k * 128))
                chunk = jnp.where(lane < total_s, chunk, 0.0)
            part = part + chunk
        if rem:
            # Only on the single-block path (tile_s == S, S % 128 != 0): one-shot.
            tail = jnp.sum(x_ref[:, :, n_full * 128:].astype(jnp.float32),
                           axis=-1, keepdims=True)
            lanecol = lax.broadcasted_iota(jnp.int32, part.shape, 2)
            part = part + jnp.where(lanecol == 0, tail, 0.0)
        return part

    if ragged_grid:
        @pl.when(s < pl.num_programs(0) - 1)
        def _acc_full():
            pool_acc[0:B, 0:C, :] += _partial_sum(False)

        @pl.when(s == pl.num_programs(0) - 1)
        def _acc_tail():
            pool_acc[0:B, 0:C, :] += _partial_sum(True)
    else:
        pool_acc[0:B, 0:C, :] += _partial_sum(False)

    @pl.when(s == pl.num_programs(0) - 1)
    def _epilogue():
        # ---- stand-in backbone projection: relu(mean-pool @ Wb + bb) ----
        # TODO(synk): full HRNet feature extractor not ported.
        pooled = (jnp.sum(pool_acc[...], axis=-1) * inv_hw).astype(jnp.bfloat16)  # (BP, CP)
        x0 = jnp.maximum(
            jnp.dot(pooled, wb_ref[...], preferred_element_type=jnp.float32)
            + bb_ref[...],
            0.0,
        )                                                               # (BP, 2048) f32
        feat_ref[...] = x0[0:feat_ref.shape[0], :]

        # NOTE: rows B..BP of x0 equal relu(bb) (the padded pool rows are zero);
        # they flow through the head matmul but are sliced off before every store.

        # ---- fused 7-head linear (single full-K matmul, bf16 weights) ----
        head = jnp.dot(x0.astype(jnp.bfloat16), wh_ref[...],
                       preferred_element_type=jnp.float32) + bh_ref[...]  # (BP, 640)
        col = lax.broadcasted_iota(jnp.int32, head.shape, 1)
        sig_mask = (col >= SIG_OFF) & (col <= SIGMT_OFF)
        head = jnp.where(sig_mask, jax.nn.sigmoid(head), head)
        head = head + jnp.where(col == CAM_OFF, INIT_CAM, 0.0)          # pred_camera += init_cam
        head_ref[...] = head[0:head_ref.shape[0], :]

        # ---- uvd -> root-relative xyz + camera root (planar lane blocks) ----
        u = head[:, U_OFF:U_OFF + 128]
        v = head[:, V_OFF:V_OFF + 128]
        d = head[:, D_OFF:D_OFF + 128]
        cam = head[:, CAM_OFF:CAM_OFF + 1]                              # camScale (BP, 1)
        cam_depth = FOCAL_LENGTH / (INPUT_SIZE * cam + 1e-9)            # exact (parity w/ torch)
        k_df = (INPUT_SIZE / FOCAL_LENGTH) * (1.0 / DEPTH_FACTOR)
        zf = d * DEPTH_FACTOR + cam_depth
        xx = u * k_df * zf
        yy = v * k_df * zf
        zz = d
        rx = xx[:, 0:1] * DEPTH_FACTOR
        ry = yy[:, 0:1] * DEPTH_FACTOR
        rz = zz[:, 0:1] * DEPTH_FACTOR + cam_depth
        gcol = lax.broadcasted_iota(jnp.int32, u.shape, 1)
        root = jnp.where(gcol == 0, rx,
                         jnp.where(gcol == 1, ry,
                                   jnp.where(gcol == 2, rz, 0.0)))
        geo = jnp.concatenate(
            [xx - xx[:, 0:1], yy - yy[:, 0:1], zz - zz[:, 0:1], root], axis=-1)
        geo_ref[...] = geo[0:geo_ref.shape[0], :]


# ------------------------------ parameters -------------------------------- #

def init_params(key, in_channels):
    """Random weights in the PyTorch layer shapes, packed for the fused kernel."""
    ks = jax.random.split(key, 16)

    def lin(kw, kb, fi, fo):
        w = jax.random.normal(kw, (fi, fo), jnp.float32) * 0.02
        b = jax.random.normal(kb, (fo,), jnp.float32) * 0.02
        return w, b

    Wb, bb = lin(ks[0], ks[1], in_channels, FEAT_DIM)     # stand-in backbone proj
    Wsh, bsh = lin(ks[2], ks[3], FEAT_DIM, 21)            # decshape
    Wph, bph = lin(ks[4], ks[5], FEAT_DIM, 108)           # decphi
    Wcm, bcm = lin(ks[6], ks[7], FEAT_DIM, 1)             # deccam
    Wsg, bsg = lin(ks[8], ks[9], FEAT_DIM, 70)            # decsigma
    Wco, bco = lin(ks[10], ks[11], FEAT_DIM, 210)         # fc_coord (joint-interleaved)
    Wct, bct = lin(ks[12], ks[13], FEAT_DIM, 3)           # fc_coord_mouthtop
    Wst, bst = lin(ks[14], ks[15], FEAT_DIM, 1)           # decsigma_mouthtop

    CP = max(128, ((in_channels + 127) // 128) * 128)
    Wb_p = jnp.zeros((CP, FEAT_DIM), jnp.float32).at[:in_channels].set(Wb)

    Wh = jnp.zeros((FEAT_DIM, HEAD_PAD), jnp.float32)
    bh = jnp.zeros((1, HEAD_PAD), jnp.float32)

    def put(W, b, w, bvec, off):
        n = w.shape[1]
        return (W.at[:, off:off + n].set(w),
                b.at[:, off:off + n].set(bvec.reshape(1, n)))

    Wh, bh = put(Wh, bh, Wsh, bsh, SHAPE_OFF)
    Wh, bh = put(Wh, bh, Wph, bph, PHI_OFF)
    Wh, bh = put(Wh, bh, Wcm, bcm, CAM_OFF)
    Wh, bh = put(Wh, bh, Wsg, bsg, SIG_OFF)
    Wh, bh = put(Wh, bh, Wst, bst, SIGMT_OFF)
    # planar uvd packing: column j*3+a of fc_coord is coord `a` of joint j
    for axis, off in ((0, U_OFF), (1, V_OFF), (2, D_OFF)):
        Wh = Wh.at[:, off:off + 70].set(Wco[:, axis::3])
        Wh = Wh.at[:, off + 70].set(Wct[:, axis])
        bh = bh.at[:, off:off + 70].set(bco[axis::3].reshape(1, 70))
        bh = bh.at[0, off + 70].set(bct[axis])

    return {
        "Wb": Wb_p.astype(jnp.bfloat16),        # (CP, 2048) bf16
        "bb": bb.reshape(1, FEAT_DIM),          # (1, 2048)  f32
        "Wh": Wh.astype(jnp.bfloat16),          # (2048, 640) bf16
        "bh": bh,                               # (1, 640)   f32
    }


# ------------------------------ forward pass ------------------------------ #

def hrnet_smplx_forward(x, params):
    """Forward pass (flip_test=False, no bboxes / gt_labels kwargs)."""
    B, C, H, W = x.shape
    S = H * W
    wb, bb, wh, bh = params["Wb"], params["bb"], params["Wh"], params["bh"]
    CP = wb.shape[0]
    BP = max(8, ((B + 7) // 8) * 8)       # matmul M pad only (pool rows B..BP stay 0)

    # Stream x in its native dtype (no host-side cast/copy); cast in-kernel.
    xr = x.reshape(B, C, S)
    x_item = xr.dtype.itemsize

    # --- generation-aware VMEM budget -> spatial tile size ---
    use_buf1 = bool(_BUF1) if _BUF1 is not None else False
    cap = _vmem_capacity_bytes()
    vmem_target = min(int(cap * 0.70), 96 << 20)

    weight_bytes = (wb.size * wb.dtype.itemsize + wh.size * wh.dtype.itemsize
                    + bb.size * 4 + bh.size * 4)
    if not use_buf1:
        weight_bytes *= 2                               # double-buffered fallback
    out_bytes = 2 * B * (FEAT_DIM + HEAD_PAD + GEO_PAD) * 4
    acc_bytes = BP * CP * 128 * 4
    resident = weight_bytes + out_bytes + acc_bytes + (4 << 20)   # + compiler scratch

    x_budget = max(vmem_target - resident, 2 << 20)
    tile_s = int(x_budget // (2 * B * C * x_item))      # x tile is double-buffered
    tile_s = max(128, min((tile_s // 128) * 128, MAX_TILE_S))
    if tile_s >= S:
        tile_s = S                                      # single full block, no tail
    num_s = int(pl.cdiv(S, tile_s))

    vmem_limit = int(min(cap,
                         max(resident + 2 * B * C * tile_s * x_item + (8 << 20),
                             32 << 20)))

    wkw = {"pipeline_mode": pl.Buffered(1)} if use_buf1 else {}

    feat, head, geo = pl.pallas_call(
        functools.partial(_fused_kernel, inv_hw=1.0 / float(S), total_s=S),
        grid=(num_s,),
        in_specs=[
            pl.BlockSpec((B, C, tile_s), lambda s: (0, 0, s)),
            pl.BlockSpec((CP, FEAT_DIM), lambda s: (0, 0), **wkw),
            pl.BlockSpec((1, FEAT_DIM), lambda s: (0, 0), **wkw),
            pl.BlockSpec((FEAT_DIM, HEAD_PAD), lambda s: (0, 0), **wkw),
            pl.BlockSpec((1, HEAD_PAD), lambda s: (0, 0), **wkw),
        ],
        out_specs=(
            pl.BlockSpec((B, FEAT_DIM), lambda s: (0, 0)),
            pl.BlockSpec((B, HEAD_PAD), lambda s: (0, 0)),
            pl.BlockSpec((B, GEO_PAD), lambda s: (0, 0)),
        ),
        out_shape=(
            jax.ShapeDtypeStruct((B, FEAT_DIM), jnp.float32),
            jax.ShapeDtypeStruct((B, HEAD_PAD), jnp.float32),
            jax.ShapeDtypeStruct((B, GEO_PAD), jnp.float32),
        ),
        scratch_shapes=[pltpu.VMEM((BP, CP, 128), jnp.float32)],
        compiler_params=pltpu.CompilerParams(
            dimension_semantics=("arbitrary",),
            vmem_limit_bytes=vmem_limit),
    )(xr, wb, bb, wh, bh)

    # ---- unpack the packed head / geometry blocks (cheap host slices) ----
    h = head
    pred_shape_full = h[:, SHAPE_OFF:SHAPE_OFF + 21]
    pred_beta = pred_shape_full[:, :11]
    pred_expression = pred_shape_full[:, 11:]
    pred_phi = h[:, PHI_OFF:PHI_OFF + 108].reshape(B, 54, 2)
    pred_camera = h[:, CAM_OFF:CAM_OFF + 1]                  # already + init_cam
    out_sigma = jnp.concatenate(
        [h[:, SIG_OFF:SIG_OFF + 70], h[:, SIGMT_OFF:SIGMT_OFF + 1]],
        axis=-1)[..., None]                                  # (B, 71, 1), already sigmoid
    out_coord = jnp.stack(
        [h[:, U_OFF:U_OFF + NUM_JOINTS],
         h[:, V_OFF:V_OFF + NUM_JOINTS],
         h[:, D_OFF:D_OFF + NUM_JOINTS]], axis=-1)           # (B, 71, 3)

    maxvals = 1.0 - out_sigma
    pred_uvd_jts = out_coord

    # hand_relative defaults to False -> relative hand uvd (out_coord unchanged)
    left_hand_uvd = out_coord[:, 25:40, :] - out_coord[:, 20:21, :]
    right_hand_uvd = out_coord[:, 40:55, :] - out_coord[:, 21:22, :]

    # camScale init = pred_camera[:, :1]; update_scale() needs SMPLXLayer.hybrik
    # (not ported) and its failure is swallowed in the reference (except
    # RuntimeError), so camScale stays equal to pred_camera.
    # TODO(synk): update_scale ICE loop / SMPLX layer not ported.
    camScale = pred_camera[:, :1][:, None, :]                # (B, 1, 1)

    pred_xyz_jts = jnp.stack(
        [geo[:, 0:NUM_JOINTS],
         geo[:, 128:128 + NUM_JOINTS],
         geo[:, 256:256 + NUM_JOINTS]], axis=-1)             # (B, 71, 3) root-relative
    camera_root = geo[:, 384:387]                            # (B, 3)

    # TODO(synk): SMPLXLayer.hybrik outputs (pred_vertices, pred_xyz_full,
    # pred_theta_quat/mat, pred_xyz_hybrik_struct, transl, pred_uv_full) and the
    # gt_labels branch need the SMPLX model files and are not translatable.

    return {
        "pred_phi": pred_phi,
        "pred_shape_full": pred_shape_full,
        "pred_beta": pred_beta,
        "pred_expression": pred_expression,
        "pred_lh_uvd": left_hand_uvd.reshape(B, 15, 3),
        "pred_rh_uvd": right_hand_uvd.reshape(B, 15, 3),
        "pred_uvd_jts": pred_uvd_jts.reshape(B, -1),
        "pred_xyz_hybrik": pred_xyz_jts.reshape(B, -1),
        "pred_sigma": out_sigma,
        "scores": 1.0 - out_sigma,
        "maxvals": maxvals,
        "cam_scale": camScale[:, 0],
        "cam_root": camera_root,
        "img_feat": feat,
        "pred_camera": pred_camera,
    }


if __name__ == "__main__":
    # probe (outside jit) whether single-buffered weight BlockSpecs are supported
    probe_single_buffered_weights()

    key = jax.random.PRNGKey(0)
    kx, kp = jax.random.split(key)
    B, C, H, W = 2, 4, 16, 16
    x = jax.random.normal(kx, (B, C, H, W), dtype=jnp.float32)
    params = init_params(kp, C)
    out = jax.jit(hrnet_smplx_forward)(x, params)
    jax.block_until_ready(out)
    print("KERNEL_OK")
</pallas_src>

<mosaic_0001>
module attributes {stable_mosaic.version = 11 : i64} {
  func.func @_probe(%arg0: i32, %arg1: memref<8x128xf32, #tpu.memory_space<vmem>>, %arg2: memref<8x128xf32, #tpu.memory_space<vmem>>) attributes {dimension_semantics = [#tpu.dimension_semantics<arbitrary>], iteration_bounds = array<i64: 2>, scalar_prefetch = 0 : i64, scratch_operands = 0 : i64, tpu.core_type = #tpu.core_type<tc>, window_params = [{pipeline_mode = #tpu.pipeline_mode<synchronous>, transform_indices = @transform_0, window_bounds = array<i64: 8, 128>}, {transform_indices = @transform_1, window_bounds = array<i64: 8, 128>}]} {
    %c0 = arith.constant 0 : index
    %c0_0 = arith.constant 0 : index
    %0 = vector.load %arg1[%c0, %c0_0] : memref<8x128xf32, #tpu.memory_space<vmem>>, vector<8x128xf32>
    %cst = arith.constant 1.000000e+00 : f32
    %1 = vector.broadcast %cst : f32 to vector<8x128xf32>
    %2 = arith.addf %0, %1 : vector<8x128xf32>
    %c0_1 = arith.constant 0 : index
    %c0_2 = arith.constant 0 : index
    %3 = vector.load %arg2[%c0_1, %c0_2] : memref<8x128xf32, #tpu.memory_space<vmem>>, vector<8x128xf32>
    tpu.vector_store %arg2[%c0_1, %c0_2], %2 {strides = array<i32>} : memref<8x128xf32, #tpu.memory_space<vmem>>, vector<8x128xf32>,
    return
  }
  func.func @transform_0(%arg0: i32) -> (i32, i32) {
    %c0_i32 = arith.constant 0 : i32
    %c0_i32_0 = arith.constant 0 : i32
    %c0_i32_1 = arith.constant 0 : i32
    return %c0_i32, %c0_i32_0 : i32, i32
  }
  func.func @transform_1(%arg0: i32) -> (i32, i32) {
    %c0_i32 = arith.constant 0 : i32
    %c0_i32_0 = arith.constant 0 : i32
    return %arg0, %c0_i32 : i32, i32
  }
}

module attributes {stable_mosaic.version = 11 : i64} {
  func.func @_fused_kernel(%arg0: i32, %arg1: memref<2x4x256xf32, #tpu.memory_space<vmem>>, %arg2: memref<128x2048xbf16, #tpu.memory_space<vmem>>, %arg3: memref<1x2048xf32, #tpu.memory_space<vmem>>, %arg4: memref<2048x640xbf16, #tpu.memory_space<vmem>>, %arg5: memref<1x640xf32, #tpu.memory_space<vmem>>, %arg6: memref<2x2048xf32, #tpu.memory_space<vmem>>, %arg7: memref<2x640xf32, #tpu.memory_space<vmem>>, %arg8: memref<2x512xf32, #tpu.memory_space<vmem>>, %arg9: memref<8x128x128xf32, #tpu.memory_space<vmem>>) attributes {dimension_semantics = [#tpu.dimension_semantics<arbitrary>], iteration_bounds = array<i64: 1>, scalar_prefetch = 0 : i64, scratch_operands = 1 : i64, tpu.core_type = #tpu.core_type<tc>, window_params = [{transform_indices = @transform_0, window_bounds = array<i64: 2, 4, 256>}, {pipeline_mode = #tpu.pipeline_mode<synchronous>, transform_indices = @transform_1, window_bounds = array<i64: 128, 2048>}, {pipeline_mode = #tpu.pipeline_mode<synchronous>, transform_indices = @transform_2, window_bounds = array<i64: 1, 2048>}, {pipeline_mode = #tpu.pipeline_mode<synchronous>, transform_indices = @transform_3, window_bounds = array<i64: 2048, 640>}, {pipeline_mode = #tpu.pipeline_mode<synchronous>, transform_indices = @transform_4, window_bounds = array<i64: 1, 640>}, {pipeline_mode = #tpu.pipeline_mode<synchronous>, transform_indices = @transform_5, window_bounds = array<i64: 2, 2048>}, {pipeline_mode = #tpu.pipeline_mode<synchronous>, transform_indices = @transform_6, window_bounds = array<i64: 2, 640>}, {pipeline_mode = #tpu.pipeline_mode<synchronous>, transform_indices = @transform_7, window_bounds = array<i64: 2, 512>}]} {
    %c0_i32 = arith.constant 0 : i32
    %0 = arith.cmpi eq, %arg0, %c0_i32 : i32
    %1 = arith.extui %0 : i1 to i32
    %c0_i32_0 = arith.constant 0 : i32
    %2 = arith.cmpi ne, %1, %c0_i32_0 : i32
    scf.if %2 {
      %cst_13 = arith.constant 0.000000e+00 : f32
      %14 = vector.broadcast %cst_13 : f32 to vector<8x128x128xf32>
      %c0_14 = arith.constant 0 : index
      %c0_15 = arith.constant 0 : index
      %c0_16 = arith.constant 0 : index
      %15 = vector.load %arg9[%c0_14, %c0_15, %c0_16] : memref<8x128x128xf32, #tpu.memory_space<vmem>>, vector<8x128x128xf32>
      tpu.vector_store %arg9[%c0_14, %c0_15, %c0_16], %14 {strides = array<i32>} : memref<8x128x128xf32, #tpu.memory_space<vmem>>, vector<8x128x128xf32>,
    } else {
    }
    %c0 = arith.constant 0 : index
    %c0_1 = arith.constant 0 : index
    %c0_2 = arith.constant 0 : index
    %3 = vector.load %arg9[%c0, %c0_1, %c0_2] : memref<8x128x128xf32, #tpu.memory_space<vmem>>, vector<2x4x128xf32>
    %cst = arith.constant 0.000000e+00 : f32
    %4 = vector.broadcast %cst : f32 to vector<2x4x128xf32>
    %c0_3 = arith.constant 0 : index
    %c0_4 = arith.constant 0 : index
    %c0_5 = arith.constant 0 : index
    %5 = vector.load %arg1[%c0_3, %c0_4, %c0_5] : memref<2x4x256xf32, #tpu.memory_space<vmem>>, vector<2x4x128xf32>
    %6 = arith.addf %4, %5 : vector<2x4x128xf32>
    %c0_6 = arith.constant 0 : index
    %c0_7 = arith.constant 0 : index
    %c128 = arith.constant 128 : index
    %7 = vector.load %arg1[%c0_6, %c0_7, %c128] : memref<2x4x256xf32, #tpu.memory_space<vmem>>, vector<2x4x128xf32>
    %8 = arith.addf %6, %7 : vector<2x4x128xf32>
    %9 = arith.addf %3, %8 : vector<2x4x128xf32>
    %c0_8 = arith.constant 0 : index
    %c0_9 = arith.constant 0 : index
    %c0_10 = arith.constant 0 : index
    %10 = vector.load %arg9[%c0_8, %c0_9, %c0_10] : memref<8x128x128xf32, #tpu.memory_space<vmem>>, vector<2x4x128xf32>
    tpu.vector_store %arg9[%c0_8, %c0_9, %c0_10], %9 {strides = array<i32>} : memref<8x128x128xf32, #tpu.memory_space<vmem>>, vector<2x4x128xf32>,
    %c0_i32_11 = arith.constant 0 : i32
    %11 = arith.cmpi eq, %arg0, %c0_i32_11 : i32
    %12 = arith.extui %11 : i1 to i32
    %c0_i32_12 = arith.constant 0 : i32
    %13 = arith.cmpi ne, %12, %c0_i32_12 : i32
    scf.if %13 {
      %c0_13 = arith.constant 0 : index
      %c0_14 = arith.constant 0 : index
      %c0_15 = arith.constant 0 : index
      %14 = vector.load %arg9[%c0_13, %c0_14, %c0_15] : memref<8x128x128xf32, #tpu.memory_space<vmem>>, vector<8x128x128xf32>
      %cst_16 = arith.constant dense<0.000000e+00> : vector<8x128xf32>
      %15 = vector.multi_reduction <add>, %14, %cst_16 [2] : vector<8x128x128xf32> to vector<8x128xf32>
      %cst_17 = arith.constant 3.906250e-03 : f32
      %16 = vector.broadcast %cst_17 : f32 to vector<8x128xf32>
      %17 = arith.mulf %15, %16 : vector<8x128xf32>
      %18 = arith.truncf %17 : vector<8x128xf32> to vector<8x128xbf16>
      %c0_18 = arith.constant 0 : index
      %c0_19 = arith.constant 0 : index
      %19 = vector.load %arg2[%c0_18, %c0_19] : memref<128x2048xbf16, #tpu.memory_space<vmem>>, vector<128x2048xbf16>
      %cst_20 = arith.constant dense<0.000000e+00> : vector<8x2048xf32>
      %20 = tpu.matmul %18, %19, %cst_20 {dimension_numbers = #tpu.dot_dimension_numbers<[1], [0], [0], [1], [0, 0, 1, 1], [], []>} : vector<8x128xbf16>, vector<128x2048xbf16>, vector<8x2048xf32> -> vector<8x2048xf32>
      %c0_21 = arith.constant 0 : index
      %c0_22 = arith.constant 0 : index
      %21 = vector.load %arg3[%c0_21, %c0_22] : memref<1x2048xf32, #tpu.memory_space<vmem>>, vector<1x2048xf32>
      %22 = vector.broadcast %21 : vector<1x2048xf32> to vector<8x2048xf32>
      %23 = arith.addf %20, %22 : vector<8x2048xf32>
      %cst_23 = arith.constant 0.000000e+00 : f32
      %24 = vector.broadcast %cst_23 : f32 to vector<8x2048xf32>
      %25 = arith.maximumf %23, %24 : vector<8x2048xf32>
      %26 = vector.extract_strided_slice %25 {offsets = [0, 0], sizes = [2, 2048], strides = [1, 1]} : vector<8x2048xf32> to vector<2x2048xf32>
      %c0_24 = arith.constant 0 : index
      %c0_25 = arith.constant 0 : index
      %27 = vector.load %arg6[%c0_24, %c0_25] : memref<2x2048xf32, #tpu.memory_space<vmem>>, vector<2x2048xf32>
      tpu.vector_store %arg6[%c0_24, %c0_25], %26 {strides = array<i32>} : memref<2x2048xf32, #tpu.memory_space<vmem>>, vector<2x2048xf32>,
      %28 = arith.truncf %25 : vector<8x2048xf32> to vector<8x2048xbf16>
      %c0_26 = arith.constant 0 : index
      %c0_27 = arith.constant 0 : index
      %29 = vector.load %arg4[%c0_26, %c0_27] : memref<2048x640xbf16, #tpu.memory_space<vmem>>, vector<2048x640xbf16>
      %cst_28 = arith.constant dense<0.000000e+00> : vector<8x640xf32>
      %30 = tpu.matmul %28, %29, %cst_28 {dimension_numbers = #tpu.dot_dimension_numbers<[1], [0], [0], [1], [0, 0, 1, 1], [], []>} : vector<8x2048xbf16>, vector<2048x640xbf16>, vector<8x640xf32> -> vector<8x640xf32>
      %c0_29 = arith.constant 0 : index
      %c0_30 = arith.constant 0 : index
      %31 = vector.load %arg5[%c0_29, %c0_30] : memref<1x640xf32, #tpu.memory_space<vmem>>, vector<1x640xf32>
      %32 = vector.broadcast %31 : vector<1x640xf32> to vector<8x640xf32>
      %33 = arith.addf %30, %32 : vector<8x640xf32>
      %34 = tpu.iota {dimensions = array<i32: 1>} : vector<8x640xi32>
      %c130_i32 = arith.constant 130 : i32
      %35 = vector.broadcast %c130_i32 : i32 to vector<8x640xi32>
      %36 = arith.cmpi sge, %34, %35 : vector<8x640xi32>
      %c200_i32 = arith.constant 200 : i32
      %37 = vector.broadcast %c200_i32 : i32 to vector<8x640xi32>
      %38 = arith.cmpi sle, %34, %37 : vector<8x640xi32>
      %39 = arith.andi %36, %38 : vector<8x640xi1>
      %40 = arith.negf %33 : vector<8x640xf32>
      %41 = math.exp %40 : vector<8x640xf32>
      %cst_31 = arith.constant 1.000000e+00 : f32
      %42 = vector.broadcast %cst_31 : f32 to vector<8x640xf32>
      %43 = arith.addf %42, %41 : vector<8x640xf32>
      %44 = arith.divf %42, %43 : vector<8x640xf32>
      %45 = arith.select %39, %44, %33 : vector<8x640xi1>, vector<8x640xf32>
      %c129_i32 = arith.constant 129 : i32
      %46 = vector.broadcast %c129_i32 : i32 to vector<8x640xi32>
      %47 = arith.cmpi eq, %34, %46 : vector<8x640xi32>
      %cst_32 = arith.constant 0.899999976 : f32
      %cst_33 = arith.constant 0.000000e+00 : f32
      %48 = vector.broadcast %cst_32 : f32 to vector<8x640xf32>
      %49 = vector.broadcast %cst_33 : f32 to vector<8x640xf32>
      %50 = arith.select %47, %48, %49 : vector<8x640xi1>, vector<8x640xf32>
      %51 = arith.addf %45, %50 : vector<8x640xf32>
      %52 = vector.extract_strided_slice %51 {offsets = [0, 0], sizes = [2, 640], strides = [1, 1]} : vector<8x640xf32> to vector<2x640xf32>
      %c0_34 = arith.constant 0 : index
      %c0_35 = arith.constant 0 : index
      %53 = vector.load %arg7[%c0_34, %c0_35] : memref<2x640xf32, #tpu.memory_space<vmem>>, vector<2x640xf32>
      tpu.vector_store %arg7[%c0_34, %c0_35], %52 {strides = array<i32>} : memref<2x640xf32, #tpu.memory_space<vmem>>, vector<2x640xf32>,
      %54 = vector.extract_strided_slice %51 {offsets = [0, 256], sizes = [8, 128], strides = [1, 1]} : vector<8x640xf32> to vector<8x128xf32>
      %55 = vector.extract_strided_slice %51 {offsets = [0, 384], sizes = [8, 128], strides = [1, 1]} : vector<8x640xf32> to vector<8x128xf32>
      %56 = vector.extract_strided_slice %51 {offsets = [0, 512], sizes = [8, 128], strides = [1, 1]} : vector<8x640xf32> to vector<8x128xf32>
      %57 = vector.extract_strided_slice %51 {offsets = [0, 129], sizes = [8, 1], strides = [1, 1]} : vector<8x640xf32> to vector<8x1xf32>
      %cst_36 = arith.constant 2.560000e+02 : f32
      %58 = vector.broadcast %cst_36 : f32 to vector<8x1xf32>
      %59 = arith.mulf %58, %57 : vector<8x1xf32>
      %cst_37 = arith.constant 9.99999971E-10 : f32
      %60 = vector.broadcast %cst_37 : f32 to vector<8x1xf32>
      %61 = arith.addf %59, %60 : vector<8x1xf32>
      %cst_38 = arith.constant 1.000000e+03 : f32
      %62 = vector.broadcast %cst_38 : f32 to vector<8x1xf32>
      %63 = arith.divf %62, %61 : vector<8x1xf32>
      %cst_39 = arith.constant 2.200000e+00 : f32
      %64 = vector.broadcast %cst_39 : f32 to vector<8x128xf32>
      %65 = arith.mulf %56, %64 : vector<8x128xf32>
      %66 = vector.broadcast %63 : vector<8x1xf32> to vector<8x128xf32>
      %67 = arith.addf %65, %66 : vector<8x128xf32>
      %cst_40 = arith.constant 0.116363637 : f32
      %68 = vector.broadcast %cst_40 : f32 to vector<8x128xf32>
      %69 = arith.mulf %54, %68 : vector<8x128xf32>
      %70 = arith.mulf %69, %67 : vector<8x128xf32>
      %cst_41 = arith.constant 0.116363637 : f32
      %71 = vector.broadcast %cst_41 : f32 to vector<8x128xf32>
      %72 = arith.mulf %55, %71 : vector<8x128xf32>
      %73 = arith.mulf %72, %67 : vector<8x128xf32>
      %74 = vector.extract_strided_slice %70 {offsets = [0, 0], sizes = [8, 1], strides = [1, 1]} : vector<8x128xf32> to vector<8x1xf32>
      %cst_42 = arith.constant 2.200000e+00 : f32
      %75 = vector.broadcast %cst_42 : f32 to vector<8x1xf32>
      %76 = arith.mulf %74, %75 : vector<8x1xf32>
      %77 = vector.extract_strided_slice %73 {offsets = [0, 0], sizes = [8, 1], strides = [1, 1]} : vector<8x128xf32> to vector<8x1xf32>
      %cst_43 = arith.constant 2.200000e+00 : f32
      %78 = vector.broadcast %cst_43 : f32 to vector<8x1xf32>
      %79 = arith.mulf %77, %78 : vector<8x1xf32>
      %80 = vector.extract_strided_slice %56 {offsets = [0, 0], sizes = [8, 1], strides = [1, 1]} : vector<8x128xf32> to vector<8x1xf32>
      %cst_44 = arith.constant 2.200000e+00 : f32
      %81 = vector.broadcast %cst_44 : f32 to vector<8x1xf32>
      %82 = arith.mulf %80, %81 : vector<8x1xf32>
      %83 = arith.addf %82, %63 : vector<8x1xf32>
      %84 = tpu.iota {dimensions = array<i32: 1>} : vector<8x128xi32>
      %c0_i32_45 = arith.constant 0 : i32
      %85 = vector.broadcast %c0_i32_45 : i32 to vector<8x128xi32>
      %86 = arith.cmpi eq, %84, %85 : vector<8x128xi32>
      %c1_i32 = arith.constant 1 : i32
      %87 = vector.broadcast %c1_i32 : i32 to vector<8x128xi32>
      %88 = arith.cmpi eq, %84, %87 : vector<8x128xi32>
      %c2_i32 = arith.constant 2 : i32
      %89 = vector.broadcast %c2_i32 : i32 to vector<8x128xi32>
      %90 = arith.cmpi eq, %84, %89 : vector<8x128xi32>
      %cst_46 = arith.constant 0.000000e+00 : f32
      %91 = vector.shape_cast %83 : vector<8x1xf32> to vector<8x1xf32>
      %92 = vector.broadcast %91 : vector<8x1xf32> to vector<8x128xf32>
      %93 = vector.broadcast %cst_46 : f32 to vector<8x128xf32>
      %94 = arith.select %90, %92, %93 : vector<8x128xi1>, vector<8x128xf32>
      %95 = vector.shape_cast %79 : vector<8x1xf32> to vector<8x1xf32>
      %96 = vector.broadcast %95 : vector<8x1xf32> to vector<8x128xf32>
      %97 = arith.select %88, %96, %94 : vector<8x128xi1>, vector<8x128xf32>
      %98 = vector.shape_cast %76 : vector<8x1xf32> to vector<8x1xf32>
      %99 = vector.broadcast %98 : vector<8x1xf32> to vector<8x128xf32>
      %100 = arith.select %86, %99, %97 : vector<8x128xi1>, vector<8x128xf32>
      %101 = vector.extract_strided_slice %70 {offsets = [0, 0], sizes = [8, 1], strides = [1, 1]} : vector<8x128xf32> to vector<8x1xf32>
      %102 = vector.broadcast %101 : vector<8x1xf32> to vector<8x128xf32>
      %103 = arith.subf %70, %102 : vector<8x128xf32>
      %104 = vector.extract_strided_slice %73 {offsets = [0, 0], sizes = [8, 1], strides = [1, 1]} : vector<8x128xf32> to vector<8x1xf32>
      %105 = vector.broadcast %104 : vector<8x1xf32> to vector<8x128xf32>
      %106 = arith.subf %73, %105 : vector<8x128xf32>
      %107 = vector.extract_strided_slice %56 {offsets = [0, 0], sizes = [8, 1], strides = [1, 1]} : vector<8x128xf32> to vector<8x1xf32>
      %108 = vector.broadcast %107 : vector<8x1xf32> to vector<8x128xf32>
      %109 = arith.subf %56, %108 : vector<8x128xf32>
      %110 = tpu.concatenate %103, %106, %109, %100 in 1 : vector<8x128xf32>, vector<8x128xf32>, vector<8x128xf32>, vector<8x128xf32> -> vector<8x512xf32>
      %111 = vector.extract_strided_slice %110 {offsets = [0, 0], sizes = [2, 512], strides = [1, 1]} : vector<8x512xf32> to vector<2x512xf32>
      %c0_47 = arith.constant 0 : index
      %c0_48 = arith.constant 0 : index
      %112 = vector.load %arg8[%c0_47, %c0_48] : memref<2x512xf32, #tpu.memory_space<vmem>>, vector<2x512xf32>
      tpu.vector_store %arg8[%c0_47, %c0_48], %111 {strides = array<i32>} : memref<2x512xf32, #tpu.memory_space<vmem>>, vector<2x512xf32>,
    } else {
    }
    return
  }
  func.func @transform_0(%arg0: i32) -> (i32, i32, i32) {
    %c0_i32 = arith.constant 0 : i32
    %c0_i32_0 = arith.constant 0 : i32
    %c0_i32_1 = arith.constant 0 : i32
    return %c0_i32, %c0_i32_0, %arg0 : i32, i32, i32
  }
  func.func @transform_1(%arg0: i32) -> (i32, i32) {
    %c0_i32 = arith.constant 0 : i32
    %c0_i32_0 = arith.constant 0 : i32
    %c0_i32_1 = arith.constant 0 : i32
    return %c0_i32, %c0_i32_0 : i32, i32
  }
  func.func @transform_2(%arg0: i32) -> (i32, i32) {
    %c0_i32 = arith.constant 0 : i32
    %c0_i32_0 = arith.constant 0 : i32
    %c0_i32_1 = arith.constant 0 : i32
    return %c0_i32, %c0_i32_0 : i32, i32
  }
  func.func @transform_3(%arg0: i32) -> (i32, i32) {
    %c0_i32 = arith.constant 0 : i32
    %c0_i32_0 = arith.constant 0 : i32
    %c0_i32_1 = arith.constant 0 : i32
    return %c0_i32, %c0_i32_0 : i32, i32
  }
  func.func @transform_4(%arg0: i32) -> (i32, i32) {
    %c0_i32 = arith.constant 0 : i32
    %c0_i32_0 = arith.constant 0 : i32
    %c0_i32_1 = arith.constant 0 : i32
    return %c0_i32, %c0_i32_0 : i32, i32
  }
  func.func @transform_5(%arg0: i32) -> (i32, i32) {
    %c0_i32 = arith.constant 0 : i32
    %c0_i32_0 = arith.constant 0 : i32
    %c0_i32_1 = arith.constant 0 : i32
    return %c0_i32, %c0_i32_0 : i32, i32
  }
  func.func @transform_6(%arg0: i32) -> (i32, i32) {
    %c0_i32 = arith.constant 0 : i32
    %c0_i32_0 = arith.constant 0 : i32
    %c0_i32_1 = arith.constant 0 : i32
    return %c0_i32, %c0_i32_0 : i32, i32
  }
  func.func @transform_7(%arg0: i32) -> (i32, i32) {
    %c0_i32 = arith.constant 0 : i32
    %c0_i32_0 = arith.constant 0 : i32
    %c0_i32_1 = arith.constant 0 : i32
    return %c0_i32, %c0_i32_0 : i32, i32
  }
}

</mosaic_0001>

<llo_original>
// kernel: tpu_custom_call.1
$region0: #{tpu_custom_call.1}
  #allocation0 [shape = 'u32[]', space=smem, size = 0x4, offset = 0x4, fixed_abs, tag = 'smem constant byte address 0x4 - core index']
  #allocation1 [shape = 'u32[144,128]{1,0:T(1,128)}', space=vmem, size = 0x12000, scoped, tag = 'internal scratch']
  %s0 = inlined_call_operand.hbm [shape: f32[8,128], index: 0, kind: input, shape index: {}]
  %s1 = inlined_call_operand.hbm [shape: f32[16,128], index: 1, kind: output, shape index: {}]
  %s2 = sld [smem:[#allocation0]]
  $region41: #{tpu_custom_call.1} parent=0
    _
  %s4 = ssub.s32 1, %s2
  %s5 = scalar_select 0, %s4, %s2
  $region1: #{tpu_custom_call.1} parent=0
    #allocation2 [shape = 'u8[4096]{0}', space=vmem, size = 0x1000, scoped, tag = 'input window, operand 0, single buffered']
    #allocation3 [shape = 's32[2]{0}', space=sflag, size = 0x8, scoped, tag = 'scoped memory for tpu_custom_call.1']
    #allocation4 [shape = 's32[2]{0}', space=sflag, size = 0x8, scoped, tag = 'scoped memory for tpu_custom_call.1']
    #allocation5 [shape = 'u8[8192]{0}', space=vmem, size = 0x2000, scoped, tag = 'output window, operand 0']
    %6 = vsyncpa [#allocation3], 0
    %7 = vsyncpa [#allocation4], 0
    %s8 = scalar_lea.sflag [#allocation4], 1
    %9 = vsyncpa %s8, 0
    loop: start=0, step=1, limit=4
    $region2: #{tpu_custom_call.1} parent=1 // loop_pre_header
      _
    $region3: #{tpu_custom_call.1} parent=1 // loop_header
      %s11 = sphi 0, %s15
      %p12 = scmp.ge.s32.totalorder %s11, 4
      %s19 = sphi 0, %s19
      %s21 = sphi 0, %s19
      %s22 = sphi 0, %s21
      %s36 = sphi 0, %s22
      %s42 = sphi 0, %s44
      %s45 = sphi 0, %s42
      %s46 = sphi 0, %s45
      %s62 = sphi 0, %s46
    $region4: #{tpu_custom_call.1} parent=1 // loop_header_branch
      %14 = sbr.rel (%p12) target = $region8
    $region5: #{tpu_custom_call.1} parent=1 // loop_body
      %s16 = ssub.s32 %s11, 1
      %s17 = ssub.s32 %s11, 2
      %s18 = sadd.s32 %s11, 1
      %s20 = sadd.s32 %s19, 1
      %p23 = scmp.eq.s32.totalorder %s11, 1
      %p24 = scmp.ne.s32.totalorder %s19, %s21
      %p25 = scmp.eq.s32.totalorder %s11, 0
      %p26 = por %p24, %p25
      %p27 = scmp.ne.s32.totalorder %s19, %s21
      %p28 = scmp.eq.s32.totalorder %s16, 1
      %p29 = por %p27, %p28
      %p30 = scmp.ne.s32.totalorder %s21, %s22
      %p31 = scmp.eq.s32.totalorder %s16, 0
      %p32 = por %p30, %p31
      %p33 = scmp.ne.s32.totalorder %s21, %s22
      %p34 = scmp.eq.s32.totalorder %s17, 1
      %p35 = por %p33, %p34
      %p37 = scmp.ne.s32.totalorder %s22, %s36
      %p38 = scmp.eq.s32.totalorder %s17, 0
      %p39 = por %p37, %p38
      %s40 = ssub.s32 %s11, %s18
      %p41 = scmp.eq.s32.totalorder %s40, 0
      %s43 = sadd.s32 %s42, 1
      %s44 = scalar_select %p41, %s42, %s43
      %p47 = pneg %p41
      %p48 = scmp.eq.s32.totalorder %s11, 1
      %p49 = por %p47, %p48
      %p50 = scmp.ne.s32.totalorder %s42, %s45
      %p51 = scmp.eq.s32.totalorder %s11, 0
      %p52 = por %p50, %p51
      %p53 = scmp.ne.s32.totalorder %s42, %s45
      %p54 = scmp.eq.s32.totalorder %s16, 1
      %p55 = por %p53, %p54
      %p56 = scmp.ne.s32.totalorder %s45, %s46
      %p57 = scmp.eq.s32.totalorder %s16, 0
      %p58 = por %p56, %p57
      %p59 = scmp.ne.s32.totalorder %s45, %s46
      %p60 = scmp.eq.s32.totalorder %s17, 1
      %p61 = por %p59, %p60
      %p63 = scmp.ne.s32.totalorder %s46, %s62
      %p64 = scmp.eq.s32.totalorder %s17, 0
      %p65 = por %p63, %p64
      %p66 = scmp.le.s32.totalorder 1, %s11
      %p67 = scmp.lt.s32.totalorder %s11, 3
      %p68 = pnand %p66, %p67
      %p69 = pneg %p68
      // Predicated region
      $region9: #{tpu_custom_call.1} parent=5 // pred_check
        _
      $region10: #{tpu_custom_call.1} parent=5 // pred_check_branch
        %71 = sbr.rel (%p68) target = $region12
      $region11: #{tpu_custom_call.1} parent=5 // pred_region
        %s72 = ssub.s32 %s11, 1
        // Predicated region
        $region13: #{tpu_custom_call.1} parent=11 // pred_check
          %p73 = pneg %p32
        $region14: #{tpu_custom_call.1} parent=11 // pred_check_branch
          %75 = sbr.rel (%p73) target = $region16
        $region15: #{tpu_custom_call.1} parent=11 // pred_region
          %s77 = ssub.s32 128, 128
          %78 = vsyncadd [#allocation3], %s77
          %s80 = sshll.u32 [#allocation2], 4
          %s81 = int_to_ptr.vmem [resolvable:$true] %s80
          %83 = dma.hbm_to_vmem [thread:$0]  %s0, 128, %s81, [#allocation3]
        $region16: #{tpu_custom_call.1} parent=11 // pred_fallthru
          _
      $region12: #{tpu_custom_call.1} parent=5 // pred_fallthru
        _
      %p84 = scmp.lt.s32.totalorder %s11, 2
      // Predicated region
      $region17: #{tpu_custom_call.1} parent=5 // pred_check
        %p85 = pneg %p84
      $region18: #{tpu_custom_call.1} parent=5 // pred_check_branch
        %87 = sbr.rel (%p85) target = $region20
      $region19: #{tpu_custom_call.1} parent=5 // pred_region
        _
      $region20: #{tpu_custom_call.1} parent=5 // pred_fallthru
        _
      %p88 = scmp.le.s32.totalorder 1, %s11
      %p89 = scmp.lt.s32.totalorder %s11, 3
      %p90 = pnand %p88, %p89
      %p91 = pneg %p90
      // Predicated region
      $region21: #{tpu_custom_call.1} parent=5 // pred_check
        _
      $region22: #{tpu_custom_call.1} parent=5 // pred_check_branch
        %93 = sbr.rel (%p90) target = $region24
      $region23: #{tpu_custom_call.1} parent=5 // pred_region
        %s94 = ssub.s32 %s11, 1
        // Predicated region
        $region25: #{tpu_custom_call.1} parent=23 // pred_check
          %p95 = pneg %p32
        $region26: #{tpu_custom_call.1} parent=23 // pred_check_branch
          %97 = sbr.rel (%p95) target = $region28
        $region27: #{tpu_custom_call.1} parent=23 // pred_region
          %98 = dma.done [#allocation3], 128
        $region28: #{tpu_custom_call.1} parent=23 // pred_fallthru
          _
        %p99 = pneg %p32
        %p100 = pneg %p29
        %p101 = pneg %p58
        %p102 = pneg %p55
        %s103 = sand.u32 %s45, 1
        %s104 = scalar_lea.sflag [#allocation4], %s103
        %s105 = sand.u32 %s45, 1
        %s106 = smul.addr %s105, 8
        %s107 = scalar_lea.vmem [#allocation5], %s106
        %v108 = vld [vmem:[#allocation2] sm:$0xff]
        %v109 = vadd.f32 %v108, 1.0
        %110 = vst [vmem:[%s107] sm:$0xff] %v109
        %s111 = sand.u32 %s45, 1
        %s112 = scalar_lea.sflag [#allocation4], %s111
        %s113 = sand.u32 %s45, 1
        %s114 = smul.addr %s113, 8
        %s115 = scalar_lea.vmem [#allocation5], %s114
        // Predicated region
        $region29: #{tpu_custom_call.1} parent=23 // pred_check
          %p116 = pneg %p55
        $region30: #{tpu_custom_call.1} parent=23 // pred_check_branch
          %118 = sbr.rel (%p116) target = $region32
        $region31: #{tpu_custom_call.1} parent=23 // pred_region
          %s120 = ssub.s32 128, 128
          %121 = vsyncadd %s112, %s120
          %s122 = smul.addr %s16, 128
          %s123 = scalar_lea.hbm %s1, %s122
          %s125 = sshll.u32 %s115, 4
          %s126 = int_to_ptr.vmem [resolvable:$true] %s125
          %128 = dma.vmem_to_hbm [thread:$0]  %s126, 128, %s123, %s112
        $region32: #{tpu_custom_call.1} parent=23 // pred_fallthru
          _
      $region24: #{tpu_custom_call.1} parent=5 // pred_fallthru
        _
      %p129 = scmp.le.s32.totalorder 2, %s11
      // Predicated region
      $region33: #{tpu_custom_call.1} parent=5 // pred_check
        %p130 = pneg %p129
      $region34: #{tpu_custom_call.1} parent=5 // pred_check_branch
        %132 = sbr.rel (%p130) target = $region36
      $region35: #{tpu_custom_call.1} parent=5 // pred_region
        %s133 = ssub.s32 %s11, 2
        // Predicated region
        $region37: #{tpu_custom_call.1} parent=35 // pred_check
          %p134 = pneg %p61
        $region38: #{tpu_custom_call.1} parent=35 // pred_check_branch
          %136 = sbr.rel (%p134) target = $region40
        $region39: #{tpu_custom_call.1} parent=35 // pred_region
          %s137 = sand.u32 %s46, 1
          %s138 = scalar_lea.sflag [#allocation4], %s137
          %s139 = sand.u32 %s46, 1
          %s140 = smul.addr %s139, 8
          %s141 = scalar_lea.vmem [#allocation5], %s140
          %142 = dma.done %s138, 128
        $region40: #{tpu_custom_call.1} parent=35 // pred_fallthru
          _
      $region36: #{tpu_custom_call.1} parent=5 // pred_fallthru
        _
    $region6: #{tpu_custom_call.1} parent=1 // loop_footer
      %s15 = sadd.s32 1, %s11
    $region7: #{tpu_custom_call.1} parent=1 // loop_footer_branch
      %10 = sbr.rel target = $region3
    $region8: #{tpu_custom_call.1} parent=1 // loop_exit
      _
    %143 = vsyncpa [#allocation3], 1
    %s144 = scalar_lea.sflag [#allocation3], 1
    %145 = vsyncpa %s144, 1
    %146 = vsyncpa [#allocation4], 1
    %s147 = scalar_lea.sflag [#allocation4], 1
    %148 = vsyncpa %s147, 1

// kernel: hrnet_smplx_forward.1
$region0: #{hrnet_smplx_forward.1}
  #allocation0 [shape = 'u32[]', space=smem, size = 0x4, offset = 0x4, fixed_abs, tag = 'smem constant byte address 0x4 - core index']
  #allocation1 [shape = 'u32[144,128]{1,0:T(1,128)}', space=vmem, size = 0x12000, scoped, tag = 'internal scratch']
  #allocation2 [shape = 'f32[8,128,128]{2,1,0:T(8,128)}', space=vmem, size = 0x80000, scoped, tag = 'scratch operand']
  %s0 = inlined_call_operand.vmem [shape: f32[2,4,256], index: 0, kind: input, shape index: {}]
  %s1 = inlined_call_operand.hbm [shape: bf16[128,2048], index: 1, kind: input, shape index: {}]
  %s2 = inlined_call_operand.hbm [shape: f32[1,2048], index: 2, kind: input, shape index: {}]
  %s3 = inlined_call_operand.hbm [shape: bf16[2048,640], index: 3, kind: input, shape index: {}]
  %s4 = inlined_call_operand.hbm [shape: f32[1,640], index: 4, kind: input, shape index: {}]
  %s5 = inlined_call_operand.hbm [shape: f32[2,2048], index: 5, kind: output, shape index: {0}]
  %s6 = inlined_call_operand.vmem [shape: f32[2,640], index: 6, kind: output, shape index: {1}]
  %s7 = inlined_call_operand.vmem [shape: f32[2,512], index: 7, kind: output, shape index: {2}]
  %8 = xla_tuple %s5, %s6, %s7
  %s9 = sld [smem:[#allocation0]]
  $region70: #{hrnet_smplx_forward.1} parent=0
    _
  %s11 = ssub.s32 1, %s9
  %s12 = scalar_select 0, %s11, %s9
  $region1: #{hrnet_smplx_forward.1} parent=0
    #allocation3 [shape = 'u8[524288]{0}', space=vmem, size = 0x80000, scoped, tag = 'input window, operand 1, single buffered']
    #allocation4 [shape = 's32[1]{0}', space=sflag, size = 0x4, scoped, tag = 'scoped memory for hrnet_smplx_forward.1']
    #allocation5 [shape = 's32[1]{0}', space=sflag, size = 0x4, scoped, tag = 'scoped memory for hrnet_smplx_forward.1']
    #allocation6 [shape = 'u8[8192]{0}', space=vmem, size = 0x2000, scoped, tag = 'input window, operand 2, single buffered']
    #allocation7 [shape = 's32[1]{0}', space=sflag, size = 0x4, scoped, tag = 'scoped memory for hrnet_smplx_forward.1']
    #allocation8 [shape = 'u8[2621440]{0}', space=vmem, size = 0x280000, scoped, tag = 'input window, operand 3, single buffered']
    #allocation9 [shape = 'u8[2560]{0}', space=vmem, size = 0xc00, scoped, tag = 'input window, operand 4, single buffered']
    #allocation10 [shape = 's32[1]{0}', space=sflag, size = 0x4, scoped, tag = 'scoped memory for hrnet_smplx_forward.1']
    #allocation11 [shape = 'u8[16384]{0}', space=vmem, size = 0x4000, scoped, tag = 'output window, operand 0, single buffered']
    %13 = vsyncpa [#allocation4], 0
    %14 = vsyncpa [#allocation7], 0
    %15 = vsyncpa [#allocation10], 0
    %16 = vsyncpa [#allocation5], 0
    // Predicated region
    $region2: #{hrnet_smplx_forward.1} parent=1 // pred_check
      _
    $region3: #{hrnet_smplx_forward.1} parent=1 // pred_check_branch
      %18 = sbr.rel (0) target = $region5
    $region4: #{hrnet_smplx_forward.1} parent=1 // pred_region
      _
    $region5: #{hrnet_smplx_forward.1} parent=1 // pred_fallthru
      _
    // Predicated region
    $region6: #{hrnet_smplx_forward.1} parent=1 // pred_check
      _
    $region7: #{hrnet_smplx_forward.1} parent=1 // pred_check_branch
      %20 = sbr.rel (0) target = $region9
    $region8: #{hrnet_smplx_forward.1} parent=1 // pred_region
      %s22 = ssub.s32 16384, 16384
      %23 = vsyncadd [#allocation4], %s22
      %s24 = sshll.u32 [#allocation3], 4
      %s25 = int_to_ptr.vmem [resolvable:$true] %s24
      %30 = dma.hbm_to_vmem [thread:$0]  %s1, 16384, %s25, [#allocation4], 1024, 1024, 64
    $region9: #{hrnet_smplx_forward.1} parent=1 // pred_fallthru
      _
    // Predicated region
    $region10: #{hrnet_smplx_forward.1} parent=1 // pred_check
      _
    $region11: #{hrnet_smplx_forward.1} parent=1 // pred_check_branch
      %32 = sbr.rel (0) target = $region13
    $region12: #{hrnet_smplx_forward.1} parent=1 // pred_region
      %s34 = ssub.s32 256, 256
      %35 = vsyncadd [#allocation7], %s34
      %s37 = sshll.u32 [#allocation6], 4
      %s38 = int_to_ptr.vmem [resolvable:$true] %s37
      %40 = dma.hbm_to_vmem [thread:$0]  %s2, 256, %s38, [#allocation7]
    $region13: #{hrnet_smplx_forward.1} parent=1 // pred_fallthru
      _
    // Predicated region
    $region14: #{hrnet_smplx_forward.1} parent=1 // pred_check
      _
    $region15: #{hrnet_smplx_forward.1} parent=1 // pred_check_branch
      %42 = sbr.rel (0) target = $region17
    $region16: #{hrnet_smplx_forward.1} parent=1 // pred_region
      %s44 = ssub.s32 81920, 81920
      %45 = vsyncadd [#allocation7], %s44
      %s46 = sshll.u32 [#allocation8], 4
      %s47 = int_to_ptr.vmem [resolvable:$true] %s46
      %52 = dma.hbm_to_vmem [thread:$0]  %s3, 81920, %s47, [#allocation7], 320, 320, 20
    $region17: #{hrnet_smplx_forward.1} parent=1 // pred_fallthru
      _
    // Predicated region
    $region18: #{hrnet_smplx_forward.1} parent=1 // pred_check
      _
    $region19: #{hrnet_smplx_forward.1} parent=1 // pred_check_branch
      %54 = sbr.rel (0) target = $region21
    $region20: #{hrnet_smplx_forward.1} parent=1 // pred_region
      %s56 = ssub.s32 80, 80
      %57 = vsyncadd [#allocation10], %s56
      %s59 = sshll.u32 [#allocation9], 4
      %s60 = int_to_ptr.vmem [resolvable:$true] %s59
      %62 = dma.hbm_to_vmem [thread:$0]  %s4, 80, %s60, [#allocation10]
    $region21: #{hrnet_smplx_forward.1} parent=1 // pred_fallthru
      _
    // Predicated region
    $region22: #{hrnet_smplx_forward.1} parent=1 // pred_check
      _
    $region23: #{hrnet_smplx_forward.1} parent=1 // pred_check_branch
      %64 = sbr.rel (0) target = $region25
    $region24: #{hrnet_smplx_forward.1} parent=1 // pred_region
      %65 = dma.done [#allocation4], 16384
    $region25: #{hrnet_smplx_forward.1} parent=1 // pred_fallthru
      _
    // Predicated region
    $region26: #{hrnet_smplx_forward.1} parent=1 // pred_check
      _
    $region27: #{hrnet_smplx_forward.1} parent=1 // pred_check_branch
      %67 = sbr.rel (0) target = $region29
    $region28: #{hrnet_smplx_forward.1} parent=1 // pred_region
      %68 = dma.done [#allocation7], 256
    $region29: #{hrnet_smplx_forward.1} parent=1 // pred_fallthru
      _
    // Predicated region
    $region30: #{hrnet_smplx_forward.1} parent=1 // pred_check
      _
    $region31: #{hrnet_smplx_forward.1} parent=1 // pred_check_branch
      %70 = sbr.rel (0) target = $region33
    $region32: #{hrnet_smplx_forward.1} parent=1 // pred_region
      %71 = dma.done [#allocation7], 81920
    $region33: #{hrnet_smplx_forward.1} parent=1 // pred_fallthru
      _
    // Predicated region
    $region34: #{hrnet_smplx_forward.1} parent=1 // pred_check
      _
    $region35: #{hrnet_smplx_forward.1} parent=1 // pred_check_branch
      %73 = sbr.rel (0) target = $region37
    $region36: #{hrnet_smplx_forward.1} parent=1 // pred_region
      %74 = dma.done [#allocation10], 80
    $region37: #{hrnet_smplx_forward.1} parent=1 // pred_fallthru
      _
    %p76 = scmp.eq.s32.totalorder 0, 0
    // Predicated region
    $region38: #{hrnet_smplx_forward.1} parent=1 // pred_check
      %p77 = pneg %p76
    $region39: #{hrnet_smplx_forward.1} parent=1 // pred_check_branch
      %79 = sbr.rel (%p77) target = $region41
    $region40: #{hrnet_smplx_forward.1} parent=1 // pred_region
      %80 = vst [vmem:[#allocation2] sm:$0xff] 0.0
      %81 = vst [vmem:[#allocation2 + $0x8] sm:$0xff] 0.0
      %82 = vst [vmem:[#allocation2 + $0x10] sm:$0xff] 0.0
      %83 = vst [vmem:[#allocation2 + $0x18] sm:$0xff] 0.0
      %84 = vst [vmem:[#allocation2 + $0x20] sm:$0xff] 0.0
      %85 = vst [vmem:[#allocation2 + $0x28] sm:$0xff] 0.0
      %86 = vst [vmem:[#allocation2 + $0x30] sm:$0xff] 0.0
      %87 = vst [vmem:[#allocation2 + $0x38] sm:$0xff] 0.0
      %88 = vst [vmem:[#allocation2 + $0x40] sm:$0xff] 0.0
      %89 = vst [vmem:[#allocation2 + $0x48] sm:$0xff] 0.0
      %90 = vst [vmem:[#allocation2 + $0x50] sm:$0xff] 0.0
      %91 = vst [vmem:[#allocation2 + $0x58] sm:$0xff] 0.0
      %92 = vst [vmem:[#allocation2 + $0x60] sm:$0xff] 0.0
      %93 = vst [vmem:[#allocation2 + $0x68] sm:$0xff] 0.0
      %94 = vst [vmem:[#allocation2 + $0x70] sm:$0xff] 0.0
      %95 = vst [vmem:[#allocation2 + $0x78] sm:$0xff] 0.0
      %96 = vst [vmem:[#allocation2 + $0x80] sm:$0xff] 0.0
      %97 = vst [vmem:[#allocation2 + $0x88] sm:$0xff] 0.0
      %98 = vst [vmem:[#allocation2 + $0x90] sm:$0xff] 0.0
      %99 = vst [vmem:[#allocation2 + $0x98] sm:$0xff] 0.0
      %100 = vst [vmem:[#allocation2 + $0xa0] sm:$0xff] 0.0
      %101 = vst [vmem:[#allocation2 + $0xa8] sm:$0xff] 0.0
      %102 = vst [vmem:[#allocation2 + $0xb0] sm:$0xff] 0.0
      %103 = vst [vmem:[#allocation2 + $0xb8] sm:$0xff] 0.0
      %104 = vst [vmem:[#allocation2 + $0xc0] sm:$0xff] 0.0
      %105 = vst [vmem:[#allocation2 + $0xc8] sm:$0xff] 0.0
      %106 = vst [vmem:[#allocation2 + $0xd0] sm:$0xff] 0.0
      %107 = vst [vmem:[#allocation2 + $0xd8] sm:$0xff] 0.0
      %108 = vst [vmem:[#allocation2 + $0xe0] sm:$0xff] 0.0
      %109 = vst [vmem:[#allocation2 + $0xe8] sm:$0xff] 0.0
      %110 = vst [vmem:[#allocation2 + $0xf0] sm:$0xff] 0.0
      %111 = vst [vmem:[#allocation2 + $0xf8] sm:$0xff] 0.0
      %112 = vst [vmem:[#allocation2 + $0x100] sm:$0xff] 0.0
      %113 = vst [vmem:[#allocation2 + $0x108] sm:$0xff] 0.0
      %114 = vst [vmem:[#allocation2 + $0x110] sm:$0xff] 0.0
      %115 = vst [vmem:[#allocation2 + $0x118] sm:$0xff] 0.0
      %116 = vst [vmem:[#allocation2 + $0x120] sm:$0xff] 0.0
      %117 = vst [vmem:[#allocation2 + $0x128] sm:$0xff] 0.0
      %118 = vst [vmem:[#allocation2 + $0x130] sm:$0xff] 0.0
      %119 = vst [vmem:[#allocation2 + $0x138] sm:$0xff] 0.0
      %120 = vst [vmem:[#allocation2 + $0x140] sm:$0xff] 0.0
      %121 = vst [vmem:[#allocation2 + $0x148] sm:$0xff] 0.0
      %122 = vst [vmem:[#allocation2 + $0x150] sm:$0xff] 0.0
      %123 = vst [vmem:[#allocation2 + $0x158] sm:$0xff] 0.0
      %124 = vst [vmem:[#allocation2 + $0x160] sm:$0xff] 0.0
      %125 = vst [vmem:[#allocation2 + $0x168] sm:$0xff] 0.0
      %126 = vst [vmem:[#allocation2 + $0x170] sm:$0xff] 0.0
      %127 = vst [vmem:[#allocation2 + $0x178] sm:$0xff] 0.0
      %128 = vst [vmem:[#allocation2 + $0x180] sm:$0xff] 0.0
      %129 = vst [vmem:[#allocation2 + $0x188] sm:$0xff] 0.0
      %130 = vst [vmem:[#allocation2 + $0x190] sm:$0xff] 0.0
      %131 = vst [vmem:[#allocation2 + $0x198] sm:$0xff] 0.0
      %132 = vst [vmem:[#allocation2 + $0x1a0] sm:$0xff] 0.0
      %133 = vst [vmem:[#allocation2 + $0x1a8] sm:$0xff] 0.0
      %134 = vst [vmem:[#allocation2 + $0x1b0] sm:$0xff] 0.0
      %135 = vst [vmem:[#allocation2 + $0x1b8] sm:$0xff] 0.0
      %136 = vst [vmem:[#allocation2 + $0x1c0] sm:$0xff] 0.0
      %137 = vst [vmem:[#allocation2 + $0x1c8] sm:$0xff] 0.0
      %138 = vst [vmem:[#allocation2 + $0x1d0] sm:$0xff] 0.0
      %139 = vst [vmem:[#allocation2 + $0x1d8] sm:$0xff] 0.0
      %140 = vst [vmem:[#allocation2 + $0x1e0] sm:$0xff] 0.0
      %141 = vst [vmem:[#allocation2 + $0x1e8] sm:$0xff] 0.0
      %142 = vst [vmem:[#allocation2 + $0x1f0] sm:$0xff] 0.0
      %143 = vst [vmem:[#allocation2 + $0x1f8] sm:$0xff] 0.0
      %144 = vst [vmem:[#allocation2 + $0x200] sm:$0xff] 0.0
      %145 = vst [vmem:[#allocation2 + $0x208] sm:$0xff] 0.0
      %146 = vst [vmem:[#allocation2 + $0x210] sm:$0xff] 0.0
      %147 = vst [vmem:[#allocation2 + $0x218] sm:$0xff] 0.0
      %148 = vst [vmem:[#allocation2 + $0x220] sm:$0xff] 0.0
      %149 = vst [vmem:[#allocation2 + $0x228] sm:$0xff] 0.0
      %150 = vst [vmem:[#allocation2 + $0x230] sm:$0xff] 0.0
      %151 = vst [vmem:[#allocation2 + $0x238] sm:$0xff] 0.0
      %152 = vst [vmem:[#allocation2 + $0x240] sm:$0xff] 0.0
      %153 = vst [vmem:[#allocation2 + $0x248] sm:$0xff] 0.0
      %154 = vst [vmem:[#allocation2 + $0x250] sm:$0xff] 0.0
      %155 = vst [vmem:[#allocation2 + $0x258] sm:$0xff] 0.0
      %156 = vst [vmem:[#allocation2 + $0x260] sm:$0xff] 0.0
      %157 = vst [vmem:[#allocation2 + $0x268] sm:$0xff] 0.0
      %158 = vst [vmem:[#allocation2 + $0x270] sm:$0xff] 0.0
      %159 = vst [vmem:[#allocation2 + $0x278] sm:$0xff] 0.0
      %160 = vst [vmem:[#allocation2 + $0x280] sm:$0xff] 0.0
      %161 = vst [vmem:[#allocation2 + $0x288] sm:$0xff] 0.0
      %162 = vst [vmem:[#allocation2 + $0x290] sm:$0xff] 0.0
      %163 = vst [vmem:[#allocation2 + $0x298] sm:$0xff] 0.0
      %164 = vst [vmem:[#allocation2 + $0x2a0] sm:$0xff] 0.0
      %165 = vst [vmem:[#allocation2 + $0x2a8] sm:$0xff] 0.0
      %166 = vst [vmem:[#allocation2 + $0x2b0] sm:$0xff] 0.0
      %167 = vst [vmem:[#allocation2 + $0x2b8] sm:$0xff] 0.0
      %168 = vst [vmem:[#allocation2 + $0x2c0] sm:$0xff] 0.0
      %169 = vst [vmem:[#allocation2 + $0x2c8] sm:$0xff] 0.0
      %170 = vst [vmem:[#allocation2 + $0x2d0] sm:$0xff] 0.0
      %171 = vst [vmem:[#allocation2 + $0x2d8] sm:$0xff] 0.0
      %172 = vst [vmem:[#allocation2 + $0x2e0] sm:$0xff] 0.0
      %173 = vst [vmem:[#allocation2 + $0x2e8] sm:$0xff] 0.0
      %174 = vst [vmem:[#allocation2 + $0x2f0] sm:$0xff] 0.0
      %175 = vst [vmem:[#allocation2 + $0x2f8] sm:$0xff] 0.0
      %176 = vst [vmem:[#allocation2 + $0x300] sm:$0xff] 0.0
      %177 = vst [vmem:[#allocation2 + $0x308] sm:$0xff] 0.0
      %178 = vst [vmem:[#allocation2 + $0x310] sm:$0xff] 0.0
      %179 = vst [vmem:[#allocation2 + $0x318] sm:$0xff] 0.0
      %180 = vst [vmem:[#allocation2 + $0x320] sm:$0xff] 0.0
      %181 = vst [vmem:[#allocation2 + $0x328] sm:$0xff] 0.0
      %182 = vst [vmem:[#allocation2 + $0x330] sm:$0xff] 0.0
      %183 = vst [vmem:[#allocation2 + $0x338] sm:$0xff] 0.0
      %184 = vst [vmem:[#allocation2 + $0x340] sm:$0xff] 0.0
      %185 = vst [vmem:[#allocation2 + $0x348] sm:$0xff] 0.0
      %186 = vst [vmem:[#allocation2 + $0x350] sm:$0xff] 0.0
      %187 = vst [vmem:[#allocation2 + $0x358] sm:$0xff] 0.0
      %188 = vst [vmem:[#allocation2 + $0x360] sm:$0xff] 0.0
      %189 = vst [vmem:[#allocation2 + $0x368] sm:$0xff] 0.0
      %190 = vst [vmem:[#allocation2 + $0x370] sm:$0xff] 0.0
      %191 = vst [vmem:[#allocation2 + $0x378] sm:$0xff] 0.0
      %192 = vst [vmem:[#allocation2 + $0x380] sm:$0xff] 0.0
      %193 = vst [vmem:[#allocation2 + $0x388] sm:$0xff] 0.0
      %194 = vst [vmem:[#allocation2 + $0x390] sm:$0xff] 0.0
      %195 = vst [vmem:[#allocation2 + $0x398] sm:$0xff] 0.0
      %196 = vst [vmem:[#allocation2 + $0x3a0] sm:$0xff] 0.0
      %197 = vst [vmem:[#allocation2 + $0x3a8] sm:$0xff] 0.0
      %198 = vst [vmem:[#allocation2 + $0x3b0] sm:$0xff] 0.0
      %199 = vst [vmem:[#allocation2 + $0x3b8] sm:$0xff] 0.0
      %200 = vst [vmem:[#allocation2 + $0x3c0] sm:$0xff] 0.0
      %201 = vst [vmem:[#allocation2 + $0x3c8] sm:$0xff] 0.0
      %202 = vst [vmem:[#allocation2 + $0x3d0] sm:$0xff] 0.0
      %203 = vst [vmem:[#allocation2 + $0x3d8] sm:$0xff] 0.0
      %204 = vst [vmem:[#allocation2 + $0x3e0] sm:$0xff] 0.0
      %205 = vst [vmem:[#allocation2 + $0x3e8] sm:$0xff] 0.0
      %206 = vst [vmem:[#allocation2 + $0x3f0] sm:$0xff] 0.0
      %207 = vst [vmem:[#allocation2 + $0x3f8] sm:$0xff] 0.0
    $region41: #{hrnet_smplx_forward.1} parent=1 // pred_fallthru
      _
    %v208 = vld [vmem:[#allocation2] sm:$0xf]
    %v209 = vld [vmem:[#allocation2 + $0x80] sm:$0xf]
    %v210 = vld [vmem:[%s0] sm:$0xf]
    %v211 = vld [vmem:[%s0 + $0x8] sm:$0xf]
    %v212 = vadd.f32 %v210, 0.0
    %v213 = vadd.f32 %v211, 0.0
    %v214 = vld [vmem:[%s0 + $0x4] sm:$0xf]
    %v215 = vld [vmem:[%s0 + $0xc] sm:$0xf]
    %v216 = vadd.f32 %v212, %v214
    %v217 = vadd.f32 %v213, %v215
    %v218 = vadd.f32 %v208, %v216
    %v219 = vadd.f32 %v209, %v217
    %220 = vst [vmem:[#allocation2] sm:$0xf] %v218
    %221 = vst [vmem:[#allocation2 + $0x80] sm:$0xf] %v219
    // Predicated region
    $region42: #{hrnet_smplx_forward.1} parent=1 // pred_check
      %p222 = pneg %p76
    $region43: #{hrnet_smplx_forward.1} parent=1 // pred_check_branch
      %224 = sbr.rel (%p222) target = $region45
    $region44: #{hrnet_smplx_forward.1} parent=1 // pred_region
      %v225 = vld [vmem:[#allocation2] sm:$0xff]
      %v226 = vld [vmem:[#allocation2 + $0x8] sm:$0xff]
      %v227 = vld [vmem:[#allocation2 + $0x10] sm:$0xff]
      %v228 = vld [vmem:[#allocation2 + $0x18] sm:$0xff]
      %v229 = vld [vmem:[#allocation2 + $0x20] sm:$0xff]
      %v230 = vld [vmem:[#allocation2 + $0x28] sm:$0xff]
      %v231 = vld [vmem:[#allocation2 + $0x30] sm:$0xff]
      %v232 = vld [vmem:[#allocation2 + $0x38] sm:$0xff]
      %v233 = vld [vmem:[#allocation2 + $0x40] sm:$0xff]
      %v234 = vld [vmem:[#allocation2 + $0x48] sm:$0xff]
      %v235 = vld [vmem:[#allocation2 + $0x50] sm:$0xff]
      %v236 = vld [vmem:[#allocation2 + $0x58] sm:$0xff]
      %v237 = vld [vmem:[#allocation2 + $0x60] sm:$0xff]
      %v238 = vld [vmem:[#allocation2 + $0x68] sm:$0xff]
      %v239 = vld [vmem:[#allocation2 + $0x70] sm:$0xff]
      %v240 = vld [vmem:[#allocation2 + $0x78] sm:$0xff]
      %v241 = vld [vmem:[#allocation2 + $0x80] sm:$0xff]
      %v242 = vld [vmem:[#allocation2 + $0x88] sm:$0xff]
      %v243 = vld [vmem:[#allocation2 + $0x90] sm:$0xff]
      %v244 = vld [vmem:[#allocation2 + $0x98] sm:$0xff]
      %v245 = vld [vmem:[#allocation2 + $0xa0] sm:$0xff]
      %v246 = vld [vmem:[#allocation2 + $0xa8] sm:$0xff]
      %v247 = vld [vmem:[#allocation2 + $0xb0] sm:$0xff]
      %v248 = vld [vmem:[#allocation2 + $0xb8] sm:$0xff]
      %v249 = vld [vmem:[#allocation2 + $0xc0] sm:$0xff]
      %v250 = vld [vmem:[#allocation2 + $0xc8] sm:$0xff]
      %v251 = vld [vmem:[#allocation2 + $0xd0] sm:$0xff]
      %v252 = vld [vmem:[#allocation2 + $0xd8] sm:$0xff]
      %v253 = vld [vmem:[#allocation2 + $0xe0] sm:$0xff]
      %v254 = vld [vmem:[#allocation2 + $0xe8] sm:$0xff]
      %v255 = vld [vmem:[#allocation2 + $0xf0] sm:$0xff]
      %v256 = vld [vmem:[#allocation2 + $0xf8] sm:$0xff]
      %v257 = vld [vmem:[#allocation2 + $0x100] sm:$0xff]
      %v258 = vld [vmem:[#allocation2 + $0x108] sm:$0xff]
      %v259 = vld [vmem:[#allocation2 + $0x110] sm:$0xff]
      %v260 = vld [vmem:[#allocation2 + $0x118] sm:$0xff]
      %v261 = vld [vmem:[#allocation2 + $0x120] sm:$0xff]
      %v262 = vld [vmem:[#allocation2 + $0x128] sm:$0xff]
      %v263 = vld [vmem:[#allocation2 + $0x130] sm:$0xff]
      %v264 = vld [vmem:[#allocation2 + $0x138] sm:$0xff]
      %v265 = vld [vmem:[#allocation2 + $0x140] sm:$0xff]
      %v266 = vld [vmem:[#allocation2 + $0x148] sm:$0xff]
      %v267 = vld [vmem:[#allocation2 + $0x150] sm:$0xff]
      %v268 = vld [vmem:[#allocation2 + $0x158] sm:$0xff]
      %v269 = vld [vmem:[#allocation2 + $0x160] sm:$0xff]
      %v270 = vld [vmem:[#allocation2 + $0x168] sm:$0xff]
      %v271 = vld [vmem:[#allocation2 + $0x170] sm:$0xff]
      %v272 = vld [vmem:[#allocation2 + $0x178] sm:$0xff]
      %v273 = vld [vmem:[#allocation2 + $0x180] sm:$0xff]
      %v274 = vld [vmem:[#allocation2 + $0x188] sm:$0xff]
      %v275 = vld [vmem:[#allocation2 + $0x190] sm:$0xff]
      %v276 = vld [vmem:[#allocation2 + $0x198] sm:$0xff]
      %v277 = vld [vmem:[#allocation2 + $0x1a0] sm:$0xff]
      %v278 = vld [vmem:[#allocation2 + $0x1a8] sm:$0xff]
      %v279 = vld [vmem:[#allocation2 + $0x1b0] sm:$0xff]
      %v280 = vld [vmem:[#allocation2 + $0x1b8] sm:$0xff]
      %v281 = vld [vmem:[#allocation2 + $0x1c0] sm:$0xff]
      %v282 = vld [vmem:[#allocation2 + $0x1c8] sm:$0xff]
      %v283 = vld [vmem:[#allocation2 + $0x1d0] sm:$0xff]
      %v284 = vld [vmem:[#allocation2 + $0x1d8] sm:$0xff]
      %v285 = vld [vmem:[#allocation2 + $0x1e0] sm:$0xff]
      %v286 = vld [vmem:[#allocation2 + $0x1e8] sm:$0xff]
      %v287 = vld [vmem:[#allocation2 + $0x1f0] sm:$0xff]
      %v288 = vld [vmem:[#allocation2 + $0x1f8] sm:$0xff]
      %v289 = vld [vmem:[#allocation2 + $0x200] sm:$0xff]
      %v290 = vld [vmem:[#allocation2 + $0x208] sm:$0xff]
      %v291 = vld [vmem:[#allocation2 + $0x210] sm:$0xff]
      %v292 = vld [vmem:[#allocation2 + $0x218] sm:$0xff]
      %v293 = vld [vmem:[#allocation2 + $0x220] sm:$0xff]
      %v294 = vld [vmem:[#allocation2 + $0x228] sm:$0xff]
      %v295 = vld [vmem:[#allocation2 + $0x230] sm:$0xff]
      %v296 = vld [vmem:[#allocation2 + $0x238] sm:$0xff]
      %v297 = vld [vmem:[#allocation2 + $0x240] sm:$0xff]
      %v298 = vld [vmem:[#allocation2 + $0x248] sm:$0xff]
      %v299 = vld [vmem:[#allocation2 + $0x250] sm:$0xff]
      %v300 = vld [vmem:[#allocation2 + $0x258] sm:$0xff]
      %v301 = vld [vmem:[#allocation2 + $0x260] sm:$0xff]
      %v302 = vld [vmem:[#allocation2 + $0x268] sm:$0xff]
      %v303 = vld [vmem:[#allocation2 + $0x270] sm:$0xff]
      %v304 = vld [vmem:[#allocation2 + $0x278] sm:$0xff]
      %v305 = vld [vmem:[#allocation2 + $0x280] sm:$0xff]
      %v306 = vld [vmem:[#allocation2 + $0x288] sm:$0xff]
      %v307 = vld [vmem:[#allocation2 + $0x290] sm:$0xff]
      %v308 = vld [vmem:[#allocation2 + $0x298] sm:$0xff]
      %v309 = vld [vmem:[#allocation2 + $0x2a0] sm:$0xff]
      %v310 = vld [vmem:[#allocation2 + $0x2a8] sm:$0xff]
      %v311 = vld [vmem:[#allocation2 + $0x2b0] sm:$0xff]
      %v312 = vld [vmem:[#allocation2 + $0x2b8] sm:$0xff]
      %v313 = vld [vmem:[#allocation2 + $0x2c0] sm:$0xff]
      %v314 = vld [vmem:[#allocation2 + $0x2c8] sm:$0xff]
      %v315 = vld [vmem:[#allocation2 + $0x2d0] sm:$0xff]
      %v316 = vld [vmem:[#allocation2 + $0x2d8] sm:$0xff]
      %v317 = vld [vmem:[#allocation2 + $0x2e0] sm:$0xff]
      %v318 = vld [vmem:[#allocation2 + $0x2e8] sm:$0xff]
      %v319 = vld [vmem:[#allocation2 + $0x2f0] sm:$0xff]
      %v320 = vld [vmem:[#allocation2 + $0x2f8] sm:$0xff]
      %v321 = vld [vmem:[#allocation2 + $0x300] sm:$0xff]
      %v322 = vld [vmem:[#allocation2 + $0x308] sm:$0xff]
      %v323 = vld [vmem:[#allocation2 + $0x310] sm:$0xff]
      %v324 = vld [vmem:[#allocation2 + $0x318] sm:$0xff]
      %v325 = vld [vmem:[#allocation2 + $0x320] sm:$0xff]
      %v326 = vld [vmem:[#allocation2 + $0x328] sm:$0xff]
      %v327 = vld [vmem:[#allocation2 + $0x330] sm:$0xff]
      %v328 = vld [vmem:[#allocation2 + $0x338] sm:$0xff]
      %v329 = vld [vmem:[#allocation2 + $0x340] sm:$0xff]
      %v330 = vld [vmem:[#allocation2 + $0x348] sm:$0xff]
      %v331 = vld [vmem:[#allocation2 + $0x350] sm:$0xff]
      %v332 = vld [vmem:[#allocation2 + $0x358] sm:$0xff]
      %v333 = vld [vmem:[#allocation2 + $0x360] sm:$0xff]
      %v334 = vld [vmem:[#allocation2 + $0x368] sm:$0xff]
      %v335 = vld [vmem:[#allocation2 + $0x370] sm:$0xff]
      %v336 = vld [vmem:[#allocation2 + $0x378] sm:$0xff]
      %v337 = vld [vmem:[#allocation2 + $0x380] sm:$0xff]
      %v338 = vld [vmem:[#allocation2 + $0x388] sm:$0xff]
      %v339 = vld [vmem:[#allocation2 + $0x390] sm:$0xff]
      %v340 = vld [vmem:[#allocation2 + $0x398] sm:$0xff]
      %v341 = vld [vmem:[#allocation2 + $0x3a0] sm:$0xff]
      %v342 = vld [vmem:[#allocation2 + $0x3a8] sm:$0xff]
      %v343 = vld [vmem:[#allocation2 + $0x3b0] sm:$0xff]
      %v344 = vld [vmem:[#allocation2 + $0x3b8] sm:$0xff]
      %v345 = vld [vmem:[#allocation2 + $0x3c0] sm:$0xff]
      %v346 = vld [vmem:[#allocation2 + $0x3c8] sm:$0xff]
      %v347 = vld [vmem:[#allocation2 + $0x3d0] sm:$0xff]
      %v348 = vld [vmem:[#allocation2 + $0x3d8] sm:$0xff]
      %v349 = vld [vmem:[#allocation2 + $0x3e0] sm:$0xff]
      %v350 = vld [vmem:[#allocation2 + $0x3e8] sm:$0xff]
      %v351 = vld [vmem:[#allocation2 + $0x3f0] sm:$0xff]
      %v352 = vld [vmem:[#allocation2 + $0x3f8] sm:$0xff]
      %353 = vadd.xlane.f32.xlu0 %v225
      %v354 = vpop.xlane.xlu0 %353
      %355 = vadd.xlane.f32.xlu0 %v226
      %v356 = vpop.xlane.xlu0 %355
      %357 = vadd.xlane.f32.xlu0 %v227
      %v358 = vpop.xlane.xlu0 %357
      %359 = vadd.xlane.f32.xlu0 %v228
      %v360 = vpop.xlane.xlu0 %359
      %361 = vadd.xlane.f32.xlu0 %v229
      %v362 = vpop.xlane.xlu0 %361
      %363 = vadd.xlane.f32.xlu0 %v230
      %v364 = vpop.xlane.xlu0 %363
      %365 = vadd.xlane.f32.xlu0 %v231
      %v366 = vpop.xlane.xlu0 %365
      %367 = vadd.xlane.f32.xlu0 %v232
      %v368 = vpop.xlane.xlu0 %367
      %369 = vadd.xlane.f32.xlu0 %v233
      %v370 = vpop.xlane.xlu0 %369
      %371 = vadd.xlane.f32.xlu0 %v234
      %v372 = vpop.xlane.xlu0 %371
      %373 = vadd.xlane.f32.xlu0 %v235
      %v374 = vpop.xlane.xlu0 %373
      %375 = vadd.xlane.f32.xlu0 %v236
      %v376 = vpop.xlane.xlu0 %375
      %377 = vadd.xlane.f32.xlu0 %v237
      %v378 = vpop.xlane.xlu0 %377
      %379 = vadd.xlane.f32.xlu0 %v238
      %v380 = vpop.xlane.xlu0 %379
      %381 = vadd.xlane.f32.xlu0 %v239
      %v382 = vpop.xlane.xlu0 %381
      %383 = vadd.xlane.f32.xlu0 %v240
      %v384 = vpop.xlane.xlu0 %383
      %385 = vadd.xlane.f32.xlu0 %v241
      %v386 = vpop.xlane.xlu0 %385
      %387 = vadd.xlane.f32.xlu0 %v242
      %v388 = vpop.xlane.xlu0 %387
      %389 = vadd.xlane.f32.xlu0 %v243
      %v390 = vpop.xlane.xlu0 %389
      %391 = vadd.xlane.f32.xlu0 %v244
      %v392 = vpop.xlane.xlu0 %391
      %393 = vadd.xlane.f32.xlu0 %v245
      %v394 = vpop.xlane.xlu0 %393
      %395 = vadd.xlane.f32.xlu0 %v246
      %v396 = vpop.xlane.xlu0 %395
      %397 = vadd.xlane.f32.xlu0 %v247
      %v398 = vpop.xlane.xlu0 %397
      %399 = vadd.xlane.f32.xlu0 %v248
      %v400 = vpop.xlane.xlu0 %399
      %401 = vadd.xlane.f32.xlu0 %v249
      %v402 = vpop.xlane.xlu0 %401
      %403 = vadd.xlane.f32.xlu0 %v250
      %v404 = vpop.xlane.xlu0 %403
      %405 = vadd.xlane.f32.xlu0 %v251
      %v406 = vpop.xlane.xlu0 %405
      %407 = vadd.xlane.f32.xlu0 %v252
      %v408 = vpop.xlane.xlu0 %407
      %409 = vadd.xlane.f32.xlu0 %v253
      %v410 = vpop.xlane.xlu0 %409
      %411 = vadd.xlane.f32.xlu0 %v254
      %v412 = vpop.xlane.xlu0 %411
      %413 = vadd.xlane.f32.xlu0 %v255
      %v414 = vpop.xlane.xlu0 %413
      %415 = vadd.xlane.f32.xlu0 %v256
      %v416 = vpop.xlane.xlu0 %415
      %417 = vadd.xlane.f32.xlu0 %v257
      %v418 = vpop.xlane.xlu0 %417
      %419 = vadd.xlane.f32.xlu0 %v258
      %v420 = vpop.xlane.xlu0 %419
      %421 = vadd.xlane.f32.xlu0 %v259
      %v422 = vpop.xlane.xlu0 %421
      %423 = vadd.xlane.f32.xlu0 %v260
      %v424 = vpop.xlane.xlu0 %423
      %425 = vadd.xlane.f32.xlu0 %v261
      %v426 = vpop.xlane.xlu0 %425
      %427 = vadd.xlane.f32.xlu0 %v262
      %v428 = vpop.xlane.xlu0 %427
      %429 = vadd.xlane.f32.xlu0 %v263
      %v430 = vpop.xlane.xlu0 %429
      %431 = vadd.xlane.f32.xlu0 %v264
      %v432 = vpop.xlane.xlu0 %431
      %433 = vadd.xlane.f32.xlu0 %v265
      %v434 = vpop.xlane.xlu0 %433
      %435 = vadd.xlane.f32.xlu0 %v266
      %v436 = vpop.xlane.xlu0 %435
      %437 = vadd.xlane.f32.xlu0 %v267
      %v438 = vpop.xlane.xlu0 %437
      %439 = vadd.xlane.f32.xlu0 %v268
      %v440 = vpop.xlane.xlu0 %439
      %441 = vadd.xlane.f32.xlu0 %v269
      %v442 = vpop.xlane.xlu0 %441
      %443 = vadd.xlane.f32.xlu0 %v270
      %v444 = vpop.xlane.xlu0 %443
      %445 = vadd.xlane.f32.xlu0 %v271
      %v446 = vpop.xlane.xlu0 %445
      %447 = vadd.xlane.f32.xlu0 %v272
      %v448 = vpop.xlane.xlu0 %447
      %449 = vadd.xlane.f32.xlu0 %v273
      %v450 = vpop.xlane.xlu0 %449
      %451 = vadd.xlane.f32.xlu0 %v274
      %v452 = vpop.xlane.xlu0 %451
      %453 = vadd.xlane.f32.xlu0 %v275
      %v454 = vpop.xlane.xlu0 %453
      %455 = vadd.xlane.f32.xlu0 %v276
      %v456 = vpop.xlane.xlu0 %455
      %457 = vadd.xlane.f32.xlu0 %v277
      %v458 = vpop.xlane.xlu0 %457
      %459 = vadd.xlane.f32.xlu0 %v278
      %v460 = vpop.xlane.xlu0 %459
      %461 = vadd.xlane.f32.xlu0 %v279
      %v462 = vpop.xlane.xlu0 %461
      %463 = vadd.xlane.f32.xlu0 %v280
      %v464 = vpop.xlane.xlu0 %463
      %465 = vadd.xlane.f32.xlu0 %v281
      %v466 = vpop.xlane.xlu0 %465
      %467 = vadd.xlane.f32.xlu0 %v282
      %v468 = vpop.xlane.xlu0 %467
      %469 = vadd.xlane.f32.xlu0 %v283
      %v470 = vpop.xlane.xlu0 %469
      %471 = vadd.xlane.f32.xlu0 %v284
      %v472 = vpop.xlane.xlu0 %471
      %473 = vadd.xlane.f32.xlu0 %v285
      %v474 = vpop.xlane.xlu0 %473
      %475 = vadd.xlane.f32.xlu0 %v286
      %v476 = vpop.xlane.xlu0 %475
      %477 = vadd.xlane.f32.xlu0 %v287
      %v478 = vpop.xlane.xlu0 %477
      %479 = vadd.xlane.f32.xlu0 %v288
      %v480 = vpop.xlane.xlu0 %479
      %481 = vadd.xlane.f32.xlu0 %v289
      %v482 = vpop.xlane.xlu0 %481
      %483 = vadd.xlane.f32.xlu0 %v290
      %v484 = vpop.xlane.xlu0 %483
      %485 = vadd.xlane.f32.xlu0 %v291
      %v486 = vpop.xlane.xlu0 %485
      %487 = vadd.xlane.f32.xlu0 %v292
      %v488 = vpop.xlane.xlu0 %487
      %489 = vadd.xlane.f32.xlu0 %v293
      %v490 = vpop.xlane.xlu0 %489
      %491 = vadd.xlane.f32.xlu0 %v294
      %v492 = vpop.xlane.xlu0 %491
      %493 = vadd.xlane.f32.xlu0 %v295
      %v494 = vpop.xlane.xlu0 %493
      %495 = vadd.xlane.f32.xlu0 %v296
      %v496 = vpop.xlane.xlu0 %495
      %497 = vadd.xlane.f32.xlu0 %v297
      %v498 = vpop.xlane.xlu0 %497
      %499 = vadd.xlane.f32.xlu0 %v298
      %v500 = vpop.xlane.xlu0 %499
      %501 = vadd.xlane.f32.xlu0 %v299
      %v502 = vpop.xlane.xlu0 %501
      %503 = vadd.xlane.f32.xlu0 %v300
      %v504 = vpop.xlane.xlu0 %503
      %505 = vadd.xlane.f32.xlu0 %v301
      %v506 = vpop.xlane.xlu0 %505
      %507 = vadd.xlane.f32.xlu0 %v302
      %v508 = vpop.xlane.xlu0 %507
      %509 = vadd.xlane.f32.xlu0 %v303
      %v510 = vpop.xlane.xlu0 %509
      %511 = vadd.xlane.f32.xlu0 %v304
      %v512 = vpop.xlane.xlu0 %511
      %513 = vadd.xlane.f32.xlu0 %v305
      %v514 = vpop.xlane.xlu0 %513
      %515 = vadd.xlane.f32.xlu0 %v306
      %v516 = vpop.xlane.xlu0 %515
      %517 = vadd.xlane.f32.xlu0 %v307
      %v518 = vpop.xlane.xlu0 %517
      %519 = vadd.xlane.f32.xlu0 %v308
      %v520 = vpop.xlane.xlu0 %519
      %521 = vadd.xlane.f32.xlu0 %v309
      %v522 = vpop.xlane.xlu0 %521
      %523 = vadd.xlane.f32.xlu0 %v310
      %v524 = vpop.xlane.xlu0 %523
      %525 = vadd.xlane.f32.xlu0 %v311
      %v526 = vpop.xlane.xlu0 %525
      %527 = vadd.xlane.f32.xlu0 %v312
      %v528 = vpop.xlane.xlu0 %527
      %529 = vadd.xlane.f32.xlu0 %v313
      %v530 = vpop.xlane.xlu0 %529
      %531 = vadd.xlane.f32.xlu0 %v314
      %v532 = vpop.xlane.xlu0 %531
      %533 = vadd.xlane.f32.xlu0 %v315
      %v534 = vpop.xlane.xlu0 %533
      %535 = vadd.xlane.f32.xlu0 %v316
      %v536 = vpop.xlane.xlu0 %535
      %537 = vadd.xlane.f32.xlu0 %v317
      %v538 = vpop.xlane.xlu0 %537
      %539 = vadd.xlane.f32.xlu0 %v318
      %v540 = vpop.xlane.xlu0 %539
      %541 = vadd.xlane.f32.xlu0 %v319
      %v542 = vpop.xlane.xlu0 %541
      %543 = vadd.xlane.f32.xlu0 %v320
      %v544 = vpop.xlane.xlu0 %543
      %545 = vadd.xlane.f32.xlu0 %v321
      %v546 = vpop.xlane.xlu0 %545
      %547 = vadd.xlane.f32.xlu0 %v322
      %v548 = vpop.xlane.xlu0 %547
      %549 = vadd.xlane.f32.xlu0 %v323
      %v550 = vpop.xlane.xlu0 %549
      %551 = vadd.xlane.f32.xlu0 %v324
      %v552 = vpop.xlane.xlu0 %551
      %553 = vadd.xlane.f32.xlu0 %v325
      %v554 = vpop.xlane.xlu0 %553
      %555 = vadd.xlane.f32.xlu0 %v326
      %v556 = vpop.xlane.xlu0 %555
      %557 = vadd.xlane.f32.xlu0 %v327
      %v558 = vpop.xlane.xlu0 %557
      %559 = vadd.xlane.f32.xlu0 %v328
      %v560 = vpop.xlane.xlu0 %559
      %561 = vadd.xlane.f32.xlu0 %v329
      %v562 = vpop.xlane.xlu0 %561
      %563 = vadd.xlane.f32.xlu0 %v330
      %v564 = vpop.xlane.xlu0 %563
      %565 = vadd.xlane.f32.xlu0 %v331
      %v566 = vpop.xlane.xlu0 %565
      %567 = vadd.xlane.f32.xlu0 %v332
      %v568 = vpop.xlane.xlu0 %567
      %569 = vadd.xlane.f32.xlu0 %v333
      %v570 = vpop.xlane.xlu0 %569
      %571 = vadd.xlane.f32.xlu0 %v334
      %v572 = vpop.xlane.xlu0 %571
      %573 = vadd.xlane.f32.xlu0 %v335
      %v574 = vpop.xlane.xlu0 %573
      %575 = vadd.xlane.f32.xlu0 %v336
      %v576 = vpop.xlane.xlu0 %575
      %577 = vadd.xlane.f32.xlu0 %v337
      %v578 = vpop.xlane.xlu0 %577
      %579 = vadd.xlane.f32.xlu0 %v338
      %v580 = vpop.xlane.xlu0 %579
      %581 = vadd.xlane.f32.xlu0 %v339
      %v582 = vpop.xlane.xlu0 %581
      %583 = vadd.xlane.f32.xlu0 %v340
      %v584 = vpop.xlane.xlu0 %583
      %585 = vadd.xlane.f32.xlu0 %v341
      %v586 = vpop.xlane.xlu0 %585
      %587 = vadd.xlane.f32.xlu0 %v342
      %v588 = vpop.xlane.xlu0 %587
      %589 = vadd.xlane.f32.xlu0 %v343
      %v590 = vpop.xlane.xlu0 %589
      %591 = vadd.xlane.f32.xlu0 %v344
      %v592 = vpop.xlane.xlu0 %591
      %593 = vadd.xlane.f32.xlu0 %v345
      %v594 = vpop.xlane.xlu0 %593
      %595 = vadd.xlane.f32.xlu0 %v346
      %v596 = vpop.xlane.xlu0 %595
      %597 = vadd.xlane.f32.xlu0 %v347
      %v598 = vpop.xlane.xlu0 %597
      %599 = vadd.xlane.f32.xlu0 %v348
      %v600 = vpop.xlane.xlu0 %599
      %601 = vadd.xlane.f32.xlu0 %v349
      %v602 = vpop.xlane.xlu0 %601
      %603 = vadd.xlane.f32.xlu0 %v350
      %v604 = vpop.xlane.xlu0 %603
      %605 = vadd.xlane.f32.xlu0 %v351
      %v606 = vpop.xlane.xlu0 %605
      %607 = vadd.xlane.f32.xlu0 %v352
      %v608 = vpop.xlane.xlu0 %607
      %v609 = vmul.f32 %v354, 0.00390625
      %v610 = vmul.f32 %v356, 0.00390625
      %v611 = vmul.f32 %v358, 0.00390625
      %v612 = vmul.f32 %v360, 0.00390625
      %v613 = vmul.f32 %v362, 0.00390625
      %v614 = vmul.f32 %v364, 0.00390625
      %v615 = vmul.f32 %v366, 0.00390625
      %v616 = vmul.f32 %v368, 0.00390625
      %v617 = vmul.f32 %v370, 0.00390625
      %v618 = vmul.f32 %v372, 0.00390625
      %v619 = vmul.f32 %v374, 0.00390625
      %v620 = vmul.f32 %v376, 0.00390625
      %v621 = vmul.f32 %v378, 0.00390625
      %v622 = vmul.f32 %v380, 0.00390625
      %v623 = vmul.f32 %v382, 0.00390625
      %v624 = vmul.f32 %v384, 0.00390625
      %v625 = vmul.f32 %v386, 0.00390625
      %v626 = vmul.f32 %v388, 0.00390625
      %v627 = vmul.f32 %v390, 0.00390625
      %v628 = vmul.f32 %v392, 0.00390625
      %v629 = vmul.f32 %v394, 0.00390625
      %v630 = vmul.f32 %v396, 0.00390625
      %v631 = vmul.f32 %v398, 0.00390625
      %v632 = vmul.f32 %v400, 0.00390625
      %v633 = vmul.f32 %v402, 0.00390625
      %v634 = vmul.f32 %v404, 0.00390625
      %v635 = vmul.f32 %v406, 0.00390625
      %v636 = vmul.f32 %v408, 0.00390625
      %v637 = vmul.f32 %v410, 0.00390625
      %v638 = vmul.f32 %v412, 0.00390625
      %v639 = vmul.f32 %v414, 0.00390625
      %v640 = vmul.f32 %v416, 0.00390625
      %v641 = vmul.f32 %v418, 0.00390625
      %v642 = vmul.f32 %v420, 0.00390625
      %v643 = vmul.f32 %v422, 0.00390625
      %v644 = vmul.f32 %v424, 0.00390625
      %v645 = vmul.f32 %v426, 0.00390625
      %v646 = vmul.f32 %v428, 0.00390625
      %v647 = vmul.f32 %v430, 0.00390625
      %v648 = vmul.f32 %v432, 0.00390625
      %v649 = vmul.f32 %v434, 0.00390625
      %v650 = vmul.f32 %v436, 0.00390625
      %v651 = vmul.f32 %v438, 0.00390625
      %v652 = vmul.f32 %v440, 0.00390625
      %v653 = vmul.f32 %v442, 0.00390625
      %v654 = vmul.f32 %v444, 0.00390625
      %v655 = vmul.f32 %v446, 0.00390625
      %v656 = vmul.f32 %v448, 0.00390625
      %v657 = vmul.f32 %v450, 0.00390625
      %v658 = vmul.f32 %v452, 0.00390625
      %v659 = vmul.f32 %v454, 0.00390625
      %v660 = vmul.f32 %v456, 0.00390625
      %v661 = vmul.f32 %v458, 0.00390625
      %v662 = vmul.f32 %v460, 0.00390625
      %v663 = vmul.f32 %v462, 0.00390625
      %v664 = vmul.f32 %v464, 0.00390625
      %v665 = vmul.f32 %v466, 0.00390625
      %v666 = vmul.f32 %v468, 0.00390625
      %v667 = vmul.f32 %v470, 0.00390625
      %v668 = vmul.f32 %v472, 0.00390625
      %v669 = vmul.f32 %v474, 0.00390625
      %v670 = vmul.f32 %v476, 0.00390625
      %v671 = vmul.f32 %v478, 0.00390625
      %v672 = vmul.f32 %v480, 0.00390625
      %v673 = vmul.f32 %v482, 0.00390625
      %v674 = vmul.f32 %v484, 0.00390625
      %v675 = vmul.f32 %v486, 0.00390625
      %v676 = vmul.f32 %v488, 0.00390625
      %v677 = vmul.f32 %v490, 0.00390625
      %v678 = vmul.f32 %v492, 0.00390625
      %v679 = vmul.f32 %v494, 0.00390625
      %v680 = vmul.f32 %v496, 0.00390625
      %v681 = vmul.f32 %v498, 0.00390625
      %v682 = vmul.f32 %v500, 0.00390625
      %v683 = vmul.f32 %v502, 0.00390625
      %v684 = vmul.f32 %v504, 0.00390625
      %v685 = vmul.f32 %v506, 0.00390625
      %v686 = vmul.f32 %v508, 0.00390625
      %v687 = vmul.f32 %v510, 0.00390625
      %v688 = vmul.f32 %v512, 0.00390625
      %v689 = vmul.f32 %v514, 0.00390625
      %v690 = vmul.f32 %v516, 0.00390625
      %v691 = vmul.f32 %v518, 0.00390625
      %v692 = vmul.f32 %v520, 0.00390625
      %v693 = vmul.f32 %v522, 0.00390625
      %v694 = vmul.f32 %v524, 0.00390625
      %v695 = vmul.f32 %v526, 0.00390625
      %v696 = vmul.f32 %v528, 0.00390625
      %v697 = vmul.f32 %v530, 0.00390625
      %v698 = vmul.f32 %v532, 0.00390625
      %v699 = vmul.f32 %v534, 0.00390625
      %v700 = vmul.f32 %v536, 0.00390625
      %v701 = vmul.f32 %v538, 0.00390625
      %v702 = vmul.f32 %v540, 0.00390625
      %v703 = vmul.f32 %v542, 0.00390625
      %v704 = vmul.f32 %v544, 0.00390625
      %v705 = vmul.f32 %v546, 0.00390625
      %v706 = vmul.f32 %v548, 0.00390625
      %v707 = vmul.f32 %v550, 0.00390625
      %v708 = vmul.f32 %v552, 0.00390625
      %v709 = vmul.f32 %v554, 0.00390625
      %v710 = vmul.f32 %v556, 0.00390625
      %v711 = vmul.f32 %v558, 0.00390625
      %v712 = vmul.f32 %v560, 0.00390625
      %v713 = vmul.f32 %v562, 0.00390625
      %v714 = vmul.f32 %v564, 0.00390625
      %v715 = vmul.f32 %v566, 0.00390625
      %v716 = vmul.f32 %v568, 0.00390625
      %v717 = vmul.f32 %v570, 0.00390625
      %v718 = vmul.f32 %v572, 0.00390625
      %v719 = vmul.f32 %v574, 0.00390625
      %v720 = vmul.f32 %v576, 0.00390625
      %v721 = vmul.f32 %v578, 0.00390625
      %v722 = vmul.f32 %v580, 0.00390625
      %v723 = vmul.f32 %v582, 0.00390625
      %v724 = vmul.f32 %v584, 0.00390625
      %v725 = vmul.f32 %v586, 0.00390625
      %v726 = vmul.f32 %v588, 0.00390625
      %v727 = vmul.f32 %v590, 0.00390625
      %v728 = vmul.f32 %v592, 0.00390625
      %v729 = vmul.f32 %v594, 0.00390625
      %v730 = vmul.f32 %v596, 0.00390625
      %v731 = vmul.f32 %v598, 0.00390625
      %v732 = vmul.f32 %v600, 0.00390625
      %v733 = vmul.f32 %v602, 0.00390625
      %v734 = vmul.f32 %v604, 0.00390625
      %v735 = vmul.f32 %v606, 0.00390625
      %v736 = vmul.f32 %v608, 0.00390625
      %v737 = vpack.c.bf16 %v610, %v609
      %v738 = vpack.c.bf16 %v612, %v611
      %v739 = vpack.c.bf16 %v614, %v613
      %v740 = vpack.c.bf16 %v616, %v615
      %v741 = vpack.c.bf16 %v618, %v617
      %v742 = vpack.c.bf16 %v620, %v619
      %v743 = vpack.c.bf16 %v622, %v621
      %v744 = vpack.c.bf16 %v624, %v623
      %v745 = vpack.c.bf16 %v626, %v625
      %v746 = vpack.c.bf16 %v628, %v627
      %v747 = vpack.c.bf16 %v630, %v629
      %v748 = vpack.c.bf16 %v632, %v631
      %v749 = vpack.c.bf16 %v634, %v633
      %v750 = vpack.c.bf16 %v636, %v635
      %v751 = vpack.c.bf16 %v638, %v637
      %v752 = vpack.c.bf16 %v640, %v639
      %v753 = vpack.c.bf16 %v642, %v641
      %v754 = vpack.c.bf16 %v644, %v643
      %v755 = vpack.c.bf16 %v646, %v645
      %v756 = vpack.c.bf16 %v648, %v647
      %v757 = vpack.c.bf16 %v650, %v649
      %v758 = vpack.c.bf16 %v652, %v651
      %v759 = vpack.c.bf16 %v654, %v653
      %v760 = vpack.c.bf16 %v656, %v655
      %v761 = vpack.c.bf16 %v658, %v657
      %v762 = vpack.c.bf16 %v660, %v659
      %v763 = vpack.c.bf16 %v662, %v661
      %v764 = vpack.c.bf16 %v664, %v663
      %v765 = vpack.c.bf16 %v666, %v665
      %v766 = vpack.c.bf16 %v668, %v667
      %v767 = vpack.c.bf16 %v670, %v669
      %v768 = vpack.c.bf16 %v672, %v671
      %v769 = vpack.c.bf16 %v674, %v673
      %v770 = vpack.c.bf16 %v676, %v675
      %v771 = vpack.c.bf16 %v678, %v677
      %v772 = vpack.c.bf16 %v680, %v679
      %v773 = vpack.c.bf16 %v682, %v681
      %v774 = vpack.c.bf16 %v684, %v683
      %v775 = vpack.c.bf16 %v686, %v685
      %v776 = vpack.c.bf16 %v688, %v687
      %v777 = vpack.c.bf16 %v690, %v689
      %v778 = vpack.c.bf16 %v692, %v691
      %v779 = vpack.c.bf16 %v694, %v693
      %v780 = vpack.c.bf16 %v696, %v695
      %v781 = vpack.c.bf16 %v698, %v697
      %v782 = vpack.c.bf16 %v700, %v699
      %v783 = vpack.c.bf16 %v702, %v701
      %v784 = vpack.c.bf16 %v704, %v703
      %v785 = vpack.c.bf16 %v706, %v705
      %v786 = vpack.c.bf16 %v708, %v707
      %v787 = vpack.c.bf16 %v710, %v709
      %v788 = vpack.c.bf16 %v712, %v711
      %v789 = vpack.c.bf16 %v714, %v713
      %v790 = vpack.c.bf16 %v716, %v715
      %v791 = vpack.c.bf16 %v718, %v717
      %v792 = vpack.c.bf16 %v720, %v719
      %v793 = vpack.c.bf16 %v722, %v721
      %v794 = vpack.c.bf16 %v724, %v723
      %v795 = vpack.c.bf16 %v726, %v725
      %v796 = vpack.c.bf16 %v728, %v727
      %v797 = vpack.c.bf16 %v730, %v729
      %v798 = vpack.c.bf16 %v732, %v731
      %v799 = vpack.c.bf16 %v734, %v733
      %v800 = vpack.c.bf16 %v736, %v735
      %v801 = vld [vmem:[#allocation3] sm:$0xff]
      %v802 = vld [vmem:[#allocation3 + $0x8] sm:$0xff]
      %v803 = vld [vmem:[#allocation3 + $0x10] sm:$0xff]
      %v804 = vld [vmem:[#allocation3 + $0x18] sm:$0xff]
      %v805 = vld [vmem:[#allocation3 + $0x20] sm:$0xff]
      %v806 = vld [vmem:[#allocation3 + $0x28] sm:$0xff]
      %v807 = vld [vmem:[#allocation3 + $0x30] sm:$0xff]
      %v808 = vld [vmem:[#allocation3 + $0x38] sm:$0xff]
      %v809 = vld [vmem:[#allocation3 + $0x40] sm:$0xff]
      %v810 = vld [vmem:[#allocation3 + $0x48] sm:$0xff]
      %v811 = vld [vmem:[#allocation3 + $0x50] sm:$0xff]
      %v812 = vld [vmem:[#allocation3 + $0x58] sm:$0xff]
      %v813 = vld [vmem:[#allocation3 + $0x60] sm:$0xff]
      %v814 = vld [vmem:[#allocation3 + $0x68] sm:$0xff]
      %v815 = vld [vmem:[#allocation3 + $0x70] sm:$0xff]
      %v816 = vld [vmem:[#allocation3 + $0x78] sm:$0xff]
      %v817 = vld [vmem:[#allocation3 + $0x80] sm:$0xff]
      %v818 = vld [vmem:[#allocation3 + $0x88] sm:$0xff]
      %v819 = vld [vmem:[#allocation3 + $0x90] sm:$0xff]
      %v820 = vld [vmem:[#allocation3 + $0x98] sm:$0xff]
      %v821 = vld [vmem:[#allocation3 + $0xa0] sm:$0xff]
      %v822 = vld [vmem:[#allocation3 + $0xa8] sm:$0xff]
      %v823 = vld [vmem:[#allocation3 + $0xb0] sm:$0xff]
      %v824 = vld [vmem:[#allocation3 + $0xb8] sm:$0xff]
      %v825 = vld [vmem:[#allocation3 + $0xc0] sm:$0xff]
      %v826 = vld [vmem:[#allocation3 + $0xc8] sm:$0xff]
      %v827 = vld [vmem:[#allocation3 + $0xd0] sm:$0xff]
      %v828 = vld [vmem:[#allocation3 + $0xd8] sm:$0xff]
      %v829 = vld [vmem:[#allocation3 + $0xe0] sm:$0xff]
      %v830 = vld [vmem:[#allocation3 + $0xe8] sm:$0xff]
      %v831 = vld [vmem:[#allocation3 + $0xf0] sm:$0xff]
      %v832 = vld [vmem:[#allocation3 + $0xf8] sm:$0xff]
      %v833 = vld [vmem:[#allocation3 + $0x100] sm:$0xff]
      %v834 = vld [vmem:[#allocation3 + $0x108] sm:$0xff]
      %v835 = vld [vmem:[#allocation3 + $0x110] sm:$0xff]
      %v836 = vld [vmem:[#allocation3 + $0x118] sm:$0xff]
      %v837 = vld [vmem:[#allocation3 + $0x120] sm:$0xff]
      %v838 = vld [vmem:[#allocation3 + $0x128] sm:$0xff]
      %v839 = vld [vmem:[#allocation3 + $0x130] sm:$0xff]
      %v840 = vld [vmem:[#allocation3 + $0x138] sm:$0xff]
      %v841 = vld [vmem:[#allocation3 + $0x140] sm:$0xff]
      %v842 = vld [vmem:[#allocation3 + $0x148] sm:$0xff]
      %v843 = vld [vmem:[#allocation3 + $0x150] sm:$0xff]
      %v844 = vld [vmem:[#allocation3 + $0x158] sm:$0xff]
      %v845 = vld [vmem:[#allocation3 + $0x160] sm:$0xff]
      %v846 = vld [vmem:[#allocation3 + $0x168] sm:$0xff]
      %v847 = vld [vmem:[#allocation3 + $0x170] sm:$0xff]
      %v848 = vld [vmem:[#allocation3 + $0x178] sm:$0xff]
      %v849 = vld [vmem:[#allocation3 + $0x180] sm:$0xff]
      %v850 = vld [vmem:[#allocation3 + $0x188] sm:$0xff]
      %v851 = vld [vmem:[#allocation3 + $0x190] sm:$0xff]
      %v852 = vld [vmem:[#allocation3 + $0x198] sm:$0xff]
      %v853 = vld [vmem:[#allocation3 + $0x1a0] sm:$0xff]
      %v854 = vld [vmem:[#allocation3 + $0x1a8] sm:$0xff]
      %v855 = vld [vmem:[#allocation3 + $0x1b0] sm:$0xff]
      %v856 = vld [vmem:[#allocation3 + $0x1b8] sm:$0xff]
      %v857 = vld [vmem:[#allocation3 + $0x1c0] sm:$0xff]
      %v858 = vld [vmem:[#allocation3 + $0x1c8] sm:$0xff]
      %v859 = vld [vmem:[#allocation3 + $0x1d0] sm:$0xff]
      %v860 = vld [vmem:[#allocation3 + $0x1d8] sm:$0xff]
      %v861 = vld [vmem:[#allocation3 + $0x1e0] sm:$0xff]
      %v862 = vld [vmem:[#allocation3 + $0x1e8] sm:$0xff]
      %v863 = vld [vmem:[#allocation3 + $0x1f0] sm:$0xff]
      %v864 = vld [vmem:[#allocation3 + $0x1f8] sm:$0xff]
      %v865 = vld [vmem:[#allocation3 + $0x200] sm:$0xff]
      %v866 = vld [vmem:[#allocation3 + $0x208] sm:$0xff]
      %v867 = vld [vmem:[#allocation3 + $0x210] sm:$0xff]
      %v868 = vld [vmem:[#allocation3 + $0x218] sm:$0xff]
      %v869 = vld [vmem:[#allocation3 + $0x220] sm:$0xff]
      %v870 = vld [vmem:[#allocation3 + $0x228] sm:$0xff]
      %v871 = vld [vmem:[#allocation3 + $0x230] sm:$0xff]
      %v872 = vld [vmem:[#allocation3 + $0x238] sm:$0xff]
      %v873 = vld [vmem:[#allocation3 + $0x240] sm:$0xff]
      %v874 = vld [vmem:[#allocation3 + $0x248] sm:$0xff]
      %v875 = vld [vmem:[#allocation3 + $0x250] sm:$0xff]
      %v876 = vld [vmem:[#allocation3 + $0x258] sm:$0xff]
      %v877 = vld [vmem:[#allocation3 + $0x260] sm:$0xff]
      %v878 = vld [vmem:[#allocation3 + $0x268] sm:$0xff]
      %v879 = vld [vmem:[#allocation3 + $0x270] sm:$0xff]
      %v880 = vld [vmem:[#allocation3 + $0x278] sm:$0xff]
      %v881 = vld [vmem:[#allocation3 + $0x280] sm:$0xff]
      %v882 = vld [vmem:[#allocation3 + $0x288] sm:$0xff]
      %v883 = vld [vmem:[#allocation3 + $0x290] sm:$0xff]
      %v884 = vld [vmem:[#allocation3 + $0x298] sm:$0xff]
      %v885 = vld [vmem:[#allocation3 + $0x2a0] sm:$0xff]
      %v886 = vld [vmem:[#allocation3 + $0x2a8] sm:$0xff]
      %v887 = vld [vmem:[#allocation3 + $0x2b0] sm:$0xff]
      %v888 = vld [vmem:[#allocation3 + $0x2b8] sm:$0xff]
      %v889 = vld [vmem:[#allocation3 + $0x2c0] sm:$0xff]
      %v890 = vld [vmem:[#allocation3 + $0x2c8] sm:$0xff]
      %v891 = vld [vmem:[#allocation3 + $0x2d0] sm:$0xff]
      %v892 = vld [vmem:[#allocation3 + $0x2d8] sm:$0xff]
      %v893 = vld [vmem:[#allocation3 + $0x2e0] sm:$0xff]
      %v894 = vld [vmem:[#allocation3 + $0x2e8] sm:$0xff]
      %v895 = vld [vmem:[#allocation3 + $0x2f0] sm:$0xff]
      %v896 = vld [vmem:[#allocation3 + $0x2f8] sm:$0xff]
      %v897 = vld [vmem:[#allocation3 + $0x300] sm:$0xff]
      %v898 = vld [vmem:[#allocation3 + $0x308] sm:$0xff]
      %v899 = vld [vmem:[#allocation3 + $0x310] sm:$0xff]
      %v900 = vld [vmem:[#allocation3 + $0x318] sm:$0xff]
      %v901 = vld [vmem:[#allocation3 + $0x320] sm:$0xff]
      %v902 = vld [vmem:[#allocation3 + $0x328] sm:$0xff]
      %v903 = vld [vmem:[#allocation3 + $0x330] sm:$0xff]
      %v904 = vld [vmem:[#allocation3 + $0x338] sm:$0xff]
      %v905 = vld [vmem:[#allocation3 + $0x340] sm:$0xff]
      %v906 = vld [vmem:[#allocation3 + $0x348] sm:$0xff]
      %v907 = vld [vmem:[#allocation3 + $0x350] sm:$0xff]
      %v908 = vld [vmem:[#allocation3 + $0x358] sm:$0xff]
      %v909 = vld [vmem:[#allocation3 + $0x360] sm:$0xff]
      %v910 = vld [vmem:[#allocation3 + $0x368] sm:$0xff]
      %v911 = vld [vmem:[#allocation3 + $0x370] sm:$0xff]
      %v912 = vld [vmem:[#allocation3 + $0x378] sm:$0xff]
      %v913 = vld [vmem:[#allocation3 + $0x380] sm:$0xff]
      %v914 = vld [vmem:[#allocation3 + $0x388] sm:$0xff]
      %v915 = vld [vmem:[#allocation3 + $0x390] sm:$0xff]
      %v916 = vld [vmem:[#allocation3 + $0x398] sm:$0xff]
      %v917 = vld [vmem:[#allocation3 + $0x3a0] sm:$0xff]
      %v918 = vld [vmem:[#allocation3 + $0x3a8] sm:$0xff]
      %v919 = vld [vmem:[#allocation3 + $0x3b0] sm:$0xff]
      %v920 = vld [vmem:[#allocation3 + $0x3b8] sm:$0xff]
      %v921 = vld [vmem:[#allocation3 + $0x3c0] sm:$0xff]
      %v922 = vld [vmem:[#allocation3 + $0x3c8] sm:$0xff]
      %v923 = vld [vmem:[#allocation3 + $0x3d0] sm:$0xff]
      %v924 = vld [vmem:[#allocation3 + $0x3d8] sm:$0xff]
      %v925 = vld [vmem:[#allocation3 + $0x3e0] sm:$0xff]
      %v926 = vld [vmem:[#allocation3 + $0x3e8] sm:$0xff]
      %v927 = vld [vmem:[#allocation3 + $0x3f0] sm:$0xff]
      %v928 = vld [vmem:[#allocation3 + $0x3f8] sm:$0xff]
      %v929 = vld [vmem:[#allocation6] sm:$0xff]
      %v930 = vld [vmem:[#allocation6 + $0x8] sm:$0xff]
      %v933 = vlaneseq
      %v934 = vshrl.u32 %v933, 7
      %v935 = vsub.s32 0, %v934
      %v936 = vrot.slane %v929, %v935
      %v937 = vlaneseq
      %v938 = vshrl.u32 %v937, 7
      %v939 = vsub.s32 1, %v938
      %v940 = vrot.slane %v929, %v939
      %v941 = vlaneseq
      %v942 = vshrl.u32 %v941, 7
      %v943 = vsub.s32 2, %v942
      %v944 = vrot.slane %v929, %v943
      %v945 = vlaneseq
      %v946 = vshrl.u32 %v945, 7
      %v947 = vsub.s32 3, %v946
      %v948 = vrot.slane %v929, %v947
      %v949 = vlaneseq
      %v950 = vshrl.u32 %v949, 7
      %v951 = vsub.s32 4, %v950
      %v952 = vrot.slane %v929, %v951
      %v953 = vlaneseq
      %v954 = vshrl.u32 %v953, 7
      %v955 = vsub.s32 5, %v954
      %v956 = vrot.slane %v929, %v955
      %v957 = vlaneseq
      %v958 = vshrl.u32 %v957, 7
      %v959 = vsub.s32 6, %v958
      %v960 = vrot.slane %v929, %v959
      %v961 = vlaneseq
      %v962 = vshrl.u32 %v961, 7
      %v963 = vsub.s32 7, %v962
      %v964 = vrot.slane %v929, %v963
      %v965 = vlaneseq
      %v966 = vshrl.u32 %v965, 7
      %v967 = vsub.s32 0, %v966
      %v968 = vrot.slane %v930, %v967
      %v969 = vlaneseq
      %v970 = vshrl.u32 %v969, 7
      %v971 = vsub.s32 1, %v970
      %v972 = vrot.slane %v930, %v971
      %v973 = vlaneseq
      %v974 = vshrl.u32 %v973, 7
      %v975 = vsub.s32 2, %v974
      %v976 = vrot.slane %v930, %v975
      %v977 = vlaneseq
      %v978 = vshrl.u32 %v977, 7
      %v979 = vsub.s32 3, %v978
      %v980 = vrot.slane %v930, %v979
      %v981 = vlaneseq
      %v982 = vshrl.u32 %v981, 7
      %v983 = vsub.s32 4, %v982
      %v984 = vrot.slane %v930, %v983
      %v985 = vlaneseq
      %v986 = vshrl.u32 %v985, 7
      %v987 = vsub.s32 5, %v986
      %v988 = vrot.slane %v930, %v987
      %v989 = vlaneseq
      %v990 = vshrl.u32 %v989, 7
      %v991 = vsub.s32 6, %v990
      %v992 = vrot.slane %v930, %v991
      %v993 = vlaneseq
      %v994 = vshrl.u32 %v993, 7
      %v995 = vsub.s32 7, %v994
      %v996 = vrot.slane %v930, %v995
      %v1077 = vunpack.c.l.b16 %v737
      %v1078 = vunpack.c.h.b16 %v737
      %v1079 = vunpack.c.l.b16 %v738
      %v1080 = vunpack.c.h.b16 %v738
      %v1081 = vunpack.c.l.b16 %v739
      %v1082 = vunpack.c.h.b16 %v739
      %v1083 = vunpack.c.l.b16 %v740
      %v1084 = vunpack.c.h.b16 %v740
      %v1085 = vunpack.c.l.b16 %v741
      %v1086 = vunpack.c.h.b16 %v741
      %v1087 = vunpack.c.l.b16 %v742
      %v1088 = vunpack.c.h.b16 %v742
      %v1089 = vunpack.c.l.b16 %v743
      %v1090 = vunpack.c.h.b16 %v743
      %v1091 = vunpack.c.l.b16 %v744
      %v1092 = vunpack.c.h.b16 %v744
      %v1093 = vunpack.c.l.b16 %v745
      %v1094 = vunpack.c.h.b16 %v745
      %v1095 = vunpack.c.l.b16 %v746
      %v1096 = vunpack.c.h.b16 %v746
      %v1097 = vunpack.c.l.b16 %v747
      %v1098 = vunpack.c.h.b16 %v747
      %v1099 = vunpack.c.l.b16 %v748
      %v1100 = vunpack.c.h.b16 %v748
      %v1101 = vunpack.c.l.b16 %v749
      %v1102 = vunpack.c.h.b16 %v749
      %v1103 = vunpack.c.l.b16 %v750
      %v1104 = vunpack.c.h.b16 %v750
      %v1105 = vunpack.c.l.b16 %v751
      %v1106 = vunpack.c.h.b16 %v751
      %v1107 = vunpack.c.l.b16 %v752
      %v1108 = vunpack.c.h.b16 %v752
      %v1109 = vunpack.c.l.b16 %v753
      %v1110 = vunpack.c.h.b16 %v753
      %v1111 = vunpack.c.l.b16 %v754
      %v1112 = vunpack.c.h.b16 %v754
      %v1113 = vunpack.c.l.b16 %v755
      %v1114 = vunpack.c.h.b16 %v755
      %v1115 = vunpack.c.l.b16 %v756
      %v1116 = vunpack.c.h.b16 %v756
      %v1117 = vunpack.c.l.b16 %v757
      %v1118 = vunpack.c.h.b16 %v757
      %v1119 = vunpack.c.l.b16 %v758
      %v1120 = vunpack.c.h.b16 %v758
      %v1121 = vunpack.c.l.b16 %v759
      %v1122 = vunpack.c.h.b16 %v759
      %v1123 = vunpack.c.l.b16 %v760
      %v1124 = vunpack.c.h.b16 %v760
      %v1125 = vunpack.c.l.b16 %v761
      %v1126 = vunpack.c.h.b16 %v761
      %v1127 = vunpack.c.l.b16 %v762
      %v1128 = vunpack.c.h.b16 %v762
      %v1129 = vunpack.c.l.b16 %v763
      %v1130 = vunpack.c.h.b16 %v763
      %v1131 = vunpack.c.l.b16 %v764
      %v1132 = vunpack.c.h.b16 %v764
      %v1133 = vunpack.c.l.b16 %v765
      %v1134 = vunpack.c.h.b16 %v765
      %v1135 = vunpack.c.l.b16 %v766
      %v1136 = vunpack.c.h.b16 %v766
      %v1137 = vunpack.c.l.b16 %v767
      %v1138 = vunpack.c.h.b16 %v767
      %v1139 = vunpack.c.l.b16 %v768
      %v1140 = vunpack.c.h.b16 %v768
      %v1141 = vunpack.c.l.b16 %v769
      %v1142 = vunpack.c.h.b16 %v769
      %v1143 = vunpack.c.l.b16 %v770
      %v1144 = vunpack.c.h.b16 %v770
      %v1145 = vunpack.c.l.b16 %v771
      %v1146 = vunpack.c.h.b16 %v771
      %v1147 = vunpack.c.l.b16 %v772
      %v1148 = vunpack.c.h.b16 %v772
      %v1149 = vunpack.c.l.b16 %v773
      %v1150 = vunpack.c.h.b16 %v773
      %v1151 = vunpack.c.l.b16 %v774
      %v1152 = vunpack.c.h.b16 %v774
      %v1153 = vunpack.c.l.b16 %v775
      %v1154 = vunpack.c.h.b16 %v775
      %v1155 = vunpack.c.l.b16 %v776
      %v1156 = vunpack.c.h.b16 %v776
      %v1157 = vunpack.c.l.b16 %v777
      %v1158 = vunpack.c.h.b16 %v777
      %v1159 = vunpack.c.l.b16 %v778
      %v1160 = vunpack.c.h.b16 %v778
      %v1161 = vunpack.c.l.b16 %v779
      %v1162 = vunpack.c.h.b16 %v779
      %v1163 = vunpack.c.l.b16 %v780
      %v1164 = vunpack.c.h.b16 %v780
      %v1165 = vunpack.c.l.b16 %v781
      %v1166 = vunpack.c.h.b16 %v781
      %v1167 = vunpack.c.l.b16 %v782
      %v1168 = vunpack.c.h.b16 %v782
      %v1169 = vunpack.c.l.b16 %v783
      %v1170 = vunpack.c.h.b16 %v783
      %v1171 = vunpack.c.l.b16 %v784
      %v1172 = vunpack.c.h.b16 %v784
      %v1173 = vunpack.c.l.b16 %v785
      %v1174 = vunpack.c.h.b16 %v785
      %v1175 = vunpack.c.l.b16 %v786
      %v1176 = vunpack.c.h.b16 %v786
      %v1177 = vunpack.c.l.b16 %v787
      %v1178 = vunpack.c.h.b16 %v787
      %v1179 = vunpack.c.l.b16 %v788
      %v1180 = vunpack.c.h.b16 %v788
      %v1181 = vunpack.c.l.b16 %v789
      %v1182 = vunpack.c.h.b16 %v789
      %v1183 = vunpack.c.l.b16 %v790
      %v1184 = vunpack.c.h.b16 %v790
      %v1185 = vunpack.c.l.b16 %v791
      %v1186 = vunpack.c.h.b16 %v791
      %v1187 = vunpack.c.l.b16 %v792
      %v1188 = vunpack.c.h.b16 %v792
      %v1189 = vunpack.c.l.b16 %v793
      %v1190 = vunpack.c.h.b16 %v793
      %v1191 = vunpack.c.l.b16 %v794
      %v1192 = vunpack.c.h.b16 %v794
      %v1193 = vunpack.c.l.b16 %v795
      %v1194 = vunpack.c.h.b16 %v795
      %v1195 = vunpack.c.l.b16 %v796
      %v1196 = vunpack.c.h.b16 %v796
      %v1197 = vunpack.c.l.b16 %v797
      %v1198 = vunpack.c.h.b16 %v797
      %v1199 = vunpack.c.l.b16 %v798
      %v1200 = vunpack.c.h.b16 %v798
      %v1201 = vunpack.c.l.b16 %v799
      %v1202 = vunpack.c.h.b16 %v799
      %v1203 = vunpack.c.l.b16 %v800
      %v1204 = vunpack.c.h.b16 %v800
      %v1205 = vlaneseq
      %v1206 = vand.u32 %v1205, 127
      %v1207 = vlaneseq
      %v1208 = vshrl.u32 %v1207, 7
      %v1209 = vsub.s32 %v1206, %v1208
      %v1210 = vrot.slane %v1077, %v1209
      %v1211 = vadd.s32 %v1206, 4294967288
      %v1212 = vlaneseq
      %v1213 = vshrl.u32 %v1212, 7
      %v1214 = vsub.s32 %v1211, %v1213
      %v1215 = vrot.slane %v1078, %v1214
      %vm1216 = vcmask 130112
      %v1217 = vsel %vm1216, %v1215, %v1210
      %v1218 = vadd.s32 %v1206, 4294967280
      %v1219 = vlaneseq
      %v1220 = vshrl.u32 %v1219, 7
      %v1221 = vsub.s32 %v1218, %v1220
      %v1222 = vrot.slane %v1079, %v1221
      %vm1223 = vcmask 195712
      %v1224 = vsel %vm1223, %v1222, %v1217
      %v1225 = vadd.s32 %v1206, 4294967272
      %v1226 = vlaneseq
      %v1227 = vshrl.u32 %v1226, 7
      %v1228 = vsub.s32 %v1225, %v1227
      %v1229 = vrot.slane %v1080, %v1228
      %vm1230 = vcmask 261312
      %v1231 = vsel %vm1230, %v1229, %v1224
      %v1232 = vadd.s32 %v1206, 4294967264
      %v1233 = vlaneseq
      %v1234 = vshrl.u32 %v1233, 7
      %v1235 = vsub.s32 %v1232, %v1234
      %v1236 = vrot.slane %v1081, %v1235
      %vm1237 = vcmask 326912
      %v1238 = vsel %vm1237, %v1236, %v1231
      %v1239 = vadd.s32 %v1206, 4294967256
      %v1240 = vlaneseq
      %v1241 = vshrl.u32 %v1240, 7
      %v1242 = vsub.s32 %v1239, %v1241
      %v1243 = vrot.slane %v1082, %v1242
      %vm1244 = vcmask 392512
      %v1245 = vsel %vm1244, %v1243, %v1238
      %v1246 = vadd.s32 %v1206, 4294967248
      %v1247 = vlaneseq
      %v1248 = vshrl.u32 %v1247, 7
      %v1249 = vsub.s32 %v1246, %v1248
      %v1250 = vrot.slane %v1083, %v1249
      %vm1251 = vcmask 458112
      %v1252 = vsel %vm1251, %v1250, %v1245
      %v1253 = vadd.s32 %v1206, 4294967240
      %v1254 = vlaneseq
      %v1255 = vshrl.u32 %v1254, 7
      %v1256 = vsub.s32 %v1253, %v1255
      %v1257 = vrot.slane %v1084, %v1256
      %vm1258 = vcmask 523712
      %v1259 = vsel %vm1258, %v1257, %v1252
      %v1260 = vadd.s32 %v1206, 4294967232
      %v1261 = vlaneseq
      %v1262 = vshrl.u32 %v1261, 7
      %v1263 = vsub.s32 %v1260, %v1262
      %v1264 = vrot.slane %v1085, %v1263
      %vm1265 = vcmask 589312
      %v1266 = vsel %vm1265, %v1264, %v1259
      %v1267 = vadd.s32 %v1206, 4294967224
      %v1268 = vlaneseq
      %v1269 = vshrl.u32 %v1268, 7
      %v1270 = vsub.s32 %v1267, %v1269
      %v1271 = vrot.slane %v1086, %v1270
      %vm1272 = vcmask 654912
      %v1273 = vsel %vm1272, %v1271, %v1266
      %v1274 = vadd.s32 %v1206, 4294967216
      %v1275 = vlaneseq
      %v1276 = vshrl.u32 %v1275, 7
      %v1277 = vsub.s32 %v1274, %v1276
      %v1278 = vrot.slane %v1087, %v1277
      %vm1279 = vcmask 720512
      %v1280 = vsel %vm1279, %v1278, %v1273
      %v1281 = vadd.s32 %v1206, 4294967208
      %v1282 = vlaneseq
      %v1283 = vshrl.u32 %v1282, 7
      %v1284 = vsub.s32 %v1281, %v1283
      %v1285 = vrot.slane %v1088, %v1284
      %vm1286 = vcmask 786112
      %v1287 = vsel %vm1286, %v1285, %v1280
      %v1288 = vadd.s32 %v1206, 4294967200
      %v1289 = vlaneseq
      %v1290 = vshrl.u32 %v1289, 7
      %v1291 = vsub.s32 %v1288, %v1290
      %v1292 = vrot.slane %v1089, %v1291
      %vm1293 = vcmask 851712
      %v1294 = vsel %vm1293, %v1292, %v1287
      %v1295 = vadd.s32 %v1206, 4294967192
      %v1296 = vlaneseq
      %v1297 = vshrl.u32 %v1296, 7
      %v1298 = vsub.s32 %v1295, %v1297
      %v1299 = vrot.slane %v1090, %v1298
      %vm1300 = vcmask 917312
      %v1301 = vsel %vm1300, %v1299, %v1294
      %v1302 = vadd.s32 %v1206, 4294967184
      %v1303 = vlaneseq
      %v1304 = vshrl.u32 %v1303, 7
      %v1305 = vsub.s32 %v1302, %v1304
      %v1306 = vrot.slane %v1091, %v1305
      %vm1307 = vcmask 982912
      %v1308 = vsel %vm1307, %v1306, %v1301
      %v1309 = vadd.s32 %v1206, 4294967176
      %v1310 = vlaneseq
      %v1311 = vshrl.u32 %v1310, 7
      %v1312 = vsub.s32 %v1309, %v1311
      %v1313 = vrot.slane %v1092, %v1312
      %vm1314 = vcmask 1048512
      %v1315 = vsel %vm1314, %v1313, %v1308
      %v1316 = vlaneseq
      %v1317 = vshrl.u32 %v1316, 7
      %v1318 = vsub.s32 %v1206, %v1317
      %v1319 = vrot.slane %v1093, %v1318
      %v1320 = vlaneseq
      %v1321 = vshrl.u32 %v1320, 7
      %v1322 = vsub.s32 %v1211, %v1321
      %v1323 = vrot.slane %v1094, %v1322
      %v1324 = vsel %vm1216, %v1323, %v1319
      %v1325 = vlaneseq
      %v1326 = vshrl.u32 %v1325, 7
      %v1327 = vsub.s32 %v1218, %v1326
      %v1328 = vrot.slane %v1095, %v1327
      %v1329 = vsel %vm1223, %v1328, %v1324
      %v1330 = vlaneseq
      %v1331 = vshrl.u32 %v1330, 7
      %v1332 = vsub.s32 %v1225, %v1331
      %v1333 = vrot.slane %v1096, %v1332
      %v1334 = vsel %vm1230, %v1333, %v1329
      %v1335 = vlaneseq
      %v1336 = vshrl.u32 %v1335, 7
      %v1337 = vsub.s32 %v1232, %v1336
      %v1338 = vrot.slane %v1097, %v1337
      %v1339 = vsel %vm1237, %v1338, %v1334
      %v1340 = vlaneseq
      %v1341 = vshrl.u32 %v1340, 7
      %v1342 = vsub.s32 %v1239, %v1341
      %v1343 = vrot.slane %v1098, %v1342
      %v1344 = vsel %vm1244, %v1343, %v1339
      %v1345 = vlaneseq
      %v1346 = vshrl.u32 %v1345, 7
      %v1347 = vsub.s32 %v1246, %v1346
      %v1348 = vrot.slane %v1099, %v1347
      %v1349 = vsel %vm1251, %v1348, %v1344
      %v1350 = vlaneseq
      %v1351 = vshrl.u32 %v1350, 7
      %v1352 = vsub.s32 %v1253, %v1351
      %v1353 = vrot.slane %v1100, %v1352
      %v1354 = vsel %vm1258, %v1353, %v1349
      %v1355 = vlaneseq
      %v1356 = vshrl.u32 %v1355, 7
      %v1357 = vsub.s32 %v1260, %v1356
      %v1358 = vrot.slane %v1101, %v1357
      %v1359 = vsel %vm1265, %v1358, %v1354
      %v1360 = vlaneseq
      %v1361 = vshrl.u32 %v1360, 7
      %v1362 = vsub.s32 %v1267, %v1361
      %v1363 = vrot.slane %v1102, %v1362
      %v1364 = vsel %vm1272, %v1363, %v1359
      %v1365 = vlaneseq
      %v1366 = vshrl.u32 %v1365, 7
      %v1367 = vsub.s32 %v1274, %v1366
      %v1368 = vrot.slane %v1103, %v1367
      %v1369 = vsel %vm1279, %v1368, %v1364
      %v1370 = vlaneseq
      %v1371 = vshrl.u32 %v1370, 7
      %v1372 = vsub.s32 %v1281, %v1371
      %v1373 = vrot.slane %v1104, %v1372
      %v1374 = vsel %vm1286, %v1373, %v1369
      %v1375 = vlaneseq
      %v1376 = vshrl.u32 %v1375, 7
      %v1377 = vsub.s32 %v1288, %v1376
      %v1378 = vrot.slane %v1105, %v1377
      %v1379 = vsel %vm1293, %v1378, %v1374
      %v1380 = vlaneseq
      %v1381 = vshrl.u32 %v1380, 7
      %v1382 = vsub.s32 %v1295, %v1381
      %v1383 = vrot.slane %v1106, %v1382
      %v1384 = vsel %vm1300, %v1383, %v1379
      %v1385 = vlaneseq
      %v1386 = vshrl.u32 %v1385, 7
      %v1387 = vsub.s32 %v1302, %v1386
      %v1388 = vrot.slane %v1107, %v1387
      %v1389 = vsel %vm1307, %v1388, %v1384
      %v1390 = vlaneseq
      %v1391 = vshrl.u32 %v1390, 7
      %v1392 = vsub.s32 %v1309, %v1391
      %v1393 = vrot.slane %v1108, %v1392
      %v1394 = vsel %vm1314, %v1393, %v1389
      %v1395 = vlaneseq
      %v1396 = vshrl.u32 %v1395, 7
      %v1397 = vsub.s32 %v1206, %v1396
      %v1398 = vrot.slane %v1109, %v1397
      %v1399 = vlaneseq
      %v1400 = vshrl.u32 %v1399, 7
      %v1401 = vsub.s32 %v1211, %v1400
      %v1402 = vrot.slane %v1110, %v1401
      %v1403 = vsel %vm1216, %v1402, %v1398
      %v1404 = vlaneseq
      %v1405 = vshrl.u32 %v1404, 7
      %v1406 = vsub.s32 %v1218, %v1405
      %v1407 = vrot.slane %v1111, %v1406
      %v1408 = vsel %vm1223, %v1407, %v1403
      %v1409 = vlaneseq
      %v1410 = vshrl.u32 %v1409, 7
      %v1411 = vsub.s32 %v1225, %v1410
      %v1412 = vrot.slane %v1112, %v1411
      %v1413 = vsel %vm1230, %v1412, %v1408
      %v1414 = vlaneseq
      %v1415 = vshrl.u32 %v1414, 7
      %v1416 = vsub.s32 %v1232, %v1415
      %v1417 = vrot.slane %v1113, %v1416
      %v1418 = vsel %vm1237, %v1417, %v1413
      %v1419 = vlaneseq
      %v1420 = vshrl.u32 %v1419, 7
      %v1421 = vsub.s32 %v1239, %v1420
      %v1422 = vrot.slane %v1114, %v1421
      %v1423 = vsel %vm1244, %v1422, %v1418
      %v1424 = vlaneseq
      %v1425 = vshrl.u32 %v1424, 7
      %v1426 = vsub.s32 %v1246, %v1425
      %v1427 = vrot.slane %v1115, %v1426
      %v1428 = vsel %vm1251, %v1427, %v1423
      %v1429 = vlaneseq
      %v1430 = vshrl.u32 %v1429, 7
      %v1431 = vsub.s32 %v1253, %v1430
      %v1432 = vrot.slane %v1116, %v1431
      %v1433 = vsel %vm1258, %v1432, %v1428
      %v1434 = vlaneseq
      %v1435 = vshrl.u32 %v1434, 7
      %v1436 = vsub.s32 %v1260, %v1435
      %v1437 = vrot.slane %v1117, %v1436
      %v1438 = vsel %vm1265, %v1437, %v1433
      %v1439 = vlaneseq
      %v1440 = vshrl.u32 %v1439, 7
      %v1441 = vsub.s32 %v1267, %v1440
      %v1442 = vrot.slane %v1118, %v1441
      %v1443 = vsel %vm1272, %v1442, %v1438
      %v1444 = vlaneseq
      %v1445 = vshrl.u32 %v1444, 7
      %v1446 = vsub.s32 %v1274, %v1445
      %v1447 = vrot.slane %v1119, %v1446
      %v1448 = vsel %vm1279, %v1447, %v1443
      %v1449 = vlaneseq
      %v1450 = vshrl.u32 %v1449, 7
      %v1451 = vsub.s32 %v1281, %v1450
      %v1452 = vrot.slane %v1120, %v1451
      %v1453 = vsel %vm1286, %v1452, %v1448
      %v1454 = vlaneseq
      %v1455 = vshrl.u32 %v1454, 7
      %v1456 = vsub.s32 %v1288, %v1455
      %v1457 = vrot.slane %v1121, %v1456
      %v1458 = vsel %vm1293, %v1457, %v1453
      %v1459 = vlaneseq
      %v1460 = vshrl.u32 %v1459, 7
      %v1461 = vsub.s32 %v1295, %v1460
      %v1462 = vrot.slane %v1122, %v1461
      %v1463 = vsel %vm1300, %v1462, %v1458
      %v1464 = vlaneseq
      %v1465 = vshrl.u32 %v1464, 7
      %v1466 = vsub.s32 %v1302, %v1465
      %v1467 = vrot.slane %v1123, %v1466
      %v1468 = vsel %vm1307, %v1467, %v1463
      %v1469 = vlaneseq
      %v1470 = vshrl.u32 %v1469, 7
      %v1471 = vsub.s32 %v1309, %v1470
      %v1472 = vrot.slane %v1124, %v1471
      %v1473 = vsel %vm1314, %v1472, %v1468
      %v1474 = vlaneseq
      %v1475 = vshrl.u32 %v1474, 7
      %v1476 = vsub.s32 %v1206, %v1475
      %v1477 = vrot.slane %v1125, %v1476
      %v1478 = vlaneseq
      %v1479 = vshrl.u32 %v1478, 7
      %v1480 = vsub.s32 %v1211, %v1479
      %v1481 = vrot.slane %v1126, %v1480
      %v1482 = vsel %vm1216, %v1481, %v1477
      %v1483 = vlaneseq
      %v1484 = vshrl.u32 %v1483, 7
      %v1485 = vsub.s32 %v1218, %v1484
      %v1486 = vrot.slane %v1127, %v1485
      %v1487 = vsel %vm1223, %v1486, %v1482
      %v1488 = vlaneseq
      %v1489 = vshrl.u32 %v1488, 7
      %v1490 = vsub.s32 %v1225, %v1489
      %v1491 = vrot.slane %v1128, %v1490
      %v1492 = vsel %vm1230, %v1491, %v1487
      %v1493 = vlaneseq
      %v1494 = vshrl.u32 %v1493, 7
      %v1495 = vsub.s32 %v1232, %v1494
      %v1496 = vrot.slane %v1129, %v1495
      %v1497 = vsel %vm1237, %v1496, %v1492
      %v1498 = vlaneseq
      %v1499 = vshrl.u32 %v1498, 7
      %v1500 = vsub.s32 %v1239, %v1499
      %v1501 = vrot.slane %v1130, %v1500
      %v1502 = vsel %vm1244, %v1501, %v1497
      %v1503 = vlaneseq
      %v1504 = vshrl.u32 %v1503, 7
      %v1505 = vsub.s32 %v1246, %v1504
      %v1506 = vrot.slane %v1131, %v1505
      %v1507 = vsel %vm1251, %v1506, %v1502
      %v1508 = vlaneseq
      %v1509 = vshrl.u32 %v1508, 7
      %v1510 = vsub.s32 %v1253, %v1509
      %v1511 = vrot.slane %v1132, %v1510
      %v1512 = vsel %vm1258, %v1511, %v1507
      %v1513 = vlaneseq
      %v1514 = vshrl.u32 %v1513, 7
      %v1515 = vsub.s32 %v1260, %v1514
      %v1516 = vrot.slane %v1133, %v1515
      %v1517 = vsel %vm1265, %v1516, %v1512
      %v1518 = vlaneseq
      %v1519 = vshrl.u32 %v1518, 7
      %v1520 = vsub.s32 %v1267, %v1519
      %v1521 = vrot.slane %v1134, %v1520
      %v1522 = vsel %vm1272, %v1521, %v1517
      %v1523 = vlaneseq
      %v1524 = vshrl.u32 %v1523, 7
      %v1525 = vsub.s32 %v1274, %v1524
      %v1526 = vrot.slane %v1135, %v1525
      %v1527 = vsel %vm1279, %v1526, %v1522
      %v1528 = vlaneseq
      %v1529 = vshrl.u32 %v1528, 7
      %v1530 = vsub.s32 %v1281, %v1529
      %v1531 = vrot.slane %v1136, %v1530
      %v1532 = vsel %vm1286, %v1531, %v1527
      %v1533 = vlaneseq
      %v1534 = vshrl.u32 %v1533, 7
      %v1535 = vsub.s32 %v1288, %v1534
      %v1536 = vrot.slane %v1137, %v1535
      %v1537 = vsel %vm1293, %v1536, %v1532
      %v1538 = vlaneseq
      %v1539 = vshrl.u32 %v1538, 7
      %v1540 = vsub.s32 %v1295, %v1539
      %v1541 = vrot.slane %v1138, %v1540
      %v1542 = vsel %vm1300, %v1541, %v1537
      %v1543 = vlaneseq
      %v1544 = vshrl.u32 %v1543, 7
      %v1545 = vsub.s32 %v1302, %v1544
      %v1546 = vrot.slane %v1139, %v1545
      %v1547 = vsel %vm1307, %v1546, %v1542
      %v1548 = vlaneseq
      %v1549 = vshrl.u32 %v1548, 7
      %v1550 = vsub.s32 %v1309, %v1549
      %v1551 = vrot.slane %v1140, %v1550
      %v1552 = vsel %vm1314, %v1551, %v1547
      %v1553 = vlaneseq
      %v1554 = vshrl.u32 %v1553, 7
      %v1555 = vsub.s32 %v1206, %v1554
      %v1556 = vrot.slane %v1141, %v1555
      %v1557 = vlaneseq
      %v1558 = vshrl.u32 %v1557, 7
      %v1559 = vsub.s32 %v1211, %v1558
      %v1560 = vrot.slane %v1142, %v1559
      %v1561 = vsel %vm1216, %v1560, %v1556
      %v1562 = vlaneseq
      %v1563 = vshrl.u32 %v1562, 7
      %v1564 = vsub.s32 %v1218, %v1563
      %v1565 = vrot.slane %v1143, %v1564
      %v1566 = vsel %vm1223, %v1565, %v1561
      %v1567 = vlaneseq
      %v1568 = vshrl.u32 %v1567, 7
      %v1569 = vsub.s32 %v1225, %v1568
      %v1570 = vrot.slane %v1144, %v1569
      %v1571 = vsel %vm1230, %v1570, %v1566
      %v1572 = vlaneseq
      %v1573 = vshrl.u32 %v1572, 7
      %v1574 = vsub.s32 %v1232, %v1573
      %v1575 = vrot.slane %v1145, %v1574
      %v1576 = vsel %vm1237, %v1575, %v1571
      %v1577 = vlaneseq
      %v1578 = vshrl.u32 %v1577, 7
      %v1579 = vsub.s32 %v1239, %v1578
      %v1580 = vrot.slane %v1146, %v1579
      %v1581 = vsel %vm1244, %v1580, %v1576
      %v1582 = vlaneseq
      %v1583 = vshrl.u32 %v1582, 7
      %v1584 = vsub.s32 %v1246, %v1583
      %v1585 = vrot.slane %v1147, %v1584
      %v1586 = vsel %vm1251, %v1585, %v1581
      %v1587 = vlaneseq
      %v1588 = vshrl.u32 %v1587, 7
      %v1589 = vsub.s32 %v1253, %v1588
      %v1590 = vrot.slane %v1148, %v1589
      %v1591 = vsel %vm1258, %v1590, %v1586
      %v1592 = vlaneseq
      %v1593 = vshrl.u32 %v1592, 7
      %v1594 = vsub.s32 %v1260, %v1593
      %v1595 = vrot.slane %v1149, %v1594
      %v1596 = vsel %vm1265, %v1595, %v1591
      %v1597 = vlaneseq
      %v1598 = vshrl.u32 %v1597, 7
      %v1599 = vsub.s32 %v1267, %v1598
      %v1600 = vrot.slane %v1150, %v1599
      %v1601 = vsel %vm1272, %v1600, %v1596
      %v1602 = vlaneseq
      %v1603 = vshrl.u32 %v1602, 7
      %v1604 = vsub.s32 %v1274, %v1603
      %v1605 = vrot.slane %v1151, %v1604
      %v1606 = vsel %vm1279, %v1605, %v1601
      %v1607 = vlaneseq
      %v1608 = vshrl.u32 %v1607, 7
      %v1609 = vsub.s32 %v1281, %v1608
      %v1610 = vrot.slane %v1152, %v1609
      %v1611 = vsel %vm1286, %v1610, %v1606
      %v1612 = vlaneseq
      %v1613 = vshrl.u32 %v1612, 7
      %v1614 = vsub.s32 %v1288, %v1613
      %v1615 = vrot.slane %v1153, %v1614
      %v1616 = vsel %vm1293, %v1615, %v1611
      %v1617 = vlaneseq
      %v1618 = vshrl.u32 %v1617, 7
      %v1619 = vsub.s32 %v1295, %v1618
      %v1620 = vrot.slane %v1154, %v1619
      %v1621 = vsel %vm1300, %v1620, %v1616
      %v1622 = vlaneseq
      %v1623 = vshrl.u32 %v1622, 7
      %v1624 = vsub.s32 %v1302, %v1623
      %v1625 = vrot.slane %v1155, %v1624
      %v1626 = vsel %vm1307, %v1625, %v1621
      %v1627 = vlaneseq
      %v1628 = vshrl.u32 %v1627, 7
      %v1629 = vsub.s32 %v1309, %v1628
      %v1630 = vrot.slane %v1156, %v1629
      %v1631 = vsel %vm1314, %v1630, %v1626
      %v1632 = vlaneseq
      %v1633 = vshrl.u32 %v1632, 7
      %v1634 = vsub.s32 %v1206, %v1633
      %v1635 = vrot.slane %v1157, %v1634
      %v1636 = vlaneseq
      %v1637 = vshrl.u32 %v1636, 7
      %v1638 = vsub.s32 %v1211, %v1637
      %v1639 = vrot.slane %v1158, %v1638
      %v1640 = vsel %vm1216, %v1639, %v1635
      %v1641 = vlaneseq
      %v1642 = vshrl.u32 %v1641, 7
      %v1643 = vsub.s32 %v1218, %v1642
      %v1644 = vrot.slane %v1159, %v1643
      %v1645 = vsel %vm1223, %v1644, %v1640
      %v1646 = vlaneseq
      %v1647 = vshrl.u32 %v1646, 7
      %v1648 = vsub.s32 %v1225, %v1647
      %v1649 = vrot.slane %v1160, %v1648
      %v1650 = vsel %vm1230, %v1649, %v1645
      %v1651 = vlaneseq
      %v1652 = vshrl.u32 %v1651, 7
      %v1653 = vsub.s32 %v1232, %v1652
      %v1654 = vrot.slane %v1161, %v1653
      %v1655 = vsel %vm1237, %v1654, %v1650
      %v1656 = vlaneseq
      %v1657 = vshrl.u32 %v1656, 7
      %v1658 = vsub.s32 %v1239, %v1657
      %v1659 = vrot.slane %v1162, %v1658
      %v1660 = vsel %vm1244, %v1659, %v1655
      %v1661 = vlaneseq
      %v1662 = vshrl.u32 %v1661, 7
      %v1663 = vsub.s32 %v1246, %v1662
      %v1664 = vrot.slane %v1163, %v1663
      %v1665 = vsel %vm1251, %v1664, %v1660
      %v1666 = vlaneseq
      %v1667 = vshrl.u32 %v1666, 7
      %v1668 = vsub.s32 %v1253, %v1667
      %v1669 = vrot.slane %v1164, %v1668
      %v1670 = vsel %vm1258, %v1669, %v1665
      %v1671 = vlaneseq
      %v1672 = vshrl.u32 %v1671, 7
      %v1673 = vsub.s32 %v1260, %v1672
      %v1674 = vrot.slane %v1165, %v1673
      %v1675 = vsel %vm1265, %v1674, %v1670
      %v1676 = vlaneseq
      %v1677 = vshrl.u32 %v1676, 7
      %v1678 = vsub.s32 %v1267, %v1677
      %v1679 = vrot.slane %v1166, %v1678
      %v1680 = vsel %vm1272, %v1679, %v1675
      %v1681 = vlaneseq
      %v1682 = vshrl.u32 %v1681, 7
      %v1683 = vsub.s32 %v1274, %v1682
      %v1684 = vrot.slane %v1167, %v1683
      %v1685 = vsel %vm1279, %v1684, %v1680
      %v1686 = vlaneseq
      %v1687 = vshrl.u32 %v1686, 7
      %v1688 = vsub.s32 %v1281, %v1687
      %v1689 = vrot.slane %v1168, %v1688
      %v1690 = vsel %vm1286, %v1689, %v1685
      %v1691 = vlaneseq
      %v1692 = vshrl.u32 %v1691, 7
      %v1693 = vsub.s32 %v1288, %v1692
      %v1694 = vrot.slane %v1169, %v1693
      %v1695 = vsel %vm1293, %v1694, %v1690
      %v1696 = vlaneseq
      %v1697 = vshrl.u32 %v1696, 7
      %v1698 = vsub.s32 %v1295, %v1697
      %v1699 = vrot.slane %v1170, %v1698
      %v1700 = vsel %vm1300, %v1699, %v1695
      %v1701 = vlaneseq
      %v1702 = vshrl.u32 %v1701, 7
      %v1703 = vsub.s32 %v1302, %v1702
      %v1704 = vrot.slane %v1171, %v1703
      %v1705 = vsel %vm1307, %v1704, %v1700
      %v1706 = vlaneseq
      %v1707 = vshrl.u32 %v1706, 7
      %v1708 = vsub.s32 %v1309, %v1707
      %v1709 = vrot.slane %v1172, %v1708
      %v1710 = vsel %vm1314, %v1709, %v1705
      %v1711 = vlaneseq
      %v1712 = vshrl.u32 %v1711, 7
      %v1713 = vsub.s32 %v1206, %v1712
      %v1714 = vrot.slane %v1173, %v1713
      %v1715 = vlaneseq
      %v1716 = vshrl.u32 %v1715, 7
      %v1717 = vsub.s32 %v1211, %v1716
      %v1718 = vrot.slane %v1174, %v1717
      %v1719 = vsel %vm1216, %v1718, %v1714
      %v1720 = vlaneseq
      %v1721 = vshrl.u32 %v1720, 7
      %v1722 = vsub.s32 %v1218, %v1721
      %v1723 = vrot.slane %v1175, %v1722
      %v1724 = vsel %vm1223, %v1723, %v1719
      %v1725 = vlaneseq
      %v1726 = vshrl.u32 %v1725, 7
      %v1727 = vsub.s32 %v1225, %v1726
      %v1728 = vrot.slane %v1176, %v1727
      %v1729 = vsel %vm1230, %v1728, %v1724
      %v1730 = vlaneseq
      %v1731 = vshrl.u32 %v1730, 7
      %v1732 = vsub.s32 %v1232, %v1731
      %v1733 = vrot.slane %v1177, %v1732
      %v1734 = vsel %vm1237, %v1733, %v1729
      %v1735 = vlaneseq
      %v1736 = vshrl.u32 %v1735, 7
      %v1737 = vsub.s32 %v1239, %v1736
      %v1738 = vrot.slane %v1178, %v1737
      %v1739 = vsel %vm1244, %v1738, %v1734
      %v1740 = vlaneseq
      %v1741 = vshrl.u32 %v1740, 7
      %v1742 = vsub.s32 %v1246, %v1741
      %v1743 = vrot.slane %v1179, %v1742
      %v1744 = vsel %vm1251, %v1743, %v1739
      %v1745 = vlaneseq
      %v1746 = vshrl.u32 %v1745, 7
      %v1747 = vsub.s32 %v1253, %v1746
      %v1748 = vrot.slane %v1180, %v1747
      %v1749 = vsel %vm1258, %v1748, %v1744
      %v1750 = vlaneseq
      %v1751 = vshrl.u32 %v1750, 7
      %v1752 = vsub.s32 %v1260, %v1751
      %v1753 = vrot.slane %v1181, %v1752
      %v1754 = vsel %vm1265, %v1753, %v1749
      %v1755 = vlaneseq
      %v1756 = vshrl.u32 %v1755, 7
      %v1757 = vsub.s32 %v1267, %v1756
      %v1758 = vrot.slane %v1182, %v1757
      %v1759 = vsel %vm1272, %v1758, %v1754
      %v1760 = vlaneseq
      %v1761 = vshrl.u32 %v1760, 7
      %v1762 = vsub.s32 %v1274, %v1761
      %v1763 = vrot.slane %v1183, %v1762
      %v1764 = vsel %vm1279, %v1763, %v1759
      %v1765 = vlaneseq
      %v1766 = vshrl.u32 %v1765, 7
      %v1767 = vsub.s32 %v1281, %v1766
      %v1768 = vrot.slane %v1184, %v1767
      %v1769 = vsel %vm1286, %v1768, %v1764
      %v1770 = vlaneseq
      %v1771 = vshrl.u32 %v1770, 7
      %v1772 = vsub.s32 %v1288, %v1771
      %v1773 = vrot.slane %v1185, %v1772
      %v1774 = vsel %vm1293, %v1773, %v1769
      %v1775 = vlaneseq
      %v1776 = vshrl.u32 %v1775, 7
      %v1777 = vsub.s32 %v1295, %v1776
      %v1778 = vrot.slane %v1186, %v1777
      %v1779 = vsel %vm1300, %v1778, %v1774
      %v1780 = vlaneseq
      %v1781 = vshrl.u32 %v1780, 7
      %v1782 = vsub.s32 %v1302, %v1781
      %v1783 = vrot.slane %v1187, %v1782
      %v1784 = vsel %vm1307, %v1783, %v1779
      %v1785 = vlaneseq
      %v1786 = vshrl.u32 %v1785, 7
      %v1787 = vsub.s32 %v1309, %v1786
      %v1788 = vrot.slane %v1188, %v1787
      %v1789 = vsel %vm1314, %v1788, %v1784
      %v1790 = vlaneseq
      %v1791 = vshrl.u32 %v1790, 7
      %v1792 = vsub.s32 %v1206, %v1791
      %v1793 = vrot.slane %v1189, %v1792
      %v1794 = vlaneseq
      %v1795 = vshrl.u32 %v1794, 7
      %v1796 = vsub.s32 %v1211, %v1795
      %v1797 = vrot.slane %v1190, %v1796
      %v1798 = vsel %vm1216, %v1797, %v1793
      %v1799 = vlaneseq
      %v1800 = vshrl.u32 %v1799, 7
      %v1801 = vsub.s32 %v1218, %v1800
      %v1802 = vrot.slane %v1191, %v1801
      %v1803 = vsel %vm1223, %v1802, %v1798
      %v1804 = vlaneseq
      %v1805 = vshrl.u32 %v1804, 7
      %v1806 = vsub.s32 %v1225, %v1805
      %v1807 = vrot.slane %v1192, %v1806
      %v1808 = vsel %vm1230, %v1807, %v1803
      %v1809 = vlaneseq
      %v1810 = vshrl.u32 %v1809, 7
      %v1811 = vsub.s32 %v1232, %v1810
      %v1812 = vrot.slane %v1193, %v1811
      %v1813 = vsel %vm1237, %v1812, %v1808
      %v1814 = vlaneseq
      %v1815 = vshrl.u32 %v1814, 7
      %v1816 = vsub.s32 %v1239, %v1815
      %v1817 = vrot.slane %v1194, %v1816
      %v1818 = vsel %vm1244, %v1817, %v1813
      %v1819 = vlaneseq
      %v1820 = vshrl.u32 %v1819, 7
      %v1821 = vsub.s32 %v1246, %v1820
      %v1822 = vrot.slane %v1195, %v1821
      %v1823 = vsel %vm1251, %v1822, %v1818
      %v1824 = vlaneseq
      %v1825 = vshrl.u32 %v1824, 7
      %v1826 = vsub.s32 %v1253, %v1825
      %v1827 = vrot.slane %v1196, %v1826
      %v1828 = vsel %vm1258, %v1827, %v1823
      %v1829 = vlaneseq
      %v1830 = vshrl.u32 %v1829, 7
      %v1831 = vsub.s32 %v1260, %v1830
      %v1832 = vrot.slane %v1197, %v1831
      %v1833 = vsel %vm1265, %v1832, %v1828
      %v1834 = vlaneseq
      %v1835 = vshrl.u32 %v1834, 7
      %v1836 = vsub.s32 %v1267, %v1835
      %v1837 = vrot.slane %v1198, %v1836
      %v1838 = vsel %vm1272, %v1837, %v1833
      %v1839 = vlaneseq
      %v1840 = vshrl.u32 %v1839, 7
      %v1841 = vsub.s32 %v1274, %v1840
      %v1842 = vrot.slane %v1199, %v1841
      %v1843 = vsel %vm1279, %v1842, %v1838
      %v1844 = vlaneseq
      %v1845 = vshrl.u32 %v1844, 7
      %v1846 = vsub.s32 %v1281, %v1845
      %v1847 = vrot.slane %v1200, %v1846
      %v1848 = vsel %vm1286, %v1847, %v1843
      %v1849 = vlaneseq
      %v1850 = vshrl.u32 %v1849, 7
      %v1851 = vsub.s32 %v1288, %v1850
      %v1852 = vrot.slane %v1201, %v1851
      %v1853 = vsel %vm1293, %v1852, %v1848
      %v1854 = vlaneseq
      %v1855 = vshrl.u32 %v1854, 7
      %v1856 = vsub.s32 %v1295, %v1855
      %v1857 = vrot.slane %v1202, %v1856
      %v1858 = vsel %vm1300, %v1857, %v1853
      %v1859 = vlaneseq
      %v1860 = vshrl.u32 %v1859, 7
      %v1861 = vsub.s32 %v1302, %v1860
      %v1862 = vrot.slane %v1203, %v1861
      %v1863 = vsel %vm1307, %v1862, %v1858
      %v1864 = vlaneseq
      %v1865 = vshrl.u32 %v1864, 7
      %v1866 = vsub.s32 %v1309, %v1865
      %v1867 = vrot.slane %v1204, %v1866
      %v1868 = vsel %vm1314, %v1867, %v1863
      %vm1869 = vcmask 1041409
      %v1870 = vsel %vm1869, %v1394, %v1315
      %vm1871 = vcmask 1042434
      %v1872 = vsel %vm1871, %v1473, %v1870
      %vm1873 = vcmask 1043459
      %v1874 = vsel %vm1873, %v1552, %v1872
      %vm1875 = vcmask 1044484
      %v1876 = vsel %vm1875, %v1631, %v1874
      %vm1877 = vcmask 1045509
      %v1878 = vsel %vm1877, %v1710, %v1876
      %vm1879 = vcmask 1046534
      %v1880 = vsel %vm1879, %v1789, %v1878
      %vm1881 = vcmask 1047559
      %v1882 = vsel %vm1881, %v1868, %v1880
      %v1883 = vpack.c.b16 %v1882, %v1882
      %v2013 = vunpack.c.l.b16 %v801
      %v2014 = vunpack.c.h.b16 %v801
      %v2015 = vunpack.c.l.b16 %v802
      %v2016 = vunpack.c.h.b16 %v802
      %v2017 = vunpack.c.l.b16 %v803
      %v2018 = vunpack.c.h.b16 %v803
      %v2019 = vunpack.c.l.b16 %v804
      %v2020 = vunpack.c.h.b16 %v804
      %v2021 = vunpack.c.l.b16 %v805
      %v2022 = vunpack.c.h.b16 %v805
      %v2023 = vunpack.c.l.b16 %v806
      %v2024 = vunpack.c.h.b16 %v806
      %v2025 = vunpack.c.l.b16 %v807
      %v2026 = vunpack.c.h.b16 %v807
      %v2027 = vunpack.c.l.b16 %v808
      %v2028 = vunpack.c.h.b16 %v808
      %v2029 = vunpack.c.l.b16 %v809
      %v2030 = vunpack.c.h.b16 %v809
      %v2031 = vunpack.c.l.b16 %v810
      %v2032 = vunpack.c.h.b16 %v810
      %v2033 = vunpack.c.l.b16 %v811
      %v2034 = vunpack.c.h.b16 %v811
      %v2035 = vunpack.c.l.b16 %v812
      %v2036 = vunpack.c.h.b16 %v812
      %v2037 = vunpack.c.l.b16 %v813
      %v2038 = vunpack.c.h.b16 %v813
      %v2039 = vunpack.c.l.b16 %v814
      %v2040 = vunpack.c.h.b16 %v814
      %v2041 = vunpack.c.l.b16 %v815
      %v2042 = vunpack.c.h.b16 %v815
      %v2043 = vunpack.c.l.b16 %v816
      %v2044 = vunpack.c.h.b16 %v816
      %v2045 = vunpack.c.l.b16 %v817
      %v2046 = vunpack.c.h.b16 %v817
      %v2047 = vunpack.c.l.b16 %v818
      %v2048 = vunpack.c.h.b16 %v818
      %v2049 = vunpack.c.l.b16 %v819
      %v2050 = vunpack.c.h.b16 %v819
      %v2051 = vunpack.c.l.b16 %v820
      %v2052 = vunpack.c.h.b16 %v820
      %v2053 = vunpack.c.l.b16 %v821
      %v2054 = vunpack.c.h.b16 %v821
      %v2055 = vunpack.c.l.b16 %v822
      %v2056 = vunpack.c.h.b16 %v822
      %v2057 = vunpack.c.l.b16 %v823
      %v2058 = vunpack.c.h.b16 %v823
      %v2059 = vunpack.c.l.b16 %v824
      %v2060 = vunpack.c.h.b16 %v824
      %v2061 = vunpack.c.l.b16 %v825
      %v2062 = vunpack.c.h.b16 %v825
      %v2063 = vunpack.c.l.b16 %v826
      %v2064 = vunpack.c.h.b16 %v826
      %v2065 = vunpack.c.l.b16 %v827
      %v2066 = vunpack.c.h.b16 %v827
      %v2067 = vunpack.c.l.b16 %v828
      %v2068 = vunpack.c.h.b16 %v828
      %v2069 = vunpack.c.l.b16 %v829
      %v2070 = vunpack.c.h.b16 %v829
      %v2071 = vunpack.c.l.b16 %v830
      %v2072 = vunpack.c.h.b16 %v830
      %v2073 = vunpack.c.l.b16 %v831
      %v2074 = vunpack.c.h.b16 %v831
      %v2075 = vunpack.c.l.b16 %v832
      %v2076 = vunpack.c.h.b16 %v832
      %v2077 = vunpack.c.l.b16 %v833
      %v2078 = vunpack.c.h.b16 %v833
      %v2079 = vunpack.c.l.b16 %v834
      %v2080 = vunpack.c.h.b16 %v834
      %v2081 = vunpack.c.l.b16 %v835
      %v2082 = vunpack.c.h.b16 %v835
      %v2083 = vunpack.c.l.b16 %v836
      %v2084 = vunpack.c.h.b16 %v836
      %v2085 = vunpack.c.l.b16 %v837
      %v2086 = vunpack.c.h.b16 %v837
      %v2087 = vunpack.c.l.b16 %v838
      %v2088 = vunpack.c.h.b16 %v838
      %v2089 = vunpack.c.l.b16 %v839
      %v2090 = vunpack.c.h.b16 %v839
      %v2091 = vunpack.c.l.b16 %v840
      %v2092 = vunpack.c.h.b16 %v840
      %v2093 = vunpack.c.l.b16 %v841
      %v2094 = vunpack.c.h.b16 %v841
      %v2095 = vunpack.c.l.b16 %v842
      %v2096 = vunpack.c.h.b16 %v842
      %v2097 = vunpack.c.l.b16 %v843
      %v2098 = vunpack.c.h.b16 %v843
      %v2099 = vunpack.c.l.b16 %v844
      %v2100 = vunpack.c.h.b16 %v844
      %v2101 = vunpack.c.l.b16 %v845
      %v2102 = vunpack.c.h.b16 %v845
      %v2103 = vunpack.c.l.b16 %v846
      %v2104 = vunpack.c.h.b16 %v846
      %v2105 = vunpack.c.l.b16 %v847
      %v2106 = vunpack.c.h.b16 %v847
      %v2107 = vunpack.c.l.b16 %v848
      %v2108 = vunpack.c.h.b16 %v848
      %v2109 = vunpack.c.l.b16 %v849
      %v2110 = vunpack.c.h.b16 %v849
      %v2111 = vunpack.c.l.b16 %v850
      %v2112 = vunpack.c.h.b16 %v850
      %v2113 = vunpack.c.l.b16 %v851
      %v2114 = vunpack.c.h.b16 %v851
      %v2115 = vunpack.c.l.b16 %v852
      %v2116 = vunpack.c.h.b16 %v852
      %v2117 = vunpack.c.l.b16 %v853
      %v2118 = vunpack.c.h.b16 %v853
      %v2119 = vunpack.c.l.b16 %v854
      %v2120 = vunpack.c.h.b16 %v854
      %v2121 = vunpack.c.l.b16 %v855
      %v2122 = vunpack.c.h.b16 %v855
      %v2123 = vunpack.c.l.b16 %v856
      %v2124 = vunpack.c.h.b16 %v856
      %v2125 = vunpack.c.l.b16 %v857
      %v2126 = vunpack.c.h.b16 %v857
      %v2127 = vunpack.c.l.b16 %v858
      %v2128 = vunpack.c.h.b16 %v858
      %v2129 = vunpack.c.l.b16 %v859
      %v2130 = vunpack.c.h.b16 %v859
      %v2131 = vunpack.c.l.b16 %v860
      %v2132 = vunpack.c.h.b16 %v860
      %v2133 = vunpack.c.l.b16 %v861
      %v2134 = vunpack.c.h.b16 %v861
      %v2135 = vunpack.c.l.b16 %v862
      %v2136 = vunpack.c.h.b16 %v862
      %v2137 = vunpack.c.l.b16 %v863
      %v2138 = vunpack.c.h.b16 %v863
      %v2139 = vunpack.c.l.b16 %v864
      %v2140 = vunpack.c.h.b16 %v864
      %v2141 = vunpack.c.l.b16 %v865
      %v2142 = vunpack.c.h.b16 %v865
      %v2143 = vunpack.c.l.b16 %v866
      %v2144 = vunpack.c.h.b16 %v866
      %v2145 = vunpack.c.l.b16 %v867
      %v2146 = vunpack.c.h.b16 %v867
      %v2147 = vunpack.c.l.b16 %v868
      %v2148 = vunpack.c.h.b16 %v868
      %v2149 = vunpack.c.l.b16 %v869
      %v2150 = vunpack.c.h.b16 %v869
      %v2151 = vunpack.c.l.b16 %v870
      %v2152 = vunpack.c.h.b16 %v870
      %v2153 = vunpack.c.l.b16 %v871
      %v2154 = vunpack.c.h.b16 %v871
      %v2155 = vunpack.c.l.b16 %v872
      %v2156 = vunpack.c.h.b16 %v872
      %v2157 = vunpack.c.l.b16 %v873
      %v2158 = vunpack.c.h.b16 %v873
      %v2159 = vunpack.c.l.b16 %v874
      %v2160 = vunpack.c.h.b16 %v874
      %v2161 = vunpack.c.l.b16 %v875
      %v2162 = vunpack.c.h.b16 %v875
      %v2163 = vunpack.c.l.b16 %v876
      %v2164 = vunpack.c.h.b16 %v876
      %v2165 = vunpack.c.l.b16 %v877
      %v2166 = vunpack.c.h.b16 %v877
      %v2167 = vunpack.c.l.b16 %v878
      %v2168 = vunpack.c.h.b16 %v878
      %v2169 = vunpack.c.l.b16 %v879
      %v2170 = vunpack.c.h.b16 %v879
      %v2171 = vunpack.c.l.b16 %v880
      %v2172 = vunpack.c.h.b16 %v880
      %v2173 = vunpack.c.l.b16 %v881
      %v2174 = vunpack.c.h.b16 %v881
      %v2175 = vunpack.c.l.b16 %v882
      %v2176 = vunpack.c.h.b16 %v882
      %v2177 = vunpack.c.l.b16 %v883
      %v2178 = vunpack.c.h.b16 %v883
      %v2179 = vunpack.c.l.b16 %v884
      %v2180 = vunpack.c.h.b16 %v884
      %v2181 = vunpack.c.l.b16 %v885
      %v2182 = vunpack.c.h.b16 %v885
      %v2183 = vunpack.c.l.b16 %v886
      %v2184 = vunpack.c.h.b16 %v886
      %v2185 = vunpack.c.l.b16 %v887
      %v2186 = vunpack.c.h.b16 %v887
      %v2187 = vunpack.c.l.b16 %v888
      %v2188 = vunpack.c.h.b16 %v888
      %v2189 = vunpack.c.l.b16 %v889
      %v2190 = vunpack.c.h.b16 %v889
      %v2191 = vunpack.c.l.b16 %v890
      %v2192 = vunpack.c.h.b16 %v890
      %v2193 = vunpack.c.l.b16 %v891
      %v2194 = vunpack.c.h.b16 %v891
      %v2195 = vunpack.c.l.b16 %v892
      %v2196 = vunpack.c.h.b16 %v892
      %v2197 = vunpack.c.l.b16 %v893
      %v2198 = vunpack.c.h.b16 %v893
      %v2199 = vunpack.c.l.b16 %v894
      %v2200 = vunpack.c.h.b16 %v894
      %v2201 = vunpack.c.l.b16 %v895
      %v2202 = vunpack.c.h.b16 %v895
      %v2203 = vunpack.c.l.b16 %v896
      %v2204 = vunpack.c.h.b16 %v896
      %v2205 = vunpack.c.l.b16 %v897
      %v2206 = vunpack.c.h.b16 %v897
      %v2207 = vunpack.c.l.b16 %v898
      %v2208 = vunpack.c.h.b16 %v898
      %v2209 = vunpack.c.l.b16 %v899
      %v2210 = vunpack.c.h.b16 %v899
      %v2211 = vunpack.c.l.b16 %v900
      %v2212 = vunpack.c.h.b16 %v900
      %v2213 = vunpack.c.l.b16 %v901
      %v2214 = vunpack.c.h.b16 %v901
      %v2215 = vunpack.c.l.b16 %v902
      %v2216 = vunpack.c.h.b16 %v902
      %v2217 = vunpack.c.l.b16 %v903
      %v2218 = vunpack.c.h.b16 %v903
      %v2219 = vunpack.c.l.b16 %v904
      %v2220 = vunpack.c.h.b16 %v904
      %v2221 = vunpack.c.l.b16 %v905
      %v2222 = vunpack.c.h.b16 %v905
      %v2223 = vunpack.c.l.b16 %v906
      %v2224 = vunpack.c.h.b16 %v906
      %v2225 = vunpack.c.l.b16 %v907
      %v2226 = vunpack.c.h.b16 %v907
      %v2227 = vunpack.c.l.b16 %v908
      %v2228 = vunpack.c.h.b16 %v908
      %v2229 = vunpack.c.l.b16 %v909
      %v2230 = vunpack.c.h.b16 %v909
      %v2231 = vunpack.c.l.b16 %v910
      %v2232 = vunpack.c.h.b16 %v910
      %v2233 = vunpack.c.l.b16 %v911
      %v2234 = vunpack.c.h.b16 %v911
      %v2235 = vunpack.c.l.b16 %v912
      %v2236 = vunpack.c.h.b16 %v912
      %v2237 = vunpack.c.l.b16 %v913
      %v2238 = vunpack.c.h.b16 %v913
      %v2239 = vunpack.c.l.b16 %v914
      %v2240 = vunpack.c.h.b16 %v914
      %v2241 = vunpack.c.l.b16 %v915
      %v2242 = vunpack.c.h.b16 %v915
      %v2243 = vunpack.c.l.b16 %v916
      %v2244 = vunpack.c.h.b16 %v916
      %v2245 = vunpack.c.l.b16 %v917
      %v2246 = vunpack.c.h.b16 %v917
      %v2247 = vunpack.c.l.b16 %v918
      %v2248 = vunpack.c.h.b16 %v918
      %v2249 = vunpack.c.l.b16 %v919
      %v2250 = vunpack.c.h.b16 %v919
      %v2251 = vunpack.c.l.b16 %v920
      %v2252 = vunpack.c.h.b16 %v920
      %v2253 = vunpack.c.l.b16 %v921
      %v2254 = vunpack.c.h.b16 %v921
      %v2255 = vunpack.c.l.b16 %v922
      %v2256 = vunpack.c.h.b16 %v922
      %v2257 = vunpack.c.l.b16 %v923
      %v2258 = vunpack.c.h.b16 %v923
      %v2259 = vunpack.c.l.b16 %v924
      %v2260 = vunpack.c.h.b16 %v924
      %v2261 = vunpack.c.l.b16 %v925
      %v2262 = vunpack.c.h.b16 %v925
      %v2263 = vunpack.c.l.b16 %v926
      %v2264 = vunpack.c.h.b16 %v926
      %v2265 = vunpack.c.l.b16 %v927
      %v2266 = vunpack.c.h.b16 %v927
      %v2267 = vunpack.c.l.b16 %v928
      %v2268 = vunpack.c.h.b16 %v928
      %v2269 = vpack.c.b16 %v2029, %v2013
      %v2270 = vpack.c.b16 %v2030, %v2014
      %v2271 = vpack.c.b16 %v2031, %v2015
      %v2272 = vpack.c.b16 %v2032, %v2016
      %v2273 = vpack.c.b16 %v2033, %v2017
      %v2274 = vpack.c.b16 %v2034, %v2018
      %v2275 = vpack.c.b16 %v2035, %v2019
      %v2276 = vpack.c.b16 %v2036, %v2020
      %v2277 = vpack.c.b16 %v2037, %v2021
      %v2278 = vpack.c.b16 %v2038, %v2022
      %v2279 = vpack.c.b16 %v2039, %v2023
      %v2280 = vpack.c.b16 %v2040, %v2024
      %v2281 = vpack.c.b16 %v2041, %v2025
      %v2282 = vpack.c.b16 %v2042, %v2026
      %v2283 = vpack.c.b16 %v2043, %v2027
      %v2284 = vpack.c.b16 %v2044, %v2028
      %v2285 = vpack.c.b16 %v2061, %v2045
      %v2286 = vpack.c.b16 %v2062, %v2046
      %v2287 = vpack.c.b16 %v2063, %v2047
      %v2288 = vpack.c.b16 %v2064, %v2048
      %v2289 = vpack.c.b16 %v2065, %v2049
      %v2290 = vpack.c.b16 %v2066, %v2050
      %v2291 = vpack.c.b16 %v2067, %v2051
      %v2292 = vpack.c.b16 %v2068, %v2052
      %v2293 = vpack.c.b16 %v2069, %v2053
      %v2294 = vpack.c.b16 %v2070, %v2054
      %v2295 = vpack.c.b16 %v2071, %v2055
      %v2296 = vpack.c.b16 %v2072, %v2056
      %v2297 = vpack.c.b16 %v2073, %v2057
      %v2298 = vpack.c.b16 %v2074, %v2058
      %v2299 = vpack.c.b16 %v2075, %v2059
      %v2300 = vpack.c.b16 %v2076, %v2060
      %v2301 = vpack.c.b16 %v2093, %v2077
      %v2302 = vpack.c.b16 %v2094, %v2078
      %v2303 = vpack.c.b16 %v2095, %v2079
      %v2304 = vpack.c.b16 %v2096, %v2080
      %v2305 = vpack.c.b16 %v2097, %v2081
      %v2306 = vpack.c.b16 %v2098, %v2082
      %v2307 = vpack.c.b16 %v2099, %v2083
      %v2308 = vpack.c.b16 %v2100, %v2084
      %v2309 = vpack.c.b16 %v2101, %v2085
      %v2310 = vpack.c.b16 %v2102, %v2086
      %v2311 = vpack.c.b16 %v2103, %v2087
      %v2312 = vpack.c.b16 %v2104, %v2088
      %v2313 = vpack.c.b16 %v2105, %v2089
      %v2314 = vpack.c.b16 %v2106, %v2090
      %v2315 = vpack.c.b16 %v2107, %v2091
      %v2316 = vpack.c.b16 %v2108, %v2092
      %v2317 = vpack.c.b16 %v2125, %v2109
      %v2318 = vpack.c.b16 %v2126, %v2110
      %v2319 = vpack.c.b16 %v2127, %v2111
      %v2320 = vpack.c.b16 %v2128, %v2112
      %v2321 = vpack.c.b16 %v2129, %v2113
      %v2322 = vpack.c.b16 %v2130, %v2114
      %v2323 = vpack.c.b16 %v2131, %v2115
      %v2324 = vpack.c.b16 %v2132, %v2116
      %v2325 = vpack.c.b16 %v2133, %v2117
      %v2326 = vpack.c.b16 %v2134, %v2118
      %v2327 = vpack.c.b16 %v2135, %v2119
      %v2328 = vpack.c.b16 %v2136, %v2120
      %v2329 = vpack.c.b16 %v2137, %v2121
      %v2330 = vpack.c.b16 %v2138, %v2122
      %v2331 = vpack.c.b16 %v2139, %v2123
      %v2332 = vpack.c.b16 %v2140, %v2124
      %v2333 = vpack.c.b16 %v2157, %v2141
      %v2334 = vpack.c.b16 %v2158, %v2142
      %v2335 = vpack.c.b16 %v2159, %v2143
      %v2336 = vpack.c.b16 %v2160, %v2144
      %v2337 = vpack.c.b16 %v2161, %v2145
      %v2338 = vpack.c.b16 %v2162, %v2146
      %v2339 = vpack.c.b16 %v2163, %v2147
      %v2340 = vpack.c.b16 %v2164, %v2148
      %v2341 = vpack.c.b16 %v2165, %v2149
      %v2342 = vpack.c.b16 %v2166, %v2150
      %v2343 = vpack.c.b16 %v2167, %v2151
      %v2344 = vpack.c.b16 %v2168, %v2152
      %v2345 = vpack.c.b16 %v2169, %v2153
      %v2346 = vpack.c.b16 %v2170, %v2154
      %v2347 = vpack.c.b16 %v2171, %v2155
      %v2348 = vpack.c.b16 %v2172, %v2156
      %v2349 = vpack.c.b16 %v2189, %v2173
      %v2350 = vpack.c.b16 %v2190, %v2174
      %v2351 = vpack.c.b16 %v2191, %v2175
      %v2352 = vpack.c.b16 %v2192, %v2176
      %v2353 = vpack.c.b16 %v2193, %v2177
      %v2354 = vpack.c.b16 %v2194, %v2178
      %v2355 = vpack.c.b16 %v2195, %v2179
      %v2356 = vpack.c.b16 %v2196, %v2180
      %v2357 = vpack.c.b16 %v2197, %v2181
      %v2358 = vpack.c.b16 %v2198, %v2182
      %v2359 = vpack.c.b16 %v2199, %v2183
      %v2360 = vpack.c.b16 %v2200, %v2184
      %v2361 = vpack.c.b16 %v2201, %v2185
      %v2362 = vpack.c.b16 %v2202, %v2186
      %v2363 = vpack.c.b16 %v2203, %v2187
      %v2364 = vpack.c.b16 %v2204, %v2188
      %v2365 = vpack.c.b16 %v2221, %v2205
      %v2366 = vpack.c.b16 %v2222, %v2206
      %v2367 = vpack.c.b16 %v2223, %v2207
      %v2368 = vpack.c.b16 %v2224, %v2208
      %v2369 = vpack.c.b16 %v2225, %v2209
      %v2370 = vpack.c.b16 %v2226, %v2210
      %v2371 = vpack.c.b16 %v2227, %v2211
      %v2372 = vpack.c.b16 %v2228, %v2212
      %v2373 = vpack.c.b16 %v2229, %v2213
      %v2374 = vpack.c.b16 %v2230, %v2214
      %v2375 = vpack.c.b16 %v2231, %v2215
      %v2376 = vpack.c.b16 %v2232, %v2216
      %v2377 = vpack.c.b16 %v2233, %v2217
      %v2378 = vpack.c.b16 %v2234, %v2218
      %v2379 = vpack.c.b16 %v2235, %v2219
      %v2380 = vpack.c.b16 %v2236, %v2220
      %v2381 = vpack.c.b16 %v2253, %v2237
      %v2382 = vpack.c.b16 %v2254, %v2238
      %v2383 = vpack.c.b16 %v2255, %v2239
      %v2384 = vpack.c.b16 %v2256, %v2240
      %v2385 = vpack.c.b16 %v2257, %v2241
      %v2386 = vpack.c.b16 %v2258, %v2242
      %v2387 = vpack.c.b16 %v2259, %v2243
      %v2388 = vpack.c.b16 %v2260, %v2244
      %v2389 = vpack.c.b16 %v2261, %v2245
      %v2390 = vpack.c.b16 %v2262, %v2246
      %v2391 = vpack.c.b16 %v2263, %v2247
      %v2392 = vpack.c.b16 %v2264, %v2248
      %v2393 = vpack.c.b16 %v2265, %v2249
      %v2394 = vpack.c.b16 %v2266, %v2250
      %v2395 = vpack.c.b16 %v2267, %v2251
      %v2396 = vpack.c.b16 %v2268, %v2252
      %2525 = vmatprep.subr.bf16.mxu0 %v2270
      %2526 = vmatpush1.bf16.msra.mxu0 %v2269
      %2527 = vmatprep.subr.bf16.mxu0 %v2286
      %2528 = vmatpush1.bf16.msra.mxu0 %v2285
      %2529 = vmatprep.subr.bf16.mxu0 %v2302
      %2530 = vmatpush1.bf16.msra.mxu0 %v2301
      %2531 = vmatprep.subr.bf16.mxu0 %v2318
      %2532 = vmatpush1.bf16.msra.mxu0 %v2317
      %2533 = vmatprep.subr.bf16.mxu0 %v2334
      %2534 = vmatpush1.bf16.msra.mxu0 %v2333
      %2535 = vmatprep.subr.bf16.mxu0 %v2350
      %2536 = vmatpush1.bf16.msra.mxu0 %v2349
      %2537 = vmatprep.subr.bf16.mxu0 %v2366
      %2538 = vmatpush1.bf16.msra.mxu0 %v2365
      %2539 = vmatprep.subr.bf16.mxu0 %v2382
      %2540 = vmatpush1.bf16.msra.mxu0 %v2381
      %2541 = vmatprep.subr.bf16.mxu0 0
      %2542 = vmatpush1.bf16.msra.mxu0 0
      %2543 = vmatprep.subr.bf16.mxu0 0
      %2544 = vmatpush1.bf16.msra.mxu0 0
      %2545 = vmatprep.subr.bf16.mxu0 0
      %2546 = vmatpush1.bf16.msra.mxu0 0
      %2547 = vmatprep.subr.bf16.mxu0 0
      %2548 = vmatpush1.bf16.msra.mxu0 0
      %2549 = vmatprep.subr.bf16.mxu0 0
      %2550 = vmatpush1.bf16.msra.mxu0 0
      %2551 = vmatprep.subr.bf16.mxu0 0
      %2552 = vmatpush1.bf16.msra.mxu0 0
      %2553 = vmatprep.subr.bf16.mxu0 0
      %2554 = vmatpush1.bf16.msra.mxu0 0
      %2555 = vmatprep.subr.bf16.mxu0 0
      %2556 = vmatpush1.bf16.msra.mxu0 0
      %2557 = vmatprep.mubr.bf16.mxu0 0
      %2558 = vmatmul.mubr.bf16.gmra.mrb[0].mxu0 %v1883
      %v2559 = vpop.f32.mrb[0].mxu0
      %v2560 = vadd.f32 %v936, %v2559
      %v2561 = vpop.f32.mrb[0].mxu0
      %v2562 = vadd.f32 %v940, %v2561
      %v2563 = vpop.f32.mrb[0].mxu0
      %v2564 = vpop.f32.mrb[0].mxu0
      %2565 = vdwg.mxu0
      %2566 = vmatprep.subr.bf16.mxu0 %v2272
      %2567 = vmatpush1.bf16.msra.mxu0 %v2271
      %2568 = vmatprep.subr.bf16.mxu0 %v2288
      %2569 = vmatpush1.bf16.msra.mxu0 %v2287
      %2570 = vmatprep.subr.bf16.mxu0 %v2304
      %2571 = vmatpush1.bf16.msra.mxu0 %v2303
      %2572 = vmatprep.subr.bf16.mxu0 %v2320
      %2573 = vmatpush1.bf16.msra.mxu0 %v2319
      %2574 = vmatprep.subr.bf16.mxu0 %v2336
      %2575 = vmatpush1.bf16.msra.mxu0 %v2335
      %2576 = vmatprep.subr.bf16.mxu0 %v2352
      %2577 = vmatpush1.bf16.msra.mxu0 %v2351
      %2578 = vmatprep.subr.bf16.mxu0 %v2368
      %2579 = vmatpush1.bf16.msra.mxu0 %v2367
      %2580 = vmatprep.subr.bf16.mxu0 %v2384
      %2581 = vmatpush1.bf16.msra.mxu0 %v2383
      %2582 = vmatprep.subr.bf16.mxu0 0
      %2583 = vmatpush1.bf16.msra.mxu0 0
      %2584 = vmatprep.subr.bf16.mxu0 0
      %2585 = vmatpush1.bf16.msra.mxu0 0
      %2586 = vmatprep.subr.bf16.mxu0 0
      %2587 = vmatpush1.bf16.msra.mxu0 0
      %2588 = vmatprep.subr.bf16.mxu0 0
      %2589 = vmatpush1.bf16.msra.mxu0 0
      %2590 = vmatprep.subr.bf16.mxu0 0
      %2591 = vmatpush1.bf16.msra.mxu0 0
      %2592 = vmatprep.subr.bf16.mxu0 0
      %2593 = vmatpush1.bf16.msra.mxu0 0
      %2594 = vmatprep.subr.bf16.mxu0 0
      %2595 = vmatpush1.bf16.msra.mxu0 0
      %2596 = vmatprep.subr.bf16.mxu0 0
      %2597 = vmatpush1.bf16.msra.mxu0 0
      %2598 = vmatprep.mubr.bf16.mxu0 0
      %2599 = vmatmul.mubr.bf16.gmra.mrb[0].mxu0 %v1883
      %v2600 = vpop.f32.mrb[0].mxu0
      %v2601 = vadd.f32 %v944, %v2600
      %v2602 = vpop.f32.mrb[0].mxu0
      %v2603 = vadd.f32 %v948, %v2602
      %v2604 = vpop.f32.mrb[0].mxu0
      %v2605 = vpop.f32.mrb[0].mxu0
      %2606 = vdwg.mxu0
      %2607 = vmatprep.subr.bf16.mxu0 %v2274
      %2608 = vmatpush1.bf16.msra.mxu0 %v2273
      %2609 = vmatprep.subr.bf16.mxu0 %v2290
      %2610 = vmatpush1.bf16.msra.mxu0 %v2289
      %2611 = vmatprep.subr.bf16.mxu0 %v2306
      %2612 = vmatpush1.bf16.msra.mxu0 %v2305
      %2613 = vmatprep.subr.bf16.mxu0 %v2322
      %2614 = vmatpush1.bf16.msra.mxu0 %v2321
      %2615 = vmatprep.subr.bf16.mxu0 %v2338
      %2616 = vmatpush1.bf16.msra.mxu0 %v2337
      %2617 = vmatprep.subr.bf16.mxu0 %v2354
      %2618 = vmatpush1.bf16.msra.mxu0 %v2353
      %2619 = vmatprep.subr.bf16.mxu0 %v2370
      %2620 = vmatpush1.bf16.msra.mxu0 %v2369
      %2621 = vmatprep.subr.bf16.mxu0 %v2386
      %2622 = vmatpush1.bf16.msra.mxu0 %v2385
      %2623 = vmatprep.subr.bf16.mxu0 0
      %2624 = vmatpush1.bf16.msra.mxu0 0
      %2625 = vmatprep.subr.bf16.mxu0 0
      %2626 = vmatpush1.bf16.msra.mxu0 0
      %2627 = vmatprep.subr.bf16.mxu0 0
      %2628 = vmatpush1.bf16.msra.mxu0 0
      %2629 = vmatprep.subr.bf16.mxu0 0
      %2630 = vmatpush1.bf16.msra.mxu0 0
      %2631 = vmatprep.subr.bf16.mxu0 0
      %2632 = vmatpush1.bf16.msra.mxu0 0
      %2633 = vmatprep.subr.bf16.mxu0 0
      %2634 = vmatpush1.bf16.msra.mxu0 0
      %2635 = vmatprep.subr.bf16.mxu0 0
      %2636 = vmatpush1.bf16.msra.mxu0 0
      %2637 = vmatprep.subr.bf16.mxu0 0
      %2638 = vmatpush1.bf16.msra.mxu0 0
      %2639 = vmatprep.mubr.bf16.mxu0 0
      %2640 = vmatmul.mubr.bf16.gmra.mrb[0].mxu0 %v1883
      %v2641 = vpop.f32.mrb[0].mxu0
      %v2642 = vadd.f32 %v952, %v2641
      %v2643 = vpop.f32.mrb[0].mxu0
      %v2644 = vadd.f32 %v956, %v2643
      %v2645 = vpop.f32.mrb[0].mxu0
      %v2646 = vpop.f32.mrb[0].mxu0
      %2647 = vdwg.mxu0
      %2648 = vmatprep.subr.bf16.mxu0 %v2276
      %2649 = vmatpush1.bf16.msra.mxu0 %v2275
      %2650 = vmatprep.subr.bf16.mxu0 %v2292
      %2651 = vmatpush1.bf16.msra.mxu0 %v2291
      %2652 = vmatprep.subr.bf16.mxu0 %v2308
      %2653 = vmatpush1.bf16.msra.mxu0 %v2307
      %2654 = vmatprep.subr.bf16.mxu0 %v2324
      %2655 = vmatpush1.bf16.msra.mxu0 %v2323
      %2656 = vmatprep.subr.bf16.mxu0 %v2340
      %2657 = vmatpush1.bf16.msra.mxu0 %v2339
      %2658 = vmatprep.subr.bf16.mxu0 %v2356
      %2659 = vmatpush1.bf16.msra.mxu0 %v2355
      %2660 = vmatprep.subr.bf16.mxu0 %v2372
      %2661 = vmatpush1.bf16.msra.mxu0 %v2371
      %2662 = vmatprep.subr.bf16.mxu0 %v2388
      %2663 = vmatpush1.bf16.msra.mxu0 %v2387
      %2664 = vmatprep.subr.bf16.mxu0 0
      %2665 = vmatpush1.bf16.msra.mxu0 0
      %2666 = vmatprep.subr.bf16.mxu0 0
      %2667 = vmatpush1.bf16.msra.mxu0 0
      %2668 = vmatprep.subr.bf16.mxu0 0
      %2669 = vmatpush1.bf16.msra.mxu0 0
      %2670 = vmatprep.subr.bf16.mxu0 0
      %2671 = vmatpush1.bf16.msra.mxu0 0
      %2672 = vmatprep.subr.bf16.mxu0 0
      %2673 = vmatpush1.bf16.msra.mxu0 0
      %2674 = vmatprep.subr.bf16.mxu0 0
      %2675 = vmatpush1.bf16.msra.mxu0 0
      %2676 = vmatprep.subr.bf16.mxu0 0
      %2677 = vmatpush1.bf16.msra.mxu0 0
      %2678 = vmatprep.subr.bf16.mxu0 0
      %2679 = vmatpush1.bf16.msra.mxu0 0
      %2680 = vmatprep.mubr.bf16.mxu0 0
      %2681 = vmatmul.mubr.bf16.gmra.mrb[0].mxu0 %v1883
      %v2682 = vpop.f32.mrb[0].mxu0
      %v2683 = vadd.f32 %v960, %v2682
      %v2684 = vpop.f32.mrb[0].mxu0
      %v2685 = vadd.f32 %v964, %v2684
      %v2686 = vpop.f32.mrb[0].mxu0
      %v2687 = vpop.f32.mrb[0].mxu0
      %2688 = vdwg.mxu0
      %2689 = vmatprep.subr.bf16.mxu0 %v2278
      %2690 = vmatpush1.bf16.msra.mxu0 %v2277
      %2691 = vmatprep.subr.bf16.mxu0 %v2294
      %2692 = vmatpush1.bf16.msra.mxu0 %v2293
      %2693 = vmatprep.subr.bf16.mxu0 %v2310
      %2694 = vmatpush1.bf16.msra.mxu0 %v2309
      %2695 = vmatprep.subr.bf16.mxu0 %v2326
      %2696 = vmatpush1.bf16.msra.mxu0 %v2325
      %2697 = vmatprep.subr.bf16.mxu0 %v2342
      %2698 = vmatpush1.bf16.msra.mxu0 %v2341
      %2699 = vmatprep.subr.bf16.mxu0 %v2358
      %2700 = vmatpush1.bf16.msra.mxu0 %v2357
      %2701 = vmatprep.subr.bf16.mxu0 %v2374
      %2702 = vmatpush1.bf16.msra.mxu0 %v2373
      %2703 = vmatprep.subr.bf16.mxu0 %v2390
      %2704 = vmatpush1.bf16.msra.mxu0 %v2389
      %2705 = vmatprep.subr.bf16.mxu0 0
      %2706 = vmatpush1.bf16.msra.mxu0 0
      %2707 = vmatprep.subr.bf16.mxu0 0
      %2708 = vmatpush1.bf16.msra.mxu0 0
      %2709 = vmatprep.subr.bf16.mxu0 0
      %2710 = vmatpush1.bf16.msra.mxu0 0
      %2711 = vmatprep.subr.bf16.mxu0 0
      %2712 = vmatpush1.bf16.msra.mxu0 0
      %2713 = vmatprep.subr.bf16.mxu0 0
      %2714 = vmatpush1.bf16.msra.mxu0 0
      %2715 = vmatprep.subr.bf16.mxu0 0
      %2716 = vmatpush1.bf16.msra.mxu0 0
      %2717 = vmatprep.subr.bf16.mxu0 0
      %2718 = vmatpush1.bf16.msra.mxu0 0
      %2719 = vmatprep.subr.bf16.mxu0 0
      %2720 = vmatpush1.bf16.msra.mxu0 0
      %2721 = vmatprep.mubr.bf16.mxu0 0
      %2722 = vmatmul.mubr.bf16.gmra.mrb[0].mxu0 %v1883
      %v2723 = vpop.f32.mrb[0].mxu0
      %v2724 = vadd.f32 %v968, %v2723
      %v2725 = vpop.f32.mrb[0].mxu0
      %v2726 = vadd.f32 %v972, %v2725
      %v2727 = vpop.f32.mrb[0].mxu0
      %v2728 = vpop.f32.mrb[0].mxu0
      %2729 = vdwg.mxu0
      %2730 = vmatprep.subr.bf16.mxu0 %v2280
      %2731 = vmatpush1.bf16.msra.mxu0 %v2279
      %2732 = vmatprep.subr.bf16.mxu0 %v2296
      %2733 = vmatpush1.bf16.msra.mxu0 %v2295
      %2734 = vmatprep.subr.bf16.mxu0 %v2312
      %2735 = vmatpush1.bf16.msra.mxu0 %v2311
      %2736 = vmatprep.subr.bf16.mxu0 %v2328
      %2737 = vmatpush1.bf16.msra.mxu0 %v2327
      %2738 = vmatprep.subr.bf16.mxu0 %v2344
      %2739 = vmatpush1.bf16.msra.mxu0 %v2343
      %2740 = vmatprep.subr.bf16.mxu0 %v2360
      %2741 = vmatpush1.bf16.msra.mxu0 %v2359
      %2742 = vmatprep.subr.bf16.mxu0 %v2376
      %2743 = vmatpush1.bf16.msra.mxu0 %v2375
      %2744 = vmatprep.subr.bf16.mxu0 %v2392
      %2745 = vmatpush1.bf16.msra.mxu0 %v2391
      %2746 = vmatprep.subr.bf16.mxu0 0
      %2747 = vmatpush1.bf16.msra.mxu0 0
      %2748 = vmatprep.subr.bf16.mxu0 0
      %2749 = vmatpush1.bf16.msra.mxu0 0
      %2750 = vmatprep.subr.bf16.mxu0 0
      %2751 = vmatpush1.bf16.msra.mxu0 0
      %2752 = vmatprep.subr.bf16.mxu0 0
      %2753 = vmatpush1.bf16.msra.mxu0 0
      %2754 = vmatprep.subr.bf16.mxu0 0
      %2755 = vmatpush1.bf16.msra.mxu0 0
      %2756 = vmatprep.subr.bf16.mxu0 0
      %2757 = vmatpush1.bf16.msra.mxu0 0
      %2758 = vmatprep.subr.bf16.mxu0 0
      %2759 = vmatpush1.bf16.msra.mxu0 0
      %2760 = vmatprep.subr.bf16.mxu0 0
      %2761 = vmatpush1.bf16.msra.mxu0 0
      %2762 = vmatprep.mubr.bf16.mxu0 0
      %2763 = vmatmul.mubr.bf16.gmra.mrb[0].mxu0 %v1883
      %v2764 = vpop.f32.mrb[0].mxu0
      %v2765 = vadd.f32 %v976, %v2764
      %v2766 = vpop.f32.mrb[0].mxu0
      %v2767 = vadd.f32 %v980, %v2766
      %v2768 = vpop.f32.mrb[0].mxu0
      %v2769 = vpop.f32.mrb[0].mxu0
      %2770 = vdwg.mxu0
      %2771 = vmatprep.subr.bf16.mxu0 %v2282
      %2772 = vmatpush1.bf16.msra.mxu0 %v2281
      %2773 = vmatprep.subr.bf16.mxu0 %v2298
      %2774 = vmatpush1.bf16.msra.mxu0 %v2297
      %2775 = vmatprep.subr.bf16.mxu0 %v2314
      %2776 = vmatpush1.bf16.msra.mxu0 %v2313
      %2777 = vmatprep.subr.bf16.mxu0 %v2330
      %2778 = vmatpush1.bf16.msra.mxu0 %v2329
      %2779 = vmatprep.subr.bf16.mxu0 %v2346
      %2780 = vmatpush1.bf16.msra.mxu0 %v2345
      %2781 = vmatprep.subr.bf16.mxu0 %v2362
      %2782 = vmatpush1.bf16.msra.mxu0 %v2361
      %2783 = vmatprep.subr.bf16.mxu0 %v2378
      %2784 = vmatpush1.bf16.msra.mxu0 %v2377
      %2785 = vmatprep.subr.bf16.mxu0 %v2394
      %2786 = vmatpush1.bf16.msra.mxu0 %v2393
      %2787 = vmatprep.subr.bf16.mxu0 0
      %2788 = vmatpush1.bf16.msra.mxu0 0
      %2789 = vmatprep.subr.bf16.mxu0 0
      %2790 = vmatpush1.bf16.msra.mxu0 0
      %2791 = vmatprep.subr.bf16.mxu0 0
      %2792 = vmatpush1.bf16.msra.mxu0 0
      %2793 = vmatprep.subr.bf16.mxu0 0
      %2794 = vmatpush1.bf16.msra.mxu0 0
      %2795 = vmatprep.subr.bf16.mxu0 0
      %2796 = vmatpush1.bf16.msra.mxu0 0
      %2797 = vmatprep.subr.bf16.mxu0 0
      %2798 = vmatpush1.bf16.msra.mxu0 0
      %2799 = vmatprep.subr.bf16.mxu0 0
      %2800 = vmatpush1.bf16.msra.mxu0 0
      %2801 = vmatprep.subr.bf16.mxu0 0
      %2802 = vmatpush1.bf16.msra.mxu0 0
      %2803 = vmatprep.mubr.bf16.mxu0 0
      %2804 = vmatmul.mubr.bf16.gmra.mrb[0].mxu0 %v1883
      %v2805 = vpop.f32.mrb[0].mxu0
      %v2806 = vadd.f32 %v984, %v2805
      %v2807 = vpop.f32.mrb[0].mxu0
      %v2808 = vadd.f32 %v988, %v2807
      %v2809 = vpop.f32.mrb[0].mxu0
      %v2810 = vpop.f32.mrb[0].mxu0
      %2811 = vdwg.mxu0
      %2812 = vmatprep.subr.bf16.mxu0 %v2284
      %2813 = vmatpush1.bf16.msra.mxu0 %v2283
      %2814 = vmatprep.subr.bf16.mxu0 %v2300
      %2815 = vmatpush1.bf16.msra.mxu0 %v2299
      %2816 = vmatprep.subr.bf16.mxu0 %v2316
      %2817 = vmatpush1.bf16.msra.mxu0 %v2315
      %2818 = vmatprep.subr.bf16.mxu0 %v2332
      %2819 = vmatpush1.bf16.msra.mxu0 %v2331
      %2820 = vmatprep.subr.bf16.mxu0 %v2348
      %2821 = vmatpush1.bf16.msra.mxu0 %v2347
      %2822 = vmatprep.subr.bf16.mxu0 %v2364
      %2823 = vmatpush1.bf16.msra.mxu0 %v2363
      %2824 = vmatprep.subr.bf16.mxu0 %v2380
      %2825 = vmatpush1.bf16.msra.mxu0 %v2379
      %2826 = vmatprep.subr.bf16.mxu0 %v2396
      %2827 = vmatpush1.bf16.msra.mxu0 %v2395
      %2828 = vmatprep.subr.bf16.mxu0 0
      %2829 = vmatpush1.bf16.msra.mxu0 0
      %2830 = vmatprep.subr.bf16.mxu0 0
      %2831 = vmatpush1.bf16.msra.mxu0 0
      %2832 = vmatprep.subr.bf16.mxu0 0
      %2833 = vmatpush1.bf16.msra.mxu0 0
      %2834 = vmatprep.subr.bf16.mxu0 0
      %2835 = vmatpush1.bf16.msra.mxu0 0
      %2836 = vmatprep.subr.bf16.mxu0 0
      %2837 = vmatpush1.bf16.msra.mxu0 0
      %2838 = vmatprep.subr.bf16.mxu0 0
      %2839 = vmatpush1.bf16.msra.mxu0 0
      %2840 = vmatprep.subr.bf16.mxu0 0
      %2841 = vmatpush1.bf16.msra.mxu0 0
      %2842 = vmatprep.subr.bf16.mxu0 0
      %2843 = vmatpush1.bf16.msra.mxu0 0
      %2844 = vmatprep.mubr.bf16.mxu0 0
      %2845 = vmatmul.mubr.bf16.gmra.mrb[0].mxu0 %v1883
      %v2846 = vpop.f32.mrb[0].mxu0
      %v2847 = vadd.f32 %v992, %v2846
      %v2848 = vpop.f32.mrb[0].mxu0
      %v2849 = vadd.f32 %v996, %v2848
      %v2850 = vpop.f32.mrb[0].mxu0
      %v2851 = vpop.f32.mrb[0].mxu0
      %2852 = vdwg.mxu0
      %v2853 = vmax.f32 %v2560, 0.0
      %v2854 = vmax.f32 %v2562, 0.0
      %v2855 = vmax.f32 %v2601, 0.0
      %v2856 = vmax.f32 %v2603, 0.0
      %v2857 = vmax.f32 %v2642, 0.0
      %v2858 = vmax.f32 %v2644, 0.0
      %v2859 = vmax.f32 %v2683, 0.0
      %v2860 = vmax.f32 %v2685, 0.0
      %v2861 = vmax.f32 %v2724, 0.0
      %v2862 = vmax.f32 %v2726, 0.0
      %v2863 = vmax.f32 %v2765, 0.0
      %v2864 = vmax.f32 %v2767, 0.0
      %v2865 = vmax.f32 %v2806, 0.0
      %v2866 = vmax.f32 %v2808, 0.0
      %v2867 = vmax.f32 %v2847, 0.0
      %v2868 = vmax.f32 %v2849, 0.0
      %v2885 = vcombine.low %v2853, %v2854
      %v2886 = vcombine.low %v2855, %v2856
      %v2888 = vunpack.c.l.s4 1983009808
      %v2889 = vunpack.c.0.s8 %v2888
      %v2890 = vlaneseq
      %v2891 = vshrl.u32 %v2890, 7
      %v2892 = vsub.s32 %v2889, %v2891
      %v2893 = vrot.slane %v2885, %v2892
      %v2895 = vunpack.c.l.s4 1983009808
      %v2896 = vunpack.c.0.s8 %v2895
      %v2897 = vlaneseq
      %v2898 = vshrl.u32 %v2897, 7
      %v2899 = vsub.s32 %v2896, %v2898
      %v2900 = vrot.slane %v2886, %v2899
      %v2901 = vcombine.low %v2893, %v2900
      %v2902 = vcombine.low %v2857, %v2858
      %v2903 = vcombine.low %v2859, %v2860
      %v2905 = vunpack.c.l.s4 1983009808
      %v2906 = vunpack.c.0.s8 %v2905
      %v2907 = vlaneseq
      %v2908 = vshrl.u32 %v2907, 7
      %v2909 = vsub.s32 %v2906, %v2908
      %v2910 = vrot.slane %v2902, %v2909
      %v2912 = vunpack.c.l.s4 1983009808
      %v2913 = vunpack.c.0.s8 %v2912
      %v2914 = vlaneseq
      %v2915 = vshrl.u32 %v2914, 7
      %v2916 = vsub.s32 %v2913, %v2915
      %v2917 = vrot.slane %v2903, %v2916
      %v2918 = vcombine.low %v2910, %v2917
      %v2919 = vcombine.low %v2861, %v2862
      %v2920 = vcombine.low %v2863, %v2864
      %v2922 = vunpack.c.l.s4 1983009808
      %v2923 = vunpack.c.0.s8 %v2922
      %v2924 = vlaneseq
      %v2925 = vshrl.u32 %v2924, 7
      %v2926 = vsub.s32 %v2923, %v2925
      %v2927 = vrot.slane %v2919, %v2926
      %v2929 = vunpack.c.l.s4 1983009808
      %v2930 = vunpack.c.0.s8 %v2929
      %v2931 = vlaneseq
      %v2932 = vshrl.u32 %v2931, 7
      %v2933 = vsub.s32 %v2930, %v2932
      %v2934 = vrot.slane %v2920, %v2933
      %v2935 = vcombine.low %v2927, %v2934
      %v2936 = vcombine.low %v2865, %v2866
      %v2937 = vcombine.low %v2867, %v2868
      %v2939 = vunpack.c.l.s4 1983009808
      %v2940 = vunpack.c.0.s8 %v2939
      %v2941 = vlaneseq
      %v2942 = vshrl.u32 %v2941, 7
      %v2943 = vsub.s32 %v2940, %v2942
      %v2944 = vrot.slane %v2936, %v2943
      %v2946 = vunpack.c.l.s4 1983009808
      %v2947 = vunpack.c.0.s8 %v2946
      %v2948 = vlaneseq
      %v2949 = vshrl.u32 %v2948, 7
      %v2950 = vsub.s32 %v2947, %v2949
      %v2951 = vrot.slane %v2937, %v2950
      %v2952 = vcombine.low %v2944, %v2951
      %2957 = vst [vmem:[#allocation11] sm:$0xff] %v2901
      %2958 = vst [vmem:[#allocation11 + $0x8] sm:$0xff] %v2918
      %2959 = vst [vmem:[#allocation11 + $0x10] sm:$0xff] %v2935
      %2960 = vst [vmem:[#allocation11 + $0x18] sm:$0xff] %v2952
      %v2961 = vpack.c.bf16 %v2853, %v2853
      %v2962 = vpack.c.bf16 %v2854, %v2854
      %v2963 = vpack.c.bf16 %v2855, %v2855
      %v2964 = vpack.c.bf16 %v2856, %v2856
      %v2965 = vpack.c.bf16 %v2857, %v2857
      %v2966 = vpack.c.bf16 %v2858, %v2858
      %v2967 = vpack.c.bf16 %v2859, %v2859
      %v2968 = vpack.c.bf16 %v2860, %v2860
      %v2969 = vpack.c.bf16 %v2861, %v2861
      %v2970 = vpack.c.bf16 %v2862, %v2862
      %v2971 = vpack.c.bf16 %v2863, %v2863
      %v2972 = vpack.c.bf16 %v2864, %v2864
      %v2973 = vpack.c.bf16 %v2865, %v2865
      %v2974 = vpack.c.bf16 %v2866, %v2866
      %v2975 = vpack.c.bf16 %v2867, %v2867
      %v2976 = vpack.c.bf16 %v2868, %v2868
      %v2977 = vld [vmem:[#allocation8] sm:$0xff]
      %v2978 = vld [vmem:[#allocation8 + $0x8] sm:$0xff]
      %v2979 = vld [vmem:[#allocation8 + $0x10] sm:$0xf]
      %v2980 = vld [vmem:[#allocation8 + $0x14] sm:$0xff]
      %v2981 = vld [vmem:[#allocation8 + $0x1c] sm:$0xff]
      %v2982 = vld [vmem:[#allocation8 + $0x24] sm:$0xf]
      %v2983 = vld [vmem:[#allocation8 + $0x28] sm:$0xff]
      %v2984 = vld [vmem:[#allocation8 + $0x30] sm:$0xff]
      %v2985 = vld [vmem:[#allocation8 + $0x38] sm:$0xf]
      %v2986 = vld [vmem:[#allocation8 + $0x3c] sm:$0xff]
      %v2987 = vld [vmem:[#allocation8 + $0x44] sm:$0xff]
      %v2988 = vld [vmem:[#allocation8 + $0x4c] sm:$0xf]
      %v2989 = vld [vmem:[#allocation8 + $0x50] sm:$0xff]
      %v2990 = vld [vmem:[#allocation8 + $0x58] sm:$0xff]
      %v2991 = vld [vmem:[#allocation8 + $0x60] sm:$0xf]
      %v2992 = vld [vmem:[#allocation8 + $0x64] sm:$0xff]
      %v2993 = vld [vmem:[#allocation8 + $0x6c] sm:$0xff]
      %v2994 = vld [vmem:[#allocation8 + $0x74] sm:$0xf]
      %v2995 = vld [vmem:[#allocation8 + $0x78] sm:$0xff]
      %v2996 = vld [vmem:[#allocation8 + $0x80] sm:$0xff]
      %v2997 = vld [vmem:[#allocation8 + $0x88] sm:$0xf]
      %v2998 = vld [vmem:[#allocation8 + $0x8c] sm:$0xff]
      %v2999 = vld [vmem:[#allocation8 + $0x94] sm:$0xff]
      %v3000 = vld [vmem:[#allocation8 + $0x9c] sm:$0xf]
      %v3001 = vld [vmem:[#allocation8 + $0xa0] sm:$0xff]
      %v3002 = vld [vmem:[#allocation8 + $0xa8] sm:$0xff]
      %v3003 = vld [vmem:[#allocation8 + $0xb0] sm:$0xf]
      %v3004 = vld [vmem:[#allocation8 + $0xb4] sm:$0xff]
      %v3005 = vld [vmem:[#allocation8 + $0xbc] sm:$0xff]
      %v3006 = vld [vmem:[#allocation8 + $0xc4] sm:$0xf]
      %v3007 = vld [vmem:[#allocation8 + $0xc8] sm:$0xff]
      %v3008 = vld [vmem:[#allocation8 + $0xd0] sm:$0xff]
      %v3009 = vld [vmem:[#allocation8 + $0xd8] sm:$0xf]
      %v3010 = vld [vmem:[#allocation8 + $0xdc] sm:$0xff]
      %v3011 = vld [vmem:[#allocation8 + $0xe4] sm:$0xff]
      %v3012 = vld [vmem:[#allocation8 + $0xec] sm:$0xf]
      %v3013 = vld [vmem:[#allocation8 + $0xf0] sm:$0xff]
      %v3014 = vld [vmem:[#allocation8 + $0xf8] sm:$0xff]
      %v3015 = vld [vmem:[#allocation8 + $0x100] sm:$0xf]
      %v3016 = vld [vmem:[#allocation8 + $0x104] sm:$0xff]
      %v3017 = vld [vmem:[#allocation8 + $0x10c] sm:$0xff]
      %v3018 = vld [vmem:[#allocation8 + $0x114] sm:$0xf]
      %v3019 = vld [vmem:[#allocation8 + $0x118] sm:$0xff]
      %v3020 = vld [vmem:[#allocation8 + $0x120] sm:$0xff]
      %v3021 = vld [vmem:[#allocation8 + $0x128] sm:$0xf]
      %v3022 = vld [vmem:[#allocation8 + $0x12c] sm:$0xff]
      %v3023 = vld [vmem:[#allocation8 + $0x134] sm:$0xff]
      %v3024 = vld [vmem:[#allocation8 + $0x13c] sm:$0xf]
      %v3025 = vld [vmem:[#allocation8 + $0x140] sm:$0xff]
      %v3026 = vld [vmem:[#allocation8 + $0x148] sm:$0xff]
      %v3027 = vld [vmem:[#allocation8 + $0x150] sm:$0xf]
      %v3028 = vld [vmem:[#allocation8 + $0x154] sm:$0xff]
      %v3029 = vld [vmem:[#allocation8 + $0x15c] sm:$0xff]
      %v3030 = vld [vmem:[#allocation8 + $0x164] sm:$0xf]
      %v3031 = vld [vmem:[#allocation8 + $0x168] sm:$0xff]
      %v3032 = vld [vmem:[#allocation8 + $0x170] sm:$0xff]
      %v3033 = vld [vmem:[#allocation8 + $0x178] sm:$0xf]
      %v3034 = vld [vmem:[#allocation8 + $0x17c] sm:$0xff]
      %v3035 = vld [vmem:[#allocation8 + $0x184] sm:$0xff]
      %v3036 = vld [vmem:[#allocation8 + $0x18c] sm:$0xf]
      %v3037 = vld [vmem:[#allocation8 + $0x190] sm:$0xff]
      %v3038 = vld [vmem:[#allocation8 + $0x198] sm:$0xff]
      %v3039 = vld [vmem:[#allocation8 + $0x1a0] sm:$0xf]
      %v3040 = vld [vmem:[#allocation8 + $0x1a4] sm:$0xff]
      %v3041 = vld [vmem:[#allocation8 + $0x1ac] sm:$0xff]
      %v3042 = vld [vmem:[#allocation8 + $0x1b4] sm:$0xf]
      %v3043 = vld [vmem:[#allocation8 + $0x1b8] sm:$0xff]
      %v3044 = vld [vmem:[#allocation8 + $0x1c0] sm:$0xff]
      %v3045 = vld [vmem:[#allocation8 + $0x1c8] sm:$0xf]
      %v3046 = vld [vmem:[#allocation8 + $0x1cc] sm:$0xff]
      %v3047 = vld [vmem:[#allocation8 + $0x1d4] sm:$0xff]
      %v3048 = vld [vmem:[#allocation8 + $0x1dc] sm:$0xf]
      %v3049 = vld [vmem:[#allocation8 + $0x1e0] sm:$0xff]
      %v3050 = vld [vmem:[#allocation8 + $0x1e8] sm:$0xff]
      %v3051 = vld [vmem:[#allocation8 + $0x1f0] sm:$0xf]
      %v3052 = vld [vmem:[#allocation8 + $0x1f4] sm:$0xff]
      %v3053 = vld [vmem:[#allocation8 + $0x1fc] sm:$0xff]
      %v3054 = vld [vmem:[#allocation8 + $0x204] sm:$0xf]
      %v3055 = vld [vmem:[#allocation8 + $0x208] sm:$0xff]
      %v3056 = vld [vmem:[#allocation8 + $0x210] sm:$0xff]
      %v3057 = vld [vmem:[#allocation8 + $0x218] sm:$0xf]
      %v3058 = vld [vmem:[#allocation8 + $0x21c] sm:$0xff]
      %v3059 = vld [vmem:[#allocation8 + $0x224] sm:$0xff]
      %v3060 = vld [vmem:[#allocation8 + $0x22c] sm:$0xf]
      %v3061 = vld [vmem:[#allocation8 + $0x230] sm:$0xff]
      %v3062 = vld [vmem:[#allocation8 + $0x238] sm:$0xff]
      %v3063 = vld [vmem:[#allocation8 + $0x240] sm:$0xf]
      %v3064 = vld [vmem:[#allocation8 + $0x244] sm:$0xff]
      %v3065 = vld [vmem:[#allocation8 + $0x24c] sm:$0xff]
      %v3066 = vld [vmem:[#allocation8 + $0x254] sm:$0xf]
      %v3067 = vld [vmem:[#allocation8 + $0x258] sm:$0xff]
      %v3068 = vld [vmem:[#allocation8 + $0x260] sm:$0xff]
      %v3069 = vld [vmem:[#allocation8 + $0x268] sm:$0xf]
      %v3070 = vld [vmem:[#allocation8 + $0x26c] sm:$0xff]
      %v3071 = vld [vmem:[#allocation8 + $0x274] sm:$0xff]
      %v3072 = vld [vmem:[#allocation8 + $0x27c] sm:$0xf]
      %v3073 = vld [vmem:[#allocation8 + $0x280] sm:$0xff]
      %v3074 = vld [vmem:[#allocation8 + $0x288] sm:$0xff]
      %v3075 = vld [vmem:[#allocation8 + $0x290] sm:$0xf]
      %v3076 = vld [vmem:[#allocation8 + $0x294] sm:$0xff]
      %v3077 = vld [vmem:[#allocation8 + $0x29c] sm:$0xff]
      %v3078 = vld [vmem:[#allocation8 + $0x2a4] sm:$0xf]
      %v3079 = vld [vmem:[#allocation8 + $0x2a8] sm:$0xff]
      %v3080 = vld [vmem:[#allocation8 + $0x2b0] sm:$0xff]
      %v3081 = vld [vmem:[#allocation8 + $0x2b8] sm:$0xf]
      %v3082 = vld [vmem:[#allocation8 + $0x2bc] sm:$0xff]
      %v3083 = vld [vmem:[#allocation8 + $0x2c4] sm:$0xff]
      %v3084 = vld [vmem:[#allocation8 + $0x2cc] sm:$0xf]
      %v3085 = vld [vmem:[#allocation8 + $0x2d0] sm:$0xff]
      %v3086 = vld [vmem:[#allocation8 + $0x2d8] sm:$0xff]
      %v3087 = vld [vmem:[#allocation8 + $0x2e0] sm:$0xf]
      %v3088 = vld [vmem:[#allocation8 + $0x2e4] sm:$0xff]
      %v3089 = vld [vmem:[#allocation8 + $0x2ec] sm:$0xff]
      %v3090 = vld [vmem:[#allocation8 + $0x2f4] sm:$0xf]
      %v3091 = vld [vmem:[#allocation8 + $0x2f8] sm:$0xff]
      %v3092 = vld [vmem:[#allocation8 + $0x300] sm:$0xff]
      %v3093 = vld [vmem:[#allocation8 + $0x308] sm:$0xf]
      %v3094 = vld [vmem:[#allocation8 + $0x30c] sm:$0xff]
      %v3095 = vld [vmem:[#allocation8 + $0x314] sm:$0xff]
      %v3096 = vld [vmem:[#allocation8 + $0x31c] sm:$0xf]
      %v3097 = vld [vmem:[#allocation8 + $0x320] sm:$0xff]
      %v3098 = vld [vmem:[#allocation8 + $0x328] sm:$0xff]
      %v3099 = vld [vmem:[#allocation8 + $0x330] sm:$0xf]
      %v3100 = vld [vmem:[#allocation8 + $0x334] sm:$0xff]
      %v3101 = vld [vmem:[#allocation8 + $0x33c] sm:$0xff]
      %v3102 = vld [vmem:[#allocation8 + $0x344] sm:$0xf]
      %v3103 = vld [vmem:[#allocation8 + $0x348] sm:$0xff]
      %v3104 = vld [vmem:[#allocation8 + $0x350] sm:$0xff]
      %v3105 = vld [vmem:[#allocation8 + $0x358] sm:$0xf]
      %v3106 = vld [vmem:[#allocation8 + $0x35c] sm:$0xff]
      %v3107 = vld [vmem:[#allocation8 + $0x364] sm:$0xff]
      %v3108 = vld [vmem:[#allocation8 + $0x36c] sm:$0xf]
      %v3109 = vld [vmem:[#allocation8 + $0x370] sm:$0xff]
      %v3110 = vld [vmem:[#allocation8 + $0x378] sm:$0xff]
      %v3111 = vld [vmem:[#allocation8 + $0x380] sm:$0xf]
      %v3112 = vld [vmem:[#allocation8 + $0x384] sm:$0xff]
      %v3113 = vld [vmem:[#allocation8 + $0x38c] sm:$0xff]
      %v3114 = vld [vmem:[#allocation8 + $0x394] sm:$0xf]
      %v3115 = vld [vmem:[#allocation8 + $0x398] sm:$0xff]
      %v3116 = vld [vmem:[#allocation8 + $0x3a0] sm:$0xff]
      %v3117 = vld [vmem:[#allocation8 + $0x3a8] sm:$0xf]
      %v3118 = vld [vmem:[#allocation8 + $0x3ac] sm:$0xff]
      %v3119 = vld [vmem:[#allocation8 + $0x3b4] sm:$0xff]
      %v3120 = vld [vmem:[#allocation8 + $0x3bc] sm:$0xf]
      %v3121 = vld [vmem:[#allocation8 + $0x3c0] sm:$0xff]
      %v3122 = vld [vmem:[#allocation8 + $0x3c8] sm:$0xff]
      %v3123 = vld [vmem:[#allocation8 + $0x3d0] sm:$0xf]
      %v3124 = vld [vmem:[#allocation8 + $0x3d4] sm:$0xff]
      %v3125 = vld [vmem:[#allocation8 + $0x3dc] sm:$0xff]
      %v3126 = vld [vmem:[#allocation8 + $0x3e4] sm:$0xf]
      %v3127 = vld [vmem:[#allocation8 + $0x3e8] sm:$0xff]
      %v3128 = vld [vmem:[#allocation8 + $0x3f0] sm:$0xff]
      %v3129 = vld [vmem:[#allocation8 + $0x3f8] sm:$0xf]
      %v3130 = vld [vmem:[#allocation8 + $0x3fc] sm:$0xff]
      %v3131 = vld [vmem:[#allocation8 + $0x404] sm:$0xff]
      %v3132 = vld [vmem:[#allocation8 + $0x40c] sm:$0xf]
      %v3133 = vld [vmem:[#allocation8 + $0x410] sm:$0xff]
      %v3134 = vld [vmem:[#allocation8 + $0x418] sm:$0xff]
      %v3135 = vld [vmem:[#allocation8 + $0x420] sm:$0xf]
      %v3136 = vld [vmem:[#allocation8 + $0x424] sm:$0xff]
      %v3137 = vld [vmem:[#allocation8 + $0x42c] sm:$0xff]
      %v3138 = vld [vmem:[#allocation8 + $0x434] sm:$0xf]
      %v3139 = vld [vmem:[#allocation8 + $0x438] sm:$0xff]
      %v3140 = vld [vmem:[#allocation8 + $0x440] sm:$0xff]
      %v3141 = vld [vmem:[#allocation8 + $0x448] sm:$0xf]
      %v3142 = vld [vmem:[#allocation8 + $0x44c] sm:$0xff]
      %v3143 = vld [vmem:[#allocation8 + $0x454] sm:$0xff]
      %v3144 = vld [vmem:[#allocation8 + $0x45c] sm:$0xf]
      %v3145 = vld [vmem:[#allocation8 + $0x460] sm:$0xff]
      %v3146 = vld [vmem:[#allocation8 + $0x468] sm:$0xff]
      %v3147 = vld [vmem:[#allocation8 + $0x470] sm:$0xf]
      %v3148 = vld [vmem:[#allocation8 + $0x474] sm:$0xff]
      %v3149 = vld [vmem:[#allocation8 + $0x47c] sm:$0xff]
      %v3150 = vld [vmem:[#allocation8 + $0x484] sm:$0xf]
      %v3151 = vld [vmem:[#allocation8 + $0x488] sm:$0xff]
      %v3152 = vld [vmem:[#allocation8 + $0x490] sm:$0xff]
      %v3153 = vld [vmem:[#allocation8 + $0x498] sm:$0xf]
      %v3154 = vld [vmem:[#allocation8 + $0x49c] sm:$0xff]
      %v3155 = vld [vmem:[#allocation8 + $0x4a4] sm:$0xff]
      %v3156 = vld [vmem:[#allocation8 + $0x4ac] sm:$0xf]
      %v3157 = vld [vmem:[#allocation8 + $0x4b0] sm:$0xff]
      %v3158 = vld [vmem:[#allocation8 + $0x4b8] sm:$0xff]
      %v3159 = vld [vmem:[#allocation8 + $0x4c0] sm:$0xf]
      %v3160 = vld [vmem:[#allocation8 + $0x4c4] sm:$0xff]
      %v3161 = vld [vmem:[#allocation8 + $0x4cc] sm:$0xff]
      %v3162 = vld [vmem:[#allocation8 + $0x4d4] sm:$0xf]
      %v3163 = vld [vmem:[#allocation8 + $0x4d8] sm:$0xff]
      %v3164 = vld [vmem:[#allocation8 + $0x4e0] sm:$0xff]
      %v3165 = vld [vmem:[#allocation8 + $0x4e8] sm:$0xf]
      %v3166 = vld [vmem:[#allocation8 + $0x4ec] sm:$0xff]
      %v3167 = vld [vmem:[#allocation8 + $0x4f4] sm:$0xff]
      %v3168 = vld [vmem:[#allocation8 + $0x4fc] sm:$0xf]
      %v3169 = vld [vmem:[#allocation8 + $0x500] sm:$0xff]
      %v3170 = vld [vmem:[#allocation8 + $0x508] sm:$0xff]
      %v3171 = vld [vmem:[#allocation8 + $0x510] sm:$0xf]
      %v3172 = vld [vmem:[#allocation8 + $0x514] sm:$0xff]
      %v3173 = vld [vmem:[#allocation8 + $0x51c] sm:$0xff]
      %v3174 = vld [vmem:[#allocation8 + $0x524] sm:$0xf]
      %v3175 = vld [vmem:[#allocation8 + $0x528] sm:$0xff]
      %v3176 = vld [vmem:[#allocation8 + $0x530] sm:$0xff]
      %v3177 = vld [vmem:[#allocation8 + $0x538] sm:$0xf]
      %v3178 = vld [vmem:[#allocation8 + $0x53c] sm:$0xff]
      %v3179 = vld [vmem:[#allocation8 + $0x544] sm:$0xff]
      %v3180 = vld [vmem:[#allocation8 + $0x54c] sm:$0xf]
      %v3181 = vld [vmem:[#allocation8 + $0x550] sm:$0xff]
      %v3182 = vld [vmem:[#allocation8 + $0x558] sm:$0xff]
      %v3183 = vld [vmem:[#allocation8 + $0x560] sm:$0xf]
      %v3184 = vld [vmem:[#allocation8 + $0x564] sm:$0xff]
      %v3185 = vld [vmem:[#allocation8 + $0x56c] sm:$0xff]
      %v3186 = vld [vmem:[#allocation8 + $0x574] sm:$0xf]
      %v3187 = vld [vmem:[#allocation8 + $0x578] sm:$0xff]
      %v3188 = vld [vmem:[#allocation8 + $0x580] sm:$0xff]
      %v3189 = vld [vmem:[#allocation8 + $0x588] sm:$0xf]
      %v3190 = vld [vmem:[#allocation8 + $0x58c] sm:$0xff]
      %v3191 = vld [vmem:[#allocation8 + $0x594] sm:$0xff]
      %v3192 = vld [vmem:[#allocation8 + $0x59c] sm:$0xf]
      %v3193 = vld [vmem:[#allocation8 + $0x5a0] sm:$0xff]
      %v3194 = vld [vmem:[#allocation8 + $0x5a8] sm:$0xff]
      %v3195 = vld [vmem:[#allocation8 + $0x5b0] sm:$0xf]
      %v3196 = vld [vmem:[#allocation8 + $0x5b4] sm:$0xff]
      %v3197 = vld [vmem:[#allocation8 + $0x5bc] sm:$0xff]
      %v3198 = vld [vmem:[#allocation8 + $0x5c4] sm:$0xf]
      %v3199 = vld [vmem:[#allocation8 + $0x5c8] sm:$0xff]
      %v3200 = vld [vmem:[#allocation8 + $0x5d0] sm:$0xff]
      %v3201 = vld [vmem:[#allocation8 + $0x5d8] sm:$0xf]
      %v3202 = vld [vmem:[#allocation8 + $0x5dc] sm:$0xff]
      %v3203 = vld [vmem:[#allocation8 + $0x5e4] sm:$0xff]
      %v3204 = vld [vmem:[#allocation8 + $0x5ec] sm:$0xf]
      %v3205 = vld [vmem:[#allocation8 + $0x5f0] sm:$0xff]
      %v3206 = vld [vmem:[#allocation8 + $0x5f8] sm:$0xff]
      %v3207 = vld [vmem:[#allocation8 + $0x600] sm:$0xf]
      %v3208 = vld [vmem:[#allocation8 + $0x604] sm:$0xff]
      %v3209 = vld [vmem:[#allocation8 + $0x60c] sm:$0xff]
      %v3210 = vld [vmem:[#allocation8 + $0x614] sm:$0xf]
      %v3211 = vld [vmem:[#allocation8 + $0x618] sm:$0xff]
      %v3212 = vld [vmem:[#allocation8 + $0x620] sm:$0xff]
      %v3213 = vld [vmem:[#allocation8 + $0x628] sm:$0xf]
      %v3214 = vld [vmem:[#allocation8 + $0x62c] sm:$0xff]
      %v3215 = vld [vmem:[#allocation8 + $0x634] sm:$0xff]
      %v3216 = vld [vmem:[#allocation8 + $0x63c] sm:$0xf]
      %v3217 = vld [vmem:[#allocation8 + $0x640] sm:$0xff]
      %v3218 = vld [vmem:[#allocation8 + $0x648] sm:$0xff]
      %v3219 = vld [vmem:[#allocation8 + $0x650] sm:$0xf]
      %v3220 = vld [vmem:[#allocation8 + $0x654] sm:$0xff]
      %v3221 = vld [vmem:[#allocation8 + $0x65c] sm:$0xff]
      %v3222 = vld [vmem:[#allocation8 + $0x664] sm:$0xf]
      %v3223 = vld [vmem:[#allocation8 + $0x668] sm:$0xff]
      %v3224 = vld [vmem:[#allocation8 + $0x670] sm:$0xff]
      %v3225 = vld [vmem:[#allocation8 + $0x678] sm:$0xf]
      %v3226 = vld [vmem:[#allocation8 + $0x67c] sm:$0xff]
      %v3227 = vld [vmem:[#allocation8 + $0x684] sm:$0xff]
      %v3228 = vld [vmem:[#allocation8 + $0x68c] sm:$0xf]
      %v3229 = vld [vmem:[#allocation8 + $0x690] sm:$0xff]
      %v3230 = vld [vmem:[#allocation8 + $0x698] sm:$0xff]
      %v3231 = vld [vmem:[#allocation8 + $0x6a0] sm:$0xf]
      %v3232 = vld [vmem:[#allocation8 + $0x6a4] sm:$0xff]
      %v3233 = vld [vmem:[#allocation8 + $0x6ac] sm:$0xff]
      %v3234 = vld [vmem:[#allocation8 + $0x6b4] sm:$0xf]
      %v3235 = vld [vmem:[#allocation8 + $0x6b8] sm:$0xff]
      %v3236 = vld [vmem:[#allocation8 + $0x6c0] sm:$0xff]
      %v3237 = vld [vmem:[#allocation8 + $0x6c8] sm:$0xf]
      %v3238 = vld [vmem:[#allocation8 + $0x6cc] sm:$0xff]
      %v3239 = vld [vmem:[#allocation8 + $0x6d4] sm:$0xff]
      %v3240 = vld [vmem:[#allocation8 + $0x6dc] sm:$0xf]
      %v3241 = vld [vmem:[#allocation8 + $0x6e0] sm:$0xff]
      %v3242 = vld [vmem:[#allocation8 + $0x6e8] sm:$0xff]
      %v3243 = vld [vmem:[#allocation8 + $0x6f0] sm:$0xf]
      %v3244 = vld [vmem:[#allocation8 + $0x6f4] sm:$0xff]
      %v3245 = vld [vmem:[#allocation8 + $0x6fc] sm:$0xff]
      %v3246 = vld [vmem:[#allocation8 + $0x704] sm:$0xf]
      %v3247 = vld [vmem:[#allocation8 + $0x708] sm:$0xff]
      %v3248 = vld [vmem:[#allocation8 + $0x710] sm:$0xff]
      %v3249 = vld [vmem:[#allocation8 + $0x718] sm:$0xf]
      %v3250 = vld [vmem:[#allocation8 + $0x71c] sm:$0xff]
      %v3251 = vld [vmem:[#allocation8 + $0x724] sm:$0xff]
      %v3252 = vld [vmem:[#allocation8 + $0x72c] sm:$0xf]
      %v3253 = vld [vmem:[#allocation8 + $0x730] sm:$0xff]
      %v3254 = vld [vmem:[#allocation8 + $0x738] sm:$0xff]
      %v3255 = vld [vmem:[#allocation8 + $0x740] sm:$0xf]
      %v3256 = vld [vmem:[#allocation8 + $0x744] sm:$0xff]
      %v3257 = vld [vmem:[#allocation8 + $0x74c] sm:$0xff]
      %v3258 = vld [vmem:[#allocation8 + $0x754] sm:$0xf]
      %v3259 = vld [vmem:[#allocation8 + $0x758] sm:$0xff]
      %v3260 = vld [vmem:[#allocation8 + $0x760] sm:$0xff]
      %v3261 = vld [vmem:[#allocation8 + $0x768] sm:$0xf]
      %v3262 = vld [vmem:[#allocation8 + $0x76c] sm:$0xff]
      %v3263 = vld [vmem:[#allocation8 + $0x774] sm:$0xff]
      %v3264 = vld [vmem:[#allocation8 + $0x77c] sm:$0xf]
      %v3265 = vld [vmem:[#allocation8 + $0x780] sm:$0xff]
      %v3266 = vld [vmem:[#allocation8 + $0x788] sm:$0xff]
      %v3267 = vld [vmem:[#allocation8 + $0x790] sm:$0xf]
      %v3268 = vld [vmem:[#allocation8 + $0x794] sm:$0xff]
      %v3269 = vld [vmem:[#allocation8 + $0x79c] sm:$0xff]
      %v3270 = vld [vmem:[#allocation8 + $0x7a4] sm:$0xf]
      %v3271 = vld [vmem:[#allocation8 + $0x7a8] sm:$0xff]
      %v3272 = vld [vmem:[#allocation8 + $0x7b0] sm:$0xff]
      %v3273 = vld [vmem:[#allocation8 + $0x7b8] sm:$0xf]
      %v3274 = vld [vmem:[#allocation8 + $0x7bc] sm:$0xff]
      %v3275 = vld [vmem:[#allocation8 + $0x7c4] sm:$0xff]
      %v3276 = vld [vmem:[#allocation8 + $0x7cc] sm:$0xf]
      %v3277 = vld [vmem:[#allocation8 + $0x7d0] sm:$0xff]
      %v3278 = vld [vmem:[#allocation8 + $0x7d8] sm:$0xff]
      %v3279 = vld [vmem:[#allocation8 + $0x7e0] sm:$0xf]
      %v3280 = vld [vmem:[#allocation8 + $0x7e4] sm:$0xff]
      %v3281 = vld [vmem:[#allocation8 + $0x7ec] sm:$0xff]
      %v3282 = vld [vmem:[#allocation8 + $0x7f4] sm:$0xf]
      %v3283 = vld [vmem:[#allocation8 + $0x7f8] sm:$0xff]
      %v3284 = vld [vmem:[#allocation8 + $0x800] sm:$0xff]
      %v3285 = vld [vmem:[#allocation8 + $0x808] sm:$0xf]
      %v3286 = vld [vmem:[#allocation8 + $0x80c] sm:$0xff]
      %v3287 = vld [vmem:[#allocation8 + $0x814] sm:$0xff]
      %v3288 = vld [vmem:[#allocation8 + $0x81c] sm:$0xf]
      %v3289 = vld [vmem:[#allocation8 + $0x820] sm:$0xff]
      %v3290 = vld [vmem:[#allocation8 + $0x828] sm:$0xff]
      %v3291 = vld [vmem:[#allocation8 + $0x830] sm:$0xf]
      %v3292 = vld [vmem:[#allocation8 + $0x834] sm:$0xff]
      %v3293 = vld [vmem:[#allocation8 + $0x83c] sm:$0xff]
      %v3294 = vld [vmem:[#allocation8 + $0x844] sm:$0xf]
      %v3295 = vld [vmem:[#allocation8 + $0x848] sm:$0xff]
      %v3296 = vld [vmem:[#allocation8 + $0x850] sm:$0xff]
      %v3297 = vld [vmem:[#allocation8 + $0x858] sm:$0xf]
      %v3298 = vld [vmem:[#allocation8 + $0x85c] sm:$0xff]
      %v3299 = vld [vmem:[#allocation8 + $0x864] sm:$0xff]
      %v3300 = vld [vmem:[#allocation8 + $0x86c] sm:$0xf]
      %v3301 = vld [vmem:[#allocation8 + $0x870] sm:$0xff]
      %v3302 = vld [vmem:[#allocation8 + $0x878] sm:$0xff]
      %v3303 = vld [vmem:[#allocation8 + $0x880] sm:$0xf]
      %v3304 = vld [vmem:[#allocation8 + $0x884] sm:$0xff]
      %v3305 = vld [vmem:[#allocation8 + $0x88c] sm:$0xff]
      %v3306 = vld [vmem:[#allocation8 + $0x894] sm:$0xf]
      %v3307 = vld [vmem:[#allocation8 + $0x898] sm:$0xff]
      %v3308 = vld [vmem:[#allocation8 + $0x8a0] sm:$0xff]
      %v3309 = vld [vmem:[#allocation8 + $0x8a8] sm:$0xf]
      %v3310 = vld [vmem:[#allocation8 + $0x8ac] sm:$0xff]
      %v3311 = vld [vmem:[#allocation8 + $0x8b4] sm:$0xff]
      %v3312 = vld [vmem:[#allocation8 + $0x8bc] sm:$0xf]
      %v3313 = vld [vmem:[#allocation8 + $0x8c0] sm:$0xff]
      %v3314 = vld [vmem:[#allocation8 + $0x8c8] sm:$0xff]
      %v3315 = vld [vmem:[#allocation8 + $0x8d0] sm:$0xf]
      %v3316 = vld [vmem:[#allocation8 + $0x8d4] sm:$0xff]
      %v3317 = vld [vmem:[#allocation8 + $0x8dc] sm:$0xff]
      %v3318 = vld [vmem:[#allocation8 + $0x8e4] sm:$0xf]
      %v3319 = vld [vmem:[#allocation8 + $0x8e8] sm:$0xff]
      %v3320 = vld [vmem:[#allocation8 + $0x8f0] sm:$0xff]
      %v3321 = vld [vmem:[#allocation8 + $0x8f8] sm:$0xf]
      %v3322 = vld [vmem:[#allocation8 + $0x8fc] sm:$0xff]
      %v3323 = vld [vmem:[#allocation8 + $0x904] sm:$0xff]
      %v3324 = vld [vmem:[#allocation8 + $0x90c] sm:$0xf]
      %v3325 = vld [vmem:[#allocation8 + $0x910] sm:$0xff]
      %v3326 = vld [vmem:[#allocation8 + $0x918] sm:$0xff]
      %v3327 = vld [vmem:[#allocation8 + $0x920] sm:$0xf]
      %v3328 = vld [vmem:[#allocation8 + $0x924] sm:$0xff]
      %v3329 = vld [vmem:[#allocation8 + $0x92c] sm:$0xff]
      %v3330 = vld [vmem:[#allocation8 + $0x934] sm:$0xf]
      %v3331 = vld [vmem:[#allocation8 + $0x938] sm:$0xff]
      %v3332 = vld [vmem:[#allocation8 + $0x940] sm:$0xff]
      %v3333 = vld [vmem:[#allocation8 + $0x948] sm:$0xf]
      %v3334 = vld [vmem:[#allocation8 + $0x94c] sm:$0xff]
      %v3335 = vld [vmem:[#allocation8 + $0x954] sm:$0xff]
      %v3336 = vld [vmem:[#allocation8 + $0x95c] sm:$0xf]
      %v3337 = vld [vmem:[#allocation8 + $0x960] sm:$0xff]
      %v3338 = vld [vmem:[#allocation8 + $0x968] sm:$0xff]
      %v3339 = vld [vmem:[#allocation8 + $0x970] sm:$0xf]
      %v3340 = vld [vmem:[#allocation8 + $0x974] sm:$0xff]
      %v3341 = vld [vmem:[#allocation8 + $0x97c] sm:$0xff]
      %v3342 = vld [vmem:[#allocation8 + $0x984] sm:$0xf]
      %v3343 = vld [vmem:[#allocation8 + $0x988] sm:$0xff]
      %v3344 = vld [vmem:[#allocation8 + $0x990] sm:$0xff]
      %v3345 = vld [vmem:[#allocation8 + $0x998] sm:$0xf]
      %v3346 = vld [vmem:[#allocation8 + $0x99c] sm:$0xff]
      %v3347 = vld [vmem:[#allocation8 + $0x9a4] sm:$0xff]
      %v3348 = vld [vmem:[#allocation8 + $0x9ac] sm:$0xf]
      %v3349 = vld [vmem:[#allocation8 + $0x9b0] sm:$0xff]
      %v3350 = vld [vmem:[#allocation8 + $0x9b8] sm:$0xff]
      %v3351 = vld [vmem:[#allocation8 + $0x9c0] sm:$0xf]
      %v3352 = vld [vmem:[#allocation8 + $0x9c4] sm:$0xff]
      %v3353 = vld [vmem:[#allocation8 + $0x9cc] sm:$0xff]
      %v3354 = vld [vmem:[#allocation8 + $0x9d4] sm:$0xf]
      %v3355 = vld [vmem:[#allocation8 + $0x9d8] sm:$0xff]
      %v3356 = vld [vmem:[#allocation8 + $0x9e0] sm:$0xff]
      %v3357 = vld [vmem:[#allocation8 + $0x9e8] sm:$0xf]
      %v3358 = vld [vmem:[#allocation8 + $0x9ec] sm:$0xff]
      %v3359 = vld [vmem:[#allocation8 + $0x9f4] sm:$0xff]
      %v3360 = vld [vmem:[#allocation8 + $0x9fc] sm:$0xf]
      %v3361 = vld [vmem:[#allocation8 + $0xa00] sm:$0xff]
      %v3362 = vld [vmem:[#allocation8 + $0xa08] sm:$0xff]
      %v3363 = vld [vmem:[#allocation8 + $0xa10] sm:$0xf]
      %v3364 = vld [vmem:[#allocation8 + $0xa14] sm:$0xff]
      %v3365 = vld [vmem:[#allocation8 + $0xa1c] sm:$0xff]
      %v3366 = vld [vmem:[#allocation8 + $0xa24] sm:$0xf]
      %v3367 = vld [vmem:[#allocation8 + $0xa28] sm:$0xff]
      %v3368 = vld [vmem:[#allocation8 + $0xa30] sm:$0xff]
      %v3369 = vld [vmem:[#allocation8 + $0xa38] sm:$0xf]
      %v3370 = vld [vmem:[#allocation8 + $0xa3c] sm:$0xff]
      %v3371 = vld [vmem:[#allocation8 + $0xa44] sm:$0xff]
      %v3372 = vld [vmem:[#allocation8 + $0xa4c] sm:$0xf]
      %v3373 = vld [vmem:[#allocation8 + $0xa50] sm:$0xff]
      %v3374 = vld [vmem:[#allocation8 + $0xa58] sm:$0xff]
      %v3375 = vld [vmem:[#allocation8 + $0xa60] sm:$0xf]
      %v3376 = vld [vmem:[#allocation8 + $0xa64] sm:$0xff]
      %v3377 = vld [vmem:[#allocation8 + $0xa6c] sm:$0xff]
      %v3378 = vld [vmem:[#allocation8 + $0xa74] sm:$0xf]
      %v3379 = vld [vmem:[#allocation8 + $0xa78] sm:$0xff]
      %v3380 = vld [vmem:[#allocation8 + $0xa80] sm:$0xff]
      %v3381 = vld [vmem:[#allocation8 + $0xa88] sm:$0xf]
      %v3382 = vld [vmem:[#allocation8 + $0xa8c] sm:$0xff]
      %v3383 = vld [vmem:[#allocation8 + $0xa94] sm:$0xff]
      %v3384 = vld [vmem:[#allocation8 + $0xa9c] sm:$0xf]
      %v3385 = vld [vmem:[#allocation8 + $0xaa0] sm:$0xff]
      %v3386 = vld [vmem:[#allocation8 + $0xaa8] sm:$0xff]
      %v3387 = vld [vmem:[#allocation8 + $0xab0] sm:$0xf]
      %v3388 = vld [vmem:[#allocation8 + $0xab4] sm:$0xff]
      %v3389 = vld [vmem:[#allocation8 + $0xabc] sm:$0xff]
      %v3390 = vld [vmem:[#allocation8 + $0xac4] sm:$0xf]
      %v3391 = vld [vmem:[#allocation8 + $0xac8] sm:$0xff]
      %v3392 = vld [vmem:[#allocation8 + $0xad0] sm:$0xff]
      %v3393 = vld [vmem:[#allocation8 + $0xad8] sm:$0xf]
      %v3394 = vld [vmem:[#allocation8 + $0xadc] sm:$0xff]
      %v3395 = vld [vmem:[#allocation8 + $0xae4] sm:$0xff]
      %v3396 = vld [vmem:[#allocation8 + $0xaec] sm:$0xf]
      %v3397 = vld [vmem:[#allocation8 + $0xaf0] sm:$0xff]
      %v3398 = vld [vmem:[#allocation8 + $0xaf8] sm:$0xff]
      %v3399 = vld [vmem:[#allocation8 + $0xb00] sm:$0xf]
      %v3400 = vld [vmem:[#allocation8 + $0xb04] sm:$0xff]
      %v3401 = vld [vmem:[#allocation8 + $0xb0c] sm:$0xff]
      %v3402 = vld [vmem:[#allocation8 + $0xb14] sm:$0xf]
      %v3403 = vld [vmem:[#allocation8 + $0xb18] sm:$0xff]
      %v3404 = vld [vmem:[#allocation8 + $0xb20] sm:$0xff]
      %v3405 = vld [vmem:[#allocation8 + $0xb28] sm:$0xf]
      %v3406 = vld [vmem:[#allocation8 + $0xb2c] sm:$0xff]
      %v3407 = vld [vmem:[#allocation8 + $0xb34] sm:$0xff]
      %v3408 = vld [vmem:[#allocation8 + $0xb3c] sm:$0xf]
      %v3409 = vld [vmem:[#allocation8 + $0xb40] sm:$0xff]
      %v3410 = vld [vmem:[#allocation8 + $0xb48] sm:$0xff]
      %v3411 = vld [vmem:[#allocation8 + $0xb50] sm:$0xf]
      %v3412 = vld [vmem:[#allocation8 + $0xb54] sm:$0xff]
      %v3413 = vld [vmem:[#allocation8 + $0xb5c] sm:$0xff]
      %v3414 = vld [vmem:[#allocation8 + $0xb64] sm:$0xf]
      %v3415 = vld [vmem:[#allocation8 + $0xb68] sm:$0xff]
      %v3416 = vld [vmem:[#allocation8 + $0xb70] sm:$0xff]
      %v3417 = vld [vmem:[#allocation8 + $0xb78] sm:$0xf]
      %v3418 = vld [vmem:[#allocation8 + $0xb7c] sm:$0xff]
      %v3419 = vld [vmem:[#allocation8 + $0xb84] sm:$0xff]
      %v3420 = vld [vmem:[#allocation8 + $0xb8c] sm:$0xf]
      %v3421 = vld [vmem:[#allocation8 + $0xb90] sm:$0xff]
      %v3422 = vld [vmem:[#allocation8 + $0xb98] sm:$0xff]
      %v3423 = vld [vmem:[#allocation8 + $0xba0] sm:$0xf]
      %v3424 = vld [vmem:[#allocation8 + $0xba4] sm:$0xff]
      %v3425 = vld [vmem:[#allocation8 + $0xbac] sm:$0xff]
      %v3426 = vld [vmem:[#allocation8 + $0xbb4] sm:$0xf]
      %v3427 = vld [vmem:[#allocation8 + $0xbb8] sm:$0xff]
      %v3428 = vld [vmem:[#allocation8 + $0xbc0] sm:$0xff]
      %v3429 = vld [vmem:[#allocation8 + $0xbc8] sm:$0xf]
      %v3430 = vld [vmem:[#allocation8 + $0xbcc] sm:$0xff]
      %v3431 = vld [vmem:[#allocation8 + $0xbd4] sm:$0xff]
      %v3432 = vld [vmem:[#allocation8 + $0xbdc] sm:$0xf]
      %v3433 = vld [vmem:[#allocation8 + $0xbe0] sm:$0xff]
      %v3434 = vld [vmem:[#allocation8 + $0xbe8] sm:$0xff]
      %v3435 = vld [vmem:[#allocation8 + $0xbf0] sm:$0xf]
      %v3436 = vld [vmem:[#allocation8 + $0xbf4] sm:$0xff]
      %v3437 = vld [vmem:[#allocation8 + $0xbfc] sm:$0xff]
      %v3438 = vld [vmem:[#allocation8 + $0xc04] sm:$0xf]
      %v3439 = vld [vmem:[#allocation8 + $0xc08] sm:$0xff]
      %v3440 = vld [vmem:[#allocation8 + $0xc10] sm:$0xff]
      %v3441 = vld [vmem:[#allocation8 + $0xc18] sm:$0xf]
      %v3442 = vld [vmem:[#allocation8 + $0xc1c] sm:$0xff]
      %v3443 = vld [vmem:[#allocation8 + $0xc24] sm:$0xff]
      %v3444 = vld [vmem:[#allocation8 + $0xc2c] sm:$0xf]
      %v3445 = vld [vmem:[#allocation8 + $0xc30] sm:$0xff]
      %v3446 = vld [vmem:[#allocation8 + $0xc38] sm:$0xff]
      %v3447 = vld [vmem:[#allocation8 + $0xc40] sm:$0xf]
      %v3448 = vld [vmem:[#allocation8 + $0xc44] sm:$0xff]
      %v3449 = vld [vmem:[#allocation8 + $0xc4c] sm:$0xff]
      %v3450 = vld [vmem:[#allocation8 + $0xc54] sm:$0xf]
      %v3451 = vld [vmem:[#allocation8 + $0xc58] sm:$0xff]
      %v3452 = vld [vmem:[#allocation8 + $0xc60] sm:$0xff]
      %v3453 = vld [vmem:[#allocation8 + $0xc68] sm:$0xf]
      %v3454 = vld [vmem:[#allocation8 + $0xc6c] sm:$0xff]
      %v3455 = vld [vmem:[#allocation8 + $0xc74] sm:$0xff]
      %v3456 = vld [vmem:[#allocation8 + $0xc7c] sm:$0xf]
      %v3457 = vld [vmem:[#allocation8 + $0xc80] sm:$0xff]
      %v3458 = vld [vmem:[#allocation8 + $0xc88] sm:$0xff]
      %v3459 = vld [vmem:[#allocation8 + $0xc90] sm:$0xf]
      %v3460 = vld [vmem:[#allocation8 + $0xc94] sm:$0xff]
      %v3461 = vld [vmem:[#allocation8 + $0xc9c] sm:$0xff]
      %v3462 = vld [vmem:[#allocation8 + $0xca4] sm:$0xf]
      %v3463 = vld [vmem:[#allocation8 + $0xca8] sm:$0xff]
      %v3464 = vld [vmem:[#allocation8 + $0xcb0] sm:$0xff]
      %v3465 = vld [vmem:[#allocation8 + $0xcb8] sm:$0xf]
      %v3466 = vld [vmem:[#allocation8 + $0xcbc] sm:$0xff]
      %v3467 = vld [vmem:[#allocation8 + $0xcc4] sm:$0xff]
      %v3468 = vld [vmem:[#allocation8 + $0xccc] sm:$0xf]
      %v3469 = vld [vmem:[#allocation8 + $0xcd0] sm:$0xff]
      %v3470 = vld [vmem:[#allocation8 + $0xcd8] sm:$0xff]
      %v3471 = vld [vmem:[#allocation8 + $0xce0] sm:$0xf]
      %v3472 = vld [vmem:[#allocation8 + $0xce4] sm:$0xff]
      %v3473 = vld [vmem:[#allocation8 + $0xcec] sm:$0xff]
      %v3474 = vld [vmem:[#allocation8 + $0xcf4] sm:$0xf]
      %v3475 = vld [vmem:[#allocation8 + $0xcf8] sm:$0xff]
      %v3476 = vld [vmem:[#allocation8 + $0xd00] sm:$0xff]
      %v3477 = vld [vmem:[#allocation8 + $0xd08] sm:$0xf]
      %v3478 = vld [vmem:[#allocation8 + $0xd0c] sm:$0xff]
      %v3479 = vld [vmem:[#allocation8 + $0xd14] sm:$0xff]
      %v3480 = vld [vmem:[#allocation8 + $0xd1c] sm:$0xf]
      %v3481 = vld [vmem:[#allocation8 + $0xd20] sm:$0xff]
      %v3482 = vld [vmem:[#allocation8 + $0xd28] sm:$0xff]
      %v3483 = vld [vmem:[#allocation8 + $0xd30] sm:$0xf]
      %v3484 = vld [vmem:[#allocation8 + $0xd34] sm:$0xff]
      %v3485 = vld [vmem:[#allocation8 + $0xd3c] sm:$0xff]
      %v3486 = vld [vmem:[#allocation8 + $0xd44] sm:$0xf]
      %v3487 = vld [vmem:[#allocation8 + $0xd48] sm:$0xff]
      %v3488 = vld [vmem:[#allocation8 + $0xd50] sm:$0xff]
      %v3489 = vld [vmem:[#allocation8 + $0xd58] sm:$0xf]
      %v3490 = vld [vmem:[#allocation8 + $0xd5c] sm:$0xff]
      %v3491 = vld [vmem:[#allocation8 + $0xd64] sm:$0xff]
      %v3492 = vld [vmem:[#allocation8 + $0xd6c] sm:$0xf]
      %v3493 = vld [vmem:[#allocation8 + $0xd70] sm:$0xff]
      %v3494 = vld [vmem:[#allocation8 + $0xd78] sm:$0xff]
      %v3495 = vld [vmem:[#allocation8 + $0xd80] sm:$0xf]
      %v3496 = vld [vmem:[#allocation8 + $0xd84] sm:$0xff]
      %v3497 = vld [vmem:[#allocation8 + $0xd8c] sm:$0xff]
      %v3498 = vld [vmem:[#allocation8 + $0xd94] sm:$0xf]
      %v3499 = vld [vmem:[#allocation8 + $0xd98] sm:$0xff]
      %v3500 = vld [vmem:[#allocation8 + $0xda0] sm:$0xff]
      %v3501 = vld [vmem:[#allocation8 + $0xda8] sm:$0xf]
      %v3502 = vld [vmem:[#allocation8 + $0xdac] sm:$0xff]
      %v3503 = vld [vmem:[#allocation8 + $0xdb4] sm:$0xff]
      %v3504 = vld [vmem:[#allocation8 + $0xdbc] sm:$0xf]
      %v3505 = vld [vmem:[#allocation8 + $0xdc0] sm:$0xff]
      %v3506 = vld [vmem:[#allocation8 + $0xdc8] sm:$0xff]
      %v3507 = vld [vmem:[#allocation8 + $0xdd0] sm:$0xf]
      %v3508 = vld [vmem:[#allocation8 + $0xdd4] sm:$0xff]
      %v3509 = vld [vmem:[#allocation8 + $0xddc] sm:$0xff]
      %v3510 = vld [vmem:[#allocation8 + $0xde4] sm:$0xf]
      %v3511 = vld [vmem:[#allocation8 + $0xde8] sm:$0xff]
      %v3512 = vld [vmem:[#allocation8 + $0xdf0] sm:$0xff]
      %v3513 = vld [vmem:[#allocation8 + $0xdf8] sm:$0xf]
      %v3514 = vld [vmem:[#allocation8 + $0xdfc] sm:$0xff]
      %v3515 = vld [vmem:[#allocation8 + $0xe04] sm:$0xff]
      %v3516 = vld [vmem:[#allocation8 + $0xe0c] sm:$0xf]
      %v3517 = vld [vmem:[#allocation8 + $0xe10] sm:$0xff]
      %v3518 = vld [vmem:[#allocation8 + $0xe18] sm:$0xff]
      %v3519 = vld [vmem:[#allocation8 + $0xe20] sm:$0xf]
      %v3520 = vld [vmem:[#allocation8 + $0xe24] sm:$0xff]
      %v3521 = vld [vmem:[#allocation8 + $0xe2c] sm:$0xff]
      %v3522 = vld [vmem:[#allocation8 + $0xe34] sm:$0xf]
      %v3523 = vld [vmem:[#allocation8 + $0xe38] sm:$0xff]
      %v3524 = vld [vmem:[#allocation8 + $0xe40] sm:$0xff]
      %v3525 = vld [vmem:[#allocation8 + $0xe48] sm:$0xf]
      %v3526 = vld [vmem:[#allocation8 + $0xe4c] sm:$0xff]
      %v3527 = vld [vmem:[#allocation8 + $0xe54] sm:$0xff]
      %v3528 = vld [vmem:[#allocation8 + $0xe5c] sm:$0xf]
      %v3529 = vld [vmem:[#allocation8 + $0xe60] sm:$0xff]
      %v3530 = vld [vmem:[#allocation8 + $0xe68] sm:$0xff]
      %v3531 = vld [vmem:[#allocation8 + $0xe70] sm:$0xf]
      %v3532 = vld [vmem:[#allocation8 + $0xe74] sm:$0xff]
      %v3533 = vld [vmem:[#allocation8 + $0xe7c] sm:$0xff]
      %v3534 = vld [vmem:[#allocation8 + $0xe84] sm:$0xf]
      %v3535 = vld [vmem:[#allocation8 + $0xe88] sm:$0xff]
      %v3536 = vld [vmem:[#allocation8 + $0xe90] sm:$0xff]
      %v3537 = vld [vmem:[#allocation8 + $0xe98] sm:$0xf]
      %v3538 = vld [vmem:[#allocation8 + $0xe9c] sm:$0xff]
      %v3539 = vld [vmem:[#allocation8 + $0xea4] sm:$0xff]
      %v3540 = vld [vmem:[#allocation8 + $0xeac] sm:$0xf]
      %v3541 = vld [vmem:[#allocation8 + $0xeb0] sm:$0xff]
      %v3542 = vld [vmem:[#allocation8 + $0xeb8] sm:$0xff]
      %v3543 = vld [vmem:[#allocation8 + $0xec0] sm:$0xf]
      %v3544 = vld [vmem:[#allocation8 + $0xec4] sm:$0xff]
      %v3545 = vld [vmem:[#allocation8 + $0xecc] sm:$0xff]
      %v3546 = vld [vmem:[#allocation8 + $0xed4] sm:$0xf]
      %v3547 = vld [vmem:[#allocation8 + $0xed8] sm:$0xff]
      %v3548 = vld [vmem:[#allocation8 + $0xee0] sm:$0xff]
      %v3549 = vld [vmem:[#allocation8 + $0xee8] sm:$0xf]
      %v3550 = vld [vmem:[#allocation8 + $0xeec] sm:$0xff]
      %v3551 = vld [vmem:[#allocation8 + $0xef4] sm:$0xff]
      %v3552 = vld [vmem:[#allocation8 + $0xefc] sm:$0xf]
      %v3553 = vld [vmem:[#allocation8 + $0xf00] sm:$0xff]
      %v3554 = vld [vmem:[#allocation8 + $0xf08] sm:$0xff]
      %v3555 = vld [vmem:[#allocation8 + $0xf10] sm:$0xf]
      %v3556 = vld [vmem:[#allocation8 + $0xf14] sm:$0xff]
      %v3557 = vld [vmem:[#allocation8 + $0xf1c] sm:$0xff]
      %v3558 = vld [vmem:[#allocation8 + $0xf24] sm:$0xf]
      %v3559 = vld [vmem:[#allocation8 + $0xf28] sm:$0xff]
      %v3560 = vld [vmem:[#allocation8 + $0xf30] sm:$0xff]
      %v3561 = vld [vmem:[#allocation8 + $0xf38] sm:$0xf]
      %v3562 = vld [vmem:[#allocation8 + $0xf3c] sm:$0xff]
      %v3563 = vld [vmem:[#allocation8 + $0xf44] sm:$0xff]
      %v3564 = vld [vmem:[#allocation8 + $0xf4c] sm:$0xf]
      %v3565 = vld [vmem:[#allocation8 + $0xf50] sm:$0xff]
      %v3566 = vld [vmem:[#allocation8 + $0xf58] sm:$0xff]
      %v3567 = vld [vmem:[#allocation8 + $0xf60] sm:$0xf]
      %v3568 = vld [vmem:[#allocation8 + $0xf64] sm:$0xff]
      %v3569 = vld [vmem:[#allocation8 + $0xf6c] sm:$0xff]
      %v3570 = vld [vmem:[#allocation8 + $0xf74] sm:$0xf]
      %v3571 = vld [vmem:[#allocation8 + $0xf78] sm:$0xff]
      %v3572 = vld [vmem:[#allocation8 + $0xf80] sm:$0xff]
      %v3573 = vld [vmem:[#allocation8 + $0xf88] sm:$0xf]
      %v3574 = vld [vmem:[#allocation8 + $0xf8c] sm:$0xff]
      %v3575 = vld [vmem:[#allocation8 + $0xf94] sm:$0xff]
      %v3576 = vld [vmem:[#allocation8 + $0xf9c] sm:$0xf]
      %v3577 = vld [vmem:[#allocation8 + $0xfa0] sm:$0xff]
      %v3578 = vld [vmem:[#allocation8 + $0xfa8] sm:$0xff]
      %v3579 = vld [vmem:[#allocation8 + $0xfb0] sm:$0xf]
      %v3580 = vld [vmem:[#allocation8 + $0xfb4] sm:$0xff]
      %v3581 = vld [vmem:[#allocation8 + $0xfbc] sm:$0xff]
      %v3582 = vld [vmem:[#allocation8 + $0xfc4] sm:$0xf]
      %v3583 = vld [vmem:[#allocation8 + $0xfc8] sm:$0xff]
      %v3584 = vld [vmem:[#allocation8 + $0xfd0] sm:$0xff]
      %v3585 = vld [vmem:[#allocation8 + $0xfd8] sm:$0xf]
      %v3586 = vld [vmem:[#allocation8 + $0xfdc] sm:$0xff]
      %v3587 = vld [vmem:[#allocation8 + $0xfe4] sm:$0xff]
      %v3588 = vld [vmem:[#allocation8 + $0xfec] sm:$0xf]
      %v3589 = vld [vmem:[#allocation8 + $0xff0] sm:$0xff]
      %v3590 = vld [vmem:[#allocation8 + $0xff8] sm:$0xff]
      %v3591 = vld [vmem:[#allocation8 + $0x1000] sm:$0xf]
      %v3592 = vld [vmem:[#allocation8 + $0x1004] sm:$0xff]
      %v3593 = vld [vmem:[#allocation8 + $0x100c] sm:$0xff]
      %v3594 = vld [vmem:[#allocation8 + $0x1014] sm:$0xf]
      %v3595 = vld [vmem:[#allocation8 + $0x1018] sm:$0xff]
      %v3596 = vld [vmem:[#allocation8 + $0x1020] sm:$0xff]
      %v3597 = vld [vmem:[#allocation8 + $0x1028] sm:$0xf]
      %v3598 = vld [vmem:[#allocation8 + $0x102c] sm:$0xff]
      %v3599 = vld [vmem:[#allocation8 + $0x1034] sm:$0xff]
      %v3600 = vld [vmem:[#allocation8 + $0x103c] sm:$0xf]
      %v3601 = vld [vmem:[#allocation8 + $0x1040] sm:$0xff]
      %v3602 = vld [vmem:[#allocation8 + $0x1048] sm:$0xff]
      %v3603 = vld [vmem:[#allocation8 + $0x1050] sm:$0xf]
      %v3604 = vld [vmem:[#allocation8 + $0x1054] sm:$0xff]
      %v3605 = vld [vmem:[#allocation8 + $0x105c] sm:$0xff]
      %v3606 = vld [vmem:[#allocation8 + $0x1064] sm:$0xf]
      %v3607 = vld [vmem:[#allocation8 + $0x1068] sm:$0xff]
      %v3608 = vld [vmem:[#allocation8 + $0x1070] sm:$0xff]
      %v3609 = vld [vmem:[#allocation8 + $0x1078] sm:$0xf]
      %v3610 = vld [vmem:[#allocation8 + $0x107c] sm:$0xff]
      %v3611 = vld [vmem:[#allocation8 + $0x1084] sm:$0xff]
      %v3612 = vld [vmem:[#allocation8 + $0x108c] sm:$0xf]
      %v3613 = vld [vmem:[#allocation8 + $0x1090] sm:$0xff]
      %v3614 = vld [vmem:[#allocation8 + $0x1098] sm:$0xff]
      %v3615 = vld [vmem:[#allocation8 + $0x10a0] sm:$0xf]
      %v3616 = vld [vmem:[#allocation8 + $0x10a4] sm:$0xff]
      %v3617 = vld [vmem:[#allocation8 + $0x10ac] sm:$0xff]
      %v3618 = vld [vmem:[#allocation8 + $0x10b4] sm:$0xf]
      %v3619 = vld [vmem:[#allocation8 + $0x10b8] sm:$0xff]
      %v3620 = vld [vmem:[#allocation8 + $0x10c0] sm:$0xff]
      %v3621 = vld [vmem:[#allocation8 + $0x10c8] sm:$0xf]
      %v3622 = vld [vmem:[#allocation8 + $0x10cc] sm:$0xff]
      %v3623 = vld [vmem:[#allocation8 + $0x10d4] sm:$0xff]
      %v3624 = vld [vmem:[#allocation8 + $0x10dc] sm:$0xf]
      %v3625 = vld [vmem:[#allocation8 + $0x10e0] sm:$0xff]
      %v3626 = vld [vmem:[#allocation8 + $0x10e8] sm:$0xff]
      %v3627 = vld [vmem:[#allocation8 + $0x10f0] sm:$0xf]
      %v3628 = vld [vmem:[#allocation8 + $0x10f4] sm:$0xff]
      %v3629 = vld [vmem:[#allocation8 + $0x10fc] sm:$0xff]
      %v3630 = vld [vmem:[#allocation8 + $0x1104] sm:$0xf]
      %v3631 = vld [vmem:[#allocation8 + $0x1108] sm:$0xff]
      %v3632 = vld [vmem:[#allocation8 + $0x1110] sm:$0xff]
      %v3633 = vld [vmem:[#allocation8 + $0x1118] sm:$0xf]
      %v3634 = vld [vmem:[#allocation8 + $0x111c] sm:$0xff]
      %v3635 = vld [vmem:[#allocation8 + $0x1124] sm:$0xff]
      %v3636 = vld [vmem:[#allocation8 + $0x112c] sm:$0xf]
      %v3637 = vld [vmem:[#allocation8 + $0x1130] sm:$0xff]
      %v3638 = vld [vmem:[#allocation8 + $0x1138] sm:$0xff]
      %v3639 = vld [vmem:[#allocation8 + $0x1140] sm:$0xf]
      %v3640 = vld [vmem:[#allocation8 + $0x1144] sm:$0xff]
      %v3641 = vld [vmem:[#allocation8 + $0x114c] sm:$0xff]
      %v3642 = vld [vmem:[#allocation8 + $0x1154] sm:$0xf]
      %v3643 = vld [vmem:[#allocation8 + $0x1158] sm:$0xff]
      %v3644 = vld [vmem:[#allocation8 + $0x1160] sm:$0xff]
      %v3645 = vld [vmem:[#allocation8 + $0x1168] sm:$0xf]
      %v3646 = vld [vmem:[#allocation8 + $0x116c] sm:$0xff]
      %v3647 = vld [vmem:[#allocation8 + $0x1174] sm:$0xff]
      %v3648 = vld [vmem:[#allocation8 + $0x117c] sm:$0xf]
      %v3649 = vld [vmem:[#allocation8 + $0x1180] sm:$0xff]
      %v3650 = vld [vmem:[#allocation8 + $0x1188] sm:$0xff]
      %v3651 = vld [vmem:[#allocation8 + $0x1190] sm:$0xf]
      %v3652 = vld [vmem:[#allocation8 + $0x1194] sm:$0xff]
      %v3653 = vld [vmem:[#allocation8 + $0x119c] sm:$0xff]
      %v3654 = vld [vmem:[#allocation8 + $0x11a4] sm:$0xf]
      %v3655 = vld [vmem:[#allocation8 + $0x11a8] sm:$0xff]
      %v3656 = vld [vmem:[#allocation8 + $0x11b0] sm:$0xff]
      %v3657 = vld [vmem:[#allocation8 + $0x11b8] sm:$0xf]
      %v3658 = vld [vmem:[#allocation8 + $0x11bc] sm:$0xff]
      %v3659 = vld [vmem:[#allocation8 + $0x11c4] sm:$0xff]
      %v3660 = vld [vmem:[#allocation8 + $0x11cc] sm:$0xf]
      %v3661 = vld [vmem:[#allocation8 + $0x11d0] sm:$0xff]
      %v3662 = vld [vmem:[#allocation8 + $0x11d8] sm:$0xff]
      %v3663 = vld [vmem:[#allocation8 + $0x11e0] sm:$0xf]
      %v3664 = vld [vmem:[#allocation8 + $0x11e4] sm:$0xff]
      %v3665 = vld [vmem:[#allocation8 + $0x11ec] sm:$0xff]
      %v3666 = vld [vmem:[#allocation8 + $0x11f4] sm:$0xf]
      %v3667 = vld [vmem:[#allocation8 + $0x11f8] sm:$0xff]
      %v3668 = vld [vmem:[#allocation8 + $0x1200] sm:$0xff]
      %v3669 = vld [vmem:[#allocation8 + $0x1208] sm:$0xf]
      %v3670 = vld [vmem:[#allocation8 + $0x120c] sm:$0xff]
      %v3671 = vld [vmem:[#allocation8 + $0x1214] sm:$0xff]
      %v3672 = vld [vmem:[#allocation8 + $0x121c] sm:$0xf]
      %v3673 = vld [vmem:[#allocation8 + $0x1220] sm:$0xff]
      %v3674 = vld [vmem:[#allocation8 + $0x1228] sm:$0xff]
      %v3675 = vld [vmem:[#allocation8 + $0x1230] sm:$0xf]
      %v3676 = vld [vmem:[#allocation8 + $0x1234] sm:$0xff]
      %v3677 = vld [vmem:[#allocation8 + $0x123c] sm:$0xff]
      %v3678 = vld [vmem:[#allocation8 + $0x1244] sm:$0xf]
      %v3679 = vld [vmem:[#allocation8 + $0x1248] sm:$0xff]
      %v3680 = vld [vmem:[#allocation8 + $0x1250] sm:$0xff]
      %v3681 = vld [vmem:[#allocation8 + $0x1258] sm:$0xf]
      %v3682 = vld [vmem:[#allocation8 + $0x125c] sm:$0xff]
      %v3683 = vld [vmem:[#allocation8 + $0x1264] sm:$0xff]
      %v3684 = vld [vmem:[#allocation8 + $0x126c] sm:$0xf]
      %v3685 = vld [vmem:[#allocation8 + $0x1270] sm:$0xff]
      %v3686 = vld [vmem:[#allocation8 + $0x1278] sm:$0xff]
      %v3687 = vld [vmem:[#allocation8 + $0x1280] sm:$0xf]
      %v3688 = vld [vmem:[#allocation8 + $0x1284] sm:$0xff]
      %v3689 = vld [vmem:[#allocation8 + $0x128c] sm:$0xff]
      %v3690 = vld [vmem:[#allocation8 + $0x1294] sm:$0xf]
      %v3691 = vld [vmem:[#allocation8 + $0x1298] sm:$0xff]
      %v3692 = vld [vmem:[#allocation8 + $0x12a0] sm:$0xff]
      %v3693 = vld [vmem:[#allocation8 + $0x12a8] sm:$0xf]
      %v3694 = vld [vmem:[#allocation8 + $0x12ac] sm:$0xff]
      %v3695 = vld [vmem:[#allocation8 + $0x12b4] sm:$0xff]
      %v3696 = vld [vmem:[#allocation8 + $0x12bc] sm:$0xf]
      %v3697 = vld [vmem:[#allocation8 + $0x12c0] sm:$0xff]
      %v3698 = vld [vmem:[#allocation8 + $0x12c8] sm:$0xff]
      %v3699 = vld [vmem:[#allocation8 + $0x12d0] sm:$0xf]
      %v3700 = vld [vmem:[#allocation8 + $0x12d4] sm:$0xff]
      %v3701 = vld [vmem:[#allocation8 + $0x12dc] sm:$0xff]
      %v3702 = vld [vmem:[#allocation8 + $0x12e4] sm:$0xf]
      %v3703 = vld [vmem:[#allocation8 + $0x12e8] sm:$0xff]
      %v3704 = vld [vmem:[#allocation8 + $0x12f0] sm:$0xff]
      %v3705 = vld [vmem:[#allocation8 + $0x12f8] sm:$0xf]
      %v3706 = vld [vmem:[#allocation8 + $0x12fc] sm:$0xff]
      %v3707 = vld [vmem:[#allocation8 + $0x1304] sm:$0xff]
      %v3708 = vld [vmem:[#allocation8 + $0x130c] sm:$0xf]
      %v3709 = vld [vmem:[#allocation8 + $0x1310] sm:$0xff]
      %v3710 = vld [vmem:[#allocation8 + $0x1318] sm:$0xff]
      %v3711 = vld [vmem:[#allocation8 + $0x1320] sm:$0xf]
      %v3712 = vld [vmem:[#allocation8 + $0x1324] sm:$0xff]
      %v3713 = vld [vmem:[#allocation8 + $0x132c] sm:$0xff]
      %v3714 = vld [vmem:[#allocation8 + $0x1334] sm:$0xf]
      %v3715 = vld [vmem:[#allocation8 + $0x1338] sm:$0xff]
      %v3716 = vld [vmem:[#allocation8 + $0x1340] sm:$0xff]
      %v3717 = vld [vmem:[#allocation8 + $0x1348] sm:$0xf]
      %v3718 = vld [vmem:[#allocation8 + $0x134c] sm:$0xff]
      %v3719 = vld [vmem:[#allocation8 + $0x1354] sm:$0xff]
      %v3720 = vld [vmem:[#allocation8 + $0x135c] sm:$0xf]
      %v3721 = vld [vmem:[#allocation8 + $0x1360] sm:$0xff]
      %v3722 = vld [vmem:[#allocation8 + $0x1368] sm:$0xff]
      %v3723 = vld [vmem:[#allocation8 + $0x1370] sm:$0xf]
      %v3724 = vld [vmem:[#allocation8 + $0x1374] sm:$0xff]
      %v3725 = vld [vmem:[#allocation8 + $0x137c] sm:$0xff]
      %v3726 = vld [vmem:[#allocation8 + $0x1384] sm:$0xf]
      %v3727 = vld [vmem:[#allocation8 + $0x1388] sm:$0xff]
      %v3728 = vld [vmem:[#allocation8 + $0x1390] sm:$0xff]
      %v3729 = vld [vmem:[#allocation8 + $0x1398] sm:$0xf]
      %v3730 = vld [vmem:[#allocation8 + $0x139c] sm:$0xff]
      %v3731 = vld [vmem:[#allocation8 + $0x13a4] sm:$0xff]
      %v3732 = vld [vmem:[#allocation8 + $0x13ac] sm:$0xf]
      %v3733 = vld [vmem:[#allocation8 + $0x13b0] sm:$0xff]
      %v3734 = vld [vmem:[#allocation8 + $0x13b8] sm:$0xff]
      %v3735 = vld [vmem:[#allocation8 + $0x13c0] sm:$0xf]
      %v3736 = vld [vmem:[#allocation8 + $0x13c4] sm:$0xff]
      %v3737 = vld [vmem:[#allocation8 + $0x13cc] sm:$0xff]
      %v3738 = vld [vmem:[#allocation8 + $0x13d4] sm:$0xf]
      %v3739 = vld [vmem:[#allocation8 + $0x13d8] sm:$0xff]
      %v3740 = vld [vmem:[#allocation8 + $0x13e0] sm:$0xff]
      %v3741 = vld [vmem:[#allocation8 + $0x13e8] sm:$0xf]
      %v3742 = vld [vmem:[#allocation8 + $0x13ec] sm:$0xff]
      %v3743 = vld [vmem:[#allocation8 + $0x13f4] sm:$0xff]
      %v3744 = vld [vmem:[#allocation8 + $0x13fc] sm:$0xf]
      %v3745 = vld [vmem:[#allocation9] sm:$0x1f]
      %v3747 = vlaneseq
      %v3748 = vshrl.u32 %v3747, 7
      %v3749 = vsub.s32 0, %v3748
      %v3750 = vrot.slane %v3745, %v3749
      %v3751 = vlaneseq
      %v3752 = vshrl.u32 %v3751, 7
      %v3753 = vsub.s32 1, %v3752
      %v3754 = vrot.slane %v3745, %v3753
      %v3755 = vlaneseq
      %v3756 = vshrl.u32 %v3755, 7
      %v3757 = vsub.s32 2, %v3756
      %v3758 = vrot.slane %v3745, %v3757
      %v3759 = vlaneseq
      %v3760 = vshrl.u32 %v3759, 7
      %v3761 = vsub.s32 3, %v3760
      %v3762 = vrot.slane %v3745, %v3761
      %v3763 = vlaneseq
      %v3764 = vshrl.u32 %v3763, 7
      %v3765 = vsub.s32 4, %v3764
      %v3766 = vrot.slane %v3745, %v3765
      %v4540 = vunpack.c.l.b16 %v2977
      %v4541 = vunpack.c.h.b16 %v2977
      %v4542 = vunpack.c.l.b16 %v2978
      %v4543 = vunpack.c.h.b16 %v2978
      %v4544 = vunpack.c.l.b16 %v2979
      %v4545 = vunpack.c.l.b16 %v2980
      %v4546 = vunpack.c.h.b16 %v2980
      %v4547 = vunpack.c.l.b16 %v2981
      %v4548 = vunpack.c.h.b16 %v2981
      %v4549 = vunpack.c.l.b16 %v2982
      %v4550 = vunpack.c.l.b16 %v2983
      %v4551 = vunpack.c.h.b16 %v2983
      %v4552 = vunpack.c.l.b16 %v2984
      %v4553 = vunpack.c.h.b16 %v2984
      %v4554 = vunpack.c.l.b16 %v2985
      %v4555 = vunpack.c.l.b16 %v2986
      %v4556 = vunpack.c.h.b16 %v2986
      %v4557 = vunpack.c.l.b16 %v2987
      %v4558 = vunpack.c.h.b16 %v2987
      %v4559 = vunpack.c.l.b16 %v2988
      %v4560 = vunpack.c.l.b16 %v2989
      %v4561 = vunpack.c.h.b16 %v2989
      %v4562 = vunpack.c.l.b16 %v2990
      %v4563 = vunpack.c.h.b16 %v2990
      %v4564 = vunpack.c.l.b16 %v2991
      %v4565 = vunpack.c.l.b16 %v2992
      %v4566 = vunpack.c.h.b16 %v2992
      %v4567 = vunpack.c.l.b16 %v2993
      %v4568 = vunpack.c.h.b16 %v2993
      %v4569 = vunpack.c.l.b16 %v2994
      %v4570 = vunpack.c.l.b16 %v2995
      %v4571 = vunpack.c.h.b16 %v2995
      %v4572 = vunpack.c.l.b16 %v2996
      %v4573 = vunpack.c.h.b16 %v2996
      %v4574 = vunpack.c.l.b16 %v2997
      %v4575 = vunpack.c.l.b16 %v2998
      %v4576 = vunpack.c.h.b16 %v2998
      %v4577 = vunpack.c.l.b16 %v2999
      %v4578 = vunpack.c.h.b16 %v2999
      %v4579 = vunpack.c.l.b16 %v3000
      %v4580 = vunpack.c.l.b16 %v3001
      %v4581 = vunpack.c.h.b16 %v3001
      %v4582 = vunpack.c.l.b16 %v3002
      %v4583 = vunpack.c.h.b16 %v3002
      %v4584 = vunpack.c.l.b16 %v3003
      %v4585 = vunpack.c.l.b16 %v3004
      %v4586 = vunpack.c.h.b16 %v3004
      %v4587 = vunpack.c.l.b16 %v3005
      %v4588 = vunpack.c.h.b16 %v3005
      %v4589 = vunpack.c.l.b16 %v3006
      %v4590 = vunpack.c.l.b16 %v3007
      %v4591 = vunpack.c.h.b16 %v3007
      %v4592 = vunpack.c.l.b16 %v3008
      %v4593 = vunpack.c.h.b16 %v3008
      %v4594 = vunpack.c.l.b16 %v3009
      %v4595 = vunpack.c.l.b16 %v3010
      %v4596 = vunpack.c.h.b16 %v3010
      %v4597 = vunpack.c.l.b16 %v3011
      %v4598 = vunpack.c.h.b16 %v3011
      %v4599 = vunpack.c.l.b16 %v3012
      %v4600 = vunpack.c.l.b16 %v3013
      %v4601 = vunpack.c.h.b16 %v3013
      %v4602 = vunpack.c.l.b16 %v3014
      %v4603 = vunpack.c.h.b16 %v3014
      %v4604 = vunpack.c.l.b16 %v3015
      %v4605 = vunpack.c.l.b16 %v3016
      %v4606 = vunpack.c.h.b16 %v3016
      %v4607 = vunpack.c.l.b16 %v3017
      %v4608 = vunpack.c.h.b16 %v3017
      %v4609 = vunpack.c.l.b16 %v3018
      %v4610 = vunpack.c.l.b16 %v3019
      %v4611 = vunpack.c.h.b16 %v3019
      %v4612 = vunpack.c.l.b16 %v3020
      %v4613 = vunpack.c.h.b16 %v3020
      %v4614 = vunpack.c.l.b16 %v3021
      %v4615 = vunpack.c.l.b16 %v3022
      %v4616 = vunpack.c.h.b16 %v3022
      %v4617 = vunpack.c.l.b16 %v3023
      %v4618 = vunpack.c.h.b16 %v3023
      %v4619 = vunpack.c.l.b16 %v3024
      %v4620 = vunpack.c.l.b16 %v3025
      %v4621 = vunpack.c.h.b16 %v3025
      %v4622 = vunpack.c.l.b16 %v3026
      %v4623 = vunpack.c.h.b16 %v3026
      %v4624 = vunpack.c.l.b16 %v3027
      %v4625 = vunpack.c.l.b16 %v3028
      %v4626 = vunpack.c.h.b16 %v3028
      %v4627 = vunpack.c.l.b16 %v3029
      %v4628 = vunpack.c.h.b16 %v3029
      %v4629 = vunpack.c.l.b16 %v3030
      %v4630 = vunpack.c.l.b16 %v3031
      %v4631 = vunpack.c.h.b16 %v3031
      %v4632 = vunpack.c.l.b16 %v3032
      %v4633 = vunpack.c.h.b16 %v3032
      %v4634 = vunpack.c.l.b16 %v3033
      %v4635 = vunpack.c.l.b16 %v3034
      %v4636 = vunpack.c.h.b16 %v3034
      %v4637 = vunpack.c.l.b16 %v3035
      %v4638 = vunpack.c.h.b16 %v3035
      %v4639 = vunpack.c.l.b16 %v3036
      %v4640 = vunpack.c.l.b16 %v3037
      %v4641 = vunpack.c.h.b16 %v3037
      %v4642 = vunpack.c.l.b16 %v3038
      %v4643 = vunpack.c.h.b16 %v3038
      %v4644 = vunpack.c.l.b16 %v3039
      %v4645 = vunpack.c.l.b16 %v3040
      %v4646 = vunpack.c.h.b16 %v3040
      %v4647 = vunpack.c.l.b16 %v3041
      %v4648 = vunpack.c.h.b16 %v3041
      %v4649 = vunpack.c.l.b16 %v3042
      %v4650 = vunpack.c.l.b16 %v3043
      %v4651 = vunpack.c.h.b16 %v3043
      %v4652 = vunpack.c.l.b16 %v3044
      %v4653 = vunpack.c.h.b16 %v3044
      %v4654 = vunpack.c.l.b16 %v3045
      %v4655 = vunpack.c.l.b16 %v3046
      %v4656 = vunpack.c.h.b16 %v3046
      %v4657 = vunpack.c.l.b16 %v3047
      %v4658 = vunpack.c.h.b16 %v3047
      %v4659 = vunpack.c.l.b16 %v3048
      %v4660 = vunpack.c.l.b16 %v3049
      %v4661 = vunpack.c.h.b16 %v3049
      %v4662 = vunpack.c.l.b16 %v3050
      %v4663 = vunpack.c.h.b16 %v3050
      %v4664 = vunpack.c.l.b16 %v3051
      %v4665 = vunpack.c.l.b16 %v3052
      %v4666 = vunpack.c.h.b16 %v3052
      %v4667 = vunpack.c.l.b16 %v3053
      %v4668 = vunpack.c.h.b16 %v3053
      %v4669 = vunpack.c.l.b16 %v3054
      %v4670 = vunpack.c.l.b16 %v3055
      %v4671 = vunpack.c.h.b16 %v3055
      %v4672 = vunpack.c.l.b16 %v3056
      %v4673 = vunpack.c.h.b16 %v3056
      %v4674 = vunpack.c.l.b16 %v3057
      %v4675 = vunpack.c.l.b16 %v3058
      %v4676 = vunpack.c.h.b16 %v3058
      %v4677 = vunpack.c.l.b16 %v3059
      %v4678 = vunpack.c.h.b16 %v3059
      %v4679 = vunpack.c.l.b16 %v3060
      %v4680 = vunpack.c.l.b16 %v3061
      %v4681 = vunpack.c.h.b16 %v3061
      %v4682 = vunpack.c.l.b16 %v3062
      %v4683 = vunpack.c.h.b16 %v3062
      %v4684 = vunpack.c.l.b16 %v3063
      %v4685 = vunpack.c.l.b16 %v3064
      %v4686 = vunpack.c.h.b16 %v3064
      %v4687 = vunpack.c.l.b16 %v3065
      %v4688 = vunpack.c.h.b16 %v3065
      %v4689 = vunpack.c.l.b16 %v3066
      %v4690 = vunpack.c.l.b16 %v3067
      %v4691 = vunpack.c.h.b16 %v3067
      %v4692 = vunpack.c.l.b16 %v3068
      %v4693 = vunpack.c.h.b16 %v3068
      %v4694 = vunpack.c.l.b16 %v3069
      %v4695 = vunpack.c.l.b16 %v3070
      %v4696 = vunpack.c.h.b16 %v3070
      %v4697 = vunpack.c.l.b16 %v3071
      %v4698 = vunpack.c.h.b16 %v3071
      %v4699 = vunpack.c.l.b16 %v3072
      %v4700 = vunpack.c.l.b16 %v3073
      %v4701 = vunpack.c.h.b16 %v3073
      %v4702 = vunpack.c.l.b16 %v3074
      %v4703 = vunpack.c.h.b16 %v3074
      %v4704 = vunpack.c.l.b16 %v3075
      %v4705 = vunpack.c.l.b16 %v3076
      %v4706 = vunpack.c.h.b16 %v3076
      %v4707 = vunpack.c.l.b16 %v3077
      %v4708 = vunpack.c.h.b16 %v3077
      %v4709 = vunpack.c.l.b16 %v3078
      %v4710 = vunpack.c.l.b16 %v3079
      %v4711 = vunpack.c.h.b16 %v3079
      %v4712 = vunpack.c.l.b16 %v3080
      %v4713 = vunpack.c.h.b16 %v3080
      %v4714 = vunpack.c.l.b16 %v3081
      %v4715 = vunpack.c.l.b16 %v3082
      %v4716 = vunpack.c.h.b16 %v3082
      %v4717 = vunpack.c.l.b16 %v3083
      %v4718 = vunpack.c.h.b16 %v3083
      %v4719 = vunpack.c.l.b16 %v3084
      %v4720 = vunpack.c.l.b16 %v3085
      %v4721 = vunpack.c.h.b16 %v3085
      %v4722 = vunpack.c.l.b16 %v3086
      %v4723 = vunpack.c.h.b16 %v3086
      %v4724 = vunpack.c.l.b16 %v3087
      %v4725 = vunpack.c.l.b16 %v3088
      %v4726 = vunpack.c.h.b16 %v3088
      %v4727 = vunpack.c.l.b16 %v3089
      %v4728 = vunpack.c.h.b16 %v3089
      %v4729 = vunpack.c.l.b16 %v3090
      %v4730 = vunpack.c.l.b16 %v3091
      %v4731 = vunpack.c.h.b16 %v3091
      %v4732 = vunpack.c.l.b16 %v3092
      %v4733 = vunpack.c.h.b16 %v3092
      %v4734 = vunpack.c.l.b16 %v3093
      %v4735 = vunpack.c.l.b16 %v3094
      %v4736 = vunpack.c.h.b16 %v3094
      %v4737 = vunpack.c.l.b16 %v3095
      %v4738 = vunpack.c.h.b16 %v3095
      %v4739 = vunpack.c.l.b16 %v3096
      %v4740 = vunpack.c.l.b16 %v3097
      %v4741 = vunpack.c.h.b16 %v3097
      %v4742 = vunpack.c.l.b16 %v3098
      %v4743 = vunpack.c.h.b16 %v3098
      %v4744 = vunpack.c.l.b16 %v3099
      %v4745 = vunpack.c.l.b16 %v3100
      %v4746 = vunpack.c.h.b16 %v3100
      %v4747 = vunpack.c.l.b16 %v3101
      %v4748 = vunpack.c.h.b16 %v3101
      %v4749 = vunpack.c.l.b16 %v3102
      %v4750 = vunpack.c.l.b16 %v3103
      %v4751 = vunpack.c.h.b16 %v3103
      %v4752 = vunpack.c.l.b16 %v3104
      %v4753 = vunpack.c.h.b16 %v3104
      %v4754 = vunpack.c.l.b16 %v3105
      %v4755 = vunpack.c.l.b16 %v3106
      %v4756 = vunpack.c.h.b16 %v3106
      %v4757 = vunpack.c.l.b16 %v3107
      %v4758 = vunpack.c.h.b16 %v3107
      %v4759 = vunpack.c.l.b16 %v3108
      %v4760 = vunpack.c.l.b16 %v3109
      %v4761 = vunpack.c.h.b16 %v3109
      %v4762 = vunpack.c.l.b16 %v3110
      %v4763 = vunpack.c.h.b16 %v3110
      %v4764 = vunpack.c.l.b16 %v3111
      %v4765 = vunpack.c.l.b16 %v3112
      %v4766 = vunpack.c.h.b16 %v3112
      %v4767 = vunpack.c.l.b16 %v3113
      %v4768 = vunpack.c.h.b16 %v3113
      %v4769 = vunpack.c.l.b16 %v3114
      %v4770 = vunpack.c.l.b16 %v3115
      %v4771 = vunpack.c.h.b16 %v3115
      %v4772 = vunpack.c.l.b16 %v3116
      %v4773 = vunpack.c.h.b16 %v3116
      %v4774 = vunpack.c.l.b16 %v3117
      %v4775 = vunpack.c.l.b16 %v3118
      %v4776 = vunpack.c.h.b16 %v3118
      %v4777 = vunpack.c.l.b16 %v3119
      %v4778 = vunpack.c.h.b16 %v3119
      %v4779 = vunpack.c.l.b16 %v3120
      %v4780 = vunpack.c.l.b16 %v3121
      %v4781 = vunpack.c.h.b16 %v3121
      %v4782 = vunpack.c.l.b16 %v3122
      %v4783 = vunpack.c.h.b16 %v3122
      %v4784 = vunpack.c.l.b16 %v3123
      %v4785 = vunpack.c.l.b16 %v3124
      %v4786 = vunpack.c.h.b16 %v3124
      %v4787 = vunpack.c.l.b16 %v3125
      %v4788 = vunpack.c.h.b16 %v3125
      %v4789 = vunpack.c.l.b16 %v3126
      %v4790 = vunpack.c.l.b16 %v3127
      %v4791 = vunpack.c.h.b16 %v3127
      %v4792 = vunpack.c.l.b16 %v3128
      %v4793 = vunpack.c.h.b16 %v3128
      %v4794 = vunpack.c.l.b16 %v3129
      %v4795 = vunpack.c.l.b16 %v3130
      %v4796 = vunpack.c.h.b16 %v3130
      %v4797 = vunpack.c.l.b16 %v3131
      %v4798 = vunpack.c.h.b16 %v3131
      %v4799 = vunpack.c.l.b16 %v3132
      %v4800 = vunpack.c.l.b16 %v3133
      %v4801 = vunpack.c.h.b16 %v3133
      %v4802 = vunpack.c.l.b16 %v3134
      %v4803 = vunpack.c.h.b16 %v3134
      %v4804 = vunpack.c.l.b16 %v3135
      %v4805 = vunpack.c.l.b16 %v3136
      %v4806 = vunpack.c.h.b16 %v3136
      %v4807 = vunpack.c.l.b16 %v3137
      %v4808 = vunpack.c.h.b16 %v3137
      %v4809 = vunpack.c.l.b16 %v3138
      %v4810 = vunpack.c.l.b16 %v3139
      %v4811 = vunpack.c.h.b16 %v3139
      %v4812 = vunpack.c.l.b16 %v3140
      %v4813 = vunpack.c.h.b16 %v3140
      %v4814 = vunpack.c.l.b16 %v3141
      %v4815 = vunpack.c.l.b16 %v3142
      %v4816 = vunpack.c.h.b16 %v3142
      %v4817 = vunpack.c.l.b16 %v3143
      %v4818 = vunpack.c.h.b16 %v3143
      %v4819 = vunpack.c.l.b16 %v3144
      %v4820 = vunpack.c.l.b16 %v3145
      %v4821 = vunpack.c.h.b16 %v3145
      %v4822 = vunpack.c.l.b16 %v3146
      %v4823 = vunpack.c.h.b16 %v3146
      %v4824 = vunpack.c.l.b16 %v3147
      %v4825 = vunpack.c.l.b16 %v3148
      %v4826 = vunpack.c.h.b16 %v3148
      %v4827 = vunpack.c.l.b16 %v3149
      %v4828 = vunpack.c.h.b16 %v3149
      %v4829 = vunpack.c.l.b16 %v3150
      %v4830 = vunpack.c.l.b16 %v3151
      %v4831 = vunpack.c.h.b16 %v3151
      %v4832 = vunpack.c.l.b16 %v3152
      %v4833 = vunpack.c.h.b16 %v3152
      %v4834 = vunpack.c.l.b16 %v3153
      %v4835 = vunpack.c.l.b16 %v3154
      %v4836 = vunpack.c.h.b16 %v3154
      %v4837 = vunpack.c.l.b16 %v3155
      %v4838 = vunpack.c.h.b16 %v3155
      %v4839 = vunpack.c.l.b16 %v3156
      %v4840 = vunpack.c.l.b16 %v3157
      %v4841 = vunpack.c.h.b16 %v3157
      %v4842 = vunpack.c.l.b16 %v3158
      %v4843 = vunpack.c.h.b16 %v3158
      %v4844 = vunpack.c.l.b16 %v3159
      %v4845 = vunpack.c.l.b16 %v3160
      %v4846 = vunpack.c.h.b16 %v3160
      %v4847 = vunpack.c.l.b16 %v3161
      %v4848 = vunpack.c.h.b16 %v3161
      %v4849 = vunpack.c.l.b16 %v3162
      %v4850 = vunpack.c.l.b16 %v3163
      %v4851 = vunpack.c.h.b16 %v3163
      %v4852 = vunpack.c.l.b16 %v3164
      %v4853 = vunpack.c.h.b16 %v3164
      %v4854 = vunpack.c.l.b16 %v3165
      %v4855 = vunpack.c.l.b16 %v3166
      %v4856 = vunpack.c.h.b16 %v3166
      %v4857 = vunpack.c.l.b16 %v3167
      %v4858 = vunpack.c.h.b16 %v3167
      %v4859 = vunpack.c.l.b16 %v3168
      %v4860 = vunpack.c.l.b16 %v3169
      %v4861 = vunpack.c.h.b16 %v3169
      %v4862 = vunpack.c.l.b16 %v3170
      %v4863 = vunpack.c.h.b16 %v3170
      %v4864 = vunpack.c.l.b16 %v3171
      %v4865 = vunpack.c.l.b16 %v3172
      %v4866 = vunpack.c.h.b16 %v3172
      %v4867 = vunpack.c.l.b16 %v3173
      %v4868 = vunpack.c.h.b16 %v3173
      %v4869 = vunpack.c.l.b16 %v3174
      %v4870 = vunpack.c.l.b16 %v3175
      %v4871 = vunpack.c.h.b16 %v3175
      %v4872 = vunpack.c.l.b16 %v3176
      %v4873 = vunpack.c.h.b16 %v3176
      %v4874 = vunpack.c.l.b16 %v3177
      %v4875 = vunpack.c.l.b16 %v3178
      %v4876 = vunpack.c.h.b16 %v3178
      %v4877 = vunpack.c.l.b16 %v3179
      %v4878 = vunpack.c.h.b16 %v3179
      %v4879 = vunpack.c.l.b16 %v3180
      %v4880 = vunpack.c.l.b16 %v3181
      %v4881 = vunpack.c.h.b16 %v3181
      %v4882 = vunpack.c.l.b16 %v3182
      %v4883 = vunpack.c.h.b16 %v3182
      %v4884 = vunpack.c.l.b16 %v3183
      %v4885 = vunpack.c.l.b16 %v3184
      %v4886 = vunpack.c.h.b16 %v3184
      %v4887 = vunpack.c.l.b16 %v3185
      %v4888 = vunpack.c.h.b16 %v3185
      %v4889 = vunpack.c.l.b16 %v3186
      %v4890 = vunpack.c.l.b16 %v3187
      %v4891 = vunpack.c.h.b16 %v3187
      %v4892 = vunpack.c.l.b16 %v3188
      %v4893 = vunpack.c.h.b16 %v3188
      %v4894 = vunpack.c.l.b16 %v3189
      %v4895 = vunpack.c.l.b16 %v3190
      %v4896 = vunpack.c.h.b16 %v3190
      %v4897 = vunpack.c.l.b16 %v3191
      %v4898 = vunpack.c.h.b16 %v3191
      %v4899 = vunpack.c.l.b16 %v3192
      %v4900 = vunpack.c.l.b16 %v3193
      %v4901 = vunpack.c.h.b16 %v3193
      %v4902 = vunpack.c.l.b16 %v3194
      %v4903 = vunpack.c.h.b16 %v3194
      %v4904 = vunpack.c.l.b16 %v3195
      %v4905 = vunpack.c.l.b16 %v3196
      %v4906 = vunpack.c.h.b16 %v3196
      %v4907 = vunpack.c.l.b16 %v3197
      %v4908 = vunpack.c.h.b16 %v3197
      %v4909 = vunpack.c.l.b16 %v3198
      %v4910 = vunpack.c.l.b16 %v3199
      %v4911 = vunpack.c.h.b16 %v3199
      %v4912 = vunpack.c.l.b16 %v3200
      %v4913 = vunpack.c.h.b16 %v3200
      %v4914 = vunpack.c.l.b16 %v3201
      %v4915 = vunpack.c.l.b16 %v3202
      %v4916 = vunpack.c.h.b16 %v3202
      %v4917 = vunpack.c.l.b16 %v3203
      %v4918 = vunpack.c.h.b16 %v3203
      %v4919 = vunpack.c.l.b16 %v3204
      %v4920 = vunpack.c.l.b16 %v3205
      %v4921 = vunpack.c.h.b16 %v3205
      %v4922 = vunpack.c.l.b16 %v3206
      %v4923 = vunpack.c.h.b16 %v3206
      %v4924 = vunpack.c.l.b16 %v3207
      %v4925 = vunpack.c.l.b16 %v3208
      %v4926 = vunpack.c.h.b16 %v3208
      %v4927 = vunpack.c.l.b16 %v3209
      %v4928 = vunpack.c.h.b16 %v3209
      %v4929 = vunpack.c.l.b16 %v3210
      %v4930 = vunpack.c.l.b16 %v3211
      %v4931 = vunpack.c.h.b16 %v3211
      %v4932 = vunpack.c.l.b16 %v3212
      %v4933 = vunpack.c.h.b16 %v3212
      %v4934 = vunpack.c.l.b16 %v3213
      %v4935 = vunpack.c.l.b16 %v3214
      %v4936 = vunpack.c.h.b16 %v3214
      %v4937 = vunpack.c.l.b16 %v3215
      %v4938 = vunpack.c.h.b16 %v3215
      %v4939 = vunpack.c.l.b16 %v3216
      %v4940 = vunpack.c.l.b16 %v3217
      %v4941 = vunpack.c.h.b16 %v3217
      %v4942 = vunpack.c.l.b16 %v3218
      %v4943 = vunpack.c.h.b16 %v3218
      %v4944 = vunpack.c.l.b16 %v3219
      %v4945 = vunpack.c.l.b16 %v3220
      %v4946 = vunpack.c.h.b16 %v3220
      %v4947 = vunpack.c.l.b16 %v3221
      %v4948 = vunpack.c.h.b16 %v3221
      %v4949 = vunpack.c.l.b16 %v3222
      %v4950 = vunpack.c.l.b16 %v3223
      %v4951 = vunpack.c.h.b16 %v3223
      %v4952 = vunpack.c.l.b16 %v3224
      %v4953 = vunpack.c.h.b16 %v3224
      %v4954 = vunpack.c.l.b16 %v3225
      %v4955 = vunpack.c.l.b16 %v3226
      %v4956 = vunpack.c.h.b16 %v3226
      %v4957 = vunpack.c.l.b16 %v3227
      %v4958 = vunpack.c.h.b16 %v3227
      %v4959 = vunpack.c.l.b16 %v3228
      %v4960 = vunpack.c.l.b16 %v3229
      %v4961 = vunpack.c.h.b16 %v3229
      %v4962 = vunpack.c.l.b16 %v3230
      %v4963 = vunpack.c.h.b16 %v3230
      %v4964 = vunpack.c.l.b16 %v3231
      %v4965 = vunpack.c.l.b16 %v3232
      %v4966 = vunpack.c.h.b16 %v3232
      %v4967 = vunpack.c.l.b16 %v3233
      %v4968 = vunpack.c.h.b16 %v3233
      %v4969 = vunpack.c.l.b16 %v3234
      %v4970 = vunpack.c.l.b16 %v3235
      %v4971 = vunpack.c.h.b16 %v3235
      %v4972 = vunpack.c.l.b16 %v3236
      %v4973 = vunpack.c.h.b16 %v3236
      %v4974 = vunpack.c.l.b16 %v3237
      %v4975 = vunpack.c.l.b16 %v3238
      %v4976 = vunpack.c.h.b16 %v3238
      %v4977 = vunpack.c.l.b16 %v3239
      %v4978 = vunpack.c.h.b16 %v3239
      %v4979 = vunpack.c.l.b16 %v3240
      %v4980 = vunpack.c.l.b16 %v3241
      %v4981 = vunpack.c.h.b16 %v3241
      %v4982 = vunpack.c.l.b16 %v3242
      %v4983 = vunpack.c.h.b16 %v3242
      %v4984 = vunpack.c.l.b16 %v3243
      %v4985 = vunpack.c.l.b16 %v3244
      %v4986 = vunpack.c.h.b16 %v3244
      %v4987 = vunpack.c.l.b16 %v3245
      %v4988 = vunpack.c.h.b16 %v3245
      %v4989 = vunpack.c.l.b16 %v3246
      %v4990 = vunpack.c.l.b16 %v3247
      %v4991 = vunpack.c.h.b16 %v3247
      %v4992 = vunpack.c.l.b16 %v3248
      %v4993 = vunpack.c.h.b16 %v3248
      %v4994 = vunpack.c.l.b16 %v3249
      %v4995 = vunpack.c.l.b16 %v3250
      %v4996 = vunpack.c.h.b16 %v3250
      %v4997 = vunpack.c.l.b16 %v3251
      %v4998 = vunpack.c.h.b16 %v3251
      %v4999 = vunpack.c.l.b16 %v3252
      %v5000 = vunpack.c.l.b16 %v3253
      %v5001 = vunpack.c.h.b16 %v3253
      %v5002 = vunpack.c.l.b16 %v3254
      %v5003 = vunpack.c.h.b16 %v3254
      %v5004 = vunpack.c.l.b16 %v3255
      %v5005 = vunpack.c.l.b16 %v3256
      %v5006 = vunpack.c.h.b16 %v3256
      %v5007 = vunpack.c.l.b16 %v3257
      %v5008 = vunpack.c.h.b16 %v3257
      %v5009 = vunpack.c.l.b16 %v3258
      %v5010 = vunpack.c.l.b16 %v3259
      %v5011 = vunpack.c.h.b16 %v3259
      %v5012 = vunpack.c.l.b16 %v3260
      %v5013 = vunpack.c.h.b16 %v3260
      %v5014 = vunpack.c.l.b16 %v3261
      %v5015 = vunpack.c.l.b16 %v3262
      %v5016 = vunpack.c.h.b16 %v3262
      %v5017 = vunpack.c.l.b16 %v3263
      %v5018 = vunpack.c.h.b16 %v3263
      %v5019 = vunpack.c.l.b16 %v3264
      %v5020 = vunpack.c.l.b16 %v3265
      %v5021 = vunpack.c.h.b16 %v3265
      %v5022 = vunpack.c.l.b16 %v3266
      %v5023 = vunpack.c.h.b16 %v3266
      %v5024 = vunpack.c.l.b16 %v3267
      %v5025 = vunpack.c.l.b16 %v3268
      %v5026 = vunpack.c.h.b16 %v3268
      %v5027 = vunpack.c.l.b16 %v3269
      %v5028 = vunpack.c.h.b16 %v3269
      %v5029 = vunpack.c.l.b16 %v3270
      %v5030 = vunpack.c.l.b16 %v3271
      %v5031 = vunpack.c.h.b16 %v3271
      %v5032 = vunpack.c.l.b16 %v3272
      %v5033 = vunpack.c.h.b16 %v3272
      %v5034 = vunpack.c.l.b16 %v3273
      %v5035 = vunpack.c.l.b16 %v3274
      %v5036 = vunpack.c.h.b16 %v3274
      %v5037 = vunpack.c.l.b16 %v3275
      %v5038 = vunpack.c.h.b16 %v3275
      %v5039 = vunpack.c.l.b16 %v3276
      %v5040 = vunpack.c.l.b16 %v3277
      %v5041 = vunpack.c.h.b16 %v3277
      %v5042 = vunpack.c.l.b16 %v3278
      %v5043 = vunpack.c.h.b16 %v3278
      %v5044 = vunpack.c.l.b16 %v3279
      %v5045 = vunpack.c.l.b16 %v3280
      %v5046 = vunpack.c.h.b16 %v3280
      %v5047 = vunpack.c.l.b16 %v3281
      %v5048 = vunpack.c.h.b16 %v3281
      %v5049 = vunpack.c.l.b16 %v3282
      %v5050 = vunpack.c.l.b16 %v3283
      %v5051 = vunpack.c.h.b16 %v3283
      %v5052 = vunpack.c.l.b16 %v3284
      %v5053 = vunpack.c.h.b16 %v3284
      %v5054 = vunpack.c.l.b16 %v3285
      %v5055 = vunpack.c.l.b16 %v3286
      %v5056 = vunpack.c.h.b16 %v3286
      %v5057 = vunpack.c.l.b16 %v3287
      %v5058 = vunpack.c.h.b16 %v3287
      %v5059 = vunpack.c.l.b16 %v3288
      %v5060 = vunpack.c.l.b16 %v3289
      %v5061 = vunpack.c.h.b16 %v3289
      %v5062 = vunpack.c.l.b16 %v3290
      %v5063 = vunpack.c.h.b16 %v3290
      %v5064 = vunpack.c.l.b16 %v3291
      %v5065 = vunpack.c.l.b16 %v3292
      %v5066 = vunpack.c.h.b16 %v3292
      %v5067 = vunpack.c.l.b16 %v3293
      %v5068 = vunpack.c.h.b16 %v3293
      %v5069 = vunpack.c.l.b16 %v3294
      %v5070 = vunpack.c.l.b16 %v3295
      %v5071 = vunpack.c.h.b16 %v3295
      %v5072 = vunpack.c.l.b16 %v3296
      %v5073 = vunpack.c.h.b16 %v3296
      %v5074 = vunpack.c.l.b16 %v3297
      %v5075 = vunpack.c.l.b16 %v3298
      %v5076 = vunpack.c.h.b16 %v3298
      %v5077 = vunpack.c.l.b16 %v3299
      %v5078 = vunpack.c.h.b16 %v3299
      %v5079 = vunpack.c.l.b16 %v3300
      %v5080 = vunpack.c.l.b16 %v3301
      %v5081 = vunpack.c.h.b16 %v3301
      %v5082 = vunpack.c.l.b16 %v3302
      %v5083 = vunpack.c.h.b16 %v3302
      %v5084 = vunpack.c.l.b16 %v3303
      %v5085 = vunpack.c.l.b16 %v3304
      %v5086 = vunpack.c.h.b16 %v3304
      %v5087 = vunpack.c.l.b16 %v3305
      %v5088 = vunpack.c.h.b16 %v3305
      %v5089 = vunpack.c.l.b16 %v3306
      %v5090 = vunpack.c.l.b16 %v3307
      %v5091 = vunpack.c.h.b16 %v3307
      %v5092 = vunpack.c.l.b16 %v3308
      %v5093 = vunpack.c.h.b16 %v3308
      %v5094 = vunpack.c.l.b16 %v3309
      %v5095 = vunpack.c.l.b16 %v3310
      %v5096 = vunpack.c.h.b16 %v3310
      %v5097 = vunpack.c.l.b16 %v3311
      %v5098 = vunpack.c.h.b16 %v3311
      %v5099 = vunpack.c.l.b16 %v3312
      %v5100 = vunpack.c.l.b16 %v3313
      %v5101 = vunpack.c.h.b16 %v3313
      %v5102 = vunpack.c.l.b16 %v3314
      %v5103 = vunpack.c.h.b16 %v3314
      %v5104 = vunpack.c.l.b16 %v3315
      %v5105 = vunpack.c.l.b16 %v3316
      %v5106 = vunpack.c.h.b16 %v3316
      %v5107 = vunpack.c.l.b16 %v3317
      %v5108 = vunpack.c.h.b16 %v3317
      %v5109 = vunpack.c.l.b16 %v3318
      %v5110 = vunpack.c.l.b16 %v3319
      %v5111 = vunpack.c.h.b16 %v3319
      %v5112 = vunpack.c.l.b16 %v3320
      %v5113 = vunpack.c.h.b16 %v3320
      %v5114 = vunpack.c.l.b16 %v3321
      %v5115 = vunpack.c.l.b16 %v3322
      %v5116 = vunpack.c.h.b16 %v3322
      %v5117 = vunpack.c.l.b16 %v3323
      %v5118 = vunpack.c.h.b16 %v3323
      %v5119 = vunpack.c.l.b16 %v3324
      %v5120 = vunpack.c.l.b16 %v3325
      %v5121 = vunpack.c.h.b16 %v3325
      %v5122 = vunpack.c.l.b16 %v3326
      %v5123 = vunpack.c.h.b16 %v3326
      %v5124 = vunpack.c.l.b16 %v3327
      %v5125 = vunpack.c.l.b16 %v3328
      %v5126 = vunpack.c.h.b16 %v3328
      %v5127 = vunpack.c.l.b16 %v3329
      %v5128 = vunpack.c.h.b16 %v3329
      %v5129 = vunpack.c.l.b16 %v3330
      %v5130 = vunpack.c.l.b16 %v3331
      %v5131 = vunpack.c.h.b16 %v3331
      %v5132 = vunpack.c.l.b16 %v3332
      %v5133 = vunpack.c.h.b16 %v3332
      %v5134 = vunpack.c.l.b16 %v3333
      %v5135 = vunpack.c.l.b16 %v3334
      %v5136 = vunpack.c.h.b16 %v3334
      %v5137 = vunpack.c.l.b16 %v3335
      %v5138 = vunpack.c.h.b16 %v3335
      %v5139 = vunpack.c.l.b16 %v3336
      %v5140 = vunpack.c.l.b16 %v3337
      %v5141 = vunpack.c.h.b16 %v3337
      %v5142 = vunpack.c.l.b16 %v3338
      %v5143 = vunpack.c.h.b16 %v3338
      %v5144 = vunpack.c.l.b16 %v3339
      %v5145 = vunpack.c.l.b16 %v3340
      %v5146 = vunpack.c.h.b16 %v3340
      %v5147 = vunpack.c.l.b16 %v3341
      %v5148 = vunpack.c.h.b16 %v3341
      %v5149 = vunpack.c.l.b16 %v3342
      %v5150 = vunpack.c.l.b16 %v3343
      %v5151 = vunpack.c.h.b16 %v3343
      %v5152 = vunpack.c.l.b16 %v3344
      %v5153 = vunpack.c.h.b16 %v3344
      %v5154 = vunpack.c.l.b16 %v3345
      %v5155 = vunpack.c.l.b16 %v3346
      %v5156 = vunpack.c.h.b16 %v3346
      %v5157 = vunpack.c.l.b16 %v3347
      %v5158 = vunpack.c.h.b16 %v3347
      %v5159 = vunpack.c.l.b16 %v3348
      %v5160 = vunpack.c.l.b16 %v3349
      %v5161 = vunpack.c.h.b16 %v3349
      %v5162 = vunpack.c.l.b16 %v3350
      %v5163 = vunpack.c.h.b16 %v3350
      %v5164 = vunpack.c.l.b16 %v3351
      %v5165 = vunpack.c.l.b16 %v3352
      %v5166 = vunpack.c.h.b16 %v3352
      %v5167 = vunpack.c.l.b16 %v3353
      %v5168 = vunpack.c.h.b16 %v3353
      %v5169 = vunpack.c.l.b16 %v3354
      %v5170 = vunpack.c.l.b16 %v3355
      %v5171 = vunpack.c.h.b16 %v3355
      %v5172 = vunpack.c.l.b16 %v3356
      %v5173 = vunpack.c.h.b16 %v3356
      %v5174 = vunpack.c.l.b16 %v3357
      %v5175 = vunpack.c.l.b16 %v3358
      %v5176 = vunpack.c.h.b16 %v3358
      %v5177 = vunpack.c.l.b16 %v3359
      %v5178 = vunpack.c.h.b16 %v3359
      %v5179 = vunpack.c.l.b16 %v3360
      %v5180 = vunpack.c.l.b16 %v3361
      %v5181 = vunpack.c.h.b16 %v3361
      %v5182 = vunpack.c.l.b16 %v3362
      %v5183 = vunpack.c.h.b16 %v3362
      %v5184 = vunpack.c.l.b16 %v3363
      %v5185 = vunpack.c.l.b16 %v3364
      %v5186 = vunpack.c.h.b16 %v3364
      %v5187 = vunpack.c.l.b16 %v3365
      %v5188 = vunpack.c.h.b16 %v3365
      %v5189 = vunpack.c.l.b16 %v3366
      %v5190 = vunpack.c.l.b16 %v3367
      %v5191 = vunpack.c.h.b16 %v3367
      %v5192 = vunpack.c.l.b16 %v3368
      %v5193 = vunpack.c.h.b16 %v3368
      %v5194 = vunpack.c.l.b16 %v3369
      %v5195 = vunpack.c.l.b16 %v3370
      %v5196 = vunpack.c.h.b16 %v3370
      %v5197 = vunpack.c.l.b16 %v3371
      %v5198 = vunpack.c.h.b16 %v3371
      %v5199 = vunpack.c.l.b16 %v3372
      %v5200 = vunpack.c.l.b16 %v3373
      %v5201 = vunpack.c.h.b16 %v3373
      %v5202 = vunpack.c.l.b16 %v3374
      %v5203 = vunpack.c.h.b16 %v3374
      %v5204 = vunpack.c.l.b16 %v3375
      %v5205 = vunpack.c.l.b16 %v3376
      %v5206 = vunpack.c.h.b16 %v3376
      %v5207 = vunpack.c.l.b16 %v3377
      %v5208 = vunpack.c.h.b16 %v3377
      %v5209 = vunpack.c.l.b16 %v3378
      %v5210 = vunpack.c.l.b16 %v3379
      %v5211 = vunpack.c.h.b16 %v3379
      %v5212 = vunpack.c.l.b16 %v3380
      %v5213 = vunpack.c.h.b16 %v3380
      %v5214 = vunpack.c.l.b16 %v3381
      %v5215 = vunpack.c.l.b16 %v3382
      %v5216 = vunpack.c.h.b16 %v3382
      %v5217 = vunpack.c.l.b16 %v3383
      %v5218 = vunpack.c.h.b16 %v3383
      %v5219 = vunpack.c.l.b16 %v3384
      %v5220 = vunpack.c.l.b16 %v3385
      %v5221 = vunpack.c.h.b16 %v3385
      %v5222 = vunpack.c.l.b16 %v3386
      %v5223 = vunpack.c.h.b16 %v3386
      %v5224 = vunpack.c.l.b16 %v3387
      %v5225 = vunpack.c.l.b16 %v3388
      %v5226 = vunpack.c.h.b16 %v3388
      %v5227 = vunpack.c.l.b16 %v3389
      %v5228 = vunpack.c.h.b16 %v3389
      %v5229 = vunpack.c.l.b16 %v3390
      %v5230 = vunpack.c.l.b16 %v3391
      %v5231 = vunpack.c.h.b16 %v3391
      %v5232 = vunpack.c.l.b16 %v3392
      %v5233 = vunpack.c.h.b16 %v3392
      %v5234 = vunpack.c.l.b16 %v3393
      %v5235 = vunpack.c.l.b16 %v3394
      %v5236 = vunpack.c.h.b16 %v3394
      %v5237 = vunpack.c.l.b16 %v3395
      %v5238 = vunpack.c.h.b16 %v3395
      %v5239 = vunpack.c.l.b16 %v3396
      %v5240 = vunpack.c.l.b16 %v3397
      %v5241 = vunpack.c.h.b16 %v3397
      %v5242 = vunpack.c.l.b16 %v3398
      %v5243 = vunpack.c.h.b16 %v3398
      %v5244 = vunpack.c.l.b16 %v3399
      %v5245 = vunpack.c.l.b16 %v3400
      %v5246 = vunpack.c.h.b16 %v3400
      %v5247 = vunpack.c.l.b16 %v3401
      %v5248 = vunpack.c.h.b16 %v3401
      %v5249 = vunpack.c.l.b16 %v3402
      %v5250 = vunpack.c.l.b16 %v3403
      %v5251 = vunpack.c.h.b16 %v3403
      %v5252 = vunpack.c.l.b16 %v3404
      %v5253 = vunpack.c.h.b16 %v3404
      %v5254 = vunpack.c.l.b16 %v3405
      %v5255 = vunpack.c.l.b16 %v3406
      %v5256 = vunpack.c.h.b16 %v3406
      %v5257 = vunpack.c.l.b16 %v3407
      %v5258 = vunpack.c.h.b16 %v3407
      %v5259 = vunpack.c.l.b16 %v3408
      %v5260 = vunpack.c.l.b16 %v3409
      %v5261 = vunpack.c.h.b16 %v3409
      %v5262 = vunpack.c.l.b16 %v3410
      %v5263 = vunpack.c.h.b16 %v3410
      %v5264 = vunpack.c.l.b16 %v3411
      %v5265 = vunpack.c.l.b16 %v3412
      %v5266 = vunpack.c.h.b16 %v3412
      %v5267 = vunpack.c.l.b16 %v3413
      %v5268 = vunpack.c.h.b16 %v3413
      %v5269 = vunpack.c.l.b16 %v3414
      %v5270 = vunpack.c.l.b16 %v3415
      %v5271 = vunpack.c.h.b16 %v3415
      %v5272 = vunpack.c.l.b16 %v3416
      %v5273 = vunpack.c.h.b16 %v3416
      %v5274 = vunpack.c.l.b16 %v3417
      %v5275 = vunpack.c.l.b16 %v3418
      %v5276 = vunpack.c.h.b16 %v3418
      %v5277 = vunpack.c.l.b16 %v3419
      %v5278 = vunpack.c.h.b16 %v3419
      %v5279 = vunpack.c.l.b16 %v3420
      %v5280 = vunpack.c.l.b16 %v3421
      %v5281 = vunpack.c.h.b16 %v3421
      %v5282 = vunpack.c.l.b16 %v3422
      %v5283 = vunpack.c.h.b16 %v3422
      %v5284 = vunpack.c.l.b16 %v3423
      %v5285 = vunpack.c.l.b16 %v3424
      %v5286 = vunpack.c.h.b16 %v3424
      %v5287 = vunpack.c.l.b16 %v3425
      %v5288 = vunpack.c.h.b16 %v3425
      %v5289 = vunpack.c.l.b16 %v3426
      %v5290 = vunpack.c.l.b16 %v3427
      %v5291 = vunpack.c.h.b16 %v3427
      %v5292 = vunpack.c.l.b16 %v3428
      %v5293 = vunpack.c.h.b16 %v3428
      %v5294 = vunpack.c.l.b16 %v3429
      %v5295 = vunpack.c.l.b16 %v3430
      %v5296 = vunpack.c.h.b16 %v3430
      %v5297 = vunpack.c.l.b16 %v3431
      %v5298 = vunpack.c.h.b16 %v3431
      %v5299 = vunpack.c.l.b16 %v3432
      %v5300 = vunpack.c.l.b16 %v3433
      %v5301 = vunpack.c.h.b16 %v3433
      %v5302 = vunpack.c.l.b16 %v3434
      %v5303 = vunpack.c.h.b16 %v3434
      %v5304 = vunpack.c.l.b16 %v3435
      %v5305 = vunpack.c.l.b16 %v3436
      %v5306 = vunpack.c.h.b16 %v3436
      %v5307 = vunpack.c.l.b16 %v3437
      %v5308 = vunpack.c.h.b16 %v3437
      %v5309 = vunpack.c.l.b16 %v3438
      %v5310 = vunpack.c.l.b16 %v3439
      %v5311 = vunpack.c.h.b16 %v3439
      %v5312 = vunpack.c.l.b16 %v3440
      %v5313 = vunpack.c.h.b16 %v3440
      %v5314 = vunpack.c.l.b16 %v3441
      %v5315 = vunpack.c.l.b16 %v3442
      %v5316 = vunpack.c.h.b16 %v3442
      %v5317 = vunpack.c.l.b16 %v3443
      %v5318 = vunpack.c.h.b16 %v3443
      %v5319 = vunpack.c.l.b16 %v3444
      %v5320 = vunpack.c.l.b16 %v3445
      %v5321 = vunpack.c.h.b16 %v3445
      %v5322 = vunpack.c.l.b16 %v3446
      %v5323 = vunpack.c.h.b16 %v3446
      %v5324 = vunpack.c.l.b16 %v3447
      %v5325 = vunpack.c.l.b16 %v3448
      %v5326 = vunpack.c.h.b16 %v3448
      %v5327 = vunpack.c.l.b16 %v3449
      %v5328 = vunpack.c.h.b16 %v3449
      %v5329 = vunpack.c.l.b16 %v3450
      %v5330 = vunpack.c.l.b16 %v3451
      %v5331 = vunpack.c.h.b16 %v3451
      %v5332 = vunpack.c.l.b16 %v3452
      %v5333 = vunpack.c.h.b16 %v3452
      %v5334 = vunpack.c.l.b16 %v3453
      %v5335 = vunpack.c.l.b16 %v3454
      %v5336 = vunpack.c.h.b16 %v3454
      %v5337 = vunpack.c.l.b16 %v3455
      %v5338 = vunpack.c.h.b16 %v3455
      %v5339 = vunpack.c.l.b16 %v3456
      %v5340 = vunpack.c.l.b16 %v3457
      %v5341 = vunpack.c.h.b16 %v3457
      %v5342 = vunpack.c.l.b16 %v3458
      %v5343 = vunpack.c.h.b16 %v3458
      %v5344 = vunpack.c.l.b16 %v3459
      %v5345 = vunpack.c.l.b16 %v3460
      %v5346 = vunpack.c.h.b16 %v3460
      %v5347 = vunpack.c.l.b16 %v3461
      %v5348 = vunpack.c.h.b16 %v3461
      %v5349 = vunpack.c.l.b16 %v3462
      %v5350 = vunpack.c.l.b16 %v3463
      %v5351 = vunpack.c.h.b16 %v3463
      %v5352 = vunpack.c.l.b16 %v3464
      %v5353 = vunpack.c.h.b16 %v3464
      %v5354 = vunpack.c.l.b16 %v3465
      %v5355 = vunpack.c.l.b16 %v3466
      %v5356 = vunpack.c.h.b16 %v3466
      %v5357 = vunpack.c.l.b16 %v3467
      %v5358 = vunpack.c.h.b16 %v3467
      %v5359 = vunpack.c.l.b16 %v3468
      %v5360 = vunpack.c.l.b16 %v3469
      %v5361 = vunpack.c.h.b16 %v3469
      %v5362 = vunpack.c.l.b16 %v3470
      %v5363 = vunpack.c.h.b16 %v3470
      %v5364 = vunpack.c.l.b16 %v3471
      %v5365 = vunpack.c.l.b16 %v3472
      %v5366 = vunpack.c.h.b16 %v3472
      %v5367 = vunpack.c.l.b16 %v3473
      %v5368 = vunpack.c.h.b16 %v3473
      %v5369 = vunpack.c.l.b16 %v3474
      %v5370 = vunpack.c.l.b16 %v3475
      %v5371 = vunpack.c.h.b16 %v3475
      %v5372 = vunpack.c.l.b16 %v3476
      %v5373 = vunpack.c.h.b16 %v3476
      %v5374 = vunpack.c.l.b16 %v3477
      %v5375 = vunpack.c.l.b16 %v3478
      %v5376 = vunpack.c.h.b16 %v3478
      %v5377 = vunpack.c.l.b16 %v3479
      %v5378 = vunpack.c.h.b16 %v3479
      %v5379 = vunpack.c.l.b16 %v3480
      %v5380 = vunpack.c.l.b16 %v3481
      %v5381 = vunpack.c.h.b16 %v3481
      %v5382 = vunpack.c.l.b16 %v3482
      %v5383 = vunpack.c.h.b16 %v3482
      %v5384 = vunpack.c.l.b16 %v3483
      %v5385 = vunpack.c.l.b16 %v3484
      %v5386 = vunpack.c.h.b16 %v3484
      %v5387 = vunpack.c.l.b16 %v3485
      %v5388 = vunpack.c.h.b16 %v3485
      %v5389 = vunpack.c.l.b16 %v3486
      %v5390 = vunpack.c.l.b16 %v3487
      %v5391 = vunpack.c.h.b16 %v3487
      %v5392 = vunpack.c.l.b16 %v3488
      %v5393 = vunpack.c.h.b16 %v3488
      %v5394 = vunpack.c.l.b16 %v3489
      %v5395 = vunpack.c.l.b16 %v3490
      %v5396 = vunpack.c.h.b16 %v3490
      %v5397 = vunpack.c.l.b16 %v3491
      %v5398 = vunpack.c.h.b16 %v3491
      %v5399 = vunpack.c.l.b16 %v3492
      %v5400 = vunpack.c.l.b16 %v3493
      %v5401 = vunpack.c.h.b16 %v3493
      %v5402 = vunpack.c.l.b16 %v3494
      %v5403 = vunpack.c.h.b16 %v3494
      %v5404 = vunpack.c.l.b16 %v3495
      %v5405 = vunpack.c.l.b16 %v3496
      %v5406 = vunpack.c.h.b16 %v3496
      %v5407 = vunpack.c.l.b16 %v3497
      %v5408 = vunpack.c.h.b16 %v3497
      %v5409 = vunpack.c.l.b16 %v3498
      %v5410 = vunpack.c.l.b16 %v3499
      %v5411 = vunpack.c.h.b16 %v3499
      %v5412 = vunpack.c.l.b16 %v3500
      %v5413 = vunpack.c.h.b16 %v3500
      %v5414 = vunpack.c.l.b16 %v3501
      %v5415 = vunpack.c.l.b16 %v3502
      %v5416 = vunpack.c.h.b16 %v3502
      %v5417 = vunpack.c.l.b16 %v3503
      %v5418 = vunpack.c.h.b16 %v3503
      %v5419 = vunpack.c.l.b16 %v3504
      %v5420 = vunpack.c.l.b16 %v3505
      %v5421 = vunpack.c.h.b16 %v3505
      %v5422 = vunpack.c.l.b16 %v3506
      %v5423 = vunpack.c.h.b16 %v3506
      %v5424 = vunpack.c.l.b16 %v3507
      %v5425 = vunpack.c.l.b16 %v3508
      %v5426 = vunpack.c.h.b16 %v3508
      %v5427 = vunpack.c.l.b16 %v3509
      %v5428 = vunpack.c.h.b16 %v3509
      %v5429 = vunpack.c.l.b16 %v3510
      %v5430 = vunpack.c.l.b16 %v3511
      %v5431 = vunpack.c.h.b16 %v3511
      %v5432 = vunpack.c.l.b16 %v3512
      %v5433 = vunpack.c.h.b16 %v3512
      %v5434 = vunpack.c.l.b16 %v3513
      %v5435 = vunpack.c.l.b16 %v3514
      %v5436 = vunpack.c.h.b16 %v3514
      %v5437 = vunpack.c.l.b16 %v3515
      %v5438 = vunpack.c.h.b16 %v3515
      %v5439 = vunpack.c.l.b16 %v3516
      %v5440 = vunpack.c.l.b16 %v3517
      %v5441 = vunpack.c.h.b16 %v3517
      %v5442 = vunpack.c.l.b16 %v3518
      %v5443 = vunpack.c.h.b16 %v3518
      %v5444 = vunpack.c.l.b16 %v3519
      %v5445 = vunpack.c.l.b16 %v3520
      %v5446 = vunpack.c.h.b16 %v3520
      %v5447 = vunpack.c.l.b16 %v3521
      %v5448 = vunpack.c.h.b16 %v3521
      %v5449 = vunpack.c.l.b16 %v3522
      %v5450 = vunpack.c.l.b16 %v3523
      %v5451 = vunpack.c.h.b16 %v3523
      %v5452 = vunpack.c.l.b16 %v3524
      %v5453 = vunpack.c.h.b16 %v3524
      %v5454 = vunpack.c.l.b16 %v3525
      %v5455 = vunpack.c.l.b16 %v3526
      %v5456 = vunpack.c.h.b16 %v3526
      %v5457 = vunpack.c.l.b16 %v3527
      %v5458 = vunpack.c.h.b16 %v3527
      %v5459 = vunpack.c.l.b16 %v3528
      %v5460 = vunpack.c.l.b16 %v3529
      %v5461 = vunpack.c.h.b16 %v3529
      %v5462 = vunpack.c.l.b16 %v3530
      %v5463 = vunpack.c.h.b16 %v3530
      %v5464 = vunpack.c.l.b16 %v3531
      %v5465 = vunpack.c.l.b16 %v3532
      %v5466 = vunpack.c.h.b16 %v3532
      %v5467 = vunpack.c.l.b16 %v3533
      %v5468 = vunpack.c.h.b16 %v3533
      %v5469 = vunpack.c.l.b16 %v3534
      %v5470 = vunpack.c.l.b16 %v3535
      %v5471 = vunpack.c.h.b16 %v3535
      %v5472 = vunpack.c.l.b16 %v3536
      %v5473 = vunpack.c.h.b16 %v3536
      %v5474 = vunpack.c.l.b16 %v3537
      %v5475 = vunpack.c.l.b16 %v3538
      %v5476 = vunpack.c.h.b16 %v3538
      %v5477 = vunpack.c.l.b16 %v3539
      %v5478 = vunpack.c.h.b16 %v3539
      %v5479 = vunpack.c.l.b16 %v3540
      %v5480 = vunpack.c.l.b16 %v3541
      %v5481 = vunpack.c.h.b16 %v3541
      %v5482 = vunpack.c.l.b16 %v3542
      %v5483 = vunpack.c.h.b16 %v3542
      %v5484 = vunpack.c.l.b16 %v3543
      %v5485 = vunpack.c.l.b16 %v3544
      %v5486 = vunpack.c.h.b16 %v3544
      %v5487 = vunpack.c.l.b16 %v3545
      %v5488 = vunpack.c.h.b16 %v3545
      %v5489 = vunpack.c.l.b16 %v3546
      %v5490 = vunpack.c.l.b16 %v3547
      %v5491 = vunpack.c.h.b16 %v3547
      %v5492 = vunpack.c.l.b16 %v3548
      %v5493 = vunpack.c.h.b16 %v3548
      %v5494 = vunpack.c.l.b16 %v3549
      %v5495 = vunpack.c.l.b16 %v3550
      %v5496 = vunpack.c.h.b16 %v3550
      %v5497 = vunpack.c.l.b16 %v3551
      %v5498 = vunpack.c.h.b16 %v3551
      %v5499 = vunpack.c.l.b16 %v3552
      %v5500 = vunpack.c.l.b16 %v3553
      %v5501 = vunpack.c.h.b16 %v3553
      %v5502 = vunpack.c.l.b16 %v3554
      %v5503 = vunpack.c.h.b16 %v3554
      %v5504 = vunpack.c.l.b16 %v3555
      %v5505 = vunpack.c.l.b16 %v3556
      %v5506 = vunpack.c.h.b16 %v3556
      %v5507 = vunpack.c.l.b16 %v3557
      %v5508 = vunpack.c.h.b16 %v3557
      %v5509 = vunpack.c.l.b16 %v3558
      %v5510 = vunpack.c.l.b16 %v3559
      %v5511 = vunpack.c.h.b16 %v3559
      %v5512 = vunpack.c.l.b16 %v3560
      %v5513 = vunpack.c.h.b16 %v3560
      %v5514 = vunpack.c.l.b16 %v3561
      %v5515 = vunpack.c.l.b16 %v3562
      %v5516 = vunpack.c.h.b16 %v3562
      %v5517 = vunpack.c.l.b16 %v3563
      %v5518 = vunpack.c.h.b16 %v3563
      %v5519 = vunpack.c.l.b16 %v3564
      %v5520 = vunpack.c.l.b16 %v3565
      %v5521 = vunpack.c.h.b16 %v3565
      %v5522 = vunpack.c.l.b16 %v3566
      %v5523 = vunpack.c.h.b16 %v3566
      %v5524 = vunpack.c.l.b16 %v3567
      %v5525 = vunpack.c.l.b16 %v3568
      %v5526 = vunpack.c.h.b16 %v3568
      %v5527 = vunpack.c.l.b16 %v3569
      %v5528 = vunpack.c.h.b16 %v3569
      %v5529 = vunpack.c.l.b16 %v3570
      %v5530 = vunpack.c.l.b16 %v3571
      %v5531 = vunpack.c.h.b16 %v3571
      %v5532 = vunpack.c.l.b16 %v3572
      %v5533 = vunpack.c.h.b16 %v3572
      %v5534 = vunpack.c.l.b16 %v3573
      %v5535 = vunpack.c.l.b16 %v3574
      %v5536 = vunpack.c.h.b16 %v3574
      %v5537 = vunpack.c.l.b16 %v3575
      %v5538 = vunpack.c.h.b16 %v3575
      %v5539 = vunpack.c.l.b16 %v3576
      %v5540 = vunpack.c.l.b16 %v3577
      %v5541 = vunpack.c.h.b16 %v3577
      %v5542 = vunpack.c.l.b16 %v3578
      %v5543 = vunpack.c.h.b16 %v3578
      %v5544 = vunpack.c.l.b16 %v3579
      %v5545 = vunpack.c.l.b16 %v3580
      %v5546 = vunpack.c.h.b16 %v3580
      %v5547 = vunpack.c.l.b16 %v3581
      %v5548 = vunpack.c.h.b16 %v3581
      %v5549 = vunpack.c.l.b16 %v3582
      %v5550 = vunpack.c.l.b16 %v3583
      %v5551 = vunpack.c.h.b16 %v3583
      %v5552 = vunpack.c.l.b16 %v3584
      %v5553 = vunpack.c.h.b16 %v3584
      %v5554 = vunpack.c.l.b16 %v3585
      %v5555 = vunpack.c.l.b16 %v3586
      %v5556 = vunpack.c.h.b16 %v3586
      %v5557 = vunpack.c.l.b16 %v3587
      %v5558 = vunpack.c.h.b16 %v3587
      %v5559 = vunpack.c.l.b16 %v3588
      %v5560 = vunpack.c.l.b16 %v3589
      %v5561 = vunpack.c.h.b16 %v3589
      %v5562 = vunpack.c.l.b16 %v3590
      %v5563 = vunpack.c.h.b16 %v3590
      %v5564 = vunpack.c.l.b16 %v3591
      %v5565 = vunpack.c.l.b16 %v3592
      %v5566 = vunpack.c.h.b16 %v3592
      %v5567 = vunpack.c.l.b16 %v3593
      %v5568 = vunpack.c.h.b16 %v3593
      %v5569 = vunpack.c.l.b16 %v3594
      %v5570 = vunpack.c.l.b16 %v3595
      %v5571 = vunpack.c.h.b16 %v3595
      %v5572 = vunpack.c.l.b16 %v3596
      %v5573 = vunpack.c.h.b16 %v3596
      %v5574 = vunpack.c.l.b16 %v3597
      %v5575 = vunpack.c.l.b16 %v3598
      %v5576 = vunpack.c.h.b16 %v3598
      %v5577 = vunpack.c.l.b16 %v3599
      %v5578 = vunpack.c.h.b16 %v3599
      %v5579 = vunpack.c.l.b16 %v3600
      %v5580 = vunpack.c.l.b16 %v3601
      %v5581 = vunpack.c.h.b16 %v3601
      %v5582 = vunpack.c.l.b16 %v3602
      %v5583 = vunpack.c.h.b16 %v3602
      %v5584 = vunpack.c.l.b16 %v3603
      %v5585 = vunpack.c.l.b16 %v3604
      %v5586 = vunpack.c.h.b16 %v3604
      %v5587 = vunpack.c.l.b16 %v3605
      %v5588 = vunpack.c.h.b16 %v3605
      %v5589 = vunpack.c.l.b16 %v3606
      %v5590 = vunpack.c.l.b16 %v3607
      %v5591 = vunpack.c.h.b16 %v3607
      %v5592 = vunpack.c.l.b16 %v3608
      %v5593 = vunpack.c.h.b16 %v3608
      %v5594 = vunpack.c.l.b16 %v3609
      %v5595 = vunpack.c.l.b16 %v3610
      %v5596 = vunpack.c.h.b16 %v3610
      %v5597 = vunpack.c.l.b16 %v3611
      %v5598 = vunpack.c.h.b16 %v3611
      %v5599 = vunpack.c.l.b16 %v3612
      %v5600 = vunpack.c.l.b16 %v3613
      %v5601 = vunpack.c.h.b16 %v3613
      %v5602 = vunpack.c.l.b16 %v3614
      %v5603 = vunpack.c.h.b16 %v3614
      %v5604 = vunpack.c.l.b16 %v3615
      %v5605 = vunpack.c.l.b16 %v3616
      %v5606 = vunpack.c.h.b16 %v3616
      %v5607 = vunpack.c.l.b16 %v3617
      %v5608 = vunpack.c.h.b16 %v3617
      %v5609 = vunpack.c.l.b16 %v3618
      %v5610 = vunpack.c.l.b16 %v3619
      %v5611 = vunpack.c.h.b16 %v3619
      %v5612 = vunpack.c.l.b16 %v3620
      %v5613 = vunpack.c.h.b16 %v3620
      %v5614 = vunpack.c.l.b16 %v3621
      %v5615 = vunpack.c.l.b16 %v3622
      %v5616 = vunpack.c.h.b16 %v3622
      %v5617 = vunpack.c.l.b16 %v3623
      %v5618 = vunpack.c.h.b16 %v3623
      %v5619 = vunpack.c.l.b16 %v3624
      %v5620 = vunpack.c.l.b16 %v3625
      %v5621 = vunpack.c.h.b16 %v3625
      %v5622 = vunpack.c.l.b16 %v3626
      %v5623 = vunpack.c.h.b16 %v3626
      %v5624 = vunpack.c.l.b16 %v3627
      %v5625 = vunpack.c.l.b16 %v3628
      %v5626 = vunpack.c.h.b16 %v3628
      %v5627 = vunpack.c.l.b16 %v3629
      %v5628 = vunpack.c.h.b16 %v3629
      %v5629 = vunpack.c.l.b16 %v3630
      %v5630 = vunpack.c.l.b16 %v3631
      %v5631 = vunpack.c.h.b16 %v3631
      %v5632 = vunpack.c.l.b16 %v3632
      %v5633 = vunpack.c.h.b16 %v3632
      %v5634 = vunpack.c.l.b16 %v3633
      %v5635 = vunpack.c.l.b16 %v3634
      %v5636 = vunpack.c.h.b16 %v3634
      %v5637 = vunpack.c.l.b16 %v3635
      %v5638 = vunpack.c.h.b16 %v3635
      %v5639 = vunpack.c.l.b16 %v3636
      %v5640 = vunpack.c.l.b16 %v3637
      %v5641 = vunpack.c.h.b16 %v3637
      %v5642 = vunpack.c.l.b16 %v3638
      %v5643 = vunpack.c.h.b16 %v3638
      %v5644 = vunpack.c.l.b16 %v3639
      %v5645 = vunpack.c.l.b16 %v3640
      %v5646 = vunpack.c.h.b16 %v3640
      %v5647 = vunpack.c.l.b16 %v3641
      %v5648 = vunpack.c.h.b16 %v3641
      %v5649 = vunpack.c.l.b16 %v3642
      %v5650 = vunpack.c.l.b16 %v3643
      %v5651 = vunpack.c.h.b16 %v3643
      %v5652 = vunpack.c.l.b16 %v3644
      %v5653 = vunpack.c.h.b16 %v3644
      %v5654 = vunpack.c.l.b16 %v3645
      %v5655 = vunpack.c.l.b16 %v3646
      %v5656 = vunpack.c.h.b16 %v3646
      %v5657 = vunpack.c.l.b16 %v3647
      %v5658 = vunpack.c.h.b16 %v3647
      %v5659 = vunpack.c.l.b16 %v3648
      %v5660 = vunpack.c.l.b16 %v3649
      %v5661 = vunpack.c.h.b16 %v3649
      %v5662 = vunpack.c.l.b16 %v3650
      %v5663 = vunpack.c.h.b16 %v3650
      %v5664 = vunpack.c.l.b16 %v3651
      %v5665 = vunpack.c.l.b16 %v3652
      %v5666 = vunpack.c.h.b16 %v3652
      %v5667 = vunpack.c.l.b16 %v3653
      %v5668 = vunpack.c.h.b16 %v3653
      %v5669 = vunpack.c.l.b16 %v3654
      %v5670 = vunpack.c.l.b16 %v3655
      %v5671 = vunpack.c.h.b16 %v3655
      %v5672 = vunpack.c.l.b16 %v3656
      %v5673 = vunpack.c.h.b16 %v3656
      %v5674 = vunpack.c.l.b16 %v3657
      %v5675 = vunpack.c.l.b16 %v3658
      %v5676 = vunpack.c.h.b16 %v3658
      %v5677 = vunpack.c.l.b16 %v3659
      %v5678 = vunpack.c.h.b16 %v3659
      %v5679 = vunpack.c.l.b16 %v3660
      %v5680 = vunpack.c.l.b16 %v3661
      %v5681 = vunpack.c.h.b16 %v3661
      %v5682 = vunpack.c.l.b16 %v3662
      %v5683 = vunpack.c.h.b16 %v3662
      %v5684 = vunpack.c.l.b16 %v3663
      %v5685 = vunpack.c.l.b16 %v3664
      %v5686 = vunpack.c.h.b16 %v3664
      %v5687 = vunpack.c.l.b16 %v3665
      %v5688 = vunpack.c.h.b16 %v3665
      %v5689 = vunpack.c.l.b16 %v3666
      %v5690 = vunpack.c.l.b16 %v3667
      %v5691 = vunpack.c.h.b16 %v3667
      %v5692 = vunpack.c.l.b16 %v3668
      %v5693 = vunpack.c.h.b16 %v3668
      %v5694 = vunpack.c.l.b16 %v3669
      %v5695 = vunpack.c.l.b16 %v3670
      %v5696 = vunpack.c.h.b16 %v3670
      %v5697 = vunpack.c.l.b16 %v3671
      %v5698 = vunpack.c.h.b16 %v3671
      %v5699 = vunpack.c.l.b16 %v3672
      %v5700 = vunpack.c.l.b16 %v3673
      %v5701 = vunpack.c.h.b16 %v3673
      %v5702 = vunpack.c.l.b16 %v3674
      %v5703 = vunpack.c.h.b16 %v3674
      %v5704 = vunpack.c.l.b16 %v3675
      %v5705 = vunpack.c.l.b16 %v3676
      %v5706 = vunpack.c.h.b16 %v3676
      %v5707 = vunpack.c.l.b16 %v3677
      %v5708 = vunpack.c.h.b16 %v3677
      %v5709 = vunpack.c.l.b16 %v3678
      %v5710 = vunpack.c.l.b16 %v3679
      %v5711 = vunpack.c.h.b16 %v3679
      %v5712 = vunpack.c.l.b16 %v3680
      %v5713 = vunpack.c.h.b16 %v3680
      %v5714 = vunpack.c.l.b16 %v3681
      %v5715 = vunpack.c.l.b16 %v3682
      %v5716 = vunpack.c.h.b16 %v3682
      %v5717 = vunpack.c.l.b16 %v3683
      %v5718 = vunpack.c.h.b16 %v3683
      %v5719 = vunpack.c.l.b16 %v3684
      %v5720 = vunpack.c.l.b16 %v3685
      %v5721 = vunpack.c.h.b16 %v3685
      %v5722 = vunpack.c.l.b16 %v3686
      %v5723 = vunpack.c.h.b16 %v3686
      %v5724 = vunpack.c.l.b16 %v3687
      %v5725 = vunpack.c.l.b16 %v3688
      %v5726 = vunpack.c.h.b16 %v3688
      %v5727 = vunpack.c.l.b16 %v3689
      %v5728 = vunpack.c.h.b16 %v3689
      %v5729 = vunpack.c.l.b16 %v3690
      %v5730 = vunpack.c.l.b16 %v3691
      %v5731 = vunpack.c.h.b16 %v3691
      %v5732 = vunpack.c.l.b16 %v3692
      %v5733 = vunpack.c.h.b16 %v3692
      %v5734 = vunpack.c.l.b16 %v3693
      %v5735 = vunpack.c.l.b16 %v3694
      %v5736 = vunpack.c.h.b16 %v3694
      %v5737 = vunpack.c.l.b16 %v3695
      %v5738 = vunpack.c.h.b16 %v3695
      %v5739 = vunpack.c.l.b16 %v3696
      %v5740 = vunpack.c.l.b16 %v3697
      %v5741 = vunpack.c.h.b16 %v3697
      %v5742 = vunpack.c.l.b16 %v3698
      %v5743 = vunpack.c.h.b16 %v3698
      %v5744 = vunpack.c.l.b16 %v3699
      %v5745 = vunpack.c.l.b16 %v3700
      %v5746 = vunpack.c.h.b16 %v3700
      %v5747 = vunpack.c.l.b16 %v3701
      %v5748 = vunpack.c.h.b16 %v3701
      %v5749 = vunpack.c.l.b16 %v3702
      %v5750 = vunpack.c.l.b16 %v3703
      %v5751 = vunpack.c.h.b16 %v3703
      %v5752 = vunpack.c.l.b16 %v3704
      %v5753 = vunpack.c.h.b16 %v3704
      %v5754 = vunpack.c.l.b16 %v3705
      %v5755 = vunpack.c.l.b16 %v3706
      %v5756 = vunpack.c.h.b16 %v3706
      %v5757 = vunpack.c.l.b16 %v3707
      %v5758 = vunpack.c.h.b16 %v3707
      %v5759 = vunpack.c.l.b16 %v3708
      %v5760 = vunpack.c.l.b16 %v3709
      %v5761 = vunpack.c.h.b16 %v3709
      %v5762 = vunpack.c.l.b16 %v3710
      %v5763 = vunpack.c.h.b16 %v3710
      %v5764 = vunpack.c.l.b16 %v3711
      %v5765 = vunpack.c.l.b16 %v3712
      %v5766 = vunpack.c.h.b16 %v3712
      %v5767 = vunpack.c.l.b16 %v3713
      %v5768 = vunpack.c.h.b16 %v3713
      %v5769 = vunpack.c.l.b16 %v3714
      %v5770 = vunpack.c.l.b16 %v3715
      %v5771 = vunpack.c.h.b16 %v3715
      %v5772 = vunpack.c.l.b16 %v3716
      %v5773 = vunpack.c.h.b16 %v3716
      %v5774 = vunpack.c.l.b16 %v3717
      %v5775 = vunpack.c.l.b16 %v3718
      %v5776 = vunpack.c.h.b16 %v3718
      %v5777 = vunpack.c.l.b16 %v3719
      %v5778 = vunpack.c.h.b16 %v3719
      %v5779 = vunpack.c.l.b16 %v3720
      %v5780 = vunpack.c.l.b16 %v3721
      %v5781 = vunpack.c.h.b16 %v3721
      %v5782 = vunpack.c.l.b16 %v3722
      %v5783 = vunpack.c.h.b16 %v3722
      %v5784 = vunpack.c.l.b16 %v3723
      %v5785 = vunpack.c.l.b16 %v3724
      %v5786 = vunpack.c.h.b16 %v3724
      %v5787 = vunpack.c.l.b16 %v3725
      %v5788 = vunpack.c.h.b16 %v3725
      %v5789 = vunpack.c.l.b16 %v3726
      %v5790 = vunpack.c.l.b16 %v3727
      %v5791 = vunpack.c.h.b16 %v3727
      %v5792 = vunpack.c.l.b16 %v3728
      %v5793 = vunpack.c.h.b16 %v3728
      %v5794 = vunpack.c.l.b16 %v3729
      %v5795 = vunpack.c.l.b16 %v3730
      %v5796 = vunpack.c.h.b16 %v3730
      %v5797 = vunpack.c.l.b16 %v3731
      %v5798 = vunpack.c.h.b16 %v3731
      %v5799 = vunpack.c.l.b16 %v3732
      %v5800 = vunpack.c.l.b16 %v3733
      %v5801 = vunpack.c.h.b16 %v3733
      %v5802 = vunpack.c.l.b16 %v3734
      %v5803 = vunpack.c.h.b16 %v3734
      %v5804 = vunpack.c.l.b16 %v3735
      %v5805 = vunpack.c.l.b16 %v3736
      %v5806 = vunpack.c.h.b16 %v3736
      %v5807 = vunpack.c.l.b16 %v3737
      %v5808 = vunpack.c.h.b16 %v3737
      %v5809 = vunpack.c.l.b16 %v3738
      %v5810 = vunpack.c.l.b16 %v3739
      %v5811 = vunpack.c.h.b16 %v3739
      %v5812 = vunpack.c.l.b16 %v3740
      %v5813 = vunpack.c.h.b16 %v3740
      %v5814 = vunpack.c.l.b16 %v3741
      %v5815 = vunpack.c.l.b16 %v3742
      %v5816 = vunpack.c.h.b16 %v3742
      %v5817 = vunpack.c.l.b16 %v3743
      %v5818 = vunpack.c.h.b16 %v3743
      %v5819 = vunpack.c.l.b16 %v3744
      %v5820 = vpack.c.b16 %v4545, %v4540
      %v5821 = vpack.c.b16 %v4546, %v4541
      %v5822 = vpack.c.b16 %v4547, %v4542
      %v5823 = vpack.c.b16 %v4548, %v4543
      %v5824 = vpack.c.b16 %v4549, %v4544
      %v5825 = vpack.c.b16 %v4555, %v4550
      %v5826 = vpack.c.b16 %v4556, %v4551
      %v5827 = vpack.c.b16 %v4557, %v4552
      %v5828 = vpack.c.b16 %v4558, %v4553
      %v5829 = vpack.c.b16 %v4559, %v4554
      %v5830 = vpack.c.b16 %v4565, %v4560
      %v5831 = vpack.c.b16 %v4566, %v4561
      %v5832 = vpack.c.b16 %v4567, %v4562
      %v5833 = vpack.c.b16 %v4568, %v4563
      %v5834 = vpack.c.b16 %v4569, %v4564
      %v5835 = vpack.c.b16 %v4575, %v4570
      %v5836 = vpack.c.b16 %v4576, %v4571
      %v5837 = vpack.c.b16 %v4577, %v4572
      %v5838 = vpack.c.b16 %v4578, %v4573
      %v5839 = vpack.c.b16 %v4579, %v4574
      %v5840 = vpack.c.b16 %v4585, %v4580
      %v5841 = vpack.c.b16 %v4586, %v4581
      %v5842 = vpack.c.b16 %v4587, %v4582
      %v5843 = vpack.c.b16 %v4588, %v4583
      %v5844 = vpack.c.b16 %v4589, %v4584
      %v5845 = vpack.c.b16 %v4595, %v4590
      %v5846 = vpack.c.b16 %v4596, %v4591
      %v5847 = vpack.c.b16 %v4597, %v4592
      %v5848 = vpack.c.b16 %v4598, %v4593
      %v5849 = vpack.c.b16 %v4599, %v4594
      %v5850 = vpack.c.b16 %v4605, %v4600
      %v5851 = vpack.c.b16 %v4606, %v4601
      %v5852 = vpack.c.b16 %v4607, %v4602
      %v5853 = vpack.c.b16 %v4608, %v4603
      %v5854 = vpack.c.b16 %v4609, %v4604
      %v5855 = vpack.c.b16 %v4615, %v4610
      %v5856 = vpack.c.b16 %v4616, %v4611
      %v5857 = vpack.c.b16 %v4617, %v4612
      %v5858 = vpack.c.b16 %v4618, %v4613
      %v5859 = vpack.c.b16 %v4619, %v4614
      %v5860 = vpack.c.b16 %v4625, %v4620
      %v5861 = vpack.c.b16 %v4626, %v4621
      %v5862 = vpack.c.b16 %v4627, %v4622
      %v5863 = vpack.c.b16 %v4628, %v4623
      %v5864 = vpack.c.b16 %v4629, %v4624
      %v5865 = vpack.c.b16 %v4635, %v4630
      %v5866 = vpack.c.b16 %v4636, %v4631
      %v5867 = vpack.c.b16 %v4637, %v4632
      %v5868 = vpack.c.b16 %v4638, %v4633
      %v5869 = vpack.c.b16 %v4639, %v4634
      %v5870 = vpack.c.b16 %v4645, %v4640
      %v5871 = vpack.c.b16 %v4646, %v4641
      %v5872 = vpack.c.b16 %v4647, %v4642
      %v5873 = vpack.c.b16 %v4648, %v4643
      %v5874 = vpack.c.b16 %v4649, %v4644
      %v5875 = vpack.c.b16 %v4655, %v4650
      %v5876 = vpack.c.b16 %v4656, %v4651
      %v5877 = vpack.c.b16 %v4657, %v4652
      %v5878 = vpack.c.b16 %v4658, %v4653
      %v5879 = vpack.c.b16 %v4659, %v4654
      %v5880 = vpack.c.b16 %v4665, %v4660
      %v5881 = vpack.c.b16 %v4666, %v4661
      %v5882 = vpack.c.b16 %v4667, %v4662
      %v5883 = vpack.c.b16 %v4668, %v4663
      %v5884 = vpack.c.b16 %v4669, %v4664
      %v5885 = vpack.c.b16 %v4675, %v4670
      %v5886 = vpack.c.b16 %v4676, %v4671
      %v5887 = vpack.c.b16 %v4677, %v4672
      %v5888 = vpack.c.b16 %v4678, %v4673
      %v5889 = vpack.c.b16 %v4679, %v4674
      %v5890 = vpack.c.b16 %v4685, %v4680
      %v5891 = vpack.c.b16 %v4686, %v4681
      %v5892 = vpack.c.b16 %v4687, %v4682
      %v5893 = vpack.c.b16 %v4688, %v4683
      %v5894 = vpack.c.b16 %v4689, %v4684
      %v5895 = vpack.c.b16 %v4695, %v4690
      %v5896 = vpack.c.b16 %v4696, %v4691
      %v5897 = vpack.c.b16 %v4697, %v4692
      %v5898 = vpack.c.b16 %v4698, %v4693
      %v5899 = vpack.c.b16 %v4699, %v4694
      %v5900 = vpack.c.b16 %v4705, %v4700
      %v5901 = vpack.c.b16 %v4706, %v4701
      %v5902 = vpack.c.b16 %v4707, %v4702
      %v5903 = vpack.c.b16 %v4708, %v4703
      %v5904 = vpack.c.b16 %v4709, %v4704
      %v5905 = vpack.c.b16 %v4715, %v4710
      %v5906 = vpack.c.b16 %v4716, %v4711
      %v5907 = vpack.c.b16 %v4717, %v4712
      %v5908 = vpack.c.b16 %v4718, %v4713
      %v5909 = vpack.c.b16 %v4719, %v4714
      %v5910 = vpack.c.b16 %v4725, %v4720
      %v5911 = vpack.c.b16 %v4726, %v4721
      %v5912 = vpack.c.b16 %v4727, %v4722
      %v5913 = vpack.c.b16 %v4728, %v4723
      %v5914 = vpack.c.b16 %v4729, %v4724
      %v5915 = vpack.c.b16 %v4735, %v4730
      %v5916 = vpack.c.b16 %v4736, %v4731
      %v5917 = vpack.c.b16 %v4737, %v4732
      %v5918 = vpack.c.b16 %v4738, %v4733
      %v5919 = vpack.c.b16 %v4739, %v4734
      %v5920 = vpack.c.b16 %v4745, %v4740
      %v5921 = vpack.c.b16 %v4746, %v4741
      %v5922 = vpack.c.b16 %v4747, %v4742
      %v5923 = vpack.c.b16 %v4748, %v4743
      %v5924 = vpack.c.b16 %v4749, %v4744
      %v5925 = vpack.c.b16 %v4755, %v4750
      %v5926 = vpack.c.b16 %v4756, %v4751
      %v5927 = vpack.c.b16 %v4757, %v4752
      %v5928 = vpack.c.b16 %v4758, %v4753
      %v5929 = vpack.c.b16 %v4759, %v4754
      %v5930 = vpack.c.b16 %v4765, %v4760
      %v5931 = vpack.c.b16 %v4766, %v4761
      %v5932 = vpack.c.b16 %v4767, %v4762
      %v5933 = vpack.c.b16 %v4768, %v4763
      %v5934 = vpack.c.b16 %v4769, %v4764
      %v5935 = vpack.c.b16 %v4775, %v4770
      %v5936 = vpack.c.b16 %v4776, %v4771
      %v5937 = vpack.c.b16 %v4777, %v4772
      %v5938 = vpack.c.b16 %v4778, %v4773
      %v5939 = vpack.c.b16 %v4779, %v4774
      %v5940 = vpack.c.b16 %v4785, %v4780
      %v5941 = vpack.c.b16 %v4786, %v4781
      %v5942 = vpack.c.b16 %v4787, %v4782
      %v5943 = vpack.c.b16 %v4788, %v4783
      %v5944 = vpack.c.b16 %v4789, %v4784
      %v5945 = vpack.c.b16 %v4795, %v4790
      %v5946 = vpack.c.b16 %v4796, %v4791
      %v5947 = vpack.c.b16 %v4797, %v4792
      %v5948 = vpack.c.b16 %v4798, %v4793
      %v5949 = vpack.c.b16 %v4799, %v4794
      %v5950 = vpack.c.b16 %v4805, %v4800
      %v5951 = vpack.c.b16 %v4806, %v4801
      %v5952 = vpack.c.b16 %v4807, %v4802
      %v5953 = vpack.c.b16 %v4808, %v4803
      %v5954 = vpack.c.b16 %v4809, %v4804
      %v5955 = vpack.c.b16 %v4815, %v4810
      %v5956 = vpack.c.b16 %v4816, %v4811
      %v5957 = vpack.c.b16 %v4817, %v4812
      %v5958 = vpack.c.b16 %v4818, %v4813
      %v5959 = vpack.c.b16 %v4819, %v4814
      %v5960 = vpack.c.b16 %v4825, %v4820
      %v5961 = vpack.c.b16 %v4826, %v4821
      %v5962 = vpack.c.b16 %v4827, %v4822
      %v5963 = vpack.c.b16 %v4828, %v4823
      %v5964 = vpack.c.b16 %v4829, %v4824
      %v5965 = vpack.c.b16 %v4835, %v4830
      %v5966 = vpack.c.b16 %v4836, %v4831
      %v5967 = vpack.c.b16 %v4837, %v4832
      %v5968 = vpack.c.b16 %v4838, %v4833
      %v5969 = vpack.c.b16 %v4839, %v4834
      %v5970 = vpack.c.b16 %v4845, %v4840
      %v5971 = vpack.c.b16 %v4846, %v4841
      %v5972 = vpack.c.b16 %v4847, %v4842
      %v5973 = vpack.c.b16 %v4848, %v4843
      %v5974 = vpack.c.b16 %v4849, %v4844
      %v5975 = vpack.c.b16 %v4855, %v4850
      %v5976 = vpack.c.b16 %v4856, %v4851
      %v5977 = vpack.c.b16 %v4857, %v4852
      %v5978 = vpack.c.b16 %v4858, %v4853
      %v5979 = vpack.c.b16 %v4859, %v4854
      %v5980 = vpack.c.b16 %v4865, %v4860
      %v5981 = vpack.c.b16 %v4866, %v4861
      %v5982 = vpack.c.b16 %v4867, %v4862
      %v5983 = vpack.c.b16 %v4868, %v4863
      %v5984 = vpack.c.b16 %v4869, %v4864
      %v5985 = vpack.c.b16 %v4875, %v4870
      %v5986 = vpack.c.b16 %v4876, %v4871
      %v5987 = vpack.c.b16 %v4877, %v4872
      %v5988 = vpack.c.b16 %v4878, %v4873
      %v5989 = vpack.c.b16 %v4879, %v4874
      %v5990 = vpack.c.b16 %v4885, %v4880
      %v5991 = vpack.c.b16 %v4886, %v4881
      %v5992 = vpack.c.b16 %v4887, %v4882
      %v5993 = vpack.c.b16 %v4888, %v4883
      %v5994 = vpack.c.b16 %v4889, %v4884
      %v5995 = vpack.c.b16 %v4895, %v4890
      %v5996 = vpack.c.b16 %v4896, %v4891
      %v5997 = vpack.c.b16 %v4897, %v4892
      %v5998 = vpack.c.b16 %v4898, %v4893
      %v5999 = vpack.c.b16 %v4899, %v4894
      %v6000 = vpack.c.b16 %v4905, %v4900
      %v6001 = vpack.c.b16 %v4906, %v4901
      %v6002 = vpack.c.b16 %v4907, %v4902
      %v6003 = vpack.c.b16 %v4908, %v4903
      %v6004 = vpack.c.b16 %v4909, %v4904
      %v6005 = vpack.c.b16 %v4915, %v4910
      %v6006 = vpack.c.b16 %v4916, %v4911
      %v6007 = vpack.c.b16 %v4917, %v4912
      %v6008 = vpack.c.b16 %v4918, %v4913
      %v6009 = vpack.c.b16 %v4919, %v4914
      %v6010 = vpack.c.b16 %v4925, %v4920
      %v6011 = vpack.c.b16 %v4926, %v4921
      %v6012 = vpack.c.b16 %v4927, %v4922
      %v6013 = vpack.c.b16 %v4928, %v4923
      %v6014 = vpack.c.b16 %v4929, %v4924
      %v6015 = vpack.c.b16 %v4935, %v4930
      %v6016 = vpack.c.b16 %v4936, %v4931
      %v6017 = vpack.c.b16 %v4937, %v4932
      %v6018 = vpack.c.b16 %v4938, %v4933
      %v6019 = vpack.c.b16 %v4939, %v4934
      %v6020 = vpack.c.b16 %v4945, %v4940
      %v6021 = vpack.c.b16 %v4946, %v4941
      %v6022 = vpack.c.b16 %v4947, %v4942
      %v6023 = vpack.c.b16 %v4948, %v4943
      %v6024 = vpack.c.b16 %v4949, %v4944
      %v6025 = vpack.c.b16 %v4955, %v4950
      %v6026 = vpack.c.b16 %v4956, %v4951
      %v6027 = vpack.c.b16 %v4957, %v4952
      %v6028 = vpack.c.b16 %v4958, %v4953
      %v6029 = vpack.c.b16 %v4959, %v4954
      %v6030 = vpack.c.b16 %v4965, %v4960
      %v6031 = vpack.c.b16 %v4966, %v4961
      %v6032 = vpack.c.b16 %v4967, %v4962
      %v6033 = vpack.c.b16 %v4968, %v4963
      %v6034 = vpack.c.b16 %v4969, %v4964
      %v6035 = vpack.c.b16 %v4975, %v4970
      %v6036 = vpack.c.b16 %v4976, %v4971
      %v6037 = vpack.c.b16 %v4977, %v4972
      %v6038 = vpack.c.b16 %v4978, %v4973
      %v6039 = vpack.c.b16 %v4979, %v4974
      %v6040 = vpack.c.b16 %v4985, %v4980
      %v6041 = vpack.c.b16 %v4986, %v4981
      %v6042 = vpack.c.b16 %v4987, %v4982
      %v6043 = vpack.c.b16 %v4988, %v4983
      %v6044 = vpack.c.b16 %v4989, %v4984
      %v6045 = vpack.c.b16 %v4995, %v4990
      %v6046 = vpack.c.b16 %v4996, %v4991
      %v6047 = vpack.c.b16 %v4997, %v4992
      %v6048 = vpack.c.b16 %v4998, %v4993
      %v6049 = vpack.c.b16 %v4999, %v4994
      %v6050 = vpack.c.b16 %v5005, %v5000
      %v6051 = vpack.c.b16 %v5006, %v5001
      %v6052 = vpack.c.b16 %v5007, %v5002
      %v6053 = vpack.c.b16 %v5008, %v5003
      %v6054 = vpack.c.b16 %v5009, %v5004
      %v6055 = vpack.c.b16 %v5015, %v5010
      %v6056 = vpack.c.b16 %v5016, %v5011
      %v6057 = vpack.c.b16 %v5017, %v5012
      %v6058 = vpack.c.b16 %v5018, %v5013
      %v6059 = vpack.c.b16 %v5019, %v5014
      %v6060 = vpack.c.b16 %v5025, %v5020
      %v6061 = vpack.c.b16 %v5026, %v5021
      %v6062 = vpack.c.b16 %v5027, %v5022
      %v6063 = vpack.c.b16 %v5028, %v5023
      %v6064 = vpack.c.b16 %v5029, %v5024
      %v6065 = vpack.c.b16 %v5035, %v5030
      %v6066 = vpack.c.b16 %v5036, %v5031
      %v6067 = vpack.c.b16 %v5037, %v5032
      %v6068 = vpack.c.b16 %v5038, %v5033
      %v6069 = vpack.c.b16 %v5039, %v5034
      %v6070 = vpack.c.b16 %v5045, %v5040
      %v6071 = vpack.c.b16 %v5046, %v5041
      %v6072 = vpack.c.b16 %v5047, %v5042
      %v6073 = vpack.c.b16 %v5048, %v5043
      %v6074 = vpack.c.b16 %v5049, %v5044
      %v6075 = vpack.c.b16 %v5055, %v5050
      %v6076 = vpack.c.b16 %v5056, %v5051
      %v6077 = vpack.c.b16 %v5057, %v5052
      %v6078 = vpack.c.b16 %v5058, %v5053
      %v6079 = vpack.c.b16 %v5059, %v5054
      %v6080 = vpack.c.b16 %v5065, %v5060
      %v6081 = vpack.c.b16 %v5066, %v5061
      %v6082 = vpack.c.b16 %v5067, %v5062
      %v6083 = vpack.c.b16 %v5068, %v5063
      %v6084 = vpack.c.b16 %v5069, %v5064
      %v6085 = vpack.c.b16 %v5075, %v5070
      %v6086 = vpack.c.b16 %v5076, %v5071
      %v6087 = vpack.c.b16 %v5077, %v5072
      %v6088 = vpack.c.b16 %v5078, %v5073
      %v6089 = vpack.c.b16 %v5079, %v5074
      %v6090 = vpack.c.b16 %v5085, %v5080
      %v6091 = vpack.c.b16 %v5086, %v5081
      %v6092 = vpack.c.b16 %v5087, %v5082
      %v6093 = vpack.c.b16 %v5088, %v5083
      %v6094 = vpack.c.b16 %v5089, %v5084
      %v6095 = vpack.c.b16 %v5095, %v5090
      %v6096 = vpack.c.b16 %v5096, %v5091
      %v6097 = vpack.c.b16 %v5097, %v5092
      %v6098 = vpack.c.b16 %v5098, %v5093
      %v6099 = vpack.c.b16 %v5099, %v5094
      %v6100 = vpack.c.b16 %v5105, %v5100
      %v6101 = vpack.c.b16 %v5106, %v5101
      %v6102 = vpack.c.b16 %v5107, %v5102
      %v6103 = vpack.c.b16 %v5108, %v5103
      %v6104 = vpack.c.b16 %v5109, %v5104
      %v6105 = vpack.c.b16 %v5115, %v5110
      %v6106 = vpack.c.b16 %v5116, %v5111
      %v6107 = vpack.c.b16 %v5117, %v5112
      %v6108 = vpack.c.b16 %v5118, %v5113
      %v6109 = vpack.c.b16 %v5119, %v5114
      %v6110 = vpack.c.b16 %v5125, %v5120
      %v6111 = vpack.c.b16 %v5126, %v5121
      %v6112 = vpack.c.b16 %v5127, %v5122
      %v6113 = vpack.c.b16 %v5128, %v5123
      %v6114 = vpack.c.b16 %v5129, %v5124
      %v6115 = vpack.c.b16 %v5135, %v5130
      %v6116 = vpack.c.b16 %v5136, %v5131
      %v6117 = vpack.c.b16 %v5137, %v5132
      %v6118 = vpack.c.b16 %v5138, %v5133
      %v6119 = vpack.c.b16 %v5139, %v5134
      %v6120 = vpack.c.b16 %v5145, %v5140
      %v6121 = vpack.c.b16 %v5146, %v5141
      %v6122 = vpack.c.b16 %v5147, %v5142
      %v6123 = vpack.c.b16 %v5148, %v5143
      %v6124 = vpack.c.b16 %v5149, %v5144
      %v6125 = vpack.c.b16 %v5155, %v5150
      %v6126 = vpack.c.b16 %v5156, %v5151
      %v6127 = vpack.c.b16 %v5157, %v5152
      %v6128 = vpack.c.b16 %v5158, %v5153
      %v6129 = vpack.c.b16 %v5159, %v5154
      %v6130 = vpack.c.b16 %v5165, %v5160
      %v6131 = vpack.c.b16 %v5166, %v5161
      %v6132 = vpack.c.b16 %v5167, %v5162
      %v6133 = vpack.c.b16 %v5168, %v5163
      %v6134 = vpack.c.b16 %v5169, %v5164
      %v6135 = vpack.c.b16 %v5175, %v5170
      %v6136 = vpack.c.b16 %v5176, %v5171
      %v6137 = vpack.c.b16 %v5177, %v5172
      %v6138 = vpack.c.b16 %v5178, %v5173
      %v6139 = vpack.c.b16 %v5179, %v5174
      %v6140 = vpack.c.b16 %v5185, %v5180
      %v6141 = vpack.c.b16 %v5186, %v5181
      %v6142 = vpack.c.b16 %v5187, %v5182
      %v6143 = vpack.c.b16 %v5188, %v5183
      %v6144 = vpack.c.b16 %v5189, %v5184
      %v6145 = vpack.c.b16 %v5195, %v5190
      %v6146 = vpack.c.b16 %v5196, %v5191
      %v6147 = vpack.c.b16 %v5197, %v5192
      %v6148 = vpack.c.b16 %v5198, %v5193
      %v6149 = vpack.c.b16 %v5199, %v5194
      %v6150 = vpack.c.b16 %v5205, %v5200
      %v6151 = vpack.c.b16 %v5206, %v5201
      %v6152 = vpack.c.b16 %v5207, %v5202
      %v6153 = vpack.c.b16 %v5208, %v5203
      %v6154 = vpack.c.b16 %v5209, %v5204
      %v6155 = vpack.c.b16 %v5215, %v5210
      %v6156 = vpack.c.b16 %v5216, %v5211
      %v6157 = vpack.c.b16 %v5217, %v5212
      %v6158 = vpack.c.b16 %v5218, %v5213
      %v6159 = vpack.c.b16 %v5219, %v5214
      %v6160 = vpack.c.b16 %v5225, %v5220
      %v6161 = vpack.c.b16 %v5226, %v5221
      %v6162 = vpack.c.b16 %v5227, %v5222
      %v6163 = vpack.c.b16 %v5228, %v5223
      %v6164 = vpack.c.b16 %v5229, %v5224
      %v6165 = vpack.c.b16 %v5235, %v5230
      %v6166 = vpack.c.b16 %v5236, %v5231
      %v6167 = vpack.c.b16 %v5237, %v5232
      %v6168 = vpack.c.b16 %v5238, %v5233
      %v6169 = vpack.c.b16 %v5239, %v5234
      %v6170 = vpack.c.b16 %v5245, %v5240
      %v6171 = vpack.c.b16 %v5246, %v5241
      %v6172 = vpack.c.b16 %v5247, %v5242
      %v6173 = vpack.c.b16 %v5248, %v5243
      %v6174 = vpack.c.b16 %v5249, %v5244
      %v6175 = vpack.c.b16 %v5255, %v5250
      %v6176 = vpack.c.b16 %v5256, %v5251
      %v6177 = vpack.c.b16 %v5257, %v5252
      %v6178 = vpack.c.b16 %v5258, %v5253
      %v6179 = vpack.c.b16 %v5259, %v5254
      %v6180 = vpack.c.b16 %v5265, %v5260
      %v6181 = vpack.c.b16 %v5266, %v5261
      %v6182 = vpack.c.b16 %v5267, %v5262
      %v6183 = vpack.c.b16 %v5268, %v5263
      %v6184 = vpack.c.b16 %v5269, %v5264
      %v6185 = vpack.c.b16 %v5275, %v5270
      %v6186 = vpack.c.b16 %v5276, %v5271
      %v6187 = vpack.c.b16 %v5277, %v5272
      %v6188 = vpack.c.b16 %v5278, %v5273
      %v6189 = vpack.c.b16 %v5279, %v5274
      %v6190 = vpack.c.b16 %v5285, %v5280
      %v6191 = vpack.c.b16 %v5286, %v5281
      %v6192 = vpack.c.b16 %v5287, %v5282
      %v6193 = vpack.c.b16 %v5288, %v5283
      %v6194 = vpack.c.b16 %v5289, %v5284
      %v6195 = vpack.c.b16 %v5295, %v5290
      %v6196 = vpack.c.b16 %v5296, %v5291
      %v6197 = vpack.c.b16 %v5297, %v5292
      %v6198 = vpack.c.b16 %v5298, %v5293
      %v6199 = vpack.c.b16 %v5299, %v5294
      %v6200 = vpack.c.b16 %v5305, %v5300
      %v6201 = vpack.c.b16 %v5306, %v5301
      %v6202 = vpack.c.b16 %v5307, %v5302
      %v6203 = vpack.c.b16 %v5308, %v5303
      %v6204 = vpack.c.b16 %v5309, %v5304
      %v6205 = vpack.c.b16 %v5315, %v5310
      %v6206 = vpack.c.b16 %v5316, %v5311
      %v6207 = vpack.c.b16 %v5317, %v5312
      %v6208 = vpack.c.b16 %v5318, %v5313
      %v6209 = vpack.c.b16 %v5319, %v5314
      %v6210 = vpack.c.b16 %v5325, %v5320
      %v6211 = vpack.c.b16 %v5326, %v5321
      %v6212 = vpack.c.b16 %v5327, %v5322
      %v6213 = vpack.c.b16 %v5328, %v5323
      %v6214 = vpack.c.b16 %v5329, %v5324
      %v6215 = vpack.c.b16 %v5335, %v5330
      %v6216 = vpack.c.b16 %v5336, %v5331
      %v6217 = vpack.c.b16 %v5337, %v5332
      %v6218 = vpack.c.b16 %v5338, %v5333
      %v6219 = vpack.c.b16 %v5339, %v5334
      %v6220 = vpack.c.b16 %v5345, %v5340
      %v6221 = vpack.c.b16 %v5346, %v5341
      %v6222 = vpack.c.b16 %v5347, %v5342
      %v6223 = vpack.c.b16 %v5348, %v5343
      %v6224 = vpack.c.b16 %v5349, %v5344
      %v6225 = vpack.c.b16 %v5355, %v5350
      %v6226 = vpack.c.b16 %v5356, %v5351
      %v6227 = vpack.c.b16 %v5357, %v5352
      %v6228 = vpack.c.b16 %v5358, %v5353
      %v6229 = vpack.c.b16 %v5359, %v5354
      %v6230 = vpack.c.b16 %v5365, %v5360
      %v6231 = vpack.c.b16 %v5366, %v5361
      %v6232 = vpack.c.b16 %v5367, %v5362
      %v6233 = vpack.c.b16 %v5368, %v5363
      %v6234 = vpack.c.b16 %v5369, %v5364
      %v6235 = vpack.c.b16 %v5375, %v5370
      %v6236 = vpack.c.b16 %v5376, %v5371
      %v6237 = vpack.c.b16 %v5377, %v5372
      %v6238 = vpack.c.b16 %v5378, %v5373
      %v6239 = vpack.c.b16 %v5379, %v5374
      %v6240 = vpack.c.b16 %v5385, %v5380
      %v6241 = vpack.c.b16 %v5386, %v5381
      %v6242 = vpack.c.b16 %v5387, %v5382
      %v6243 = vpack.c.b16 %v5388, %v5383
      %v6244 = vpack.c.b16 %v5389, %v5384
      %v6245 = vpack.c.b16 %v5395, %v5390
      %v6246 = vpack.c.b16 %v5396, %v5391
      %v6247 = vpack.c.b16 %v5397, %v5392
      %v6248 = vpack.c.b16 %v5398, %v5393
      %v6249 = vpack.c.b16 %v5399, %v5394
      %v6250 = vpack.c.b16 %v5405, %v5400
      %v6251 = vpack.c.b16 %v5406, %v5401
      %v6252 = vpack.c.b16 %v5407, %v5402
      %v6253 = vpack.c.b16 %v5408, %v5403
      %v6254 = vpack.c.b16 %v5409, %v5404
      %v6255 = vpack.c.b16 %v5415, %v5410
      %v6256 = vpack.c.b16 %v5416, %v5411
      %v6257 = vpack.c.b16 %v5417, %v5412
      %v6258 = vpack.c.b16 %v5418, %v5413
      %v6259 = vpack.c.b16 %v5419, %v5414
      %v6260 = vpack.c.b16 %v5425, %v5420
      %v6261 = vpack.c.b16 %v5426, %v5421
      %v6262 = vpack.c.b16 %v5427, %v5422
      %v6263 = vpack.c.b16 %v5428, %v5423
      %v6264 = vpack.c.b16 %v5429, %v5424
      %v6265 = vpack.c.b16 %v5435, %v5430
      %v6266 = vpack.c.b16 %v5436, %v5431
      %v6267 = vpack.c.b16 %v5437, %v5432
      %v6268 = vpack.c.b16 %v5438, %v5433
      %v6269 = vpack.c.b16 %v5439, %v5434
      %v6270 = vpack.c.b16 %v5445, %v5440
      %v6271 = vpack.c.b16 %v5446, %v5441
      %v6272 = vpack.c.b16 %v5447, %v5442
      %v6273 = vpack.c.b16 %v5448, %v5443
      %v6274 = vpack.c.b16 %v5449, %v5444
      %v6275 = vpack.c.b16 %v5455, %v5450
      %v6276 = vpack.c.b16 %v5456, %v5451
      %v6277 = vpack.c.b16 %v5457, %v5452
      %v6278 = vpack.c.b16 %v5458, %v5453
      %v6279 = vpack.c.b16 %v5459, %v5454
      %v6280 = vpack.c.b16 %v5465, %v5460
      %v6281 = vpack.c.b16 %v5466, %v5461
      %v6282 = vpack.c.b16 %v5467, %v5462
      %v6283 = vpack.c.b16 %v5468, %v5463
      %v6284 = vpack.c.b16 %v5469, %v5464
      %v6285 = vpack.c.b16 %v5475, %v5470
      %v6286 = vpack.c.b16 %v5476, %v5471
      %v6287 = vpack.c.b16 %v5477, %v5472
      %v6288 = vpack.c.b16 %v5478, %v5473
      %v6289 = vpack.c.b16 %v5479, %v5474
      %v6290 = vpack.c.b16 %v5485, %v5480
      %v6291 = vpack.c.b16 %v5486, %v5481
      %v6292 = vpack.c.b16 %v5487, %v5482
      %v6293 = vpack.c.b16 %v5488, %v5483
      %v6294 = vpack.c.b16 %v5489, %v5484
      %v6295 = vpack.c.b16 %v5495, %v5490
      %v6296 = vpack.c.b16 %v5496, %v5491
      %v6297 = vpack.c.b16 %v5497, %v5492
      %v6298 = vpack.c.b16 %v5498, %v5493
      %v6299 = vpack.c.b16 %v5499, %v5494
      %v6300 = vpack.c.b16 %v5505, %v5500
      %v6301 = vpack.c.b16 %v5506, %v5501
      %v6302 = vpack.c.b16 %v5507, %v5502
      %v6303 = vpack.c.b16 %v5508, %v5503
      %v6304 = vpack.c.b16 %v5509, %v5504
      %v6305 = vpack.c.b16 %v5515, %v5510
      %v6306 = vpack.c.b16 %v5516, %v5511
      %v6307 = vpack.c.b16 %v5517, %v5512
      %v6308 = vpack.c.b16 %v5518, %v5513
      %v6309 = vpack.c.b16 %v5519, %v5514
      %v6310 = vpack.c.b16 %v5525, %v5520
      %v6311 = vpack.c.b16 %v5526, %v5521
      %v6312 = vpack.c.b16 %v5527, %v5522
      %v6313 = vpack.c.b16 %v5528, %v5523
      %v6314 = vpack.c.b16 %v5529, %v5524
      %v6315 = vpack.c.b16 %v5535, %v5530
      %v6316 = vpack.c.b16 %v5536, %v5531
      %v6317 = vpack.c.b16 %v5537, %v5532
      %v6318 = vpack.c.b16 %v5538, %v5533
      %v6319 = vpack.c.b16 %v5539, %v5534
      %v6320 = vpack.c.b16 %v5545, %v5540
      %v6321 = vpack.c.b16 %v5546, %v5541
      %v6322 = vpack.c.b16 %v5547, %v5542
      %v6323 = vpack.c.b16 %v5548, %v5543
      %v6324 = vpack.c.b16 %v5549, %v5544
      %v6325 = vpack.c.b16 %v5555, %v5550
      %v6326 = vpack.c.b16 %v5556, %v5551
      %v6327 = vpack.c.b16 %v5557, %v5552
      %v6328 = vpack.c.b16 %v5558, %v5553
      %v6329 = vpack.c.b16 %v5559, %v5554
      %v6330 = vpack.c.b16 %v5565, %v5560
      %v6331 = vpack.c.b16 %v5566, %v5561
      %v6332 = vpack.c.b16 %v5567, %v5562
      %v6333 = vpack.c.b16 %v5568, %v5563
      %v6334 = vpack.c.b16 %v5569, %v5564
      %v6335 = vpack.c.b16 %v5575, %v5570
      %v6336 = vpack.c.b16 %v5576, %v5571
      %v6337 = vpack.c.b16 %v5577, %v5572
      %v6338 = vpack.c.b16 %v5578, %v5573
      %v6339 = vpack.c.b16 %v5579, %v5574
      %v6340 = vpack.c.b16 %v5585, %v5580
      %v6341 = vpack.c.b16 %v5586, %v5581
      %v6342 = vpack.c.b16 %v5587, %v5582
      %v6343 = vpack.c.b16 %v5588, %v5583
      %v6344 = vpack.c.b16 %v5589, %v5584
      %v6345 = vpack.c.b16 %v5595, %v5590
      %v6346 = vpack.c.b16 %v5596, %v5591
      %v6347 = vpack.c.b16 %v5597, %v5592
      %v6348 = vpack.c.b16 %v5598, %v5593
      %v6349 = vpack.c.b16 %v5599, %v5594
      %v6350 = vpack.c.b16 %v5605, %v5600
      %v6351 = vpack.c.b16 %v5606, %v5601
      %v6352 = vpack.c.b16 %v5607, %v5602
      %v6353 = vpack.c.b16 %v5608, %v5603
      %v6354 = vpack.c.b16 %v5609, %v5604
      %v6355 = vpack.c.b16 %v5615, %v5610
      %v6356 = vpack.c.b16 %v5616, %v5611
      %v6357 = vpack.c.b16 %v5617, %v5612
      %v6358 = vpack.c.b16 %v5618, %v5613
      %v6359 = vpack.c.b16 %v5619, %v5614
      %v6360 = vpack.c.b16 %v5625, %v5620
      %v6361 = vpack.c.b16 %v5626, %v5621
      %v6362 = vpack.c.b16 %v5627, %v5622
      %v6363 = vpack.c.b16 %v5628, %v5623
      %v6364 = vpack.c.b16 %v5629, %v5624
      %v6365 = vpack.c.b16 %v5635, %v5630
      %v6366 = vpack.c.b16 %v5636, %v5631
      %v6367 = vpack.c.b16 %v5637, %v5632
      %v6368 = vpack.c.b16 %v5638, %v5633
      %v6369 = vpack.c.b16 %v5639, %v5634
      %v6370 = vpack.c.b16 %v5645, %v5640
      %v6371 = vpack.c.b16 %v5646, %v5641
      %v6372 = vpack.c.b16 %v5647, %v5642
      %v6373 = vpack.c.b16 %v5648, %v5643
      %v6374 = vpack.c.b16 %v5649, %v5644
      %v6375 = vpack.c.b16 %v5655, %v5650
      %v6376 = vpack.c.b16 %v5656, %v5651
      %v6377 = vpack.c.b16 %v5657, %v5652
      %v6378 = vpack.c.b16 %v5658, %v5653
      %v6379 = vpack.c.b16 %v5659, %v5654
      %v6380 = vpack.c.b16 %v5665, %v5660
      %v6381 = vpack.c.b16 %v5666, %v5661
      %v6382 = vpack.c.b16 %v5667, %v5662
      %v6383 = vpack.c.b16 %v5668, %v5663
      %v6384 = vpack.c.b16 %v5669, %v5664
      %v6385 = vpack.c.b16 %v5675, %v5670
      %v6386 = vpack.c.b16 %v5676, %v5671
      %v6387 = vpack.c.b16 %v5677, %v5672
      %v6388 = vpack.c.b16 %v5678, %v5673
      %v6389 = vpack.c.b16 %v5679, %v5674
      %v6390 = vpack.c.b16 %v5685, %v5680
      %v6391 = vpack.c.b16 %v5686, %v5681
      %v6392 = vpack.c.b16 %v5687, %v5682
      %v6393 = vpack.c.b16 %v5688, %v5683
      %v6394 = vpack.c.b16 %v5689, %v5684
      %v6395 = vpack.c.b16 %v5695, %v5690
      %v6396 = vpack.c.b16 %v5696, %v5691
      %v6397 = vpack.c.b16 %v5697, %v5692
      %v6398 = vpack.c.b16 %v5698, %v5693
      %v6399 = vpack.c.b16 %v5699, %v5694
      %v6400 = vpack.c.b16 %v5705, %v5700
      %v6401 = vpack.c.b16 %v5706, %v5701
      %v6402 = vpack.c.b16 %v5707, %v5702
      %v6403 = vpack.c.b16 %v5708, %v5703
      %v6404 = vpack.c.b16 %v5709, %v5704
      %v6405 = vpack.c.b16 %v5715, %v5710
      %v6406 = vpack.c.b16 %v5716, %v5711
      %v6407 = vpack.c.b16 %v5717, %v5712
      %v6408 = vpack.c.b16 %v5718, %v5713
      %v6409 = vpack.c.b16 %v5719, %v5714
      %v6410 = vpack.c.b16 %v5725, %v5720
      %v6411 = vpack.c.b16 %v5726, %v5721
      %v6412 = vpack.c.b16 %v5727, %v5722
      %v6413 = vpack.c.b16 %v5728, %v5723
      %v6414 = vpack.c.b16 %v5729, %v5724
      %v6415 = vpack.c.b16 %v5735, %v5730
      %v6416 = vpack.c.b16 %v5736, %v5731
      %v6417 = vpack.c.b16 %v5737, %v5732
      %v6418 = vpack.c.b16 %v5738, %v5733
      %v6419 = vpack.c.b16 %v5739, %v5734
      %v6420 = vpack.c.b16 %v5745, %v5740
      %v6421 = vpack.c.b16 %v5746, %v5741
      %v6422 = vpack.c.b16 %v5747, %v5742
      %v6423 = vpack.c.b16 %v5748, %v5743
      %v6424 = vpack.c.b16 %v5749, %v5744
      %v6425 = vpack.c.b16 %v5755, %v5750
      %v6426 = vpack.c.b16 %v5756, %v5751
      %v6427 = vpack.c.b16 %v5757, %v5752
      %v6428 = vpack.c.b16 %v5758, %v5753
      %v6429 = vpack.c.b16 %v5759, %v5754
      %v6430 = vpack.c.b16 %v5765, %v5760
      %v6431 = vpack.c.b16 %v5766, %v5761
      %v6432 = vpack.c.b16 %v5767, %v5762
      %v6433 = vpack.c.b16 %v5768, %v5763
      %v6434 = vpack.c.b16 %v5769, %v5764
      %v6435 = vpack.c.b16 %v5775, %v5770
      %v6436 = vpack.c.b16 %v5776, %v5771
      %v6437 = vpack.c.b16 %v5777, %v5772
      %v6438 = vpack.c.b16 %v5778, %v5773
      %v6439 = vpack.c.b16 %v5779, %v5774
      %v6440 = vpack.c.b16 %v5785, %v5780
      %v6441 = vpack.c.b16 %v5786, %v5781
      %v6442 = vpack.c.b16 %v5787, %v5782
      %v6443 = vpack.c.b16 %v5788, %v5783
      %v6444 = vpack.c.b16 %v5789, %v5784
      %v6445 = vpack.c.b16 %v5795, %v5790
      %v6446 = vpack.c.b16 %v5796, %v5791
      %v6447 = vpack.c.b16 %v5797, %v5792
      %v6448 = vpack.c.b16 %v5798, %v5793
      %v6449 = vpack.c.b16 %v5799, %v5794
      %v6450 = vpack.c.b16 %v5805, %v5800
      %v6451 = vpack.c.b16 %v5806, %v5801
      %v6452 = vpack.c.b16 %v5807, %v5802
      %v6453 = vpack.c.b16 %v5808, %v5803
      %v6454 = vpack.c.b16 %v5809, %v5804
      %v6455 = vpack.c.b16 %v5815, %v5810
      %v6456 = vpack.c.b16 %v5816, %v5811
      %v6457 = vpack.c.b16 %v5817, %v5812
      %v6458 = vpack.c.b16 %v5818, %v5813
      %v6459 = vpack.c.b16 %v5819, %v5814
      %7100 = vmatprep.subr.bf16.mxu0 %v5821
      %7101 = vmatpush1.bf16.msra.mxu0 %v5820
      %7102 = vmatprep.subr.bf16.mxu0 %v5826
      %7103 = vmatpush1.bf16.msra.mxu0 %v5825
      %7104 = vmatprep.subr.bf16.mxu0 %v5831
      %7105 = vmatpush1.bf16.msra.mxu0 %v5830
      %7106 = vmatprep.subr.bf16.mxu0 %v5836
      %7107 = vmatpush1.bf16.msra.mxu0 %v5835
      %7108 = vmatprep.subr.bf16.mxu0 %v5841
      %7109 = vmatpush1.bf16.msra.mxu0 %v5840
      %7110 = vmatprep.subr.bf16.mxu0 %v5846
      %7111 = vmatpush1.bf16.msra.mxu0 %v5845
      %7112 = vmatprep.subr.bf16.mxu0 %v5851
      %7113 = vmatpush1.bf16.msra.mxu0 %v5850
      %7114 = vmatprep.subr.bf16.mxu0 %v5856
      %7115 = vmatpush1.bf16.msra.mxu0 %v5855
      %7116 = vmatprep.subr.bf16.mxu0 %v5861
      %7117 = vmatpush1.bf16.msra.mxu0 %v5860
      %7118 = vmatprep.subr.bf16.mxu0 %v5866
      %7119 = vmatpush1.bf16.msra.mxu0 %v5865
      %7120 = vmatprep.subr.bf16.mxu0 %v5871
      %7121 = vmatpush1.bf16.msra.mxu0 %v5870
      %7122 = vmatprep.subr.bf16.mxu0 %v5876
      %7123 = vmatpush1.bf16.msra.mxu0 %v5875
      %7124 = vmatprep.subr.bf16.mxu0 %v5881
      %7125 = vmatpush1.bf16.msra.mxu0 %v5880
      %7126 = vmatprep.subr.bf16.mxu0 %v5886
      %7127 = vmatpush1.bf16.msra.mxu0 %v5885
      %7128 = vmatprep.subr.bf16.mxu0 %v5891
      %7129 = vmatpush1.bf16.msra.mxu0 %v5890
      %7130 = vmatprep.subr.bf16.mxu0 %v5896
      %7131 = vmatpush1.bf16.msra.mxu0 %v5895
      %7132 = vmatprep.mubr.bf16.mxu0 %v2962
      %7133 = vmatmul.mubr.bf16.gmra.mrb[0].mxu0 %v2961
      %v7134 = vpop.f32.mrb[0].mxu0
      %v7135 = vadd.f32 %v3750, %v7134
      %v7136 = vpop.f32.mrb[0].mxu0
      %v7137 = vadd.f32 %v3754, %v7136
      %v7138 = vpop.f32.mrb[0].mxu0
      %v7139 = vpop.f32.mrb[0].mxu0
      %7140 = vdwg.mxu0
      %7141 = vmatprep.subr.bf16.mxu0 %v5901
      %7142 = vmatpush1.bf16.msra.mxu0 %v5900
      %7143 = vmatprep.subr.bf16.mxu0 %v5906
      %7144 = vmatpush1.bf16.msra.mxu0 %v5905
      %7145 = vmatprep.subr.bf16.mxu0 %v5911
      %7146 = vmatpush1.bf16.msra.mxu0 %v5910
      %7147 = vmatprep.subr.bf16.mxu0 %v5916
      %7148 = vmatpush1.bf16.msra.mxu0 %v5915
      %7149 = vmatprep.subr.bf16.mxu0 %v5921
      %7150 = vmatpush1.bf16.msra.mxu0 %v5920
      %7151 = vmatprep.subr.bf16.mxu0 %v5926
      %7152 = vmatpush1.bf16.msra.mxu0 %v5925
      %7153 = vmatprep.subr.bf16.mxu0 %v5931
      %7154 = vmatpush1.bf16.msra.mxu0 %v5930
      %7155 = vmatprep.subr.bf16.mxu0 %v5936
      %7156 = vmatpush1.bf16.msra.mxu0 %v5935
      %7157 = vmatprep.subr.bf16.mxu0 %v5941
      %7158 = vmatpush1.bf16.msra.mxu0 %v5940
      %7159 = vmatprep.subr.bf16.mxu0 %v5946
      %7160 = vmatpush1.bf16.msra.mxu0 %v5945
      %7161 = vmatprep.subr.bf16.mxu0 %v5951
      %7162 = vmatpush1.bf16.msra.mxu0 %v5950
      %7163 = vmatprep.subr.bf16.mxu0 %v5956
      %7164 = vmatpush1.bf16.msra.mxu0 %v5955
      %7165 = vmatprep.subr.bf16.mxu0 %v5961
      %7166 = vmatpush1.bf16.msra.mxu0 %v5960
      %7167 = vmatprep.subr.bf16.mxu0 %v5966
      %7168 = vmatpush1.bf16.msra.mxu0 %v5965
      %7169 = vmatprep.subr.bf16.mxu0 %v5971
      %7170 = vmatpush1.bf16.msra.mxu0 %v5970
      %7171 = vmatprep.subr.bf16.mxu0 %v5976
      %7172 = vmatpush1.bf16.msra.mxu0 %v5975
      %7173 = vmatprep.mubr.bf16.mxu0 %v2964
      %7174 = vmatmul.mubr.bf16.gmra.mrb[0].mxu0 %v2963
      %v7175 = vpop.f32.mrb[0].mxu0
      %v7176 = vadd.f32 %v7135, %v7175
      %v7177 = vpop.f32.mrb[0].mxu0
      %v7178 = vadd.f32 %v7137, %v7177
      %v7179 = vpop.f32.mrb[0].mxu0
      %v7180 = vpop.f32.mrb[0].mxu0
      %7181 = vdwg.mxu0
      %7182 = vmatprep.subr.bf16.mxu0 %v5981
      %7183 = vmatpush1.bf16.msra.mxu0 %v5980
      %7184 = vmatprep.subr.bf16.mxu0 %v5986
      %7185 = vmatpush1.bf16.msra.mxu0 %v5985
      %7186 = vmatprep.subr.bf16.mxu0 %v5991
      %7187 = vmatpush1.bf16.msra.mxu0 %v5990
      %7188 = vmatprep.subr.bf16.mxu0 %v5996
      %7189 = vmatpush1.bf16.msra.mxu0 %v5995
      %7190 = vmatprep.subr.bf16.mxu0 %v6001
      %7191 = vmatpush1.bf16.msra.mxu0 %v6000
      %7192 = vmatprep.subr.bf16.mxu0 %v6006
      %7193 = vmatpush1.bf16.msra.mxu0 %v6005
      %7194 = vmatprep.subr.bf16.mxu0 %v6011
      %7195 = vmatpush1.bf16.msra.mxu0 %v6010
      %7196 = vmatprep.subr.bf16.mxu0 %v6016
      %7197 = vmatpush1.bf16.msra.mxu0 %v6015
      %7198 = vmatprep.subr.bf16.mxu0 %v6021
      %7199 = vmatpush1.bf16.msra.mxu0 %v6020
      %7200 = vmatprep.subr.bf16.mxu0 %v6026
      %7201 = vmatpush1.bf16.msra.mxu0 %v6025
      %7202 = vmatprep.subr.bf16.mxu0 %v6031
      %7203 = vmatpush1.bf16.msra.mxu0 %v6030
      %7204 = vmatprep.subr.bf16.mxu0 %v6036
      %7205 = vmatpush1.bf16.msra.mxu0 %v6035
      %7206 = vmatprep.subr.bf16.mxu0 %v6041
      %7207 = vmatpush1.bf16.msra.mxu0 %v6040
      %7208 = vmatprep.subr.bf16.mxu0 %v6046
      %7209 = vmatpush1.bf16.msra.mxu0 %v6045
      %7210 = vmatprep.subr.bf16.mxu0 %v6051
      %7211 = vmatpush1.bf16.msra.mxu0 %v6050
      %7212 = vmatprep.subr.bf16.mxu0 %v6056
      %7213 = vmatpush1.bf16.msra.mxu0 %v6055
      %7214 = vmatprep.mubr.bf16.mxu0 %v2966
      %7215 = vmatmul.mubr.bf16.gmra.mrb[0].mxu0 %v2965
      %v7216 = vpop.f32.mrb[0].mxu0
      %v7217 = vadd.f32 %v7176, %v7216
      %v7218 = vpop.f32.mrb[0].mxu0
      %v7219 = vadd.f32 %v7178, %v7218
      %v7220 = vpop.f32.mrb[0].mxu0
      %v7221 = vpop.f32.mrb[0].mxu0
      %7222 = vdwg.mxu0
      %7223 = vmatprep.subr.bf16.mxu0 %v6061
      %7224 = vmatpush1.bf16.msra.mxu0 %v6060
      %7225 = vmatprep.subr.bf16.mxu0 %v6066
      %7226 = vmatpush1.bf16.msra.mxu0 %v6065
      %7227 = vmatprep.subr.bf16.mxu0 %v6071
      %7228 = vmatpush1.bf16.msra.mxu0 %v6070
      %7229 = vmatprep.subr.bf16.mxu0 %v6076
      %7230 = vmatpush1.bf16.msra.mxu0 %v6075
      %7231 = vmatprep.subr.bf16.mxu0 %v6081
      %7232 = vmatpush1.bf16.msra.mxu0 %v6080
      %7233 = vmatprep.subr.bf16.mxu0 %v6086
      %7234 = vmatpush1.bf16.msra.mxu0 %v6085
      %7235 = vmatprep.subr.bf16.mxu0 %v6091
      %7236 = vmatpush1.bf16.msra.mxu0 %v6090
      %7237 = vmatprep.subr.bf16.mxu0 %v6096
      %7238 = vmatpush1.bf16.msra.mxu0 %v6095
      %7239 = vmatprep.subr.bf16.mxu0 %v6101
      %7240 = vmatpush1.bf16.msra.mxu0 %v6100
      %7241 = vmatprep.subr.bf16.mxu0 %v6106
      %7242 = vmatpush1.bf16.msra.mxu0 %v6105
      %7243 = vmatprep.subr.bf16.mxu0 %v6111
      %7244 = vmatpush1.bf16.msra.mxu0 %v6110
      %7245 = vmatprep.subr.bf16.mxu0 %v6116
      %7246 = vmatpush1.bf16.msra.mxu0 %v6115
      %7247 = vmatprep.subr.bf16.mxu0 %v6121
      %7248 = vmatpush1.bf16.msra.mxu0 %v6120
      %7249 = vmatprep.subr.bf16.mxu0 %v6126
      %7250 = vmatpush1.bf16.msra.mxu0 %v6125
      %7251 = vmatprep.subr.bf16.mxu0 %v6131
      %7252 = vmatpush1.bf16.msra.mxu0 %v6130
      %7253 = vmatprep.subr.bf16.mxu0 %v6136
      %7254 = vmatpush1.bf16.msra.mxu0 %v6135
      %7255 = vmatprep.mubr.bf16.mxu0 %v2968
      %7256 = vmatmul.mubr.bf16.gmra.mrb[0].mxu0 %v2967
      %v7257 = vpop.f32.mrb[0].mxu0
      %v7258 = vadd.f32 %v7217, %v7257
      %v7259 = vpop.f32.mrb[0].mxu0
      %v7260 = vadd.f32 %v7219, %v7259
      %v7261 = vpop.f32.mrb[0].mxu0
      %v7262 = vpop.f32.mrb[0].mxu0
      %7263 = vdwg.mxu0
      %7264 = vmatprep.subr.bf16.mxu0 %v6141
      %7265 = vmatpush1.bf16.msra.mxu0 %v6140
      %7266 = vmatprep.subr.bf16.mxu0 %v6146
      %7267 = vmatpush1.bf16.msra.mxu0 %v6145
      %7268 = vmatprep.subr.bf16.mxu0 %v6151
      %7269 = vmatpush1.bf16.msra.mxu0 %v6150
      %7270 = vmatprep.subr.bf16.mxu0 %v6156
      %7271 = vmatpush1.bf16.msra.mxu0 %v6155
      %7272 = vmatprep.subr.bf16.mxu0 %v6161
      %7273 = vmatpush1.bf16.msra.mxu0 %v6160
      %7274 = vmatprep.subr.bf16.mxu0 %v6166
      %7275 = vmatpush1.bf16.msra.mxu0 %v6165
      %7276 = vmatprep.subr.bf16.mxu0 %v6171
      %7277 = vmatpush1.bf16.msra.mxu0 %v6170
      %7278 = vmatprep.subr.bf16.mxu0 %v6176
      %7279 = vmatpush1.bf16.msra.mxu0 %v6175
      %7280 = vmatprep.subr.bf16.mxu0 %v6181
      %7281 = vmatpush1.bf16.msra.mxu0 %v6180
      %7282 = vmatprep.subr.bf16.mxu0 %v6186
      %7283 = vmatpush1.bf16.msra.mxu0 %v6185
      %7284 = vmatprep.subr.bf16.mxu0 %v6191
      %7285 = vmatpush1.bf16.msra.mxu0 %v6190
      %7286 = vmatprep.subr.bf16.mxu0 %v6196
      %7287 = vmatpush1.bf16.msra.mxu0 %v6195
      %7288 = vmatprep.subr.bf16.mxu0 %v6201
      %7289 = vmatpush1.bf16.msra.mxu0 %v6200
      %7290 = vmatprep.subr.bf16.mxu0 %v6206
      %7291 = vmatpush1.bf16.msra.mxu0 %v6205
      %7292 = vmatprep.subr.bf16.mxu0 %v6211
      %7293 = vmatpush1.bf16.msra.mxu0 %v6210
      %7294 = vmatprep.subr.bf16.mxu0 %v6216
      %7295 = vmatpush1.bf16.msra.mxu0 %v6215
      %7296 = vmatprep.mubr.bf16.mxu0 %v2970
      %7297 = vmatmul.mubr.bf16.gmra.mrb[0].mxu0 %v2969
      %v7298 = vpop.f32.mrb[0].mxu0
      %v7299 = vadd.f32 %v7258, %v7298
      %v7300 = vpop.f32.mrb[0].mxu0
      %v7301 = vadd.f32 %v7260, %v7300
      %v7302 = vpop.f32.mrb[0].mxu0
      %v7303 = vpop.f32.mrb[0].mxu0
      %7304 = vdwg.mxu0
      %7305 = vmatprep.subr.bf16.mxu0 %v6221
      %7306 = vmatpush1.bf16.msra.mxu0 %v6220
      %7307 = vmatprep.subr.bf16.mxu0 %v6226
      %7308 = vmatpush1.bf16.msra.mxu0 %v6225
      %7309 = vmatprep.subr.bf16.mxu0 %v6231
      %7310 = vmatpush1.bf16.msra.mxu0 %v6230
      %7311 = vmatprep.subr.bf16.mxu0 %v6236
      %7312 = vmatpush1.bf16.msra.mxu0 %v6235
      %7313 = vmatprep.subr.bf16.mxu0 %v6241
      %7314 = vmatpush1.bf16.msra.mxu0 %v6240
      %7315 = vmatprep.subr.bf16.mxu0 %v6246
      %7316 = vmatpush1.bf16.msra.mxu0 %v6245
      %7317 = vmatprep.subr.bf16.mxu0 %v6251
      %7318 = vmatpush1.bf16.msra.mxu0 %v6250
      %7319 = vmatprep.subr.bf16.mxu0 %v6256
      %7320 = vmatpush1.bf16.msra.mxu0 %v6255
      %7321 = vmatprep.subr.bf16.mxu0 %v6261
      %7322 = vmatpush1.bf16.msra.mxu0 %v6260
      %7323 = vmatprep.subr.bf16.mxu0 %v6266
      %7324 = vmatpush1.bf16.msra.mxu0 %v6265
      %7325 = vmatprep.subr.bf16.mxu0 %v6271
      %7326 = vmatpush1.bf16.msra.mxu0 %v6270
      %7327 = vmatprep.subr.bf16.mxu0 %v6276
      %7328 = vmatpush1.bf16.msra.mxu0 %v6275
      %7329 = vmatprep.subr.bf16.mxu0 %v6281
      %7330 = vmatpush1.bf16.msra.mxu0 %v6280
      %7331 = vmatprep.subr.bf16.mxu0 %v6286
      %7332 = vmatpush1.bf16.msra.mxu0 %v6285
      %7333 = vmatprep.subr.bf16.mxu0 %v6291
      %7334 = vmatpush1.bf16.msra.mxu0 %v6290
      %7335 = vmatprep.subr.bf16.mxu0 %v6296
      %7336 = vmatpush1.bf16.msra.mxu0 %v6295
      %7337 = vmatprep.mubr.bf16.mxu0 %v2972
      %7338 = vmatmul.mubr.bf16.gmra.mrb[0].mxu0 %v2971
      %v7339 = vpop.f32.mrb[0].mxu0
      %v7340 = vadd.f32 %v7299, %v7339
      %v7341 = vpop.f32.mrb[0].mxu0
      %v7342 = vadd.f32 %v7301, %v7341
      %v7343 = vpop.f32.mrb[0].mxu0
      %v7344 = vpop.f32.mrb[0].mxu0
      %7345 = vdwg.mxu0
      %7346 = vmatprep.subr.bf16.mxu0 %v6301
      %7347 = vmatpush1.bf16.msra.mxu0 %v6300
      %7348 = vmatprep.subr.bf16.mxu0 %v6306
      %7349 = vmatpush1.bf16.msra.mxu0 %v6305
      %7350 = vmatprep.subr.bf16.mxu0 %v6311
      %7351 = vmatpush1.bf16.msra.mxu0 %v6310
      %7352 = vmatprep.subr.bf16.mxu0 %v6316
      %7353 = vmatpush1.bf16.msra.mxu0 %v6315
      %7354 = vmatprep.subr.bf16.mxu0 %v6321
      %7355 = vmatpush1.bf16.msra.mxu0 %v6320
      %7356 = vmatprep.subr.bf16.mxu0 %v6326
      %7357 = vmatpush1.bf16.msra.mxu0 %v6325
      %7358 = vmatprep.subr.bf16.mxu0 %v6331
      %7359 = vmatpush1.bf16.msra.mxu0 %v6330
      %7360 = vmatprep.subr.bf16.mxu0 %v6336
      %7361 = vmatpush1.bf16.msra.mxu0 %v6335
      %7362 = vmatprep.subr.bf16.mxu0 %v6341
      %7363 = vmatpush1.bf16.msra.mxu0 %v6340
      %7364 = vmatprep.subr.bf16.mxu0 %v6346
      %7365 = vmatpush1.bf16.msra.mxu0 %v6345
      %7366 = vmatprep.subr.bf16.mxu0 %v6351
      %7367 = vmatpush1.bf16.msra.mxu0 %v6350
      %7368 = vmatprep.subr.bf16.mxu0 %v6356
      %7369 = vmatpush1.bf16.msra.mxu0 %v6355
      %7370 = vmatprep.subr.bf16.mxu0 %v6361
      %7371 = vmatpush1.bf16.msra.mxu0 %v6360
      %7372 = vmatprep.subr.bf16.mxu0 %v6366
      %7373 = vmatpush1.bf16.msra.mxu0 %v6365
      %7374 = vmatprep.subr.bf16.mxu0 %v6371
      %7375 = vmatpush1.bf16.msra.mxu0 %v6370
      %7376 = vmatprep.subr.bf16.mxu0 %v6376
      %7377 = vmatpush1.bf16.msra.mxu0 %v6375
      %7378 = vmatprep.mubr.bf16.mxu0 %v2974
      %7379 = vmatmul.mubr.bf16.gmra.mrb[0].mxu0 %v2973
      %v7380 = vpop.f32.mrb[0].mxu0
      %v7381 = vadd.f32 %v7340, %v7380
      %v7382 = vpop.f32.mrb[0].mxu0
      %v7383 = vadd.f32 %v7342, %v7382
      %v7384 = vpop.f32.mrb[0].mxu0
      %v7385 = vpop.f32.mrb[0].mxu0
      %7386 = vdwg.mxu0
      %7387 = vmatprep.subr.bf16.mxu0 %v6381
      %7388 = vmatpush1.bf16.msra.mxu0 %v6380
      %7389 = vmatprep.subr.bf16.mxu0 %v6386
      %7390 = vmatpush1.bf16.msra.mxu0 %v6385
      %7391 = vmatprep.subr.bf16.mxu0 %v6391
      %7392 = vmatpush1.bf16.msra.mxu0 %v6390
      %7393 = vmatprep.subr.bf16.mxu0 %v6396
      %7394 = vmatpush1.bf16.msra.mxu0 %v6395
      %7395 = vmatprep.subr.bf16.mxu0 %v6401
      %7396 = vmatpush1.bf16.msra.mxu0 %v6400
      %7397 = vmatprep.subr.bf16.mxu0 %v6406
      %7398 = vmatpush1.bf16.msra.mxu0 %v6405
      %7399 = vmatprep.subr.bf16.mxu0 %v6411
      %7400 = vmatpush1.bf16.msra.mxu0 %v6410
      %7401 = vmatprep.subr.bf16.mxu0 %v6416
      %7402 = vmatpush1.bf16.msra.mxu0 %v6415
      %7403 = vmatprep.subr.bf16.mxu0 %v6421
      %7404 = vmatpush1.bf16.msra.mxu0 %v6420
      %7405 = vmatprep.subr.bf16.mxu0 %v6426
      %7406 = vmatpush1.bf16.msra.mxu0 %v6425
      %7407 = vmatprep.subr.bf16.mxu0 %v6431
      %7408 = vmatpush1.bf16.msra.mxu0 %v6430
      %7409 = vmatprep.subr.bf16.mxu0 %v6436
      %7410 = vmatpush1.bf16.msra.mxu0 %v6435
      %7411 = vmatprep.subr.bf16.mxu0 %v6441
      %7412 = vmatpush1.bf16.msra.mxu0 %v6440
      %7413 = vmatprep.subr.bf16.mxu0 %v6446
      %7414 = vmatpush1.bf16.msra.mxu0 %v6445
      %7415 = vmatprep.subr.bf16.mxu0 %v6451
      %7416 = vmatpush1.bf16.msra.mxu0 %v6450
      %7417 = vmatprep.subr.bf16.mxu0 %v6456
      %7418 = vmatpush1.bf16.msra.mxu0 %v6455
      %7419 = vmatprep.mubr.bf16.mxu0 %v2976
      %7420 = vmatmul.mubr.bf16.gmra.mrb[0].mxu0 %v2975
      %v7421 = vpop.f32.mrb[0].mxu0
      %v7422 = vadd.f32 %v7381, %v7421
      %v7423 = vpop.f32.mrb[0].mxu0
      %v7424 = vadd.f32 %v7383, %v7423
      %v7425 = vpop.f32.mrb[0].mxu0
      %v7426 = vpop.f32.mrb[0].mxu0
      %7427 = vdwg.mxu0
      %7428 = vmatprep.subr.bf16.mxu0 %v5823
      %7429 = vmatpush1.bf16.msra.mxu0 %v5822
      %7430 = vmatprep.subr.bf16.mxu0 %v5828
      %7431 = vmatpush1.bf16.msra.mxu0 %v5827
      %7432 = vmatprep.subr.bf16.mxu0 %v5833
      %7433 = vmatpush1.bf16.msra.mxu0 %v5832
      %7434 = vmatprep.subr.bf16.mxu0 %v5838
      %7435 = vmatpush1.bf16.msra.mxu0 %v5837
      %7436 = vmatprep.subr.bf16.mxu0 %v5843
      %7437 = vmatpush1.bf16.msra.mxu0 %v5842
      %7438 = vmatprep.subr.bf16.mxu0 %v5848
      %7439 = vmatpush1.bf16.msra.mxu0 %v5847
      %7440 = vmatprep.subr.bf16.mxu0 %v5853
      %7441 = vmatpush1.bf16.msra.mxu0 %v5852
      %7442 = vmatprep.subr.bf16.mxu0 %v5858
      %7443 = vmatpush1.bf16.msra.mxu0 %v5857
      %7444 = vmatprep.subr.bf16.mxu0 %v5863
      %7445 = vmatpush1.bf16.msra.mxu0 %v5862
      %7446 = vmatprep.subr.bf16.mxu0 %v5868
      %7447 = vmatpush1.bf16.msra.mxu0 %v5867
      %7448 = vmatprep.subr.bf16.mxu0 %v5873
      %7449 = vmatpush1.bf16.msra.mxu0 %v5872
      %7450 = vmatprep.subr.bf16.mxu0 %v5878
      %7451 = vmatpush1.bf16.msra.mxu0 %v5877
      %7452 = vmatprep.subr.bf16.mxu0 %v5883
      %7453 = vmatpush1.bf16.msra.mxu0 %v5882
      %7454 = vmatprep.subr.bf16.mxu0 %v5888
      %7455 = vmatpush1.bf16.msra.mxu0 %v5887
      %7456 = vmatprep.subr.bf16.mxu0 %v5893
      %7457 = vmatpush1.bf16.msra.mxu0 %v5892
      %7458 = vmatprep.subr.bf16.mxu0 %v5898
      %7459 = vmatpush1.bf16.msra.mxu0 %v5897
      %7460 = vmatprep.mubr.bf16.mxu0 %v2962
      %7461 = vmatmul.mubr.bf16.gmra.mrb[0].mxu0 %v2961
      %v7462 = vpop.f32.mrb[0].mxu0
      %v7463 = vadd.f32 %v3758, %v7462
      %v7464 = vpop.f32.mrb[0].mxu0
      %v7465 = vadd.f32 %v3762, %v7464
      %v7466 = vpop.f32.mrb[0].mxu0
      %v7467 = vpop.f32.mrb[0].mxu0
      %7468 = vdwg.mxu0
      %7469 = vmatprep.subr.bf16.mxu0 %v5903
      %7470 = vmatpush1.bf16.msra.mxu0 %v5902
      %7471 = vmatprep.subr.bf16.mxu0 %v5908
      %7472 = vmatpush1.bf16.msra.mxu0 %v5907
      %7473 = vmatprep.subr.bf16.mxu0 %v5913
      %7474 = vmatpush1.bf16.msra.mxu0 %v5912
      %7475 = vmatprep.subr.bf16.mxu0 %v5918
      %7476 = vmatpush1.bf16.msra.mxu0 %v5917
      %7477 = vmatprep.subr.bf16.mxu0 %v5923
      %7478 = vmatpush1.bf16.msra.mxu0 %v5922
      %7479 = vmatprep.subr.bf16.mxu0 %v5928
      %7480 = vmatpush1.bf16.msra.mxu0 %v5927
      %7481 = vmatprep.subr.bf16.mxu0 %v5933
      %7482 = vmatpush1.bf16.msra.mxu0 %v5932
      %7483 = vmatprep.subr.bf16.mxu0 %v5938
      %7484 = vmatpush1.bf16.msra.mxu0 %v5937
      %7485 = vmatprep.subr.bf16.mxu0 %v5943
      %7486 = vmatpush1.bf16.msra.mxu0 %v5942
      %7487 = vmatprep.subr.bf16.mxu0 %v5948
      %7488 = vmatpush1.bf16.msra.mxu0 %v5947
      %7489 = vmatprep.subr.bf16.mxu0 %v5953
      %7490 = vmatpush1.bf16.msra.mxu0 %v5952
      %7491 = vmatprep.subr.bf16.mxu0 %v5958
      %7492 = vmatpush1.bf16.msra.mxu0 %v5957
      %7493 = vmatprep.subr.bf16.mxu0 %v5963
      %7494 = vmatpush1.bf16.msra.mxu0 %v5962
      %7495 = vmatprep.subr.bf16.mxu0 %v5968
      %7496 = vmatpush1.bf16.msra.mxu0 %v5967
      %7497 = vmatprep.subr.bf16.mxu0 %v5973
      %7498 = vmatpush1.bf16.msra.mxu0 %v5972
      %7499 = vmatprep.subr.bf16.mxu0 %v5978
      %7500 = vmatpush1.bf16.msra.mxu0 %v5977
      %7501 = vmatprep.mubr.bf16.mxu0 %v2964
      %7502 = vmatmul.mubr.bf16.gmra.mrb[0].mxu0 %v2963
      %v7503 = vpop.f32.mrb[0].mxu0
      %v7504 = vadd.f32 %v7463, %v7503
      %v7505 = vpop.f32.mrb[0].mxu0
      %v7506 = vadd.f32 %v7465, %v7505
      %v7507 = vpop.f32.mrb[0].mxu0
      %v7508 = vpop.f32.mrb[0].mxu0
      %7509 = vdwg.mxu0
      %7510 = vmatprep.subr.bf16.mxu0 %v5983
      %7511 = vmatpush1.bf16.msra.mxu0 %v5982
      %7512 = vmatprep.subr.bf16.mxu0 %v5988
      %7513 = vmatpush1.bf16.msra.mxu0 %v5987
      %7514 = vmatprep.subr.bf16.mxu0 %v5993
      %7515 = vmatpush1.bf16.msra.mxu0 %v5992
      %7516 = vmatprep.subr.bf16.mxu0 %v5998
      %7517 = vmatpush1.bf16.msra.mxu0 %v5997
      %7518 = vmatprep.subr.bf16.mxu0 %v6003
      %7519 = vmatpush1.bf16.msra.mxu0 %v6002
      %7520 = vmatprep.subr.bf16.mxu0 %v6008
      %7521 = vmatpush1.bf16.msra.mxu0 %v6007
      %7522 = vmatprep.subr.bf16.mxu0 %v6013
      %7523 = vmatpush1.bf16.msra.mxu0 %v6012
      %7524 = vmatprep.subr.bf16.mxu0 %v6018
      %7525 = vmatpush1.bf16.msra.mxu0 %v6017
      %7526 = vmatprep.subr.bf16.mxu0 %v6023
      %7527 = vmatpush1.bf16.msra.mxu0 %v6022
      %7528 = vmatprep.subr.bf16.mxu0 %v6028
      %7529 = vmatpush1.bf16.msra.mxu0 %v6027
      %7530 = vmatprep.subr.bf16.mxu0 %v6033
      %7531 = vmatpush1.bf16.msra.mxu0 %v6032
      %7532 = vmatprep.subr.bf16.mxu0 %v6038
      %7533 = vmatpush1.bf16.msra.mxu0 %v6037
      %7534 = vmatprep.subr.bf16.mxu0 %v6043
      %7535 = vmatpush1.bf16.msra.mxu0 %v6042
      %7536 = vmatprep.subr.bf16.mxu0 %v6048
      %7537 = vmatpush1.bf16.msra.mxu0 %v6047
      %7538 = vmatprep.subr.bf16.mxu0 %v6053
      %7539 = vmatpush1.bf16.msra.mxu0 %v6052
      %7540 = vmatprep.subr.bf16.mxu0 %v6058
      %7541 = vmatpush1.bf16.msra.mxu0 %v6057
      %7542 = vmatprep.mubr.bf16.mxu0 %v2966
      %7543 = vmatmul.mubr.bf16.gmra.mrb[0].mxu0 %v2965
      %v7544 = vpop.f32.mrb[0].mxu0
      %v7545 = vadd.f32 %v7504, %v7544
      %v7546 = vpop.f32.mrb[0].mxu0
      %v7547 = vadd.f32 %v7506, %v7546
      %v7548 = vpop.f32.mrb[0].mxu0
      %v7549 = vpop.f32.mrb[0].mxu0
      %7550 = vdwg.mxu0
      %7551 = vmatprep.subr.bf16.mxu0 %v6063
      %7552 = vmatpush1.bf16.msra.mxu0 %v6062
      %7553 = vmatprep.subr.bf16.mxu0 %v6068
      %7554 = vmatpush1.bf16.msra.mxu0 %v6067
      %7555 = vmatprep.subr.bf16.mxu0 %v6073
      %7556 = vmatpush1.bf16.msra.mxu0 %v6072
      %7557 = vmatprep.subr.bf16.mxu0 %v6078
      %7558 = vmatpush1.bf16.msra.mxu0 %v6077
      %7559 = vmatprep.subr.bf16.mxu0 %v6083
      %7560 = vmatpush1.bf16.msra.mxu0 %v6082
      %7561 = vmatprep.subr.bf16.mxu0 %v6088
      %7562 = vmatpush1.bf16.msra.mxu0 %v6087
      %7563 = vmatprep.subr.bf16.mxu0 %v6093
      %7564 = vmatpush1.bf16.msra.mxu0 %v6092
      %7565 = vmatprep.subr.bf16.mxu0 %v6098
      %7566 = vmatpush1.bf16.msra.mxu0 %v6097
      %7567 = vmatprep.subr.bf16.mxu0 %v6103
      %7568 = vmatpush1.bf16.msra.mxu0 %v6102
      %7569 = vmatprep.subr.bf16.mxu0 %v6108
      %7570 = vmatpush1.bf16.msra.mxu0 %v6107
      %7571 = vmatprep.subr.bf16.mxu0 %v6113
      %7572 = vmatpush1.bf16.msra.mxu0 %v6112
      %7573 = vmatprep.subr.bf16.mxu0 %v6118
      %7574 = vmatpush1.bf16.msra.mxu0 %v6117
      %7575 = vmatprep.subr.bf16.mxu0 %v6123
      %7576 = vmatpush1.bf16.msra.mxu0 %v6122
      %7577 = vmatprep.subr.bf16.mxu0 %v6128
      %7578 = vmatpush1.bf16.msra.mxu0 %v6127
      %7579 = vmatprep.subr.bf16.mxu0 %v6133
      %7580 = vmatpush1.bf16.msra.mxu0 %v6132
      %7581 = vmatprep.subr.bf16.mxu0 %v6138
      %7582 = vmatpush1.bf16.msra.mxu0 %v6137
      %7583 = vmatprep.mubr.bf16.mxu0 %v2968
      %7584 = vmatmul.mubr.bf16.gmra.mrb[0].mxu0 %v2967
      %v7585 = vpop.f32.mrb[0].mxu0
      %v7586 = vadd.f32 %v7545, %v7585
      %v7587 = vpop.f32.mrb[0].mxu0
      %v7588 = vadd.f32 %v7547, %v7587
      %v7589 = vpop.f32.mrb[0].mxu0
      %v7590 = vpop.f32.mrb[0].mxu0
      %7591 = vdwg.mxu0
      %7592 = vmatprep.subr.bf16.mxu0 %v6143
      %7593 = vmatpush1.bf16.msra.mxu0 %v6142
      %7594 = vmatprep.subr.bf16.mxu0 %v6148
      %7595 = vmatpush1.bf16.msra.mxu0 %v6147
      %7596 = vmatprep.subr.bf16.mxu0 %v6153
      %7597 = vmatpush1.bf16.msra.mxu0 %v6152
      %7598 = vmatprep.subr.bf16.mxu0 %v6158
      %7599 = vmatpush1.bf16.msra.mxu0 %v6157
      %7600 = vmatprep.subr.bf16.mxu0 %v6163
      %7601 = vmatpush1.bf16.msra.mxu0 %v6162
      %7602 = vmatprep.subr.bf16.mxu0 %v6168
      %7603 = vmatpush1.bf16.msra.mxu0 %v6167
      %7604 = vmatprep.subr.bf16.mxu0 %v6173
      %7605 = vmatpush1.bf16.msra.mxu0 %v6172
      %7606 = vmatprep.subr.bf16.mxu0 %v6178
      %7607 = vmatpush1.bf16.msra.mxu0 %v6177
      %7608 = vmatprep.subr.bf16.mxu0 %v6183
      %7609 = vmatpush1.bf16.msra.mxu0 %v6182
      %7610 = vmatprep.subr.bf16.mxu0 %v6188
      %7611 = vmatpush1.bf16.msra.mxu0 %v6187
      %7612 = vmatprep.subr.bf16.mxu0 %v6193
      %7613 = vmatpush1.bf16.msra.mxu0 %v6192
      %7614 = vmatprep.subr.bf16.mxu0 %v6198
      %7615 = vmatpush1.bf16.msra.mxu0 %v6197
      %7616 = vmatprep.subr.bf16.mxu0 %v6203
      %7617 = vmatpush1.bf16.msra.mxu0 %v6202
      %7618 = vmatprep.subr.bf16.mxu0 %v6208
      %7619 = vmatpush1.bf16.msra.mxu0 %v6207
      %7620 = vmatprep.subr.bf16.mxu0 %v6213
      %7621 = vmatpush1.bf16.msra.mxu0 %v6212
      %7622 = vmatprep.subr.bf16.mxu0 %v6218
      %7623 = vmatpush1.bf16.msra.mxu0 %v6217
      %7624 = vmatprep.mubr.bf16.mxu0 %v2970
      %7625 = vmatmul.mubr.bf16.gmra.mrb[0].mxu0 %v2969
      %v7626 = vpop.f32.mrb[0].mxu0
      %v7627 = vadd.f32 %v7586, %v7626
      %v7628 = vpop.f32.mrb[0].mxu0
      %v7629 = vadd.f32 %v7588, %v7628
      %v7630 = vpop.f32.mrb[0].mxu0
      %v7631 = vpop.f32.mrb[0].mxu0
      %7632 = vdwg.mxu0
      %7633 = vmatprep.subr.bf16.mxu0 %v6223
      %7634 = vmatpush1.bf16.msra.mxu0 %v6222
      %7635 = vmatprep.subr.bf16.mxu0 %v6228
      %7636 = vmatpush1.bf16.msra.mxu0 %v6227
      %7637 = vmatprep.subr.bf16.mxu0 %v6233
      %7638 = vmatpush1.bf16.msra.mxu0 %v6232
      %7639 = vmatprep.subr.bf16.mxu0 %v6238
      %7640 = vmatpush1.bf16.msra.mxu0 %v6237
      %7641 = vmatprep.subr.bf16.mxu0 %v6243
      %7642 = vmatpush1.bf16.msra.mxu0 %v6242
      %7643 = vmatprep.subr.bf16.mxu0 %v6248
      %7644 = vmatpush1.bf16.msra.mxu0 %v6247
      %7645 = vmatprep.subr.bf16.mxu0 %v6253
      %7646 = vmatpush1.bf16.msra.mxu0 %v6252
      %7647 = vmatprep.subr.bf16.mxu0 %v6258
      %7648 = vmatpush1.bf16.msra.mxu0 %v6257
      %7649 = vmatprep.subr.bf16.mxu0 %v6263
      %7650 = vmatpush1.bf16.msra.mxu0 %v6262
      %7651 = vmatprep.subr.bf16.mxu0 %v6268
      %7652 = vmatpush1.bf16.msra.mxu0 %v6267
      %7653 = vmatprep.subr.bf16.mxu0 %v6273
      %7654 = vmatpush1.bf16.msra.mxu0 %v6272
      %7655 = vmatprep.subr.bf16.mxu0 %v6278
      %7656 = vmatpush1.bf16.msra.mxu0 %v6277
      %7657 = vmatprep.subr.bf16.mxu0 %v6283
      %7658 = vmatpush1.bf16.msra.mxu0 %v6282
      %7659 = vmatprep.subr.bf16.mxu0 %v6288
      %7660 = vmatpush1.bf16.msra.mxu0 %v6287
      %7661 = vmatprep.subr.bf16.mxu0 %v6293
      %7662 = vmatpush1.bf16.msra.mxu0 %v6292
      %7663 = vmatprep.subr.bf16.mxu0 %v6298
      %7664 = vmatpush1.bf16.msra.mxu0 %v6297
      %7665 = vmatprep.mubr.bf16.mxu0 %v2972
      %7666 = vmatmul.mubr.bf16.gmra.mrb[0].mxu0 %v2971
      %v7667 = vpop.f32.mrb[0].mxu0
      %v7668 = vadd.f32 %v7627, %v7667
      %v7669 = vpop.f32.mrb[0].mxu0
      %v7670 = vadd.f32 %v7629, %v7669
      %v7671 = vpop.f32.mrb[0].mxu0
      %v7672 = vpop.f32.mrb[0].mxu0
      %7673 = vdwg.mxu0
      %7674 = vmatprep.subr.bf16.mxu0 %v6303
      %7675 = vmatpush1.bf16.msra.mxu0 %v6302
      %7676 = vmatprep.subr.bf16.mxu0 %v6308
      %7677 = vmatpush1.bf16.msra.mxu0 %v6307
      %7678 = vmatprep.subr.bf16.mxu0 %v6313
      %7679 = vmatpush1.bf16.msra.mxu0 %v6312
      %7680 = vmatprep.subr.bf16.mxu0 %v6318
      %7681 = vmatpush1.bf16.msra.mxu0 %v6317
      %7682 = vmatprep.subr.bf16.mxu0 %v6323
      %7683 = vmatpush1.bf16.msra.mxu0 %v6322
      %7684 = vmatprep.subr.bf16.mxu0 %v6328
      %7685 = vmatpush1.bf16.msra.mxu0 %v6327
      %7686 = vmatprep.subr.bf16.mxu0 %v6333
      %7687 = vmatpush1.bf16.msra.mxu0 %v6332
      %7688 = vmatprep.subr.bf16.mxu0 %v6338
      %7689 = vmatpush1.bf16.msra.mxu0 %v6337
      %7690 = vmatprep.subr.bf16.mxu0 %v6343
      %7691 = vmatpush1.bf16.msra.mxu0 %v6342
      %7692 = vmatprep.subr.bf16.mxu0 %v6348
      %7693 = vmatpush1.bf16.msra.mxu0 %v6347
      %7694 = vmatprep.subr.bf16.mxu0 %v6353
      %7695 = vmatpush1.bf16.msra.mxu0 %v6352
      %7696 = vmatprep.subr.bf16.mxu0 %v6358
      %7697 = vmatpush1.bf16.msra.mxu0 %v6357
      %7698 = vmatprep.subr.bf16.mxu0 %v6363
      %7699 = vmatpush1.bf16.msra.mxu0 %v6362
      %7700 = vmatprep.subr.bf16.mxu0 %v6368
      %7701 = vmatpush1.bf16.msra.mxu0 %v6367
      %7702 = vmatprep.subr.bf16.mxu0 %v6373
      %7703 = vmatpush1.bf16.msra.mxu0 %v6372
      %7704 = vmatprep.subr.bf16.mxu0 %v6378
      %7705 = vmatpush1.bf16.msra.mxu0 %v6377
      %7706 = vmatprep.mubr.bf16.mxu0 %v2974
      %7707 = vmatmul.mubr.bf16.gmra.mrb[0].mxu0 %v2973
      %v7708 = vpop.f32.mrb[0].mxu0
      %v7709 = vadd.f32 %v7668, %v7708
      %v7710 = vpop.f32.mrb[0].mxu0
      %v7711 = vadd.f32 %v7670, %v7710
      %v7712 = vpop.f32.mrb[0].mxu0
      %v7713 = vpop.f32.mrb[0].mxu0
      %7714 = vdwg.mxu0
      %7715 = vmatprep.subr.bf16.mxu0 %v6383
      %7716 = vmatpush1.bf16.msra.mxu0 %v6382
      %7717 = vmatprep.subr.bf16.mxu0 %v6388
      %7718 = vmatpush1.bf16.msra.mxu0 %v6387
      %7719 = vmatprep.subr.bf16.mxu0 %v6393
      %7720 = vmatpush1.bf16.msra.mxu0 %v6392
      %7721 = vmatprep.subr.bf16.mxu0 %v6398
      %7722 = vmatpush1.bf16.msra.mxu0 %v6397
      %7723 = vmatprep.subr.bf16.mxu0 %v6403
      %7724 = vmatpush1.bf16.msra.mxu0 %v6402
      %7725 = vmatprep.subr.bf16.mxu0 %v6408
      %7726 = vmatpush1.bf16.msra.mxu0 %v6407
      %7727 = vmatprep.subr.bf16.mxu0 %v6413
      %7728 = vmatpush1.bf16.msra.mxu0 %v6412
      %7729 = vmatprep.subr.bf16.mxu0 %v6418
      %7730 = vmatpush1.bf16.msra.mxu0 %v6417
      %7731 = vmatprep.subr.bf16.mxu0 %v6423
      %7732 = vmatpush1.bf16.msra.mxu0 %v6422
      %7733 = vmatprep.subr.bf16.mxu0 %v6428
      %7734 = vmatpush1.bf16.msra.mxu0 %v6427
      %7735 = vmatprep.subr.bf16.mxu0 %v6433
      %7736 = vmatpush1.bf16.msra.mxu0 %v6432
      %7737 = vmatprep.subr.bf16.mxu0 %v6438
      %7738 = vmatpush1.bf16.msra.mxu0 %v6437
      %7739 = vmatprep.subr.bf16.mxu0 %v6443
      %7740 = vmatpush1.bf16.msra.mxu0 %v6442
      %7741 = vmatprep.subr.bf16.mxu0 %v6448
      %7742 = vmatpush1.bf16.msra.mxu0 %v6447
      %7743 = vmatprep.subr.bf16.mxu0 %v6453
      %7744 = vmatpush1.bf16.msra.mxu0 %v6452
      %7745 = vmatprep.subr.bf16.mxu0 %v6458
      %7746 = vmatpush1.bf16.msra.mxu0 %v6457
      %7747 = vmatprep.mubr.bf16.mxu0 %v2976
      %7748 = vmatmul.mubr.bf16.gmra.mrb[0].mxu0 %v2975
      %v7749 = vpop.f32.mrb[0].mxu0
      %v7750 = vadd.f32 %v7709, %v7749
      %v7751 = vpop.f32.mrb[0].mxu0
      %v7752 = vadd.f32 %v7711, %v7751
      %v7753 = vpop.f32.mrb[0].mxu0
      %v7754 = vpop.f32.mrb[0].mxu0
      %7755 = vdwg.mxu0
      %7756 = vmatprep.subr.bf16.mxu0 0
      %7757 = vmatpush1.bf16.msra.mxu0 %v5824
      %7758 = vmatprep.subr.bf16.mxu0 0
      %7759 = vmatpush1.bf16.msra.mxu0 %v5829
      %7760 = vmatprep.subr.bf16.mxu0 0
      %7761 = vmatpush1.bf16.msra.mxu0 %v5834
      %7762 = vmatprep.subr.bf16.mxu0 0
      %7763 = vmatpush1.bf16.msra.mxu0 %v5839
      %7764 = vmatprep.subr.bf16.mxu0 0
      %7765 = vmatpush1.bf16.msra.mxu0 %v5844
      %7766 = vmatprep.subr.bf16.mxu0 0
      %7767 = vmatpush1.bf16.msra.mxu0 %v5849
      %7768 = vmatprep.subr.bf16.mxu0 0
      %7769 = vmatpush1.bf16.msra.mxu0 %v5854
      %7770 = vmatprep.subr.bf16.mxu0 0
      %7771 = vmatpush1.bf16.msra.mxu0 %v5859
      %7772 = vmatprep.subr.bf16.mxu0 0
      %7773 = vmatpush1.bf16.msra.mxu0 %v5864
      %7774 = vmatprep.subr.bf16.mxu0 0
      %7775 = vmatpush1.bf16.msra.mxu0 %v5869
      %7776 = vmatprep.subr.bf16.mxu0 0
      %7777 = vmatpush1.bf16.msra.mxu0 %v5874
      %7778 = vmatprep.subr.bf16.mxu0 0
      %7779 = vmatpush1.bf16.msra.mxu0 %v5879
      %7780 = vmatprep.subr.bf16.mxu0 0
      %7781 = vmatpush1.bf16.msra.mxu0 %v5884
      %7782 = vmatprep.subr.bf16.mxu0 0
      %7783 = vmatpush1.bf16.msra.mxu0 %v5889
      %7784 = vmatprep.subr.bf16.mxu0 0
      %7785 = vmatpush1.bf16.msra.mxu0 %v5894
      %7786 = vmatprep.subr.bf16.mxu0 0
      %7787 = vmatpush1.bf16.msra.mxu0 %v5899
      %7788 = vmatprep.mubr.bf16.mxu0 %v2962
      %7789 = vmatmul.mubr.bf16.gmra.mrb[0].mxu0 %v2961
      %v7790 = vpop.f32.mrb[0].mxu0
      %v7791 = vadd.f32 %v3766, %v7790
      %v7792 = vpop.f32.mrb[0].mxu0
      %v7793 = vpop.f32.mrb[0].mxu0
      %v7794 = vpop.f32.mrb[0].mxu0
      %7795 = vdwg.mxu0
      %7796 = vmatprep.subr.bf16.mxu0 0
      %7797 = vmatpush1.bf16.msra.mxu0 %v5904
      %7798 = vmatprep.subr.bf16.mxu0 0
      %7799 = vmatpush1.bf16.msra.mxu0 %v5909
      %7800 = vmatprep.subr.bf16.mxu0 0
      %7801 = vmatpush1.bf16.msra.mxu0 %v5914
      %7802 = vmatprep.subr.bf16.mxu0 0
      %7803 = vmatpush1.bf16.msra.mxu0 %v5919
      %7804 = vmatprep.subr.bf16.mxu0 0
      %7805 = vmatpush1.bf16.msra.mxu0 %v5924
      %7806 = vmatprep.subr.bf16.mxu0 0
      %7807 = vmatpush1.bf16.msra.mxu0 %v5929
      %7808 = vmatprep.subr.bf16.mxu0 0
      %7809 = vmatpush1.bf16.msra.mxu0 %v5934
      %7810 = vmatprep.subr.bf16.mxu0 0
      %7811 = vmatpush1.bf16.msra.mxu0 %v5939
      %7812 = vmatprep.subr.bf16.mxu0 0
      %7813 = vmatpush1.bf16.msra.mxu0 %v5944
      %7814 = vmatprep.subr.bf16.mxu0 0
      %7815 = vmatpush1.bf16.msra.mxu0 %v5949
      %7816 = vmatprep.subr.bf16.mxu0 0
      %7817 = vmatpush1.bf16.msra.mxu0 %v5954
      %7818 = vmatprep.subr.bf16.mxu0 0
      %7819 = vmatpush1.bf16.msra.mxu0 %v5959
      %7820 = vmatprep.subr.bf16.mxu0 0
      %7821 = vmatpush1.bf16.msra.mxu0 %v5964
      %7822 = vmatprep.subr.bf16.mxu0 0
      %7823 = vmatpush1.bf16.msra.mxu0 %v5969
      %7824 = vmatprep.subr.bf16.mxu0 0
      %7825 = vmatpush1.bf16.msra.mxu0 %v5974
      %7826 = vmatprep.subr.bf16.mxu0 0
      %7827 = vmatpush1.bf16.msra.mxu0 %v5979
      %7828 = vmatprep.mubr.bf16.mxu0 %v2964
      %7829 = vmatmul.mubr.bf16.gmra.mrb[0].mxu0 %v2963
      %v7830 = vpop.f32.mrb[0].mxu0
      %v7831 = vadd.f32 %v7791, %v7830
      %v7832 = vpop.f32.mrb[0].mxu0
      %v7833 = vpop.f32.mrb[0].mxu0
      %v7834 = vpop.f32.mrb[0].mxu0
      %7835 = vdwg.mxu0
      %7836 = vmatprep.subr.bf16.mxu0 0
      %7837 = vmatpush1.bf16.msra.mxu0 %v5984
      %7838 = vmatprep.subr.bf16.mxu0 0
      %7839 = vmatpush1.bf16.msra.mxu0 %v5989
      %7840 = vmatprep.subr.bf16.mxu0 0
      %7841 = vmatpush1.bf16.msra.mxu0 %v5994
      %7842 = vmatprep.subr.bf16.mxu0 0
      %7843 = vmatpush1.bf16.msra.mxu0 %v5999
      %7844 = vmatprep.subr.bf16.mxu0 0
      %7845 = vmatpush1.bf16.msra.mxu0 %v6004
      %7846 = vmatprep.subr.bf16.mxu0 0
      %7847 = vmatpush1.bf16.msra.mxu0 %v6009
      %7848 = vmatprep.subr.bf16.mxu0 0
      %7849 = vmatpush1.bf16.msra.mxu0 %v6014
      %7850 = vmatprep.subr.bf16.mxu0 0
      %7851 = vmatpush1.bf16.msra.mxu0 %v6019
      %7852 = vmatprep.subr.bf16.mxu0 0
      %7853 = vmatpush1.bf16.msra.mxu0 %v6024
      %7854 = vmatprep.subr.bf16.mxu0 0
      %7855 = vmatpush1.bf16.msra.mxu0 %v6029
      %7856 = vmatprep.subr.bf16.mxu0 0
      %7857 = vmatpush1.bf16.msra.mxu0 %v6034
      %7858 = vmatprep.subr.bf16.mxu0 0
      %7859 = vmatpush1.bf16.msra.mxu0 %v6039
      %7860 = vmatprep.subr.bf16.mxu0 0
      %7861 = vmatpush1.bf16.msra.mxu0 %v6044
      %7862 = vmatprep.subr.bf16.mxu0 0
      %7863 = vmatpush1.bf16.msra.mxu0 %v6049
      %7864 = vmatprep.subr.bf16.mxu0 0
      %7865 = vmatpush1.bf16.msra.mxu0 %v6054
      %7866 = vmatprep.subr.bf16.mxu0 0
      %7867 = vmatpush1.bf16.msra.mxu0 %v6059
      %7868 = vmatprep.mubr.bf16.mxu0 %v2966
      %7869 = vmatmul.mubr.bf16.gmra.mrb[0].mxu0 %v2965
      %v7870 = vpop.f32.mrb[0].mxu0
      %v7871 = vadd.f32 %v7831, %v7870
      %v7872 = vpop.f32.mrb[0].mxu0
      %v7873 = vpop.f32.mrb[0].mxu0
      %v7874 = vpop.f32.mrb[0].mxu0
      %7875 = vdwg.mxu0
      %7876 = vmatprep.subr.bf16.mxu0 0
      %7877 = vmatpush1.bf16.msra.mxu0 %v6064
      %7878 = vmatprep.subr.bf16.mxu0 0
      %7879 = vmatpush1.bf16.msra.mxu0 %v6069
      %7880 = vmatprep.subr.bf16.mxu0 0
      %7881 = vmatpush1.bf16.msra.mxu0 %v6074
      %7882 = vmatprep.subr.bf16.mxu0 0
      %7883 = vmatpush1.bf16.msra.mxu0 %v6079
      %7884 = vmatprep.subr.bf16.mxu0 0
      %7885 = vmatpush1.bf16.msra.mxu0 %v6084
      %7886 = vmatprep.subr.bf16.mxu0 0
      %7887 = vmatpush1.bf16.msra.mxu0 %v6089
      %7888 = vmatprep.subr.bf16.mxu0 0
      %7889 = vmatpush1.bf16.msra.mxu0 %v6094
      %7890 = vmatprep.subr.bf16.mxu0 0
      %7891 = vmatpush1.bf16.msra.mxu0 %v6099
      %7892 = vmatprep.subr.bf16.mxu0 0
      %7893 = vmatpush1.bf16.msra.mxu0 %v6104
      %7894 = vmatprep.subr.bf16.mxu0 0
      %7895 = vmatpush1.bf16.msra.mxu0 %v6109
      %7896 = vmatprep.subr.bf16.mxu0 0
      %7897 = vmatpush1.bf16.msra.mxu0 %v6114
      %7898 = vmatprep.subr.bf16.mxu0 0
      %7899 = vmatpush1.bf16.msra.mxu0 %v6119
      %7900 = vmatprep.subr.bf16.mxu0 0
      %7901 = vmatpush1.bf16.msra.mxu0 %v6124
      %7902 = vmatprep.subr.bf16.mxu0 0
      %7903 = vmatpush1.bf16.msra.mxu0 %v6129
      %7904 = vmatprep.subr.bf16.mxu0 0
      %7905 = vmatpush1.bf16.msra.mxu0 %v6134
      %7906 = vmatprep.subr.bf16.mxu0 0
      %7907 = vmatpush1.bf16.msra.mxu0 %v6139
      %7908 = vmatprep.mubr.bf16.mxu0 %v2968
      %7909 = vmatmul.mubr.bf16.gmra.mrb[0].mxu0 %v2967
      %v7910 = vpop.f32.mrb[0].mxu0
      %v7911 = vadd.f32 %v7871, %v7910
      %v7912 = vpop.f32.mrb[0].mxu0
      %v7913 = vpop.f32.mrb[0].mxu0
      %v7914 = vpop.f32.mrb[0].mxu0
      %7915 = vdwg.mxu0
      %7916 = vmatprep.subr.bf16.mxu0 0
      %7917 = vmatpush1.bf16.msra.mxu0 %v6144
      %7918 = vmatprep.subr.bf16.mxu0 0
      %7919 = vmatpush1.bf16.msra.mxu0 %v6149
      %7920 = vmatprep.subr.bf16.mxu0 0
      %7921 = vmatpush1.bf16.msra.mxu0 %v6154
      %7922 = vmatprep.subr.bf16.mxu0 0
      %7923 = vmatpush1.bf16.msra.mxu0 %v6159
      %7924 = vmatprep.subr.bf16.mxu0 0
      %7925 = vmatpush1.bf16.msra.mxu0 %v6164
      %7926 = vmatprep.subr.bf16.mxu0 0
      %7927 = vmatpush1.bf16.msra.mxu0 %v6169
      %7928 = vmatprep.subr.bf16.mxu0 0
      %7929 = vmatpush1.bf16.msra.mxu0 %v6174
      %7930 = vmatprep.subr.bf16.mxu0 0
      %7931 = vmatpush1.bf16.msra.mxu0 %v6179
      %7932 = vmatprep.subr.bf16.mxu0 0
      %7933 = vmatpush1.bf16.msra.mxu0 %v6184
      %7934 = vmatprep.subr.bf16.mxu0 0
      %7935 = vmatpush1.bf16.msra.mxu0 %v6189
      %7936 = vmatprep.subr.bf16.mxu0 0
      %7937 = vmatpush1.bf16.msra.mxu0 %v6194
      %7938 = vmatprep.subr.bf16.mxu0 0
      %7939 = vmatpush1.bf16.msra.mxu0 %v6199
      %7940 = vmatprep.subr.bf16.mxu0 0
      %7941 = vmatpush1.bf16.msra.mxu0 %v6204
      %7942 = vmatprep.subr.bf16.mxu0 0
      %7943 = vmatpush1.bf16.msra.mxu0 %v6209
      %7944 = vmatprep.subr.bf16.mxu0 0
      %7945 = vmatpush1.bf16.msra.mxu0 %v6214
      %7946 = vmatprep.subr.bf16.mxu0 0
      %7947 = vmatpush1.bf16.msra.mxu0 %v6219
      %7948 = vmatprep.mubr.bf16.mxu0 %v2970
      %7949 = vmatmul.mubr.bf16.gmra.mrb[0].mxu0 %v2969
      %v7950 = vpop.f32.mrb[0].mxu0
      %v7951 = vadd.f32 %v7911, %v7950
      %v7952 = vpop.f32.mrb[0].mxu0
      %v7953 = vpop.f32.mrb[0].mxu0
      %v7954 = vpop.f32.mrb[0].mxu0
      %7955 = vdwg.mxu0
      %7956 = vmatprep.subr.bf16.mxu0 0
      %7957 = vmatpush1.bf16.msra.mxu0 %v6224
      %7958 = vmatprep.subr.bf16.mxu0 0
      %7959 = vmatpush1.bf16.msra.mxu0 %v6229
      %7960 = vmatprep.subr.bf16.mxu0 0
      %7961 = vmatpush1.bf16.msra.mxu0 %v6234
      %7962 = vmatprep.subr.bf16.mxu0 0
      %7963 = vmatpush1.bf16.msra.mxu0 %v6239
      %7964 = vmatprep.subr.bf16.mxu0 0
      %7965 = vmatpush1.bf16.msra.mxu0 %v6244
      %7966 = vmatprep.subr.bf16.mxu0 0
      %7967 = vmatpush1.bf16.msra.mxu0 %v6249
      %7968 = vmatprep.subr.bf16.mxu0 0
      %7969 = vmatpush1.bf16.msra.mxu0 %v6254
      %7970 = vmatprep.subr.bf16.mxu0 0
      %7971 = vmatpush1.bf16.msra.mxu0 %v6259
      %7972 = vmatprep.subr.bf16.mxu0 0
      %7973 = vmatpush1.bf16.msra.mxu0 %v6264
      %7974 = vmatprep.subr.bf16.mxu0 0
      %7975 = vmatpush1.bf16.msra.mxu0 %v6269
      %7976 = vmatprep.subr.bf16.mxu0 0
      %7977 = vmatpush1.bf16.msra.mxu0 %v6274
      %7978 = vmatprep.subr.bf16.mxu0 0
      %7979 = vmatpush1.bf16.msra.mxu0 %v6279
      %7980 = vmatprep.subr.bf16.mxu0 0
      %7981 = vmatpush1.bf16.msra.mxu0 %v6284
      %7982 = vmatprep.subr.bf16.mxu0 0
      %7983 = vmatpush1.bf16.msra.mxu0 %v6289
      %7984 = vmatprep.subr.bf16.mxu0 0
      %7985 = vmatpush1.bf16.msra.mxu0 %v6294
      %7986 = vmatprep.subr.bf16.mxu0 0
      %7987 = vmatpush1.bf16.msra.mxu0 %v6299
      %7988 = vmatprep.mubr.bf16.mxu0 %v2972
      %7989 = vmatmul.mubr.bf16.gmra.mrb[0].mxu0 %v2971
      %v7990 = vpop.f32.mrb[0].mxu0
      %v7991 = vadd.f32 %v7951, %v7990
      %v7992 = vpop.f32.mrb[0].mxu0
      %v7993 = vpop.f32.mrb[0].mxu0
      %v7994 = vpop.f32.mrb[0].mxu0
      %7995 = vdwg.mxu0
      %7996 = vmatprep.subr.bf16.mxu0 0
      %7997 = vmatpush1.bf16.msra.mxu0 %v6304
      %7998 = vmatprep.subr.bf16.mxu0 0
      %7999 = vmatpush1.bf16.msra.mxu0 %v6309
      %8000 = vmatprep.subr.bf16.mxu0 0
      %8001 = vmatpush1.bf16.msra.mxu0 %v6314
      %8002 = vmatprep.subr.bf16.mxu0 0
      %8003 = vmatpush1.bf16.msra.mxu0 %v6319
      %8004 = vmatprep.subr.bf16.mxu0 0
      %8005 = vmatpush1.bf16.msra.mxu0 %v6324
      %8006 = vmatprep.subr.bf16.mxu0 0
      %8007 = vmatpush1.bf16.msra.mxu0 %v6329
      %8008 = vmatprep.subr.bf16.mxu0 0
      %8009 = vmatpush1.bf16.msra.mxu0 %v6334
      %8010 = vmatprep.subr.bf16.mxu0 0
      %8011 = vmatpush1.bf16.msra.mxu0 %v6339
      %8012 = vmatprep.subr.bf16.mxu0 0
      %8013 = vmatpush1.bf16.msra.mxu0 %v6344
      %8014 = vmatprep.subr.bf16.mxu0 0
      %8015 = vmatpush1.bf16.msra.mxu0 %v6349
      %8016 = vmatprep.subr.bf16.mxu0 0
      %8017 = vmatpush1.bf16.msra.mxu0 %v6354
      %8018 = vmatprep.subr.bf16.mxu0 0
      %8019 = vmatpush1.bf16.msra.mxu0 %v6359
      %8020 = vmatprep.subr.bf16.mxu0 0
      %8021 = vmatpush1.bf16.msra.mxu0 %v6364
      %8022 = vmatprep.subr.bf16.mxu0 0
      %8023 = vmatpush1.bf16.msra.mxu0 %v6369
      %8024 = vmatprep.subr.bf16.mxu0 0
      %8025 = vmatpush1.bf16.msra.mxu0 %v6374
      %8026 = vmatprep.subr.bf16.mxu0 0
      %8027 = vmatpush1.bf16.msra.mxu0 %v6379
      %8028 = vmatprep.mubr.bf16.mxu0 %v2974
      %8029 = vmatmul.mubr.bf16.gmra.mrb[0].mxu0 %v2973
      %v8030 = vpop.f32.mrb[0].mxu0
      %v8031 = vadd.f32 %v7991, %v8030
      %v8032 = vpop.f32.mrb[0].mxu0
      %v8033 = vpop.f32.mrb[0].mxu0
      %v8034 = vpop.f32.mrb[0].mxu0
      %8035 = vdwg.mxu0
      %8036 = vmatprep.subr.bf16.mxu0 0
      %8037 = vmatpush1.bf16.msra.mxu0 %v6384
      %8038 = vmatprep.subr.bf16.mxu0 0
      %8039 = vmatpush1.bf16.msra.mxu0 %v6389
      %8040 = vmatprep.subr.bf16.mxu0 0
      %8041 = vmatpush1.bf16.msra.mxu0 %v6394
      %8042 = vmatprep.subr.bf16.mxu0 0
      %8043 = vmatpush1.bf16.msra.mxu0 %v6399
      %8044 = vmatprep.subr.bf16.mxu0 0
      %8045 = vmatpush1.bf16.msra.mxu0 %v6404
      %8046 = vmatprep.subr.bf16.mxu0 0
      %8047 = vmatpush1.bf16.msra.mxu0 %v6409
      %8048 = vmatprep.subr.bf16.mxu0 0
      %8049 = vmatpush1.bf16.msra.mxu0 %v6414
      %8050 = vmatprep.subr.bf16.mxu0 0
      %8051 = vmatpush1.bf16.msra.mxu0 %v6419
      %8052 = vmatprep.subr.bf16.mxu0 0
      %8053 = vmatpush1.bf16.msra.mxu0 %v6424
      %8054 = vmatprep.subr.bf16.mxu0 0
      %8055 = vmatpush1.bf16.msra.mxu0 %v6429
      %8056 = vmatprep.subr.bf16.mxu0 0
      %8057 = vmatpush1.bf16.msra.mxu0 %v6434
      %8058 = vmatprep.subr.bf16.mxu0 0
      %8059 = vmatpush1.bf16.msra.mxu0 %v6439
      %8060 = vmatprep.subr.bf16.mxu0 0
      %8061 = vmatpush1.bf16.msra.mxu0 %v6444
      %8062 = vmatprep.subr.bf16.mxu0 0
      %8063 = vmatpush1.bf16.msra.mxu0 %v6449
      %8064 = vmatprep.subr.bf16.mxu0 0
      %8065 = vmatpush1.bf16.msra.mxu0 %v6454
      %8066 = vmatprep.subr.bf16.mxu0 0
      %8067 = vmatpush1.bf16.msra.mxu0 %v6459
      %8068 = vmatprep.mubr.bf16.mxu0 %v2976
      %8069 = vmatmul.mubr.bf16.gmra.mrb[0].mxu0 %v2975
      %v8070 = vpop.f32.mrb[0].mxu0
      %v8071 = vadd.f32 %v8031, %v8070
      %v8072 = vpop.f32.mrb[0].mxu0
      %v8073 = vpop.f32.mrb[0].mxu0
      %v8074 = vpop.f32.mrb[0].mxu0
      %8075 = vdwg.mxu0
      %v8076 = vadd.s32 %v1206, 128
      %v8077 = vadd.s32 %v1206, 256
      %v8078 = vadd.s32 %v1206, 384
      %v8079 = vadd.s32 %v1206, 512
      %vm8080 = vcmp.ge.s32.totalorder %v1206, 130
      %vm8081 = vcmp.ge.s32.totalorder %v8076, 130
      %vm8082 = vcmp.ge.s32.totalorder %v8077, 130
      %vm8083 = vcmp.ge.s32.totalorder %v8078, 130
      %vm8084 = vcmp.ge.s32.totalorder %v8079, 130
      %vm8085 = vcmp.le.s32.totalorder %v1206, 200
      %vm8086 = vcmp.le.s32.totalorder %v8076, 200
      %vm8087 = vcmp.le.s32.totalorder %v8077, 200
      %vm8088 = vcmp.le.s32.totalorder %v8078, 200
      %vm8089 = vcmp.le.s32.totalorder %v8079, 200
      %vm8090 = vmand %vm8080, %vm8085
      %vm8091 = vmand %vm8081, %vm8086
      %vm8092 = vmand %vm8082, %vm8087
      %vm8093 = vmand %vm8083, %vm8088
      %vm8094 = vmand %vm8084, %vm8089
      %v8095 = vxor.u32 %v7422, 2147483648
      %v8096 = vxor.u32 %v7424, 2147483648
      %v8097 = vxor.u32 %v7750, 2147483648
      %v8098 = vxor.u32 %v7752, 2147483648
      %v8099 = vxor.u32 %v8071, 2147483648
      %v8100 = vmul.f32 %v8095, 1.442695
      %v8101 = vpow.pop %v8100
      %v8102 = vmul.f32 %v8096, 1.442695
      %v8103 = vpow.pop %v8102
      %v8104 = vmul.f32 %v8097, 1.442695
      %v8105 = vpow.pop %v8104
      %v8106 = vmul.f32 %v8098, 1.442695
      %v8107 = vpow.pop %v8106
      %v8108 = vmul.f32 %v8099, 1.442695
      %v8109 = vpow.pop %v8108
      %v8110 = vadd.f32 %v8101, 1.0
      %v8111 = vadd.f32 %v8103, 1.0
      %v8112 = vadd.f32 %v8105, 1.0
      %v8113 = vadd.f32 %v8107, 1.0
      %v8114 = vadd.f32 %v8109, 1.0
      %v8115 = vrcp.pop %v8110
      %v8116 = vmul.f32 1.0, %v8115
      %v8117 = vrcp.pop %v8111
      %v8118 = vmul.f32 1.0, %v8117
      %v8119 = vrcp.pop %v8112
      %v8120 = vmul.f32 1.0, %v8119
      %v8121 = vrcp.pop %v8113
      %v8122 = vmul.f32 1.0, %v8121
      %v8123 = vrcp.pop %v8114
      %v8124 = vmul.f32 1.0, %v8123
      %v8125 = vsel %vm8090, %v8116, %v7422
      %v8126 = vsel %vm8091, %v8118, %v7424
      %v8127 = vsel %vm8092, %v8120, %v7750
      %v8128 = vsel %vm8093, %v8122, %v7752
      %v8129 = vsel %vm8094, %v8124, %v8071
      %vm8130 = vcmp.eq.s32.totalorder %v1206, 129
      %vm8131 = vcmp.eq.s32.totalorder %v8076, 129
      %vm8132 = vcmp.eq.s32.totalorder %v8077, 129
      %vm8133 = vcmp.eq.s32.totalorder %v8078, 129
      %vm8134 = vcmp.eq.s32.totalorder %v8079, 129
      %v8135 = vsel %vm8130, 0.9, 0.0
      %v8136 = vsel %vm8131, 0.9, 0.0
      %v8137 = vsel %vm8132, 0.9, 0.0
      %v8138 = vsel %vm8133, 0.9, 0.0
      %v8139 = vsel %vm8134, 0.9, 0.0
      %v8140 = vadd.f32 %v8125, %v8135
      %v8141 = vadd.f32 %v8126, %v8136
      %v8142 = vadd.f32 %v8127, %v8137
      %v8143 = vadd.f32 %v8128, %v8138
      %v8144 = vadd.f32 %v8129, %v8139
      %v8150 = vcombine.low %v8140, %v8141
      %v8151 = vcombine.low %v8142, %v8143
      %v8153 = vunpack.c.l.s4 1983009808
      %v8154 = vunpack.c.0.s8 %v8153
      %v8155 = vlaneseq
      %v8156 = vshrl.u32 %v8155, 7
      %v8157 = vsub.s32 %v8154, %v8156
      %v8158 = vrot.slane %v8150, %v8157
      %v8160 = vunpack.c.l.s4 1983009808
      %v8161 = vunpack.c.0.s8 %v8160
      %v8162 = vlaneseq
      %v8163 = vshrl.u32 %v8162, 7
      %v8164 = vsub.s32 %v8161, %v8163
      %v8165 = vrot.slane %v8151, %v8164
      %v8166 = vcombine.low %v8158, %v8165
      %v8168 = vunpack.c.l.s4 1983009808
      %v8169 = vunpack.c.0.s8 %v8168
      %v8170 = vlaneseq
      %v8171 = vshrl.u32 %v8170, 7
      %v8172 = vsub.s32 %v8169, %v8171
      %v8173 = vrot.slane %v8144, %v8172
      %8176 = vst [vmem:[%s6] sm:$0xff] %v8166
      %8177 = vst [vmem:[%s6 + $0x8] sm:$0x3] %v8173
      %v8178 = vmul.f32 %v8141, 256.0
      %v8179 = vadd.f32 %v8178, 1e-09
      %v8180 = vrcp.pop %v8179
      %v8181 = vmul.f32 1000.0, %v8180
      %v8182 = vmul.f32 %v8144, 2.2
      %8184 = vset.pattern.permute.xlu0 1
      %8185 = vperm.xlu0 %8184, %v8181
      %v8186 = vpop.permute.xlu0 %8185
      %v8188 = vadd.f32 %v8182, %v8186
      %v8189 = vmul.f32 %v8142, 0.11636364
      %v8190 = vmul.f32 %v8189, %v8188
      %v8191 = vmul.f32 %v8143, 0.11636364
      %v8192 = vmul.f32 %v8191, %v8188
      %v8193 = vmul.f32 %v8190, 2.2
      %v8194 = vmul.f32 %v8192, 2.2
      %8195 = vrot.lane.b32.xlu0 %v8181, 127
      %v8196 = vpop.permute.xlu0 %8195
      %v8198 = vadd.f32 %v8182, %v8196
      %vm8199 = vcmp.eq.s32.totalorder %v1206, 0
      %vm8200 = vcmp.eq.s32.totalorder %v1206, 1
      %vm8201 = vcmp.eq.s32.totalorder %v1206, 2
      %8203 = vset.pattern.permute.xlu0 0
      %8204 = vperm.xlu0 %8203, %v8198
      %v8205 = vpop.permute.xlu0 %8204
      %v8207 = vsel %vm8201, %v8205, 0.0
      %8209 = vset.pattern.permute.xlu0 0
      %8210 = vperm.xlu0 %8209, %v8194
      %v8211 = vpop.permute.xlu0 %8210
      %v8213 = vsel %vm8200, %v8211, %v8207
      %8215 = vset.pattern.permute.xlu0 0
      %8216 = vperm.xlu0 %8215, %v8193
      %v8217 = vpop.permute.xlu0 %8216
      %v8219 = vsel %vm8199, %v8217, %v8213
      %8221 = vset.pattern.permute.xlu0 0
      %8222 = vperm.xlu0 %8221, %v8190
      %v8223 = vpop.permute.xlu0 %8222
      %v8225 = vsub.f32 %v8190, %v8223
      %8227 = vset.pattern.permute.xlu0 0
      %8228 = vperm.xlu0 %8227, %v8192
      %v8229 = vpop.permute.xlu0 %8228
      %v8231 = vsub.f32 %v8192, %v8229
      %8232 = vset.pattern.permute.xlu0 0
      %8233 = vperm.xlu0 %8232, %v8144
      %v8234 = vpop.permute.xlu0 %8233
      %v8236 = vsub.f32 %v8144, %v8234
      %v8241 = vcombine.low %v8225, %v8231
      %v8242 = vcombine.low %v8236, %v8219
      %v8244 = vunpack.c.l.s4 1983009808
      %v8245 = vunpack.c.0.s8 %v8244
      %v8246 = vlaneseq
      %v8247 = vshrl.u32 %v8246, 7
      %v8248 = vsub.s32 %v8245, %v8247
      %v8249 = vrot.slane %v8241, %v8248
      %v8251 = vunpack.c.l.s4 1983009808
      %v8252 = vunpack.c.0.s8 %v8251
      %v8253 = vlaneseq
      %v8254 = vshrl.u32 %v8253, 7
      %v8255 = vsub.s32 %v8252, %v8254
      %v8256 = vrot.slane %v8242, %v8255
      %v8257 = vcombine.low %v8249, %v8256
      %8259 = vst [vmem:[%s7] sm:$0xff] %v8257
    $region45: #{hrnet_smplx_forward.1} parent=1 // pred_fallthru
      _
    // Predicated region
    $region46: #{hrnet_smplx_forward.1} parent=1 // pred_check
      _
    $region47: #{hrnet_smplx_forward.1} parent=1 // pred_check_branch
      %8261 = sbr.rel (0) target = $region49
    $region48: #{hrnet_smplx_forward.1} parent=1 // pred_region
      %s8263 = ssub.s32 512, 512
      %8264 = vsyncadd [#allocation5], %s8263
      %s8266 = sshll.u32 [#allocation11], 4
      %s8267 = int_to_ptr.vmem [resolvable:$true] %s8266
      %8269 = dma.vmem_to_hbm [thread:$0]  %s8267, 512, %s5, [#allocation5]
    $region49: #{hrnet_smplx_forward.1} parent=1 // pred_fallthru
      _
    // Predicated region
    $region50: #{hrnet_smplx_forward.1} parent=1 // pred_check
      _
    $region51: #{hrnet_smplx_forward.1} parent=1 // pred_check_branch
      %8271 = sbr.rel (0) target = $region53
    $region52: #{hrnet_smplx_forward.1} parent=1 // pred_region
      _
    $region53: #{hrnet_smplx_forward.1} parent=1 // pred_fallthru
      _
    // Predicated region
    $region54: #{hrnet_smplx_forward.1} parent=1 // pred_check
      _
    $region55: #{hrnet_smplx_forward.1} parent=1 // pred_check_branch
      %8273 = sbr.rel (0) target = $region57
    $region56: #{hrnet_smplx_forward.1} parent=1 // pred_region
      _
    $region57: #{hrnet_smplx_forward.1} parent=1 // pred_fallthru
      _
    // Predicated region
    $region58: #{hrnet_smplx_forward.1} parent=1 // pred_check
      _
    $region59: #{hrnet_smplx_forward.1} parent=1 // pred_check_branch
      %8275 = sbr.rel (0) target = $region61
    $region60: #{hrnet_smplx_forward.1} parent=1 // pred_region
      %8276 = dma.done [#allocation5], 512
    $region61: #{hrnet_smplx_forward.1} parent=1 // pred_fallthru
      _
    // Predicated region
    $region62: #{hrnet_smplx_forward.1} parent=1 // pred_check
      _
    $region63: #{hrnet_smplx_forward.1} parent=1 // pred_check_branch
      %8278 = sbr.rel (0) target = $region65
    $region64: #{hrnet_smplx_forward.1} parent=1 // pred_region
      _
    $region65: #{hrnet_smplx_forward.1} parent=1 // pred_fallthru
      _
    // Predicated region
    $region66: #{hrnet_smplx_forward.1} parent=1 // pred_check
      _
    $region67: #{hrnet_smplx_forward.1} parent=1 // pred_check_branch
      %8280 = sbr.rel (0) target = $region69
    $region68: #{hrnet_smplx_forward.1} parent=1 // pred_region
      _
    $region69: #{hrnet_smplx_forward.1} parent=1 // pred_fallthru
      _
    %8281 = vsyncpa [#allocation4], 1
    %8282 = vsyncpa [#allocation7], 1
    %8283 = vsyncpa [#allocation10], 1
    %8284 = vsyncpa [#allocation5], 1

</llo_original>
